<compile_context>
chip_gen: v5e
topology: v5e:2x2
jax: 0.10.0
libtpu: 0.0.40
codegen_flags: <defaults>
</compile_context>

<pallas_src>
import math

import jax
import jax.numpy as jnp
from jax.experimental import pallas as pl
from jax.experimental.pallas import tpu as pltpu

EMB_POS = 10
EMB_DIR = 4
HIDDEN = 128
POS_DIM = EMB_POS * 6 + 3   # 63
DIR_DIM = EMB_DIR * 6 + 3   # 27


# ---------------------------------------------------------------------------
# Positional-encoding helpers (wrapper side, only used by the fallback path
# and for the weight-row permutation)
# ---------------------------------------------------------------------------

def _prescale(x, L):
    """(N,3) -> (N,3L) columns [2^0*x | 2^1*x | ... | 2^(L-1)*x] (exact in f32)."""
    freqs = 2.0 ** jnp.arange(L, dtype=jnp.float32)              # (L,)
    return (x[:, None, :] * freqs[None, :, None]).reshape(x.shape[0], 3 * L)


def _grouped_pe(x, L):
    """Positional encoding in 'grouped' column order [sins | coses | x]."""
    s = _prescale(x, L)
    return jnp.concatenate([jnp.sin(s), jnp.cos(s), x], axis=1)


def _grouped_perm(L):
    """Row permutation mapping grouped embedding columns [sins|coses|x] to
    torch's interleaved column order, so grouped_emb @ W[perm] == torch_emb @ W."""
    p = [3 + 6 * j + c for j in range(L) for c in range(3)]      # sin rows
    p += [6 + 6 * j + c for j in range(L) for c in range(3)]     # cos rows
    p += [0, 1, 2]                                               # x rows
    return jnp.array(p, dtype=jnp.int32)


# ---------------------------------------------------------------------------
# In-kernel trig support probe
# ---------------------------------------------------------------------------

_TRIG_OK = None


def _trig_in_kernel_ok():
    """Check that jnp.sin/jnp.cos lower inside a Pallas TPU kernel *and* are
    accurate over the argument range used by the positional encoding."""
    global _TRIG_OK
    if _TRIG_OK is None:
        try:
            x = jnp.linspace(-2048.0, 2048.0, 8 * 128,
                             dtype=jnp.float32).reshape(8, 128)

            def probe(x_ref, s_ref, c_ref):
                s_ref[...] = jnp.sin(x_ref[...])
                c_ref[...] = jnp.cos(x_ref[...])

            s, c = pl.pallas_call(
                probe,
                out_shape=(jax.ShapeDtypeStruct((8, 128), jnp.float32),
                           jax.ShapeDtypeStruct((8, 128), jnp.float32)),
            )(x)
            err = jnp.maximum(jnp.max(jnp.abs(s - jnp.sin(x))),
                              jnp.max(jnp.abs(c - jnp.cos(x))))
            _TRIG_OK = bool(err < 1e-3)
        except Exception:
            _TRIG_OK = False
    return _TRIG_OK


# ---------------------------------------------------------------------------
# Kernel
# ---------------------------------------------------------------------------

def _nerf_kernel(in_x_ref, in_d_ref,
                 w1e_ref, wstack_ref, bstack_ref,
                 w23h_ref, w23s_ref, bsig_ref,
                 w3h_ref, w3e_ref, b3_ref,
                 w4_ref, b4_ref,
                 out_ref, *scratch):
    bf16 = jnp.bfloat16
    f32 = jnp.float32
    fuse_pe = bool(scratch)            # trace-time switch (scratch only in fused mode)

    def dot(a, w):                     # MXU matmul, f32 accumulation
        return jnp.dot(a, w, preferred_element_type=f32)

    def ep(acc, b):                    # bias + ReLU in f32, carry activation in bf16
        return jnp.maximum(acc + b, 0.0).astype(bf16)

    def build_emb(raw_ref, emb_s, L, dim):
        """Positional encoding fully in-kernel, grouped order [sins|coses|x].

        2^j * x is exact in f32 (power-of-two scale); sin/cos run once each
        over the dense (TN,3L) slab on the EUP; assembly uses masked column
        stores into VMEM scratch (lane-prefix value slice only)."""
        x3 = raw_ref[...]                                       # (TN, 3) f32
        for j in range(L):
            emb_s[:, 3 * j:3 * j + 3] = x3 * (2.0 ** j)
        s = emb_s[...][:, 0:3 * L]                              # (TN, 3L) f32
        emb_s[:, 0:3 * L] = jnp.sin(s)
        emb_s[:, 3 * L:6 * L] = jnp.cos(s)
        emb_s[:, 6 * L:dim] = x3
        return emb_s[...].astype(bf16)                          # (TN, dim) bf16

    if fuse_pe:
        ex = build_emb(in_x_ref, scratch[0], EMB_POS, POS_DIM)  # (TN, 63) bf16
    else:
        ex = in_x_ref[...]                                      # (TN, 63) bf16

    bst = bstack_ref[...]                                       # (8, 128) f32

    # block1 L0 and block2's emb_x contribution share the LHS `ex`: fuse them
    # into one full-width (63,256) MXU pass (256-wide MXU on v6e/v7x).
    e1 = dot(ex, w1e_ref[...])                                  # (TN, 256) f32
    h = ep(e1[:, :HIDDEN], bst[0:1, :])                         # block1 L0
    e2 = e1[:, HIDDEN:]                                         # held until block2 (f32)

    for k in range(3):                                          # block1 L1..L3
        h = ep(dot(h, wstack_ref[k]), bst[k + 1:k + 2, :])

    # block2 — first layer consumes cat(h, emb_x) via row-split weights.
    t = ep(dot(h, wstack_ref[3]) + e2, bst[4:5, :])
    t = ep(dot(t, wstack_ref[4]), bst[5:6, :])
    t = ep(dot(t, wstack_ref[5]), bst[6:7, :])

    # block2 last layer, split: lane-dense (128,128) matmul for h2 (no ReLU);
    # sigma column via VPU multiply + lane reduce (keeps the MXU output lane-dense).
    h2 = (dot(t, w23h_ref[...]) + bst[7:8, :]).astype(bf16)     # (TN, 128)
    sig = jnp.sum(t.astype(f32) * w23s_ref[...], axis=-1, keepdims=True)
    sig = jnp.maximum(sig + bsig_ref[...], 0.0)                 # (TN, 1) f32

    # emb_d is only needed now — build it late to keep its live range short.
    if fuse_pe:
        ed = build_emb(in_d_ref, scratch[1], EMB_DIR, DIR_DIM)  # (TN, 27) bf16
    else:
        ed = in_d_ref[...]                                      # (TN, 27) bf16

    # block3 — cat(h2, emb_d) via row-split weights.
    h3 = ep(dot(h2, w3h_ref[...]) + dot(ed, w3e_ref[...]), b3_ref[...])

    # block4
    c = jax.nn.sigmoid(dot(h3, w4_ref[...]) + b4_ref[...])      # (TN, 3) f32

    # Packed output: cols 0-2 = c, col 3 = sigma.
    out_ref[:, 0:3] = c
    out_ref[:, 3:4] = sig


# ---------------------------------------------------------------------------
# Wrapper
# ---------------------------------------------------------------------------

def nerf_forward(o, d, kparams, tile_n=2048, fuse_pe=None):
    """Run the NeRF MLP.

    tile_n: rays per grid step.  2048 is a safe default on v5e/v6e/v7x; sweep
    up to 4096 on v5e/v6e (128 MiB VMEM).  On v7x (64 MiB per-TC VMEM) keep
    tile_n <= 2048 unless the measured footprint fits the 48 MiB cap, and keep
    the grid length even so both TensorCores get work."""
    N = o.shape[0]
    if fuse_pe is None:
        fuse_pe = _trig_in_kernel_ok()

    tile_n = int(min(tile_n, pl.cdiv(N, 8) * 8))
    assert tile_n % 8 == 0
    pad = (-N) % tile_n
    if pad:
        o = jnp.concatenate([o, jnp.zeros((pad, 3), o.dtype)], axis=0)
        d = jnp.concatenate([d, jnp.zeros((pad, 3), d.dtype)], axis=0)
    Np = N + pad

    if fuse_pe:
        # Raw (N,3) inputs: positional encoding runs in-kernel, so the wrapper
        # does no extra HBM round-trip and per-step input DMA is 24 B/ray.
        in_x, in_d = o, d
        scratch = [pltpu.VMEM((tile_n, POS_DIM), jnp.float32),
                   pltpu.VMEM((tile_n, DIR_DIM), jnp.float32)]
    else:
        # TODO(synk): fallback when this Mosaic build cannot lower in-kernel
        # sin/cos — positional encoding stays in the XLA wrapper (bf16).
        in_x = _grouped_pe(o, EMB_POS).astype(jnp.bfloat16)     # (Np, 63)
        in_d = _grouped_pe(d, EMB_DIR).astype(jnp.bfloat16)     # (Np, 27)
        scratch = []

    row = lambda a: pl.BlockSpec((tile_n, a.shape[1]), lambda i: (i, 0))
    whole = lambda a: pl.BlockSpec(a.shape, lambda i, nd=a.ndim: (0,) * nd)
    in_specs = [row(in_x), row(in_d)] + [whole(p) for p in kparams]

    grid_spec = pltpu.PrefetchScalarGridSpec(
        num_scalar_prefetch=0,
        grid=(Np // tile_n,),
        in_specs=in_specs,
        out_specs=pl.BlockSpec((tile_n, 4), lambda i: (i, 0)),
        scratch_shapes=scratch)

    # Advisory cost estimate for XLA's scheduler.
    flops_row = 2 * (POS_DIM * 2 * HIDDEN          # fused (63,256) first matmul
                     + 7 * HIDDEN * HIDDEN         # 6 hidden layers + w23h
                     + HIDDEN                      # sigma reduce
                     + HIDDEN * (HIDDEN // 2)      # w3h
                     + DIR_DIM * (HIDDEN // 2)     # w3e
                     + (HIDDEN // 2) * 3)          # w4
    transc_row = (6 * (EMB_POS + EMB_DIR) + 3) if fuse_pe else 3
    bytes_io = (int(in_x.size) * in_x.dtype.itemsize
                + int(in_d.size) * in_d.dtype.itemsize
                + Np * 4 * 4
                + sum(int(p.size) * p.dtype.itemsize for p in kparams))

    # VMEM cap: always set (v5e's default scoped cap is only 16 MiB) but never
    # above 48 MiB so the same config leaves headroom on v7x's 64 MiB VMEM.
    vmem_cap = min(48 * 1024 * 1024, 24 * 1024 * 1024 + tile_n * 8 * 1024)

    out = pl.pallas_call(
        _nerf_kernel,
        out_shape=jax.ShapeDtypeStruct((Np, 4), jnp.float32),
        grid_spec=grid_spec,
        compiler_params=pltpu.CompilerParams(
            dimension_semantics=("parallel",),
            vmem_limit_bytes=vmem_cap),
        cost_estimate=pl.CostEstimate(
            flops=Np * flops_row,
            transcendentals=Np * transc_row,
            bytes_accessed=bytes_io),
    )(in_x, in_d, *kparams)

    return out[:N, 0:3], out[:N, 3]


# ---------------------------------------------------------------------------
# Parameters (torch-equivalent init + kernel packing)
# ---------------------------------------------------------------------------

def init_linear(key, fan_in, fan_out):
    # mimic torch nn.Linear default init: U(-1/sqrt(fan_in), 1/sqrt(fan_in))
    kw, kb = jax.random.split(key)
    bound = 1.0 / math.sqrt(fan_in)
    W = jax.random.uniform(kw, (fan_in, fan_out), jnp.float32, -bound, bound)
    b = jax.random.uniform(kb, (1, fan_out), jnp.float32, -bound, bound)
    return W, b


def init_params(key):
    ks = jax.random.split(key, 10)
    return dict(
        b1=[init_linear(ks[0], POS_DIM, HIDDEN),
            init_linear(ks[1], HIDDEN, HIDDEN),
            init_linear(ks[2], HIDDEN, HIDDEN),
            init_linear(ks[3], HIDDEN, HIDDEN)],
        b2=[init_linear(ks[4], HIDDEN + POS_DIM, HIDDEN),
            init_linear(ks[5], HIDDEN, HIDDEN),
            init_linear(ks[6], HIDDEN, HIDDEN),
            init_linear(ks[7], HIDDEN, HIDDEN + 1)],
        b3=init_linear(ks[8], HIDDEN + DIR_DIM, HIDDEN // 2),
        b4=init_linear(ks[9], HIDDEN // 2, 3),
    )


def prepare_params(full):
    """Pack torch-layout f32 params into the kernel's bf16/permuted layout."""
    (W10, b10), (W11, b11), (W12, b12), (W13, b13) = full["b1"]
    (W20, b20), (W21, b21), (W22, b22), (W23, b23) = full["b2"]
    W30, b30 = full["b3"]
    W40, b40 = full["b4"]
    pp = _grouped_perm(EMB_POS)
    pd = _grouped_perm(EMB_DIR)
    bf = jnp.bfloat16
    f32 = jnp.float32

    # Fused first-layer weight: [W10 | W20_emb_part] -> (63,256), grouped rows.
    w1e = jnp.concatenate([W10, W20[HIDDEN:]], axis=1)[pp].astype(bf)
    wstack = jnp.stack([W11, W12, W13, W20[:HIDDEN], W21, W22]).astype(bf)  # (6,128,128)
    bstack = jnp.concatenate(
        [b10, b11, b12, b13, b20, b21, b22, b23[:, :HIDDEN]],
        axis=0).astype(f32)                                                 # (8,128)

    return (w1e,                                   # (63,256)  bf16
            wstack,                                # (6,128,128) bf16
            bstack,                                # (8,128)   f32
            W23[:, :HIDDEN].astype(bf),            # (128,128) bf16 lane-dense h2 matmul
            W23[:, HIDDEN:HIDDEN + 1].T.astype(f32),   # (1,128) f32 sigma weight row
            b23[:, HIDDEN:HIDDEN + 1].astype(f32),     # (1,1)   f32 sigma bias
            W30[:HIDDEN].astype(bf),               # (128,64)  bf16
            W30[HIDDEN:][pd].astype(bf),           # (27,64)   bf16 grouped rows
            b30.astype(f32),                       # (1,64)    f32
            W40.astype(bf),                        # (64,3)    bf16
            b40.astype(f32))                       # (1,3)     f32


# ---------------------------------------------------------------------------
# Pure-JAX reference (straight port of NerfModel.forward, all f32)
# ---------------------------------------------------------------------------

def reference_forward(o, d, full):
    def pe(x, L):
        out = [x]
        for j in range(L):
            out.append(jnp.sin(2.0 ** j * x))
            out.append(jnp.cos(2.0 ** j * x))
        return jnp.concatenate(out, axis=1)

    emb_x = pe(o, EMB_POS)
    emb_d = pe(d, EMB_DIR)
    h = emb_x
    for W, b in full["b1"]:
        h = jnp.maximum(h @ W + b, 0.0)
    W, b = full["b2"][0]
    t = jnp.maximum(jnp.concatenate([h, emb_x], axis=1) @ W + b, 0.0)
    for W, b in full["b2"][1:3]:
        t = jnp.maximum(t @ W + b, 0.0)
    W, b = full["b2"][3]
    tmp = t @ W + b
    h2, sigma = tmp[:, :-1], jnp.maximum(tmp[:, -1], 0.0)
    W, b = full["b3"]
    h3 = jnp.maximum(jnp.concatenate([h2, emb_d], axis=1) @ W + b, 0.0)
    W, b = full["b4"]
    c = jax.nn.sigmoid(h3 @ W + b)
    return c, sigma


if __name__ == "__main__":
    key = jax.random.PRNGKey(0)
    k_o, k_d, k_p = jax.random.split(key, 3)

    N = 1024  # rays; tile_n=512 -> grid of 2 (even, so v7x's two TCs both get work)
    o = jax.random.normal(k_o, (N, 3), jnp.float32)   # positions
    d = jax.random.normal(k_d, (N, 3), jnp.float32)   # view directions

    full = init_params(k_p)
    kparams = prepare_params(full)

    c, sigma = nerf_forward(o, d, kparams, tile_n=512)
    jax.block_until_ready((c, sigma))

    c_ref, sigma_ref = reference_forward(o, d, full)
    assert c.shape == (N, 3) and sigma.shape == (N,)
    # bf16 MXU matmuls with f32 accumulation -> ~1e-2 level agreement vs f32 ref.
    assert jnp.allclose(c, c_ref, atol=3e-2, rtol=3e-2)
    assert jnp.allclose(sigma, sigma_ref, atol=3e-2, rtol=3e-2)

    print("KERNEL_OK")
</pallas_src>

<mosaic_0001>
module attributes {stable_mosaic.version = 11 : i64} {
  func.func @probe(%arg0: memref<8x128xf32, #tpu.memory_space<vmem>>, %arg1: memref<8x128xf32, #tpu.memory_space<vmem>>, %arg2: memref<8x128xf32, #tpu.memory_space<vmem>>) attributes {dimension_semantics = [], scalar_prefetch = 0 : i64, scratch_operands = 0 : i64, tpu.core_type = #tpu.core_type<tc>} {
    %c0 = arith.constant 0 : index
    %c0_0 = arith.constant 0 : index
    %0 = vector.load %arg0[%c0, %c0_0] : memref<8x128xf32, #tpu.memory_space<vmem>>, vector<8x128xf32>
    %1 = math.sin %0 : vector<8x128xf32>
    %c0_1 = arith.constant 0 : index
    %c0_2 = arith.constant 0 : index
    %2 = vector.load %arg1[%c0_1, %c0_2] : memref<8x128xf32, #tpu.memory_space<vmem>>, vector<8x128xf32>
    tpu.vector_store %arg1[%c0_1, %c0_2], %1 {strides = array<i32>} : memref<8x128xf32, #tpu.memory_space<vmem>>, vector<8x128xf32>,
    %c0_3 = arith.constant 0 : index
    %c0_4 = arith.constant 0 : index
    %3 = vector.load %arg0[%c0_3, %c0_4] : memref<8x128xf32, #tpu.memory_space<vmem>>, vector<8x128xf32>
    %4 = math.cos %3 : vector<8x128xf32>
    %c0_5 = arith.constant 0 : index
    %c0_6 = arith.constant 0 : index
    %5 = vector.load %arg2[%c0_5, %c0_6] : memref<8x128xf32, #tpu.memory_space<vmem>>, vector<8x128xf32>
    tpu.vector_store %arg2[%c0_5, %c0_6], %4 {strides = array<i32>} : memref<8x128xf32, #tpu.memory_space<vmem>>, vector<8x128xf32>,
    return
  }
}

module attributes {stable_mosaic.version = 11 : i64} {
  func.func @_nerf_kernel(%arg0: i32, %arg1: memref<512x63xbf16, #tpu.memory_space<vmem>>, %arg2: memref<512x27xbf16, #tpu.memory_space<vmem>>, %arg3: memref<63x256xbf16, #tpu.memory_space<vmem>>, %arg4: memref<6x128x128xbf16, #tpu.memory_space<vmem>>, %arg5: memref<8x128xf32, #tpu.memory_space<vmem>>, %arg6: memref<128x128xbf16, #tpu.memory_space<vmem>>, %arg7: memref<1x128xf32, #tpu.memory_space<vmem>>, %arg8: memref<1x1xf32, #tpu.memory_space<vmem>>, %arg9: memref<128x64xbf16, #tpu.memory_space<vmem>>, %arg10: memref<27x64xbf16, #tpu.memory_space<vmem>>, %arg11: memref<1x64xf32, #tpu.memory_space<vmem>>, %arg12: memref<64x3xbf16, #tpu.memory_space<vmem>>, %arg13: memref<1x3xf32, #tpu.memory_space<vmem>>, %arg14: memref<512x4xf32, #tpu.memory_space<vmem>>) attributes {dimension_semantics = [#tpu.dimension_semantics<parallel>], iteration_bounds = array<i64: 2>, scalar_prefetch = 0 : i64, scratch_operands = 0 : i64, tpu.core_type = #tpu.core_type<tc>, window_params = [{transform_indices = @transform_0, window_bounds = array<i64: 512, 63>}, {transform_indices = @transform_1, window_bounds = array<i64: 512, 27>}, {pipeline_mode = #tpu.pipeline_mode<synchronous>, transform_indices = @transform_2, window_bounds = array<i64: 63, 256>}, {pipeline_mode = #tpu.pipeline_mode<synchronous>, transform_indices = @transform_3, window_bounds = array<i64: 6, 128, 128>}, {pipeline_mode = #tpu.pipeline_mode<synchronous>, transform_indices = @transform_4, window_bounds = array<i64: 8, 128>}, {pipeline_mode = #tpu.pipeline_mode<synchronous>, transform_indices = @transform_5, window_bounds = array<i64: 128, 128>}, {pipeline_mode = #tpu.pipeline_mode<synchronous>, transform_indices = @transform_6, window_bounds = array<i64: 1, 128>}, {pipeline_mode = #tpu.pipeline_mode<synchronous>, transform_indices = @transform_7, window_bounds = array<i64: 1, 1>}, {pipeline_mode = #tpu.pipeline_mode<synchronous>, transform_indices = @transform_8, window_bounds = array<i64: 128, 64>}, {pipeline_mode = #tpu.pipeline_mode<synchronous>, transform_indices = @transform_9, window_bounds = array<i64: 27, 64>}, {pipeline_mode = #tpu.pipeline_mode<synchronous>, transform_indices = @transform_10, window_bounds = array<i64: 1, 64>}, {pipeline_mode = #tpu.pipeline_mode<synchronous>, transform_indices = @transform_11, window_bounds = array<i64: 64, 3>}, {pipeline_mode = #tpu.pipeline_mode<synchronous>, transform_indices = @transform_12, window_bounds = array<i64: 1, 3>}, {transform_indices = @transform_13, window_bounds = array<i64: 512, 4>}]} {
    %c0 = arith.constant 0 : index
    %c0_0 = arith.constant 0 : index
    %0 = vector.load %arg1[%c0, %c0_0] : memref<512x63xbf16, #tpu.memory_space<vmem>>, vector<512x63xbf16>
    %c0_1 = arith.constant 0 : index
    %c0_2 = arith.constant 0 : index
    %1 = vector.load %arg5[%c0_1, %c0_2] : memref<8x128xf32, #tpu.memory_space<vmem>>, vector<8x128xf32>
    %c0_3 = arith.constant 0 : index
    %c0_4 = arith.constant 0 : index
    %2 = vector.load %arg3[%c0_3, %c0_4] : memref<63x256xbf16, #tpu.memory_space<vmem>>, vector<63x256xbf16>
    %cst = arith.constant dense<0.000000e+00> : vector<512x256xf32>
    %3 = tpu.matmul %0, %2, %cst {dimension_numbers = #tpu.dot_dimension_numbers<[1], [0], [0], [1], [0, 0, 1, 1], [], []>} : vector<512x63xbf16>, vector<63x256xbf16>, vector<512x256xf32> -> vector<512x256xf32>
    %4 = vector.extract_strided_slice %3 {offsets = [0, 0], sizes = [512, 128], strides = [1, 1]} : vector<512x256xf32> to vector<512x128xf32>
    %5 = vector.extract_strided_slice %1 {offsets = [0, 0], sizes = [1, 128], strides = [1, 1]} : vector<8x128xf32> to vector<1x128xf32>
    %6 = vector.broadcast %5 : vector<1x128xf32> to vector<512x128xf32>
    %7 = arith.addf %4, %6 : vector<512x128xf32>
    %cst_5 = arith.constant 0.000000e+00 : f32
    %8 = vector.broadcast %cst_5 : f32 to vector<512x128xf32>
    %9 = arith.maximumf %7, %8 : vector<512x128xf32>
    %10 = arith.truncf %9 : vector<512x128xf32> to vector<512x128xbf16>
    %11 = vector.extract_strided_slice %3 {offsets = [0, 128], sizes = [512, 128], strides = [1, 1]} : vector<512x256xf32> to vector<512x128xf32>
    %c0_6 = arith.constant 0 : index
    %c0_7 = arith.constant 0 : index
    %c0_8 = arith.constant 0 : index
    %12 = vector.load %arg4[%c0_6, %c0_7, %c0_8] : memref<6x128x128xbf16, #tpu.memory_space<vmem>>, vector<1x128x128xbf16>
    %13 = vector.shape_cast %12 : vector<1x128x128xbf16> to vector<128x128xbf16>
    %cst_9 = arith.constant dense<0.000000e+00> : vector<512x128xf32>
    %14 = tpu.matmul %10, %13, %cst_9 {dimension_numbers = #tpu.dot_dimension_numbers<[1], [0], [0], [1], [0, 0, 1, 1], [], []>} : vector<512x128xbf16>, vector<128x128xbf16>, vector<512x128xf32> -> vector<512x128xf32>
    %15 = vector.extract_strided_slice %1 {offsets = [1, 0], sizes = [1, 128], strides = [1, 1]} : vector<8x128xf32> to vector<1x128xf32>
    %16 = vector.broadcast %15 : vector<1x128xf32> to vector<512x128xf32>
    %17 = arith.addf %14, %16 : vector<512x128xf32>
    %cst_10 = arith.constant 0.000000e+00 : f32
    %18 = vector.broadcast %cst_10 : f32 to vector<512x128xf32>
    %19 = arith.maximumf %17, %18 : vector<512x128xf32>
    %20 = arith.truncf %19 : vector<512x128xf32> to vector<512x128xbf16>
    %c1 = arith.constant 1 : index
    %c0_11 = arith.constant 0 : index
    %c0_12 = arith.constant 0 : index
    %21 = vector.load %arg4[%c1, %c0_11, %c0_12] : memref<6x128x128xbf16, #tpu.memory_space<vmem>>, vector<1x128x128xbf16>
    %22 = vector.shape_cast %21 : vector<1x128x128xbf16> to vector<128x128xbf16>
    %cst_13 = arith.constant dense<0.000000e+00> : vector<512x128xf32>
    %23 = tpu.matmul %20, %22, %cst_13 {dimension_numbers = #tpu.dot_dimension_numbers<[1], [0], [0], [1], [0, 0, 1, 1], [], []>} : vector<512x128xbf16>, vector<128x128xbf16>, vector<512x128xf32> -> vector<512x128xf32>
    %24 = vector.extract_strided_slice %1 {offsets = [2, 0], sizes = [1, 128], strides = [1, 1]} : vector<8x128xf32> to vector<1x128xf32>
    %25 = vector.broadcast %24 : vector<1x128xf32> to vector<512x128xf32>
    %26 = arith.addf %23, %25 : vector<512x128xf32>
    %cst_14 = arith.constant 0.000000e+00 : f32
    %27 = vector.broadcast %cst_14 : f32 to vector<512x128xf32>
    %28 = arith.maximumf %26, %27 : vector<512x128xf32>
    %29 = arith.truncf %28 : vector<512x128xf32> to vector<512x128xbf16>
    %c2 = arith.constant 2 : index
    %c0_15 = arith.constant 0 : index
    %c0_16 = arith.constant 0 : index
    %30 = vector.load %arg4[%c2, %c0_15, %c0_16] : memref<6x128x128xbf16, #tpu.memory_space<vmem>>, vector<1x128x128xbf16>
    %31 = vector.shape_cast %30 : vector<1x128x128xbf16> to vector<128x128xbf16>
    %cst_17 = arith.constant dense<0.000000e+00> : vector<512x128xf32>
    %32 = tpu.matmul %29, %31, %cst_17 {dimension_numbers = #tpu.dot_dimension_numbers<[1], [0], [0], [1], [0, 0, 1, 1], [], []>} : vector<512x128xbf16>, vector<128x128xbf16>, vector<512x128xf32> -> vector<512x128xf32>
    %33 = vector.extract_strided_slice %1 {offsets = [3, 0], sizes = [1, 128], strides = [1, 1]} : vector<8x128xf32> to vector<1x128xf32>
    %34 = vector.broadcast %33 : vector<1x128xf32> to vector<512x128xf32>
    %35 = arith.addf %32, %34 : vector<512x128xf32>
    %cst_18 = arith.constant 0.000000e+00 : f32
    %36 = vector.broadcast %cst_18 : f32 to vector<512x128xf32>
    %37 = arith.maximumf %35, %36 : vector<512x128xf32>
    %38 = arith.truncf %37 : vector<512x128xf32> to vector<512x128xbf16>
    %c3 = arith.constant 3 : index
    %c0_19 = arith.constant 0 : index
    %c0_20 = arith.constant 0 : index
    %39 = vector.load %arg4[%c3, %c0_19, %c0_20] : memref<6x128x128xbf16, #tpu.memory_space<vmem>>, vector<1x128x128xbf16>
    %40 = vector.shape_cast %39 : vector<1x128x128xbf16> to vector<128x128xbf16>
    %cst_21 = arith.constant dense<0.000000e+00> : vector<512x128xf32>
    %41 = tpu.matmul %38, %40, %cst_21 {dimension_numbers = #tpu.dot_dimension_numbers<[1], [0], [0], [1], [0, 0, 1, 1], [], []>} : vector<512x128xbf16>, vector<128x128xbf16>, vector<512x128xf32> -> vector<512x128xf32>
    %42 = arith.addf %41, %11 : vector<512x128xf32>
    %43 = vector.extract_strided_slice %1 {offsets = [4, 0], sizes = [1, 128], strides = [1, 1]} : vector<8x128xf32> to vector<1x128xf32>
    %44 = vector.broadcast %43 : vector<1x128xf32> to vector<512x128xf32>
    %45 = arith.addf %42, %44 : vector<512x128xf32>
    %cst_22 = arith.constant 0.000000e+00 : f32
    %46 = vector.broadcast %cst_22 : f32 to vector<512x128xf32>
    %47 = arith.maximumf %45, %46 : vector<512x128xf32>
    %48 = arith.truncf %47 : vector<512x128xf32> to vector<512x128xbf16>
    %c4 = arith.constant 4 : index
    %c0_23 = arith.constant 0 : index
    %c0_24 = arith.constant 0 : index
    %49 = vector.load %arg4[%c4, %c0_23, %c0_24] : memref<6x128x128xbf16, #tpu.memory_space<vmem>>, vector<1x128x128xbf16>
    %50 = vector.shape_cast %49 : vector<1x128x128xbf16> to vector<128x128xbf16>
    %cst_25 = arith.constant dense<0.000000e+00> : vector<512x128xf32>
    %51 = tpu.matmul %48, %50, %cst_25 {dimension_numbers = #tpu.dot_dimension_numbers<[1], [0], [0], [1], [0, 0, 1, 1], [], []>} : vector<512x128xbf16>, vector<128x128xbf16>, vector<512x128xf32> -> vector<512x128xf32>
    %52 = vector.extract_strided_slice %1 {offsets = [5, 0], sizes = [1, 128], strides = [1, 1]} : vector<8x128xf32> to vector<1x128xf32>
    %53 = vector.broadcast %52 : vector<1x128xf32> to vector<512x128xf32>
    %54 = arith.addf %51, %53 : vector<512x128xf32>
    %cst_26 = arith.constant 0.000000e+00 : f32
    %55 = vector.broadcast %cst_26 : f32 to vector<512x128xf32>
    %56 = arith.maximumf %54, %55 : vector<512x128xf32>
    %57 = arith.truncf %56 : vector<512x128xf32> to vector<512x128xbf16>
    %c5 = arith.constant 5 : index
    %c0_27 = arith.constant 0 : index
    %c0_28 = arith.constant 0 : index
    %58 = vector.load %arg4[%c5, %c0_27, %c0_28] : memref<6x128x128xbf16, #tpu.memory_space<vmem>>, vector<1x128x128xbf16>
    %59 = vector.shape_cast %58 : vector<1x128x128xbf16> to vector<128x128xbf16>
    %cst_29 = arith.constant dense<0.000000e+00> : vector<512x128xf32>
    %60 = tpu.matmul %57, %59, %cst_29 {dimension_numbers = #tpu.dot_dimension_numbers<[1], [0], [0], [1], [0, 0, 1, 1], [], []>} : vector<512x128xbf16>, vector<128x128xbf16>, vector<512x128xf32> -> vector<512x128xf32>
    %61 = vector.extract_strided_slice %1 {offsets = [6, 0], sizes = [1, 128], strides = [1, 1]} : vector<8x128xf32> to vector<1x128xf32>
    %62 = vector.broadcast %61 : vector<1x128xf32> to vector<512x128xf32>
    %63 = arith.addf %60, %62 : vector<512x128xf32>
    %cst_30 = arith.constant 0.000000e+00 : f32
    %64 = vector.broadcast %cst_30 : f32 to vector<512x128xf32>
    %65 = arith.maximumf %63, %64 : vector<512x128xf32>
    %66 = arith.truncf %65 : vector<512x128xf32> to vector<512x128xbf16>
    %c0_31 = arith.constant 0 : index
    %c0_32 = arith.constant 0 : index
    %67 = vector.load %arg6[%c0_31, %c0_32] : memref<128x128xbf16, #tpu.memory_space<vmem>>, vector<128x128xbf16>
    %cst_33 = arith.constant dense<0.000000e+00> : vector<512x128xf32>
    %68 = tpu.matmul %66, %67, %cst_33 {dimension_numbers = #tpu.dot_dimension_numbers<[1], [0], [0], [1], [0, 0, 1, 1], [], []>} : vector<512x128xbf16>, vector<128x128xbf16>, vector<512x128xf32> -> vector<512x128xf32>
    %69 = vector.extract_strided_slice %1 {offsets = [7, 0], sizes = [1, 128], strides = [1, 1]} : vector<8x128xf32> to vector<1x128xf32>
    %70 = vector.broadcast %69 : vector<1x128xf32> to vector<512x128xf32>
    %71 = arith.addf %68, %70 : vector<512x128xf32>
    %72 = arith.truncf %71 : vector<512x128xf32> to vector<512x128xbf16>
    %73 = arith.extf %66 : vector<512x128xbf16> to vector<512x128xf32>
    %c0_34 = arith.constant 0 : index
    %c0_35 = arith.constant 0 : index
    %74 = vector.load %arg7[%c0_34, %c0_35] : memref<1x128xf32, #tpu.memory_space<vmem>>, vector<1x128xf32>
    %75 = vector.broadcast %74 : vector<1x128xf32> to vector<512x128xf32>
    %76 = arith.mulf %73, %75 : vector<512x128xf32>
    %cst_36 = arith.constant dense<0.000000e+00> : vector<512xf32>
    %77 = vector.multi_reduction <add>, %76, %cst_36 [1] : vector<512x128xf32> to vector<512xf32>
    %78 = vector.shape_cast %77 : vector<512xf32> to vector<512x1xf32>
    %c0_37 = arith.constant 0 : index
    %c0_38 = arith.constant 0 : index
    %79 = vector.load %arg8[%c0_37, %c0_38] : memref<1x1xf32, #tpu.memory_space<vmem>>, vector<1x1xf32>
    %80 = vector.broadcast %79 : vector<1x1xf32> to vector<512x1xf32>
    %81 = arith.addf %78, %80 : vector<512x1xf32>
    %cst_39 = arith.constant 0.000000e+00 : f32
    %82 = vector.broadcast %cst_39 : f32 to vector<512x1xf32>
    %83 = arith.maximumf %81, %82 : vector<512x1xf32>
    %c0_40 = arith.constant 0 : index
    %c0_41 = arith.constant 0 : index
    %84 = vector.load %arg2[%c0_40, %c0_41] : memref<512x27xbf16, #tpu.memory_space<vmem>>, vector<512x27xbf16>
    %c0_42 = arith.constant 0 : index
    %c0_43 = arith.constant 0 : index
    %85 = vector.load %arg9[%c0_42, %c0_43] : memref<128x64xbf16, #tpu.memory_space<vmem>>, vector<128x64xbf16>
    %cst_44 = arith.constant dense<0.000000e+00> : vector<512x64xf32>
    %86 = tpu.matmul %72, %85, %cst_44 {dimension_numbers = #tpu.dot_dimension_numbers<[1], [0], [0], [1], [0, 0, 1, 1], [], []>} : vector<512x128xbf16>, vector<128x64xbf16>, vector<512x64xf32> -> vector<512x64xf32>
    %c0_45 = arith.constant 0 : index
    %c0_46 = arith.constant 0 : index
    %87 = vector.load %arg10[%c0_45, %c0_46] : memref<27x64xbf16, #tpu.memory_space<vmem>>, vector<27x64xbf16>
    %cst_47 = arith.constant dense<0.000000e+00> : vector<512x64xf32>
    %88 = tpu.matmul %84, %87, %cst_47 {dimension_numbers = #tpu.dot_dimension_numbers<[1], [0], [0], [1], [0, 0, 1, 1], [], []>} : vector<512x27xbf16>, vector<27x64xbf16>, vector<512x64xf32> -> vector<512x64xf32>
    %89 = arith.addf %86, %88 : vector<512x64xf32>
    %c0_48 = arith.constant 0 : index
    %c0_49 = arith.constant 0 : index
    %90 = vector.load %arg11[%c0_48, %c0_49] : memref<1x64xf32, #tpu.memory_space<vmem>>, vector<1x64xf32>
    %91 = vector.broadcast %90 : vector<1x64xf32> to vector<512x64xf32>
    %92 = arith.addf %89, %91 : vector<512x64xf32>
    %cst_50 = arith.constant 0.000000e+00 : f32
    %93 = vector.broadcast %cst_50 : f32 to vector<512x64xf32>
    %94 = arith.maximumf %92, %93 : vector<512x64xf32>
    %95 = arith.truncf %94 : vector<512x64xf32> to vector<512x64xbf16>
    %c0_51 = arith.constant 0 : index
    %c0_52 = arith.constant 0 : index
    %96 = vector.load %arg12[%c0_51, %c0_52] : memref<64x3xbf16, #tpu.memory_space<vmem>>, vector<64x3xbf16>
    %cst_53 = arith.constant dense<0.000000e+00> : vector<512x3xf32>
    %97 = tpu.matmul %95, %96, %cst_53 {dimension_numbers = #tpu.dot_dimension_numbers<[1], [0], [0], [1], [0, 0, 1, 1], [], []>} : vector<512x64xbf16>, vector<64x3xbf16>, vector<512x3xf32> -> vector<512x3xf32>
    %c0_54 = arith.constant 0 : index
    %c0_55 = arith.constant 0 : index
    %98 = vector.load %arg13[%c0_54, %c0_55] : memref<1x3xf32, #tpu.memory_space<vmem>>, vector<1x3xf32>
    %99 = vector.broadcast %98 : vector<1x3xf32> to vector<512x3xf32>
    %100 = arith.addf %97, %99 : vector<512x3xf32>
    %101 = arith.negf %100 : vector<512x3xf32>
    %102 = math.exp %101 : vector<512x3xf32>
    %cst_56 = arith.constant 1.000000e+00 : f32
    %103 = vector.broadcast %cst_56 : f32 to vector<512x3xf32>
    %104 = arith.addf %103, %102 : vector<512x3xf32>
    %105 = arith.divf %103, %104 : vector<512x3xf32>
    %c0_57 = arith.constant 0 : index
    %c0_58 = arith.constant 0 : index
    %106 = vector.load %arg14[%c0_57, %c0_58] : memref<512x4xf32, #tpu.memory_space<vmem>>, vector<512x3xf32>
    tpu.vector_store %arg14[%c0_57, %c0_58], %105 {strides = array<i32>} : memref<512x4xf32, #tpu.memory_space<vmem>>, vector<512x3xf32>,
    %c0_59 = arith.constant 0 : index
    %c3_60 = arith.constant 3 : index
    %107 = vector.load %arg14[%c0_59, %c3_60] : memref<512x4xf32, #tpu.memory_space<vmem>>, vector<512x1xf32>
    tpu.vector_store %arg14[%c0_59, %c3_60], %83 {strides = array<i32>} : memref<512x4xf32, #tpu.memory_space<vmem>>, vector<512x1xf32>,
    return
  }
  func.func @transform_0(%arg0: i32) -> (i32, i32) {
    %c0_i32 = arith.constant 0 : i32
    %c0_i32_0 = arith.constant 0 : i32
    return %arg0, %c0_i32 : i32, i32
  }
  func.func @transform_1(%arg0: i32) -> (i32, i32) {
    %c0_i32 = arith.constant 0 : i32
    %c0_i32_0 = arith.constant 0 : i32
    return %arg0, %c0_i32 : i32, i32
  }
  func.func @transform_2(%arg0: i32) -> (i32, i32) {
    %c0_i32 = arith.constant 0 : i32
    %c0_i32_0 = arith.constant 0 : i32
    %c0_i32_1 = arith.constant 0 : i32
    return %c0_i32, %c0_i32_0 : i32, i32
  }
  func.func @transform_3(%arg0: i32) -> (i32, i32, i32) {
    %c0_i32 = arith.constant 0 : i32
    %c0_i32_0 = arith.constant 0 : i32
    %c0_i32_1 = arith.constant 0 : i32
    %c0_i32_2 = arith.constant 0 : i32
    return %c0_i32, %c0_i32_0, %c0_i32_1 : i32, i32, i32
  }
  func.func @transform_4(%arg0: i32) -> (i32, i32) {
    %c0_i32 = arith.constant 0 : i32
    %c0_i32_0 = arith.constant 0 : i32
    %c0_i32_1 = arith.constant 0 : i32
    return %c0_i32, %c0_i32_0 : i32, i32
  }
  func.func @transform_5(%arg0: i32) -> (i32, i32) {
    %c0_i32 = arith.constant 0 : i32
    %c0_i32_0 = arith.constant 0 : i32
    %c0_i32_1 = arith.constant 0 : i32
    return %c0_i32, %c0_i32_0 : i32, i32
  }
  func.func @transform_6(%arg0: i32) -> (i32, i32) {
    %c0_i32 = arith.constant 0 : i32
    %c0_i32_0 = arith.constant 0 : i32
    %c0_i32_1 = arith.constant 0 : i32
    return %c0_i32, %c0_i32_0 : i32, i32
  }
  func.func @transform_7(%arg0: i32) -> (i32, i32) {
    %c0_i32 = arith.constant 0 : i32
    %c0_i32_0 = arith.constant 0 : i32
    %c0_i32_1 = arith.constant 0 : i32
    return %c0_i32, %c0_i32_0 : i32, i32
  }
  func.func @transform_8(%arg0: i32) -> (i32, i32) {
    %c0_i32 = arith.constant 0 : i32
    %c0_i32_0 = arith.constant 0 : i32
    %c0_i32_1 = arith.constant 0 : i32
    return %c0_i32, %c0_i32_0 : i32, i32
  }
  func.func @transform_9(%arg0: i32) -> (i32, i32) {
    %c0_i32 = arith.constant 0 : i32
    %c0_i32_0 = arith.constant 0 : i32
    %c0_i32_1 = arith.constant 0 : i32
    return %c0_i32, %c0_i32_0 : i32, i32
  }
  func.func @transform_10(%arg0: i32) -> (i32, i32) {
    %c0_i32 = arith.constant 0 : i32
    %c0_i32_0 = arith.constant 0 : i32
    %c0_i32_1 = arith.constant 0 : i32
    return %c0_i32, %c0_i32_0 : i32, i32
  }
  func.func @transform_11(%arg0: i32) -> (i32, i32) {
    %c0_i32 = arith.constant 0 : i32
    %c0_i32_0 = arith.constant 0 : i32
    %c0_i32_1 = arith.constant 0 : i32
    return %c0_i32, %c0_i32_0 : i32, i32
  }
  func.func @transform_12(%arg0: i32) -> (i32, i32) {
    %c0_i32 = arith.constant 0 : i32
    %c0_i32_0 = arith.constant 0 : i32
    %c0_i32_1 = arith.constant 0 : i32
    return %c0_i32, %c0_i32_0 : i32, i32
  }
  func.func @transform_13(%arg0: i32) -> (i32, i32) {
    %c0_i32 = arith.constant 0 : i32
    %c0_i32_0 = arith.constant 0 : i32
    return %arg0, %c0_i32 : i32, i32
  }
}

</mosaic_0001>

<llo_original>
// kernel: tpu_custom_call.1
$region0: #{tpu_custom_call.1}
  #allocation0 [shape = 'u32[]', space=smem, size = 0x4, offset = 0x4, fixed_abs, tag = 'smem constant byte address 0x4 - core index']
  #allocation1 [shape = 'u32[72,128]{1,0:T(1,128)}', space=vmem, size = 0x9000, scoped, tag = 'internal scratch']
  %s0 = inlined_call_operand.hbm [shape: f32[8,128], index: 0, kind: input, shape index: {}]
  %s1 = inlined_call_operand.hbm [shape: f32[8,128], index: 1, kind: output, shape index: {0}]
  %s2 = inlined_call_operand.hbm [shape: f32[8,128], index: 2, kind: output, shape index: {1}]
  %3 = xla_tuple %s1, %s2
  %s4 = sld [smem:[#allocation0]]
  $region26: #{tpu_custom_call.1} parent=0
    _
  %s6 = ssub.s32 1, %s4
  %s7 = scalar_select 0, %s6, %s4
  $region1: #{tpu_custom_call.1} parent=0
    #allocation2 [shape = 'u8[4096]{0}', space=vmem, size = 0x1000, scoped, tag = 'input window, operand 0, single buffered']
    #allocation3 [shape = 's32[1]{0}', space=sflag, size = 0x4, scoped, tag = 'scoped memory for tpu_custom_call.1']
    #allocation4 [shape = 's32[1]{0}', space=sflag, size = 0x4, scoped, tag = 'scoped memory for tpu_custom_call.1']
    #allocation5 [shape = 'u8[4096]{0}', space=vmem, size = 0x1000, scoped, tag = 'output window, operand 0, single buffered']
    #allocation6 [shape = 'u8[4096]{0}', space=vmem, size = 0x1000, scoped, tag = 'output window, operand 1, single buffered']
    #allocation7 [shape = 's32[1]{0}', space=sflag, size = 0x4, scoped, tag = 'scoped memory for tpu_custom_call.1']
    %8 = vsyncpa [#allocation3], 0
    %9 = vsyncpa [#allocation4], 0
    %10 = vsyncpa [#allocation7], 0
    // Predicated region
    $region2: #{tpu_custom_call.1} parent=1 // pred_check
      _
    $region3: #{tpu_custom_call.1} parent=1 // pred_check_branch
      %12 = sbr.rel (0) target = $region5
    $region4: #{tpu_custom_call.1} parent=1 // pred_region
      %14 = vsyncadd [#allocation3], 0
      %s16 = sshll.u32 %s0, 4
      %s17 = int_to_ptr.hbm [resolvable:$true] %s16
      %s18 = sshll.u32 [#allocation2], 4
      %s19 = int_to_ptr.vmem [resolvable:$true] %s18
      %21 = dma.hbm_to_vmem [thread:$0]  %s17, 128, %s19, [#allocation3]
    $region5: #{tpu_custom_call.1} parent=1 // pred_fallthru
      _
    // Predicated region
    $region6: #{tpu_custom_call.1} parent=1 // pred_check
      _
    $region7: #{tpu_custom_call.1} parent=1 // pred_check_branch
      %23 = sbr.rel (0) target = $region9
    $region8: #{tpu_custom_call.1} parent=1 // pred_region
      %25 = dma.done [#allocation3], 128
    $region9: #{tpu_custom_call.1} parent=1 // pred_fallthru
      _
    %v26 = vld [vmem:[#allocation2] sm:$0xff]
    %v27 = vand.u32 2147483647, %v26
    %vm28 = vcmp.le.f32.partialorder %v27, 0.7853982
    %vm29 = vcmp.lt.s32.totalorder %v26, 0
    %v30 = vand.u32 %v26, 2139095040
    %v31 = vshrl.u32 %v30, 23
    %v32 = vsub.s32 %v31, 127
    %v33 = vand.u32 2147483647, %v26
    %v34 = vand.u32 %v33, 8388607
    %v35 = vor.u32 %v34, 8388608
    %v36 = vsub.s32 0, %v35
    %v37 = vadd.s32 %v32, 1
    %vm38 = vcmp.gt.s32.totalorder %v37, 0
    %v39 = vsel %vm38, %v37, 0
    %v40 = vshrl.u32 %v39, 5
    %v41 = vand.u32 %v39, 31
    %v42 = vsub.s32 32, %v41
    %v43 = vshrl.u32 683565275, %v42
    %v44 = vshll.u32 683565275, %v41
    %v45 = vshrl.u32 2475754826, %v42
    %v46 = vor.u32 %v44, %v45
    %v47 = vshll.u32 2475754826, %v41
    %v48 = vshrl.u32 2131351028, %v42
    %v49 = vor.u32 %v47, %v48
    %v50 = vshll.u32 2131351028, %v41
    %v51 = vshrl.u32 2102212464, %v42
    %v52 = vor.u32 %v50, %v51
    %v53 = vshll.u32 2102212464, %v41
    %v54 = vshrl.u32 920167782, %v42
    %v55 = vor.u32 %v53, %v54
    %v56 = vshll.u32 920167782, %v41
    %v57 = vshrl.u32 1326507024, %v42
    %v58 = vor.u32 %v56, %v57
    %vm59 = vcmp.lt.s32.totalorder %v40, 1
    %vm60 = vcmp.lt.s32.totalorder %v40, 2
    %vm61 = vcmp.lt.s32.totalorder %v40, 3
    %vm62 = vcmp.lt.s32.totalorder %v40, 4
    %v63 = vsel %vm59, %v43, %v46
    %v64 = vsel %vm62, %v52, 2102212464
    %v65 = vsel %vm61, %v49, %v64
    %v66 = vsel %vm60, %v63, %v65
    %v67 = vsel %vm59, %v46, %v49
    %v68 = vsel %vm62, %v55, 920167782
    %v69 = vsel %vm61, %v52, %v68
    %v70 = vsel %vm60, %v67, %v69
    %v71 = vsel %vm59, %v49, %v52
    %v72 = vsel %vm62, %v58, 1326507024
    %v73 = vsel %vm61, %v55, %v72
    %v74 = vsel %vm60, %v71, %v73
    %v75 = vshll.u32 %v35, 8
    %v76 = vand.u32 %v75, 65535
    %v77 = vshrl.u32 %v75, 16
    %v78 = vand.u32 %v74, 65535
    %v79 = vshrl.u32 %v74, 16
    %v80 = vmul.u32 %v76, %v78
    %v81 = vmul.u32 %v76, %v79
    %v82 = vmul.u32 %v77, %v78
    %v83 = vmul.u32 %v77, %v79
    %v84 = vshll.u32 %v81, 16
    %v85 = vshrl.u32 %v81, 16
    %v86 = vshll.u32 %v82, 16
    %v87 = vshrl.u32 %v82, 16
    %vm88 = vc.u32 %v80, %v84
    %v89 = vsel %vm88, 1, 0
    %v90 = vadd.s32 %v80, %v84
    %v91 = vadd.s32 %v83, %v89
    %vm92 = vc.u32 %v90, %v86
    %v93 = vsel %vm92, 1, 0
    %v94 = vadd.s32 %v90, %v86
    %v95 = vadd.s32 %v91, %v93
    %v96 = vadd.s32 %v95, %v85
    %v97 = vadd.s32 %v96, %v87
    %v98 = vand.u32 %v75, 65535
    %v99 = vshrl.u32 %v75, 16
    %v100 = vand.u32 %v70, 65535
    %v101 = vshrl.u32 %v70, 16
    %v102 = vmul.u32 %v98, %v100
    %v103 = vmul.u32 %v98, %v101
    %v104 = vmul.u32 %v99, %v100
    %v105 = vmul.u32 %v99, %v101
    %v106 = vshll.u32 %v103, 16
    %v107 = vshrl.u32 %v103, 16
    %v108 = vshll.u32 %v104, 16
    %v109 = vshrl.u32 %v104, 16
    %vm110 = vc.u32 %v102, %v106
    %v111 = vsel %vm110, 1, 0
    %v112 = vadd.s32 %v102, %v106
    %v113 = vadd.s32 %v105, %v111
    %vm114 = vc.u32 %v112, %v108
    %v115 = vsel %vm114, 1, 0
    %v116 = vadd.s32 %v112, %v108
    %v117 = vadd.s32 %v113, %v115
    %v118 = vadd.s32 %v117, %v107
    %v119 = vadd.s32 %v118, %v109
    %v120 = vmul.u32 %v75, %v66
    %v121 = vadd.s32 %v97, %v116
    %vm122 = vc.u32 %v97, %v116
    %v123 = vadd.s32 %v119, 1
    %v124 = vsel %vm122, %v123, %v119
    %v125 = vadd.s32 %v120, %v124
    %v126 = vadd.s32 %v125, 536870912
    %v127 = vshrl.u32 %v126, 30
    %v128 = vshll.u32 %v127, 30
    %v129 = vsub.s32 %v125, %v128
    %vm130 = vcmp.lt.s32.totalorder %v129, 0
    %v131 = vsub.s32 0, %v129
    %v132 = vsel %vm130, %v131, %v129
    %v133 = vclz %v132
    %v134 = vsub.s32 %v133, 2
    %vm135 = vcmp.gt.s32.totalorder 0, %v134
    %v136 = vsel %vm135, 0, %v134
    %v137 = vsub.s32 32, %v136
    %v138 = vshll.u32 %v129, %v136
    %v139 = vshrl.u32 %v121, %v137
    %v140 = vor.u32 %v138, %v139
    %v141 = vsub.s32 4294967266, %v136
    %v142 = vadd.s32 %v141, 127
    %v143 = vshll.u32 %v142, 23
    %v144 = vor.u32 4788187, %v143
    %v145 = vand.u32 2147483647, %v144
    %v147 = vcvt.s32.f32 %v140
    %v148 = vmul.f32 %v147, %v145
    %v149 = vxor.u32 %v148, 2147483648
    %v150 = vsel %vm29, %v149, %v148
    %v151 = vsub.s32 4, %v127
    %v152 = vsel %vm29, %v151, %v127
    %v153 = vsel %vm28, %v26, %v150
    %v154 = vsel %vm28, 0, %v152
    %v155 = vmul.f32 %v153, %v153
    %v156 = vmul.f32 %v155, -0.001358992
    %v157 = vadd.f32 %v156, 0.041655596
    %v158 = vmul.f32 %v155, %v157
    %v159 = vadd.f32 %v158, -0.4999988
    %v160 = vmul.f32 %v155, %v159
    %v161 = vadd.f32 1.0, %v160
    %v162 = vmul.f32 %v153, %v153
    %v163 = vmul.f32 %v162, -0.00019511016
    %v164 = vadd.f32 %v163, 0.008332121
    %v165 = vmul.f32 %v162, %v164
    %v166 = vadd.f32 %v165, -0.16666654
    %v167 = vmul.f32 %v162, %v166
    %v168 = vadd.f32 %v167, 1.0
    %v169 = vmul.f32 %v168, %v153
    %vm170 = vweird.f32 %v26
    %v171 = vadd.s32 %v154, 3
    %v172 = vand.u32 %v171, 3
    %vm173 = vcmp.lt.s32.totalorder %v172, 2
    %vm174 = vcmp.eq.s32.totalorder %v172, 0
    %v175 = vxor.u32 %v169, 2147483648
    %v176 = vsel %vm174, %v161, %v175
    %vm177 = vcmp.eq.s32.totalorder %v172, 2
    %v178 = vxor.u32 %v161, 2147483648
    %v179 = vsel %vm177, %v178, %v169
    %v180 = vsel %vm173, %v176, %v179
    %v181 = vsel %vm170, nan, %v180
    %182 = vst [vmem:[#allocation5] sm:$0xff] %v181
    %v183 = vld [vmem:[#allocation2] sm:$0xff]
    %v184 = vand.u32 2147483647, %v183
    %vm185 = vcmp.le.f32.partialorder %v184, 0.7853982
    %vm186 = vcmp.lt.s32.totalorder %v183, 0
    %v187 = vand.u32 %v183, 2139095040
    %v188 = vshrl.u32 %v187, 23
    %v189 = vsub.s32 %v188, 127
    %v190 = vand.u32 2147483647, %v183
    %v191 = vand.u32 %v190, 8388607
    %v192 = vor.u32 %v191, 8388608
    %v193 = vsub.s32 0, %v192
    %v194 = vadd.s32 %v189, 1
    %vm195 = vcmp.gt.s32.totalorder %v194, 0
    %v196 = vsel %vm195, %v194, 0
    %v197 = vshrl.u32 %v196, 5
    %v198 = vand.u32 %v196, 31
    %v199 = vsub.s32 32, %v198
    %v200 = vshrl.u32 683565275, %v199
    %v201 = vshll.u32 683565275, %v198
    %v202 = vshrl.u32 2475754826, %v199
    %v203 = vor.u32 %v201, %v202
    %v204 = vshll.u32 2475754826, %v198
    %v205 = vshrl.u32 2131351028, %v199
    %v206 = vor.u32 %v204, %v205
    %v207 = vshll.u32 2131351028, %v198
    %v208 = vshrl.u32 2102212464, %v199
    %v209 = vor.u32 %v207, %v208
    %v210 = vshll.u32 2102212464, %v198
    %v211 = vshrl.u32 920167782, %v199
    %v212 = vor.u32 %v210, %v211
    %v213 = vshll.u32 920167782, %v198
    %v214 = vshrl.u32 1326507024, %v199
    %v215 = vor.u32 %v213, %v214
    %vm216 = vcmp.lt.s32.totalorder %v197, 1
    %vm217 = vcmp.lt.s32.totalorder %v197, 2
    %vm218 = vcmp.lt.s32.totalorder %v197, 3
    %vm219 = vcmp.lt.s32.totalorder %v197, 4
    %v220 = vsel %vm216, %v200, %v203
    %v221 = vsel %vm219, %v209, 2102212464
    %v222 = vsel %vm218, %v206, %v221
    %v223 = vsel %vm217, %v220, %v222
    %v224 = vsel %vm216, %v203, %v206
    %v225 = vsel %vm219, %v212, 920167782
    %v226 = vsel %vm218, %v209, %v225
    %v227 = vsel %vm217, %v224, %v226
    %v228 = vsel %vm216, %v206, %v209
    %v229 = vsel %vm219, %v215, 1326507024
    %v230 = vsel %vm218, %v212, %v229
    %v231 = vsel %vm217, %v228, %v230
    %v232 = vshll.u32 %v192, 8
    %v233 = vand.u32 %v232, 65535
    %v234 = vshrl.u32 %v232, 16
    %v235 = vand.u32 %v231, 65535
    %v236 = vshrl.u32 %v231, 16
    %v237 = vmul.u32 %v233, %v235
    %v238 = vmul.u32 %v233, %v236
    %v239 = vmul.u32 %v234, %v235
    %v240 = vmul.u32 %v234, %v236
    %v241 = vshll.u32 %v238, 16
    %v242 = vshrl.u32 %v238, 16
    %v243 = vshll.u32 %v239, 16
    %v244 = vshrl.u32 %v239, 16
    %vm245 = vc.u32 %v237, %v241
    %v246 = vsel %vm245, 1, 0
    %v247 = vadd.s32 %v237, %v241
    %v248 = vadd.s32 %v240, %v246
    %vm249 = vc.u32 %v247, %v243
    %v250 = vsel %vm249, 1, 0
    %v251 = vadd.s32 %v247, %v243
    %v252 = vadd.s32 %v248, %v250
    %v253 = vadd.s32 %v252, %v242
    %v254 = vadd.s32 %v253, %v244
    %v255 = vand.u32 %v232, 65535
    %v256 = vshrl.u32 %v232, 16
    %v257 = vand.u32 %v227, 65535
    %v258 = vshrl.u32 %v227, 16
    %v259 = vmul.u32 %v255, %v257
    %v260 = vmul.u32 %v255, %v258
    %v261 = vmul.u32 %v256, %v257
    %v262 = vmul.u32 %v256, %v258
    %v263 = vshll.u32 %v260, 16
    %v264 = vshrl.u32 %v260, 16
    %v265 = vshll.u32 %v261, 16
    %v266 = vshrl.u32 %v261, 16
    %vm267 = vc.u32 %v259, %v263
    %v268 = vsel %vm267, 1, 0
    %v269 = vadd.s32 %v259, %v263
    %v270 = vadd.s32 %v262, %v268
    %vm271 = vc.u32 %v269, %v265
    %v272 = vsel %vm271, 1, 0
    %v273 = vadd.s32 %v269, %v265
    %v274 = vadd.s32 %v270, %v272
    %v275 = vadd.s32 %v274, %v264
    %v276 = vadd.s32 %v275, %v266
    %v277 = vmul.u32 %v232, %v223
    %v278 = vadd.s32 %v254, %v273
    %vm279 = vc.u32 %v254, %v273
    %v280 = vadd.s32 %v276, 1
    %v281 = vsel %vm279, %v280, %v276
    %v282 = vadd.s32 %v277, %v281
    %v283 = vadd.s32 %v282, 536870912
    %v284 = vshrl.u32 %v283, 30
    %v285 = vshll.u32 %v284, 30
    %v286 = vsub.s32 %v282, %v285
    %vm287 = vcmp.lt.s32.totalorder %v286, 0
    %v288 = vsub.s32 0, %v286
    %v289 = vsel %vm287, %v288, %v286
    %v290 = vclz %v289
    %v291 = vsub.s32 %v290, 2
    %vm292 = vcmp.gt.s32.totalorder 0, %v291
    %v293 = vsel %vm292, 0, %v291
    %v294 = vsub.s32 32, %v293
    %v295 = vshll.u32 %v286, %v293
    %v296 = vshrl.u32 %v278, %v294
    %v297 = vor.u32 %v295, %v296
    %v298 = vsub.s32 4294967266, %v293
    %v299 = vadd.s32 %v298, 127
    %v300 = vshll.u32 %v299, 23
    %v301 = vor.u32 4788187, %v300
    %v302 = vand.u32 2147483647, %v301
    %v304 = vcvt.s32.f32 %v297
    %v305 = vmul.f32 %v304, %v302
    %v306 = vxor.u32 %v305, 2147483648
    %v307 = vsel %vm186, %v306, %v305
    %v308 = vsub.s32 4, %v284
    %v309 = vsel %vm186, %v308, %v284
    %v310 = vsel %vm185, %v183, %v307
    %v311 = vsel %vm185, 0, %v309
    %v312 = vmul.f32 %v310, %v310
    %v313 = vmul.f32 %v312, -0.001358992
    %v314 = vadd.f32 %v313, 0.041655596
    %v315 = vmul.f32 %v312, %v314
    %v316 = vadd.f32 %v315, -0.4999988
    %v317 = vmul.f32 %v312, %v316
    %v318 = vadd.f32 1.0, %v317
    %v319 = vmul.f32 %v310, %v310
    %v320 = vmul.f32 %v319, -0.00019511016
    %v321 = vadd.f32 %v320, 0.008332121
    %v322 = vmul.f32 %v319, %v321
    %v323 = vadd.f32 %v322, -0.16666654
    %v324 = vmul.f32 %v319, %v323
    %v325 = vadd.f32 %v324, 1.0
    %v326 = vmul.f32 %v325, %v310
    %vm327 = vweird.f32 %v183
    %v328 = vand.u32 %v311, 3
    %vm329 = vcmp.lt.s32.totalorder %v328, 2
    %vm330 = vcmp.eq.s32.totalorder %v328, 0
    %v331 = vxor.u32 %v326, 2147483648
    %v332 = vsel %vm330, %v318, %v331
    %vm333 = vcmp.eq.s32.totalorder %v328, 2
    %v334 = vxor.u32 %v318, 2147483648
    %v335 = vsel %vm333, %v334, %v326
    %v336 = vsel %vm329, %v332, %v335
    %v337 = vsel %vm327, nan, %v336
    %338 = vst [vmem:[#allocation6] sm:$0xff] %v337
    // Predicated region
    $region10: #{tpu_custom_call.1} parent=1 // pred_check
      _
    $region11: #{tpu_custom_call.1} parent=1 // pred_check_branch
      %340 = sbr.rel (0) target = $region13
    $region12: #{tpu_custom_call.1} parent=1 // pred_region
      %342 = vsyncadd [#allocation4], 0
      %s344 = sshll.u32 [#allocation5], 4
      %s345 = int_to_ptr.vmem [resolvable:$true] %s344
      %s346 = sshll.u32 %s1, 4
      %s347 = int_to_ptr.hbm [resolvable:$true] %s346
      %349 = dma.vmem_to_hbm [thread:$0]  %s345, 128, %s347, [#allocation4]
    $region13: #{tpu_custom_call.1} parent=1 // pred_fallthru
      _
    // Predicated region
    $region14: #{tpu_custom_call.1} parent=1 // pred_check
      _
    $region15: #{tpu_custom_call.1} parent=1 // pred_check_branch
      %351 = sbr.rel (0) target = $region17
    $region16: #{tpu_custom_call.1} parent=1 // pred_region
      %353 = vsyncadd [#allocation7], 0
      %s355 = sshll.u32 [#allocation6], 4
      %s356 = int_to_ptr.vmem [resolvable:$true] %s355
      %s357 = sshll.u32 %s2, 4
      %s358 = int_to_ptr.hbm [resolvable:$true] %s357
      %360 = dma.vmem_to_hbm [thread:$0]  %s356, 128, %s358, [#allocation7]
    $region17: #{tpu_custom_call.1} parent=1 // pred_fallthru
      _
    // Predicated region
    $region18: #{tpu_custom_call.1} parent=1 // pred_check
      _
    $region19: #{tpu_custom_call.1} parent=1 // pred_check_branch
      %362 = sbr.rel (0) target = $region21
    $region20: #{tpu_custom_call.1} parent=1 // pred_region
      %364 = dma.done [#allocation4], 128
    $region21: #{tpu_custom_call.1} parent=1 // pred_fallthru
      _
    // Predicated region
    $region22: #{tpu_custom_call.1} parent=1 // pred_check
      _
    $region23: #{tpu_custom_call.1} parent=1 // pred_check_branch
      %366 = sbr.rel (0) target = $region25
    $region24: #{tpu_custom_call.1} parent=1 // pred_region
      %368 = dma.done [#allocation7], 128
    $region25: #{tpu_custom_call.1} parent=1 // pred_fallthru
      _
    %369 = vsyncpa [#allocation3], 1
    %370 = vsyncpa [#allocation4], 1
    %371 = vsyncpa [#allocation7], 1

// kernel: tpu_custom_call.1
$region0: #{tpu_custom_call.1}
  #allocation0 [shape = 'u32[]', space=smem, size = 0x4, offset = 0x4, fixed_abs, tag = 'smem constant byte address 0x4 - core index']
  #allocation1 [shape = 'u32[72,128]{1,0:T(1,128)}', space=vmem, size = 0x9000, scoped, tag = 'internal scratch']
  #allocation2 [shape = 'f32[1,1]{1,0:T(1,128)S(1)}', space=vmem, size = 0x200, scoped, tag = 'scoped memory for tpu_custom_call.1']
  %s0 = inlined_call_operand.vmem [shape: bf16[1024,63], index: 0, kind: input, shape index: {}]
  %s1 = inlined_call_operand.vmem [shape: bf16[1024,27], index: 1, kind: input, shape index: {}]
  %s2 = inlined_call_operand.vmem [shape: bf16[63,256], index: 2, kind: input, shape index: {}]
  %s3 = inlined_call_operand.vmem [shape: bf16[6,128,128], index: 3, kind: input, shape index: {}]
  %s4 = inlined_call_operand.vmem [shape: f32[8,128], index: 4, kind: input, shape index: {}]
  %s5 = inlined_call_operand.vmem [shape: bf16[128,128], index: 5, kind: input, shape index: {}]
  %s6 = inlined_call_operand.vmem [shape: f32[1,128], index: 6, kind: input, shape index: {}]
  %s7 = inlined_call_operand.<no memory space> [shape: f32[1,1], index: 7, kind: input, shape index: {}]
  %s8 = inlined_call_operand.vmem [shape: bf16[128,64], index: 8, kind: input, shape index: {}]
  %s9 = inlined_call_operand.vmem [shape: bf16[27,64], index: 9, kind: input, shape index: {}]
  %s10 = inlined_call_operand.vmem [shape: f32[1,64], index: 10, kind: input, shape index: {}]
  %s11 = inlined_call_operand.vmem [shape: bf16[64,3], index: 11, kind: input, shape index: {}]
  %s12 = inlined_call_operand.vmem [shape: f32[1,3], index: 12, kind: input, shape index: {}]
  %s13 = inlined_call_operand.vmem [shape: f32[1024,4], index: 13, kind: output, shape index: {}]
  %s14 = sld [smem:[#allocation0]]
  $region85: #{tpu_custom_call.1} parent=0
    _
  %s16 = ssub.s32 1, %s14
  %s17 = scalar_select 0, %s16, %s14
  %v18 = vstv %s7
  %19 = vst [vmem:[#allocation2] sm:$0x1] %v18
  loop: start=0, step=1, limit=4
  $region2: #{tpu_custom_call.1} parent=0 // loop_pre_header
    _
  $region3: #{tpu_custom_call.1} parent=0 // loop_header
    %s21 = sphi 0, %s25
    %p22 = scmp.ge.s32.totalorder %s21, 4
    %s31 = sphi 0, %s33
    %s34 = sphi 0, %s31
    %s35 = sphi 0, %s34
    %s51 = sphi 0, %s35
    %s57 = sphi 0, %s59
    %s60 = sphi 0, %s57
    %s61 = sphi 0, %s60
    %s77 = sphi 0, %s61
    %s81 = sphi 0, %s81
    %s83 = sphi 0, %s81
    %s84 = sphi 0, %s83
    %s98 = sphi 0, %s84
    %s102 = sphi 0, %s102
    %s104 = sphi 0, %s102
    %s105 = sphi 0, %s104
    %s119 = sphi 0, %s105
    %s123 = sphi 0, %s123
    %s125 = sphi 0, %s123
    %s126 = sphi 0, %s125
    %s140 = sphi 0, %s126
    %s144 = sphi 0, %s144
    %s146 = sphi 0, %s144
    %s147 = sphi 0, %s146
    %s161 = sphi 0, %s147
    %s165 = sphi 0, %s165
    %s167 = sphi 0, %s165
    %s168 = sphi 0, %s167
    %s182 = sphi 0, %s168
    %s186 = sphi 0, %s186
    %s188 = sphi 0, %s186
    %s189 = sphi 0, %s188
    %s203 = sphi 0, %s189
    %s207 = sphi 0, %s207
    %s209 = sphi 0, %s207
    %s210 = sphi 0, %s209
    %s224 = sphi 0, %s210
    %s228 = sphi 0, %s228
    %s230 = sphi 0, %s228
    %s231 = sphi 0, %s230
    %s245 = sphi 0, %s231
    %s249 = sphi 0, %s249
    %s251 = sphi 0, %s249
    %s252 = sphi 0, %s251
    %s266 = sphi 0, %s252
    %s270 = sphi 0, %s270
    %s272 = sphi 0, %s270
    %s273 = sphi 0, %s272
    %s287 = sphi 0, %s273
    %s291 = sphi 0, %s291
    %s293 = sphi 0, %s291
    %s294 = sphi 0, %s293
    %s308 = sphi 0, %s294
    %s314 = sphi 0, %s316
    %s317 = sphi 0, %s314
    %s318 = sphi 0, %s317
    %s334 = sphi 0, %s318
  $region4: #{tpu_custom_call.1} parent=0 // loop_header_branch
    %24 = sbr.rel (%p22) target = $region8
  $region5: #{tpu_custom_call.1} parent=0 // loop_body
    %s26 = ssub.s32 %s21, 1
    %s27 = ssub.s32 %s21, 2
    %s28 = sadd.s32 %s21, 1
    %s29 = ssub.s32 %s21, %s28
    %p30 = scmp.eq.s32.totalorder %s29, 0
    %s32 = sadd.s32 %s31, 1
    %s33 = scalar_select %p30, %s31, %s32
    %p36 = pneg %p30
    %p37 = scmp.eq.s32.totalorder %s21, 1
    %p38 = por %p36, %p37
    %p39 = scmp.ne.s32.totalorder %s31, %s34
    %p40 = scmp.eq.s32.totalorder %s21, 0
    %p41 = por %p39, %p40
    %p42 = scmp.ne.s32.totalorder %s31, %s34
    %p43 = scmp.eq.s32.totalorder %s26, 1
    %p44 = por %p42, %p43
    %p45 = scmp.ne.s32.totalorder %s34, %s35
    %p46 = scmp.eq.s32.totalorder %s26, 0
    %p47 = por %p45, %p46
    %p48 = scmp.ne.s32.totalorder %s34, %s35
    %p49 = scmp.eq.s32.totalorder %s27, 1
    %p50 = por %p48, %p49
    %p52 = scmp.ne.s32.totalorder %s35, %s51
    %p53 = scmp.eq.s32.totalorder %s27, 0
    %p54 = por %p52, %p53
    %s55 = ssub.s32 %s21, %s28
    %p56 = scmp.eq.s32.totalorder %s55, 0
    %s58 = sadd.s32 %s57, 1
    %s59 = scalar_select %p56, %s57, %s58
    %p62 = pneg %p56
    %p63 = scmp.eq.s32.totalorder %s21, 1
    %p64 = por %p62, %p63
    %p65 = scmp.ne.s32.totalorder %s57, %s60
    %p66 = scmp.eq.s32.totalorder %s21, 0
    %p67 = por %p65, %p66
    %p68 = scmp.ne.s32.totalorder %s57, %s60
    %p69 = scmp.eq.s32.totalorder %s26, 1
    %p70 = por %p68, %p69
    %p71 = scmp.ne.s32.totalorder %s60, %s61
    %p72 = scmp.eq.s32.totalorder %s26, 0
    %p73 = por %p71, %p72
    %p74 = scmp.ne.s32.totalorder %s60, %s61
    %p75 = scmp.eq.s32.totalorder %s27, 1
    %p76 = por %p74, %p75
    %p78 = scmp.ne.s32.totalorder %s61, %s77
    %p79 = scmp.eq.s32.totalorder %s27, 0
    %p80 = por %p78, %p79
    %s82 = sadd.s32 %s81, 1
    %p85 = scmp.eq.s32.totalorder %s21, 1
    %p86 = scmp.ne.s32.totalorder %s81, %s83
    %p87 = scmp.eq.s32.totalorder %s21, 0
    %p88 = por %p86, %p87
    %p89 = scmp.ne.s32.totalorder %s81, %s83
    %p90 = scmp.eq.s32.totalorder %s26, 1
    %p91 = por %p89, %p90
    %p92 = scmp.ne.s32.totalorder %s83, %s84
    %p93 = scmp.eq.s32.totalorder %s26, 0
    %p94 = por %p92, %p93
    %p95 = scmp.ne.s32.totalorder %s83, %s84
    %p96 = scmp.eq.s32.totalorder %s27, 1
    %p97 = por %p95, %p96
    %p99 = scmp.ne.s32.totalorder %s84, %s98
    %p100 = scmp.eq.s32.totalorder %s27, 0
    %p101 = por %p99, %p100
    %s103 = sadd.s32 %s102, 1
    %p106 = scmp.eq.s32.totalorder %s21, 1
    %p107 = scmp.ne.s32.totalorder %s102, %s104
    %p108 = scmp.eq.s32.totalorder %s21, 0
    %p109 = por %p107, %p108
    %p110 = scmp.ne.s32.totalorder %s102, %s104
    %p111 = scmp.eq.s32.totalorder %s26, 1
    %p112 = por %p110, %p111
    %p113 = scmp.ne.s32.totalorder %s104, %s105
    %p114 = scmp.eq.s32.totalorder %s26, 0
    %p115 = por %p113, %p114
    %p116 = scmp.ne.s32.totalorder %s104, %s105
    %p117 = scmp.eq.s32.totalorder %s27, 1
    %p118 = por %p116, %p117
    %p120 = scmp.ne.s32.totalorder %s105, %s119
    %p121 = scmp.eq.s32.totalorder %s27, 0
    %p122 = por %p120, %p121
    %s124 = sadd.s32 %s123, 1
    %p127 = scmp.eq.s32.totalorder %s21, 1
    %p128 = scmp.ne.s32.totalorder %s123, %s125
    %p129 = scmp.eq.s32.totalorder %s21, 0
    %p130 = por %p128, %p129
    %p131 = scmp.ne.s32.totalorder %s123, %s125
    %p132 = scmp.eq.s32.totalorder %s26, 1
    %p133 = por %p131, %p132
    %p134 = scmp.ne.s32.totalorder %s125, %s126
    %p135 = scmp.eq.s32.totalorder %s26, 0
    %p136 = por %p134, %p135
    %p137 = scmp.ne.s32.totalorder %s125, %s126
    %p138 = scmp.eq.s32.totalorder %s27, 1
    %p139 = por %p137, %p138
    %p141 = scmp.ne.s32.totalorder %s126, %s140
    %p142 = scmp.eq.s32.totalorder %s27, 0
    %p143 = por %p141, %p142
    %s145 = sadd.s32 %s144, 1
    %p148 = scmp.eq.s32.totalorder %s21, 1
    %p149 = scmp.ne.s32.totalorder %s144, %s146
    %p150 = scmp.eq.s32.totalorder %s21, 0
    %p151 = por %p149, %p150
    %p152 = scmp.ne.s32.totalorder %s144, %s146
    %p153 = scmp.eq.s32.totalorder %s26, 1
    %p154 = por %p152, %p153
    %p155 = scmp.ne.s32.totalorder %s146, %s147
    %p156 = scmp.eq.s32.totalorder %s26, 0
    %p157 = por %p155, %p156
    %p158 = scmp.ne.s32.totalorder %s146, %s147
    %p159 = scmp.eq.s32.totalorder %s27, 1
    %p160 = por %p158, %p159
    %p162 = scmp.ne.s32.totalorder %s147, %s161
    %p163 = scmp.eq.s32.totalorder %s27, 0
    %p164 = por %p162, %p163
    %s166 = sadd.s32 %s165, 1
    %p169 = scmp.eq.s32.totalorder %s21, 1
    %p170 = scmp.ne.s32.totalorder %s165, %s167
    %p171 = scmp.eq.s32.totalorder %s21, 0
    %p172 = por %p170, %p171
    %p173 = scmp.ne.s32.totalorder %s165, %s167
    %p174 = scmp.eq.s32.totalorder %s26, 1
    %p175 = por %p173, %p174
    %p176 = scmp.ne.s32.totalorder %s167, %s168
    %p177 = scmp.eq.s32.totalorder %s26, 0
    %p178 = por %p176, %p177
    %p179 = scmp.ne.s32.totalorder %s167, %s168
    %p180 = scmp.eq.s32.totalorder %s27, 1
    %p181 = por %p179, %p180
    %p183 = scmp.ne.s32.totalorder %s168, %s182
    %p184 = scmp.eq.s32.totalorder %s27, 0
    %p185 = por %p183, %p184
    %s187 = sadd.s32 %s186, 1
    %p190 = scmp.eq.s32.totalorder %s21, 1
    %p191 = scmp.ne.s32.totalorder %s186, %s188
    %p192 = scmp.eq.s32.totalorder %s21, 0
    %p193 = por %p191, %p192
    %p194 = scmp.ne.s32.totalorder %s186, %s188
    %p195 = scmp.eq.s32.totalorder %s26, 1
    %p196 = por %p194, %p195
    %p197 = scmp.ne.s32.totalorder %s188, %s189
    %p198 = scmp.eq.s32.totalorder %s26, 0
    %p199 = por %p197, %p198
    %p200 = scmp.ne.s32.totalorder %s188, %s189
    %p201 = scmp.eq.s32.totalorder %s27, 1
    %p202 = por %p200, %p201
    %p204 = scmp.ne.s32.totalorder %s189, %s203
    %p205 = scmp.eq.s32.totalorder %s27, 0
    %p206 = por %p204, %p205
    %s208 = sadd.s32 %s207, 1
    %p211 = scmp.eq.s32.totalorder %s21, 1
    %p212 = scmp.ne.s32.totalorder %s207, %s209
    %p213 = scmp.eq.s32.totalorder %s21, 0
    %p214 = por %p212, %p213
    %p215 = scmp.ne.s32.totalorder %s207, %s209
    %p216 = scmp.eq.s32.totalorder %s26, 1
    %p217 = por %p215, %p216
    %p218 = scmp.ne.s32.totalorder %s209, %s210
    %p219 = scmp.eq.s32.totalorder %s26, 0
    %p220 = por %p218, %p219
    %p221 = scmp.ne.s32.totalorder %s209, %s210
    %p222 = scmp.eq.s32.totalorder %s27, 1
    %p223 = por %p221, %p222
    %p225 = scmp.ne.s32.totalorder %s210, %s224
    %p226 = scmp.eq.s32.totalorder %s27, 0
    %p227 = por %p225, %p226
    %s229 = sadd.s32 %s228, 1
    %p232 = scmp.eq.s32.totalorder %s21, 1
    %p233 = scmp.ne.s32.totalorder %s228, %s230
    %p234 = scmp.eq.s32.totalorder %s21, 0
    %p235 = por %p233, %p234
    %p236 = scmp.ne.s32.totalorder %s228, %s230
    %p237 = scmp.eq.s32.totalorder %s26, 1
    %p238 = por %p236, %p237
    %p239 = scmp.ne.s32.totalorder %s230, %s231
    %p240 = scmp.eq.s32.totalorder %s26, 0
    %p241 = por %p239, %p240
    %p242 = scmp.ne.s32.totalorder %s230, %s231
    %p243 = scmp.eq.s32.totalorder %s27, 1
    %p244 = por %p242, %p243
    %p246 = scmp.ne.s32.totalorder %s231, %s245
    %p247 = scmp.eq.s32.totalorder %s27, 0
    %p248 = por %p246, %p247
    %s250 = sadd.s32 %s249, 1
    %p253 = scmp.eq.s32.totalorder %s21, 1
    %p254 = scmp.ne.s32.totalorder %s249, %s251
    %p255 = scmp.eq.s32.totalorder %s21, 0
    %p256 = por %p254, %p255
    %p257 = scmp.ne.s32.totalorder %s249, %s251
    %p258 = scmp.eq.s32.totalorder %s26, 1
    %p259 = por %p257, %p258
    %p260 = scmp.ne.s32.totalorder %s251, %s252
    %p261 = scmp.eq.s32.totalorder %s26, 0
    %p262 = por %p260, %p261
    %p263 = scmp.ne.s32.totalorder %s251, %s252
    %p264 = scmp.eq.s32.totalorder %s27, 1
    %p265 = por %p263, %p264
    %p267 = scmp.ne.s32.totalorder %s252, %s266
    %p268 = scmp.eq.s32.totalorder %s27, 0
    %p269 = por %p267, %p268
    %s271 = sadd.s32 %s270, 1
    %p274 = scmp.eq.s32.totalorder %s21, 1
    %p275 = scmp.ne.s32.totalorder %s270, %s272
    %p276 = scmp.eq.s32.totalorder %s21, 0
    %p277 = por %p275, %p276
    %p278 = scmp.ne.s32.totalorder %s270, %s272
    %p279 = scmp.eq.s32.totalorder %s26, 1
    %p280 = por %p278, %p279
    %p281 = scmp.ne.s32.totalorder %s272, %s273
    %p282 = scmp.eq.s32.totalorder %s26, 0
    %p283 = por %p281, %p282
    %p284 = scmp.ne.s32.totalorder %s272, %s273
    %p285 = scmp.eq.s32.totalorder %s27, 1
    %p286 = por %p284, %p285
    %p288 = scmp.ne.s32.totalorder %s273, %s287
    %p289 = scmp.eq.s32.totalorder %s27, 0
    %p290 = por %p288, %p289
    %s292 = sadd.s32 %s291, 1
    %p295 = scmp.eq.s32.totalorder %s21, 1
    %p296 = scmp.ne.s32.totalorder %s291, %s293
    %p297 = scmp.eq.s32.totalorder %s21, 0
    %p298 = por %p296, %p297
    %p299 = scmp.ne.s32.totalorder %s291, %s293
    %p300 = scmp.eq.s32.totalorder %s26, 1
    %p301 = por %p299, %p300
    %p302 = scmp.ne.s32.totalorder %s293, %s294
    %p303 = scmp.eq.s32.totalorder %s26, 0
    %p304 = por %p302, %p303
    %p305 = scmp.ne.s32.totalorder %s293, %s294
    %p306 = scmp.eq.s32.totalorder %s27, 1
    %p307 = por %p305, %p306
    %p309 = scmp.ne.s32.totalorder %s294, %s308
    %p310 = scmp.eq.s32.totalorder %s27, 0
    %p311 = por %p309, %p310
    %s312 = ssub.s32 %s21, %s28
    %p313 = scmp.eq.s32.totalorder %s312, 0
    %s315 = sadd.s32 %s314, 1
    %s316 = scalar_select %p313, %s314, %s315
    %p319 = pneg %p313
    %p320 = scmp.eq.s32.totalorder %s21, 1
    %p321 = por %p319, %p320
    %p322 = scmp.ne.s32.totalorder %s314, %s317
    %p323 = scmp.eq.s32.totalorder %s21, 0
    %p324 = por %p322, %p323
    %p325 = scmp.ne.s32.totalorder %s314, %s317
    %p326 = scmp.eq.s32.totalorder %s26, 1
    %p327 = por %p325, %p326
    %p328 = scmp.ne.s32.totalorder %s317, %s318
    %p329 = scmp.eq.s32.totalorder %s26, 0
    %p330 = por %p328, %p329
    %p331 = scmp.ne.s32.totalorder %s317, %s318
    %p332 = scmp.eq.s32.totalorder %s27, 1
    %p333 = por %p331, %p332
    %p335 = scmp.ne.s32.totalorder %s318, %s334
    %p336 = scmp.eq.s32.totalorder %s27, 0
    %p337 = por %p335, %p336
    %p338 = scmp.le.s32.totalorder 1, %s21
    %p339 = scmp.lt.s32.totalorder %s21, 3
    %p340 = pnand %p338, %p339
    %p341 = pneg %p340
    // Predicated region
    $region9: #{tpu_custom_call.1} parent=5 // pred_check
      _
    $region10: #{tpu_custom_call.1} parent=5 // pred_check_branch
      %343 = sbr.rel (%p340) target = $region12
    $region11: #{tpu_custom_call.1} parent=5 // pred_region
      %s344 = ssub.s32 %s21, 1
      // Predicated region
      $region13: #{tpu_custom_call.1} parent=11 // pred_check
        %p345 = pneg %p94
      $region14: #{tpu_custom_call.1} parent=11 // pred_check_branch
        %347 = sbr.rel (%p345) target = $region16
      $region15: #{tpu_custom_call.1} parent=11 // pred_region
        _
      $region16: #{tpu_custom_call.1} parent=11 // pred_fallthru
        _
      // Predicated region
      $region17: #{tpu_custom_call.1} parent=11 // pred_check
        %p348 = pneg %p115
      $region18: #{tpu_custom_call.1} parent=11 // pred_check_branch
        %350 = sbr.rel (%p348) target = $region20
      $region19: #{tpu_custom_call.1} parent=11 // pred_region
        _
      $region20: #{tpu_custom_call.1} parent=11 // pred_fallthru
        _
      // Predicated region
      $region21: #{tpu_custom_call.1} parent=11 // pred_check
        %p351 = pneg %p136
      $region22: #{tpu_custom_call.1} parent=11 // pred_check_branch
        %353 = sbr.rel (%p351) target = $region24
      $region23: #{tpu_custom_call.1} parent=11 // pred_region
        _
      $region24: #{tpu_custom_call.1} parent=11 // pred_fallthru
        _
      // Predicated region
      $region25: #{tpu_custom_call.1} parent=11 // pred_check
        %p354 = pneg %p157
      $region26: #{tpu_custom_call.1} parent=11 // pred_check_branch
        %356 = sbr.rel (%p354) target = $region28
      $region27: #{tpu_custom_call.1} parent=11 // pred_region
        _
      $region28: #{tpu_custom_call.1} parent=11 // pred_fallthru
        _
      // Predicated region
      $region29: #{tpu_custom_call.1} parent=11 // pred_check
        %p357 = pneg %p178
      $region30: #{tpu_custom_call.1} parent=11 // pred_check_branch
        %359 = sbr.rel (%p357) target = $region32
      $region31: #{tpu_custom_call.1} parent=11 // pred_region
        _
      $region32: #{tpu_custom_call.1} parent=11 // pred_fallthru
        _
      // Predicated region
      $region33: #{tpu_custom_call.1} parent=11 // pred_check
        %p360 = pneg %p199
      $region34: #{tpu_custom_call.1} parent=11 // pred_check_branch
        %362 = sbr.rel (%p360) target = $region36
      $region35: #{tpu_custom_call.1} parent=11 // pred_region
        _
      $region36: #{tpu_custom_call.1} parent=11 // pred_fallthru
        _
      // Predicated region
      $region37: #{tpu_custom_call.1} parent=11 // pred_check
        %p363 = pneg %p220
      $region38: #{tpu_custom_call.1} parent=11 // pred_check_branch
        %365 = sbr.rel (%p363) target = $region40
      $region39: #{tpu_custom_call.1} parent=11 // pred_region
        _
      $region40: #{tpu_custom_call.1} parent=11 // pred_fallthru
        _
      // Predicated region
      $region41: #{tpu_custom_call.1} parent=11 // pred_check
        %p366 = pneg %p241
      $region42: #{tpu_custom_call.1} parent=11 // pred_check_branch
        %368 = sbr.rel (%p366) target = $region44
      $region43: #{tpu_custom_call.1} parent=11 // pred_region
        _
      $region44: #{tpu_custom_call.1} parent=11 // pred_fallthru
        _
      // Predicated region
      $region45: #{tpu_custom_call.1} parent=11 // pred_check
        %p369 = pneg %p262
      $region46: #{tpu_custom_call.1} parent=11 // pred_check_branch
        %371 = sbr.rel (%p369) target = $region48
      $region47: #{tpu_custom_call.1} parent=11 // pred_region
        _
      $region48: #{tpu_custom_call.1} parent=11 // pred_fallthru
        _
      // Predicated region
      $region49: #{tpu_custom_call.1} parent=11 // pred_check
        %p372 = pneg %p283
      $region50: #{tpu_custom_call.1} parent=11 // pred_check_branch
        %374 = sbr.rel (%p372) target = $region52
      $region51: #{tpu_custom_call.1} parent=11 // pred_region
        _
      $region52: #{tpu_custom_call.1} parent=11 // pred_fallthru
        _
      // Predicated region
      $region53: #{tpu_custom_call.1} parent=11 // pred_check
        %p375 = pneg %p304
      $region54: #{tpu_custom_call.1} parent=11 // pred_check_branch
        %377 = sbr.rel (%p375) target = $region56
      $region55: #{tpu_custom_call.1} parent=11 // pred_region
        _
      $region56: #{tpu_custom_call.1} parent=11 // pred_fallthru
        _
    $region12: #{tpu_custom_call.1} parent=5 // pred_fallthru
      _
    %p378 = scmp.lt.s32.totalorder %s21, 2
    // Predicated region
    $region57: #{tpu_custom_call.1} parent=5 // pred_check
      %p379 = pneg %p378
    $region58: #{tpu_custom_call.1} parent=5 // pred_check_branch
      %381 = sbr.rel (%p379) target = $region60
    $region59: #{tpu_custom_call.1} parent=5 // pred_region
      // Predicated region
      $region61: #{tpu_custom_call.1} parent=59 // pred_check
        %p382 = pneg %p41
      $region62: #{tpu_custom_call.1} parent=59 // pred_check_branch
        %384 = sbr.rel (%p382) target = $region64
      $region63: #{tpu_custom_call.1} parent=59 // pred_region
        %s385 = smul.u32 64, %s21
        %p386 = scmp.lt.s32.totalorder %s385, 127
        %s387 = scalar_select %p386, %s385, 127
        %s388 = smul.addr %s387, 4
        %s389 = scalar_lea.vmem %s0, %s388
        %s390 = smul.u32 64, %s21
      $region64: #{tpu_custom_call.1} parent=59 // pred_fallthru
        _
      // Predicated region
      $region65: #{tpu_custom_call.1} parent=59 // pred_check
        %p391 = pneg %p67
      $region66: #{tpu_custom_call.1} parent=59 // pred_check_branch
        %393 = sbr.rel (%p391) target = $region68
      $region67: #{tpu_custom_call.1} parent=59 // pred_region
        %s394 = smul.u32 64, %s21
        %p395 = scmp.lt.s32.totalorder %s394, 127
        %s396 = scalar_select %p395, %s394, 127
        %s397 = smul.addr %s396, 4
        %s398 = scalar_lea.vmem %s1, %s397
        %s399 = smul.u32 64, %s21
      $region68: #{tpu_custom_call.1} parent=59 // pred_fallthru
        _
    $region60: #{tpu_custom_call.1} parent=5 // pred_fallthru
      _
    %p400 = scmp.le.s32.totalorder 1, %s21
    %p401 = scmp.lt.s32.totalorder %s21, 3
    %p402 = pnand %p400, %p401
    %p403 = pneg %p402
    // Predicated region
    $region69: #{tpu_custom_call.1} parent=5 // pred_check
      _
    $region70: #{tpu_custom_call.1} parent=5 // pred_check_branch
      %405 = sbr.rel (%p402) target = $region72
    $region71: #{tpu_custom_call.1} parent=5 // pred_region
      %s406 = ssub.s32 %s21, 1
      %s407 = smul.u32 64, %s26
      %p408 = scmp.lt.s32.totalorder %s407, 127
      %s409 = scalar_select %p408, %s407, 127
      %s410 = smul.addr %s409, 4
      %s411 = scalar_lea.vmem %s0, %s410
      %p412 = pneg %p47
      %p413 = pneg %p44
      %s414 = smul.u32 64, %s26
      %p415 = scmp.lt.s32.totalorder %s414, 127
      %s416 = scalar_select %p415, %s414, 127
      %s417 = smul.addr %s416, 4
      %s418 = scalar_lea.vmem %s1, %s417
      %p419 = pneg %p73
      %p420 = pneg %p70
      %p421 = pneg %p94
      %p422 = pneg %p91
      %p423 = pneg %p115
      %p424 = pneg %p112
      %p425 = pneg %p136
      %p426 = pneg %p133
      %p427 = pneg %p157
      %p428 = pneg %p154
      %p429 = pneg %p178
      %p430 = pneg %p175
      %p431 = pneg %p199
      %p432 = pneg %p196
      %p433 = pneg %p220
      %p434 = pneg %p217
      %p435 = pneg %p241
      %p436 = pneg %p238
      %p437 = pneg %p262
      %p438 = pneg %p259
      %p439 = pneg %p283
      %p440 = pneg %p280
      %p441 = pneg %p304
      %p442 = pneg %p301
      %p443 = pneg %p330
      %p444 = pneg %p327
      %s445 = smul.u32 64, %s26
      %p446 = scmp.lt.s32.totalorder %s445, 127
      %s447 = scalar_select %p446, %s445, 127
      %s448 = smul.addr %s447, 8
      %s449 = scalar_lea.vmem %s13, %s448
      %s450 = smul.u32 64, %s26
      %p451 = scmp.lt.s32.totalorder %s450, 127
      %s452 = scalar_select %p451, %s450, 127
      %s453 = smul.addr %s452, 4
      %s454 = scalar_lea.vmem %s0, %s453
      %s455 = smul.u32 64, %s26
      %s456 = smul.u32 64, %s26
      %p457 = scmp.lt.s32.totalorder %s456, 127
      %s458 = scalar_select %p457, %s456, 127
      %s459 = smul.addr %s458, 4
      %s460 = scalar_lea.vmem %s1, %s459
      %s461 = smul.u32 64, %s26
      %s462 = smul.u32 64, %s26
      %p463 = scmp.lt.s32.totalorder %s462, 127
      %s464 = scalar_select %p463, %s462, 127
      %s465 = smul.addr %s464, 8
      %s466 = scalar_lea.vmem %s13, %s465
      %s467 = smul.u32 64, %s26
      %v469 = vld [vmem:[%s454] sm:$0xf]
      %v470 = vld [vmem:[%s454 + $0x4] sm:$0xf]
      %v471 = vld [vmem:[%s454 + $0x8] sm:$0xf]
      %v472 = vld [vmem:[%s454 + $0xc] sm:$0xf]
      %v473 = vld [vmem:[%s454 + $0x10] sm:$0xf]
      %v474 = vld [vmem:[%s454 + $0x14] sm:$0xf]
      %v475 = vld [vmem:[%s454 + $0x18] sm:$0xf]
      %v476 = vld [vmem:[%s454 + $0x1c] sm:$0xf]
      %v477 = vld [vmem:[%s454 + $0x20] sm:$0xf]
      %v478 = vld [vmem:[%s454 + $0x24] sm:$0xf]
      %v479 = vld [vmem:[%s454 + $0x28] sm:$0xf]
      %v480 = vld [vmem:[%s454 + $0x2c] sm:$0xf]
      %v481 = vld [vmem:[%s454 + $0x30] sm:$0xf]
      %v482 = vld [vmem:[%s454 + $0x34] sm:$0xf]
      %v483 = vld [vmem:[%s454 + $0x38] sm:$0xf]
      %v484 = vld [vmem:[%s454 + $0x3c] sm:$0xf]
      %v485 = vld [vmem:[%s454 + $0x40] sm:$0xf]
      %v486 = vld [vmem:[%s454 + $0x44] sm:$0xf]
      %v487 = vld [vmem:[%s454 + $0x48] sm:$0xf]
      %v488 = vld [vmem:[%s454 + $0x4c] sm:$0xf]
      %v489 = vld [vmem:[%s454 + $0x50] sm:$0xf]
      %v490 = vld [vmem:[%s454 + $0x54] sm:$0xf]
      %v491 = vld [vmem:[%s454 + $0x58] sm:$0xf]
      %v492 = vld [vmem:[%s454 + $0x5c] sm:$0xf]
      %v493 = vld [vmem:[%s454 + $0x60] sm:$0xf]
      %v494 = vld [vmem:[%s454 + $0x64] sm:$0xf]
      %v495 = vld [vmem:[%s454 + $0x68] sm:$0xf]
      %v496 = vld [vmem:[%s454 + $0x6c] sm:$0xf]
      %v497 = vld [vmem:[%s454 + $0x70] sm:$0xf]
      %v498 = vld [vmem:[%s454 + $0x74] sm:$0xf]
      %v499 = vld [vmem:[%s454 + $0x78] sm:$0xf]
      %v500 = vld [vmem:[%s454 + $0x7c] sm:$0xf]
      %v501 = vld [vmem:[%s454 + $0x80] sm:$0xf]
      %v502 = vld [vmem:[%s454 + $0x84] sm:$0xf]
      %v503 = vld [vmem:[%s454 + $0x88] sm:$0xf]
      %v504 = vld [vmem:[%s454 + $0x8c] sm:$0xf]
      %v505 = vld [vmem:[%s454 + $0x90] sm:$0xf]
      %v506 = vld [vmem:[%s454 + $0x94] sm:$0xf]
      %v507 = vld [vmem:[%s454 + $0x98] sm:$0xf]
      %v508 = vld [vmem:[%s454 + $0x9c] sm:$0xf]
      %v509 = vld [vmem:[%s454 + $0xa0] sm:$0xf]
      %v510 = vld [vmem:[%s454 + $0xa4] sm:$0xf]
      %v511 = vld [vmem:[%s454 + $0xa8] sm:$0xf]
      %v512 = vld [vmem:[%s454 + $0xac] sm:$0xf]
      %v513 = vld [vmem:[%s454 + $0xb0] sm:$0xf]
      %v514 = vld [vmem:[%s454 + $0xb4] sm:$0xf]
      %v515 = vld [vmem:[%s454 + $0xb8] sm:$0xf]
      %v516 = vld [vmem:[%s454 + $0xbc] sm:$0xf]
      %v517 = vld [vmem:[%s454 + $0xc0] sm:$0xf]
      %v518 = vld [vmem:[%s454 + $0xc4] sm:$0xf]
      %v519 = vld [vmem:[%s454 + $0xc8] sm:$0xf]
      %v520 = vld [vmem:[%s454 + $0xcc] sm:$0xf]
      %v521 = vld [vmem:[%s454 + $0xd0] sm:$0xf]
      %v522 = vld [vmem:[%s454 + $0xd4] sm:$0xf]
      %v523 = vld [vmem:[%s454 + $0xd8] sm:$0xf]
      %v524 = vld [vmem:[%s454 + $0xdc] sm:$0xf]
      %v525 = vld [vmem:[%s454 + $0xe0] sm:$0xf]
      %v526 = vld [vmem:[%s454 + $0xe4] sm:$0xf]
      %v527 = vld [vmem:[%s454 + $0xe8] sm:$0xf]
      %v528 = vld [vmem:[%s454 + $0xec] sm:$0xf]
      %v529 = vld [vmem:[%s454 + $0xf0] sm:$0xf]
      %v530 = vld [vmem:[%s454 + $0xf4] sm:$0xf]
      %v531 = vld [vmem:[%s454 + $0xf8] sm:$0xf]
      %v532 = vld [vmem:[%s454 + $0xfc] sm:$0xf]
      %v533 = vld [vmem:[%s4] sm:$0xff]
      %v534 = vld [vmem:[%s2] sm:$0xff]
      %v535 = vld [vmem:[%s2 + $0x8] sm:$0xff]
      %v536 = vld [vmem:[%s2 + $0x10] sm:$0xff]
      %v537 = vld [vmem:[%s2 + $0x18] sm:$0xff]
      %v538 = vld [vmem:[%s2 + $0x20] sm:$0xff]
      %v539 = vld [vmem:[%s2 + $0x28] sm:$0xff]
      %v540 = vld [vmem:[%s2 + $0x30] sm:$0xff]
      %v541 = vld [vmem:[%s2 + $0x38] sm:$0xff]
      %v606 = vunpack.c.l.b16 %v469
      %v607 = vunpack.c.l.b16 %v470
      %v608 = vunpack.c.l.b16 %v471
      %v609 = vunpack.c.l.b16 %v472
      %v610 = vunpack.c.l.b16 %v473
      %v611 = vunpack.c.l.b16 %v474
      %v612 = vunpack.c.l.b16 %v475
      %v613 = vunpack.c.l.b16 %v476
      %v614 = vunpack.c.l.b16 %v477
      %v615 = vunpack.c.l.b16 %v478
      %v616 = vunpack.c.l.b16 %v479
      %v617 = vunpack.c.l.b16 %v480
      %v618 = vunpack.c.l.b16 %v481
      %v619 = vunpack.c.l.b16 %v482
      %v620 = vunpack.c.l.b16 %v483
      %v621 = vunpack.c.l.b16 %v484
      %v622 = vunpack.c.l.b16 %v485
      %v623 = vunpack.c.l.b16 %v486
      %v624 = vunpack.c.l.b16 %v487
      %v625 = vunpack.c.l.b16 %v488
      %v626 = vunpack.c.l.b16 %v489
      %v627 = vunpack.c.l.b16 %v490
      %v628 = vunpack.c.l.b16 %v491
      %v629 = vunpack.c.l.b16 %v492
      %v630 = vunpack.c.l.b16 %v493
      %v631 = vunpack.c.l.b16 %v494
      %v632 = vunpack.c.l.b16 %v495
      %v633 = vunpack.c.l.b16 %v496
      %v634 = vunpack.c.l.b16 %v497
      %v635 = vunpack.c.l.b16 %v498
      %v636 = vunpack.c.l.b16 %v499
      %v637 = vunpack.c.l.b16 %v500
      %v638 = vunpack.c.l.b16 %v501
      %v639 = vunpack.c.l.b16 %v502
      %v640 = vunpack.c.l.b16 %v503
      %v641 = vunpack.c.l.b16 %v504
      %v642 = vunpack.c.l.b16 %v505
      %v643 = vunpack.c.l.b16 %v506
      %v644 = vunpack.c.l.b16 %v507
      %v645 = vunpack.c.l.b16 %v508
      %v646 = vunpack.c.l.b16 %v509
      %v647 = vunpack.c.l.b16 %v510
      %v648 = vunpack.c.l.b16 %v511
      %v649 = vunpack.c.l.b16 %v512
      %v650 = vunpack.c.l.b16 %v513
      %v651 = vunpack.c.l.b16 %v514
      %v652 = vunpack.c.l.b16 %v515
      %v653 = vunpack.c.l.b16 %v516
      %v654 = vunpack.c.l.b16 %v517
      %v655 = vunpack.c.l.b16 %v518
      %v656 = vunpack.c.l.b16 %v519
      %v657 = vunpack.c.l.b16 %v520
      %v658 = vunpack.c.l.b16 %v521
      %v659 = vunpack.c.l.b16 %v522
      %v660 = vunpack.c.l.b16 %v523
      %v661 = vunpack.c.l.b16 %v524
      %v662 = vunpack.c.l.b16 %v525
      %v663 = vunpack.c.l.b16 %v526
      %v664 = vunpack.c.l.b16 %v527
      %v665 = vunpack.c.l.b16 %v528
      %v666 = vunpack.c.l.b16 %v529
      %v667 = vunpack.c.l.b16 %v530
      %v668 = vunpack.c.l.b16 %v531
      %v669 = vunpack.c.l.b16 %v532
      %v670 = vpack.c.b16 %v607, %v606
      %v671 = vpack.c.b16 %v609, %v608
      %v672 = vpack.c.b16 %v611, %v610
      %v673 = vpack.c.b16 %v613, %v612
      %v674 = vpack.c.b16 %v615, %v614
      %v675 = vpack.c.b16 %v617, %v616
      %v676 = vpack.c.b16 %v619, %v618
      %v677 = vpack.c.b16 %v621, %v620
      %v678 = vpack.c.b16 %v623, %v622
      %v679 = vpack.c.b16 %v625, %v624
      %v680 = vpack.c.b16 %v627, %v626
      %v681 = vpack.c.b16 %v629, %v628
      %v682 = vpack.c.b16 %v631, %v630
      %v683 = vpack.c.b16 %v633, %v632
      %v684 = vpack.c.b16 %v635, %v634
      %v685 = vpack.c.b16 %v637, %v636
      %v686 = vpack.c.b16 %v639, %v638
      %v687 = vpack.c.b16 %v641, %v640
      %v688 = vpack.c.b16 %v643, %v642
      %v689 = vpack.c.b16 %v645, %v644
      %v690 = vpack.c.b16 %v647, %v646
      %v691 = vpack.c.b16 %v649, %v648
      %v692 = vpack.c.b16 %v651, %v650
      %v693 = vpack.c.b16 %v653, %v652
      %v694 = vpack.c.b16 %v655, %v654
      %v695 = vpack.c.b16 %v657, %v656
      %v696 = vpack.c.b16 %v659, %v658
      %v697 = vpack.c.b16 %v661, %v660
      %v698 = vpack.c.b16 %v663, %v662
      %v699 = vpack.c.b16 %v665, %v664
      %v700 = vpack.c.b16 %v667, %v666
      %v701 = vpack.c.b16 %v669, %v668
      %v710 = vunpack.c.l.b16 %v534
      %v711 = vunpack.c.h.b16 %v534
      %v712 = vunpack.c.l.b16 %v535
      %v713 = vunpack.c.h.b16 %v535
      %v714 = vunpack.c.l.b16 %v536
      %v715 = vunpack.c.h.b16 %v536
      %v716 = vunpack.c.l.b16 %v537
      %v717 = vunpack.c.h.b16 %v537
      %v718 = vunpack.c.l.b16 %v538
      %v719 = vunpack.c.h.b16 %v538
      %v720 = vunpack.c.l.b16 %v539
      %v721 = vunpack.c.h.b16 %v539
      %v722 = vunpack.c.l.b16 %v540
      %v723 = vunpack.c.h.b16 %v540
      %v724 = vunpack.c.l.b16 %v541
      %v725 = vunpack.c.h.b16 %v541
      %v726 = vpack.c.b16 %v712, %v710
      %v727 = vpack.c.b16 %v713, %v711
      %v728 = vpack.c.b16 %v716, %v714
      %v729 = vpack.c.b16 %v717, %v715
      %v730 = vpack.c.b16 %v720, %v718
      %v731 = vpack.c.b16 %v721, %v719
      %v732 = vpack.c.b16 %v724, %v722
      %v733 = vpack.c.b16 %v725, %v723
      %vm740 = vcmask 515072
      %v742 = vsel %vm740, %v670, 0
      %v745 = vsel %vm740, %v671, 0
      %v748 = vsel %vm740, %v672, 0
      %v751 = vsel %vm740, %v673, 0
      %v754 = vsel %vm740, %v674, 0
      %v757 = vsel %vm740, %v675, 0
      %v760 = vsel %vm740, %v676, 0
      %v763 = vsel %vm740, %v677, 0
      %v766 = vsel %vm740, %v678, 0
      %v769 = vsel %vm740, %v679, 0
      %v772 = vsel %vm740, %v680, 0
      %v775 = vsel %vm740, %v681, 0
      %v778 = vsel %vm740, %v682, 0
      %v781 = vsel %vm740, %v683, 0
      %v784 = vsel %vm740, %v684, 0
      %v787 = vsel %vm740, %v685, 0
      %v790 = vsel %vm740, %v686, 0
      %v793 = vsel %vm740, %v687, 0
      %v796 = vsel %vm740, %v688, 0
      %v799 = vsel %vm740, %v689, 0
      %v802 = vsel %vm740, %v690, 0
      %v805 = vsel %vm740, %v691, 0
      %v808 = vsel %vm740, %v692, 0
      %v811 = vsel %vm740, %v693, 0
      %v814 = vsel %vm740, %v694, 0
      %v817 = vsel %vm740, %v695, 0
      %v820 = vsel %vm740, %v696, 0
      %v823 = vsel %vm740, %v697, 0
      %v826 = vsel %vm740, %v698, 0
      %v829 = vsel %vm740, %v699, 0
      %v832 = vsel %vm740, %v700, 0
      %v835 = vsel %vm740, %v701, 0
      %vm837 = vcmask 1046528
      %vm838 = vcmask 1047552
      %v839 = vsel %vm837, 4294967295, 65535
      %v840 = vsel %vm838, %v839, 0
      %v842 = vand.u32 %v732, %v840
      %v845 = vand.u32 %v733, %v840
      %847 = vmatpush.bf16.msra.mxu0 0
      %848 = vmatpush.bf16.msra.mxu0 0
      %849 = vmatpush.bf16.msra.mxu0 0
      %850 = vmatpush.bf16.msra.mxu0 0
      %851 = vmatpush.bf16.msra.mxu0 %v842
      %852 = vmatpush.bf16.msra.mxu0 %v730
      %853 = vmatpush.bf16.msra.mxu0 %v728
      %854 = vmatpush.bf16.msra.mxu0 %v726
      %855 = vmatmul.bf16.gmra.mxu0 %v742
      %v856 = vpop.f32.mrf.mxu0
      %v857 = vadd.f32 0.0, %v856
      %v858 = vpop.f32.mrf.mxu0
      %v859 = vadd.f32 0.0, %v858
      %860 = vmatmul.bf16.gmra.mxu0 %v745
      %v861 = vpop.f32.mrf.mxu0
      %v862 = vadd.f32 0.0, %v861
      %v863 = vpop.f32.mrf.mxu0
      %v864 = vadd.f32 0.0, %v863
      %865 = vmatmul.bf16.gmra.mxu0 %v748
      %v866 = vpop.f32.mrf.mxu0
      %v867 = vadd.f32 0.0, %v866
      %v868 = vpop.f32.mrf.mxu0
      %v869 = vadd.f32 0.0, %v868
      %870 = vmatmul.bf16.gmra.mxu0 %v751
      %v871 = vpop.f32.mrf.mxu0
      %v872 = vadd.f32 0.0, %v871
      %v873 = vpop.f32.mrf.mxu0
      %v874 = vadd.f32 0.0, %v873
      %875 = vmatmul.bf16.gmra.mxu0 %v754
      %v876 = vpop.f32.mrf.mxu0
      %v877 = vadd.f32 0.0, %v876
      %v878 = vpop.f32.mrf.mxu0
      %v879 = vadd.f32 0.0, %v878
      %880 = vmatmul.bf16.gmra.mxu0 %v757
      %v881 = vpop.f32.mrf.mxu0
      %v882 = vadd.f32 0.0, %v881
      %v883 = vpop.f32.mrf.mxu0
      %v884 = vadd.f32 0.0, %v883
      %885 = vmatmul.bf16.gmra.mxu0 %v760
      %v886 = vpop.f32.mrf.mxu0
      %v887 = vadd.f32 0.0, %v886
      %v888 = vpop.f32.mrf.mxu0
      %v889 = vadd.f32 0.0, %v888
      %890 = vmatmul.bf16.gmra.mxu0 %v763
      %v891 = vpop.f32.mrf.mxu0
      %v892 = vadd.f32 0.0, %v891
      %v893 = vpop.f32.mrf.mxu0
      %v894 = vadd.f32 0.0, %v893
      %895 = vmatmul.bf16.gmra.mxu0 %v766
      %v896 = vpop.f32.mrf.mxu0
      %v897 = vadd.f32 0.0, %v896
      %v898 = vpop.f32.mrf.mxu0
      %v899 = vadd.f32 0.0, %v898
      %900 = vmatmul.bf16.gmra.mxu0 %v769
      %v901 = vpop.f32.mrf.mxu0
      %v902 = vadd.f32 0.0, %v901
      %v903 = vpop.f32.mrf.mxu0
      %v904 = vadd.f32 0.0, %v903
      %905 = vmatmul.bf16.gmra.mxu0 %v772
      %v906 = vpop.f32.mrf.mxu0
      %v907 = vadd.f32 0.0, %v906
      %v908 = vpop.f32.mrf.mxu0
      %v909 = vadd.f32 0.0, %v908
      %910 = vmatmul.bf16.gmra.mxu0 %v775
      %v911 = vpop.f32.mrf.mxu0
      %v912 = vadd.f32 0.0, %v911
      %v913 = vpop.f32.mrf.mxu0
      %v914 = vadd.f32 0.0, %v913
      %915 = vmatmul.bf16.gmra.mxu0 %v778
      %v916 = vpop.f32.mrf.mxu0
      %v917 = vadd.f32 0.0, %v916
      %v918 = vpop.f32.mrf.mxu0
      %v919 = vadd.f32 0.0, %v918
      %920 = vmatmul.bf16.gmra.mxu0 %v781
      %v921 = vpop.f32.mrf.mxu0
      %v922 = vadd.f32 0.0, %v921
      %v923 = vpop.f32.mrf.mxu0
      %v924 = vadd.f32 0.0, %v923
      %925 = vmatmul.bf16.gmra.mxu0 %v784
      %v926 = vpop.f32.mrf.mxu0
      %v927 = vadd.f32 0.0, %v926
      %v928 = vpop.f32.mrf.mxu0
      %v929 = vadd.f32 0.0, %v928
      %930 = vmatmul.bf16.gmra.mxu0 %v787
      %v931 = vpop.f32.mrf.mxu0
      %v932 = vadd.f32 0.0, %v931
      %v933 = vpop.f32.mrf.mxu0
      %v934 = vadd.f32 0.0, %v933
      %935 = vmatmul.bf16.gmra.mxu0 %v790
      %v936 = vpop.f32.mrf.mxu0
      %v937 = vadd.f32 0.0, %v936
      %v938 = vpop.f32.mrf.mxu0
      %v939 = vadd.f32 0.0, %v938
      %940 = vmatmul.bf16.gmra.mxu0 %v793
      %v941 = vpop.f32.mrf.mxu0
      %v942 = vadd.f32 0.0, %v941
      %v943 = vpop.f32.mrf.mxu0
      %v944 = vadd.f32 0.0, %v943
      %945 = vmatmul.bf16.gmra.mxu0 %v796
      %v946 = vpop.f32.mrf.mxu0
      %v947 = vadd.f32 0.0, %v946
      %v948 = vpop.f32.mrf.mxu0
      %v949 = vadd.f32 0.0, %v948
      %950 = vmatmul.bf16.gmra.mxu0 %v799
      %v951 = vpop.f32.mrf.mxu0
      %v952 = vadd.f32 0.0, %v951
      %v953 = vpop.f32.mrf.mxu0
      %v954 = vadd.f32 0.0, %v953
      %955 = vmatmul.bf16.gmra.mxu0 %v802
      %v956 = vpop.f32.mrf.mxu0
      %v957 = vadd.f32 0.0, %v956
      %v958 = vpop.f32.mrf.mxu0
      %v959 = vadd.f32 0.0, %v958
      %960 = vmatmul.bf16.gmra.mxu0 %v805
      %v961 = vpop.f32.mrf.mxu0
      %v962 = vadd.f32 0.0, %v961
      %v963 = vpop.f32.mrf.mxu0
      %v964 = vadd.f32 0.0, %v963
      %965 = vmatmul.bf16.gmra.mxu0 %v808
      %v966 = vpop.f32.mrf.mxu0
      %v967 = vadd.f32 0.0, %v966
      %v968 = vpop.f32.mrf.mxu0
      %v969 = vadd.f32 0.0, %v968
      %970 = vmatmul.bf16.gmra.mxu0 %v811
      %v971 = vpop.f32.mrf.mxu0
      %v972 = vadd.f32 0.0, %v971
      %v973 = vpop.f32.mrf.mxu0
      %v974 = vadd.f32 0.0, %v973
      %975 = vmatmul.bf16.gmra.mxu0 %v814
      %v976 = vpop.f32.mrf.mxu0
      %v977 = vadd.f32 0.0, %v976
      %v978 = vpop.f32.mrf.mxu0
      %v979 = vadd.f32 0.0, %v978
      %980 = vmatmul.bf16.gmra.mxu0 %v817
      %v981 = vpop.f32.mrf.mxu0
      %v982 = vadd.f32 0.0, %v981
      %v983 = vpop.f32.mrf.mxu0
      %v984 = vadd.f32 0.0, %v983
      %985 = vmatmul.bf16.gmra.mxu0 %v820
      %v986 = vpop.f32.mrf.mxu0
      %v987 = vadd.f32 0.0, %v986
      %v988 = vpop.f32.mrf.mxu0
      %v989 = vadd.f32 0.0, %v988
      %990 = vmatmul.bf16.gmra.mxu0 %v823
      %v991 = vpop.f32.mrf.mxu0
      %v992 = vadd.f32 0.0, %v991
      %v993 = vpop.f32.mrf.mxu0
      %v994 = vadd.f32 0.0, %v993
      %995 = vmatmul.bf16.gmra.mxu0 %v826
      %v996 = vpop.f32.mrf.mxu0
      %v997 = vadd.f32 0.0, %v996
      %v998 = vpop.f32.mrf.mxu0
      %v999 = vadd.f32 0.0, %v998
      %1000 = vmatmul.bf16.gmra.mxu0 %v829
      %v1001 = vpop.f32.mrf.mxu0
      %v1002 = vadd.f32 0.0, %v1001
      %v1003 = vpop.f32.mrf.mxu0
      %v1004 = vadd.f32 0.0, %v1003
      %1005 = vmatmul.bf16.gmra.mxu0 %v832
      %v1006 = vpop.f32.mrf.mxu0
      %v1007 = vadd.f32 0.0, %v1006
      %v1008 = vpop.f32.mrf.mxu0
      %v1009 = vadd.f32 0.0, %v1008
      %1010 = vmatmul.bf16.gmra.mxu0 %v835
      %v1011 = vpop.f32.mrf.mxu0
      %v1012 = vadd.f32 0.0, %v1011
      %v1013 = vpop.f32.mrf.mxu0
      %v1014 = vadd.f32 0.0, %v1013
      %1015 = vdwg.mxu0
      %1016 = vmatpush.bf16.msra.mxu0 0
      %1017 = vmatpush.bf16.msra.mxu0 0
      %1018 = vmatpush.bf16.msra.mxu0 0
      %1019 = vmatpush.bf16.msra.mxu0 0
      %1020 = vmatpush.bf16.msra.mxu0 %v845
      %1021 = vmatpush.bf16.msra.mxu0 %v731
      %1022 = vmatpush.bf16.msra.mxu0 %v729
      %1023 = vmatpush.bf16.msra.mxu0 %v727
      %1024 = vmatmul.bf16.gmra.mxu0 %v742
      %v1025 = vpop.f32.mrf.mxu0
      %v1026 = vadd.f32 0.0, %v1025
      %v1027 = vpop.f32.mrf.mxu0
      %v1028 = vadd.f32 0.0, %v1027
      %1029 = vmatmul.bf16.gmra.mxu0 %v745
      %v1030 = vpop.f32.mrf.mxu0
      %v1031 = vadd.f32 0.0, %v1030
      %v1032 = vpop.f32.mrf.mxu0
      %v1033 = vadd.f32 0.0, %v1032
      %1034 = vmatmul.bf16.gmra.mxu0 %v748
      %v1035 = vpop.f32.mrf.mxu0
      %v1036 = vadd.f32 0.0, %v1035
      %v1037 = vpop.f32.mrf.mxu0
      %v1038 = vadd.f32 0.0, %v1037
      %1039 = vmatmul.bf16.gmra.mxu0 %v751
      %v1040 = vpop.f32.mrf.mxu0
      %v1041 = vadd.f32 0.0, %v1040
      %v1042 = vpop.f32.mrf.mxu0
      %v1043 = vadd.f32 0.0, %v1042
      %1044 = vmatmul.bf16.gmra.mxu0 %v754
      %v1045 = vpop.f32.mrf.mxu0
      %v1046 = vadd.f32 0.0, %v1045
      %v1047 = vpop.f32.mrf.mxu0
      %v1048 = vadd.f32 0.0, %v1047
      %1049 = vmatmul.bf16.gmra.mxu0 %v757
      %v1050 = vpop.f32.mrf.mxu0
      %v1051 = vadd.f32 0.0, %v1050
      %v1052 = vpop.f32.mrf.mxu0
      %v1053 = vadd.f32 0.0, %v1052
      %1054 = vmatmul.bf16.gmra.mxu0 %v760
      %v1055 = vpop.f32.mrf.mxu0
      %v1056 = vadd.f32 0.0, %v1055
      %v1057 = vpop.f32.mrf.mxu0
      %v1058 = vadd.f32 0.0, %v1057
      %1059 = vmatmul.bf16.gmra.mxu0 %v763
      %v1060 = vpop.f32.mrf.mxu0
      %v1061 = vadd.f32 0.0, %v1060
      %v1062 = vpop.f32.mrf.mxu0
      %v1063 = vadd.f32 0.0, %v1062
      %1064 = vmatmul.bf16.gmra.mxu0 %v766
      %v1065 = vpop.f32.mrf.mxu0
      %v1066 = vadd.f32 0.0, %v1065
      %v1067 = vpop.f32.mrf.mxu0
      %v1068 = vadd.f32 0.0, %v1067
      %1069 = vmatmul.bf16.gmra.mxu0 %v769
      %v1070 = vpop.f32.mrf.mxu0
      %v1071 = vadd.f32 0.0, %v1070
      %v1072 = vpop.f32.mrf.mxu0
      %v1073 = vadd.f32 0.0, %v1072
      %1074 = vmatmul.bf16.gmra.mxu0 %v772
      %v1075 = vpop.f32.mrf.mxu0
      %v1076 = vadd.f32 0.0, %v1075
      %v1077 = vpop.f32.mrf.mxu0
      %v1078 = vadd.f32 0.0, %v1077
      %1079 = vmatmul.bf16.gmra.mxu0 %v775
      %v1080 = vpop.f32.mrf.mxu0
      %v1081 = vadd.f32 0.0, %v1080
      %v1082 = vpop.f32.mrf.mxu0
      %v1083 = vadd.f32 0.0, %v1082
      %1084 = vmatmul.bf16.gmra.mxu0 %v778
      %v1085 = vpop.f32.mrf.mxu0
      %v1086 = vadd.f32 0.0, %v1085
      %v1087 = vpop.f32.mrf.mxu0
      %v1088 = vadd.f32 0.0, %v1087
      %1089 = vmatmul.bf16.gmra.mxu0 %v781
      %v1090 = vpop.f32.mrf.mxu0
      %v1091 = vadd.f32 0.0, %v1090
      %v1092 = vpop.f32.mrf.mxu0
      %v1093 = vadd.f32 0.0, %v1092
      %1094 = vmatmul.bf16.gmra.mxu0 %v784
      %v1095 = vpop.f32.mrf.mxu0
      %v1096 = vadd.f32 0.0, %v1095
      %v1097 = vpop.f32.mrf.mxu0
      %v1098 = vadd.f32 0.0, %v1097
      %1099 = vmatmul.bf16.gmra.mxu0 %v787
      %v1100 = vpop.f32.mrf.mxu0
      %v1101 = vadd.f32 0.0, %v1100
      %v1102 = vpop.f32.mrf.mxu0
      %v1103 = vadd.f32 0.0, %v1102
      %1104 = vmatmul.bf16.gmra.mxu0 %v790
      %v1105 = vpop.f32.mrf.mxu0
      %v1106 = vadd.f32 0.0, %v1105
      %v1107 = vpop.f32.mrf.mxu0
      %v1108 = vadd.f32 0.0, %v1107
      %1109 = vmatmul.bf16.gmra.mxu0 %v793
      %v1110 = vpop.f32.mrf.mxu0
      %v1111 = vadd.f32 0.0, %v1110
      %v1112 = vpop.f32.mrf.mxu0
      %v1113 = vadd.f32 0.0, %v1112
      %1114 = vmatmul.bf16.gmra.mxu0 %v796
      %v1115 = vpop.f32.mrf.mxu0
      %v1116 = vadd.f32 0.0, %v1115
      %v1117 = vpop.f32.mrf.mxu0
      %v1118 = vadd.f32 0.0, %v1117
      %1119 = vmatmul.bf16.gmra.mxu0 %v799
      %v1120 = vpop.f32.mrf.mxu0
      %v1121 = vadd.f32 0.0, %v1120
      %v1122 = vpop.f32.mrf.mxu0
      %v1123 = vadd.f32 0.0, %v1122
      %1124 = vmatmul.bf16.gmra.mxu0 %v802
      %v1125 = vpop.f32.mrf.mxu0
      %v1126 = vadd.f32 0.0, %v1125
      %v1127 = vpop.f32.mrf.mxu0
      %v1128 = vadd.f32 0.0, %v1127
      %1129 = vmatmul.bf16.gmra.mxu0 %v805
      %v1130 = vpop.f32.mrf.mxu0
      %v1131 = vadd.f32 0.0, %v1130
      %v1132 = vpop.f32.mrf.mxu0
      %v1133 = vadd.f32 0.0, %v1132
      %1134 = vmatmul.bf16.gmra.mxu0 %v808
      %v1135 = vpop.f32.mrf.mxu0
      %v1136 = vadd.f32 0.0, %v1135
      %v1137 = vpop.f32.mrf.mxu0
      %v1138 = vadd.f32 0.0, %v1137
      %1139 = vmatmul.bf16.gmra.mxu0 %v811
      %v1140 = vpop.f32.mrf.mxu0
      %v1141 = vadd.f32 0.0, %v1140
      %v1142 = vpop.f32.mrf.mxu0
      %v1143 = vadd.f32 0.0, %v1142
      %1144 = vmatmul.bf16.gmra.mxu0 %v814
      %v1145 = vpop.f32.mrf.mxu0
      %v1146 = vadd.f32 0.0, %v1145
      %v1147 = vpop.f32.mrf.mxu0
      %v1148 = vadd.f32 0.0, %v1147
      %1149 = vmatmul.bf16.gmra.mxu0 %v817
      %v1150 = vpop.f32.mrf.mxu0
      %v1151 = vadd.f32 0.0, %v1150
      %v1152 = vpop.f32.mrf.mxu0
      %v1153 = vadd.f32 0.0, %v1152
      %1154 = vmatmul.bf16.gmra.mxu0 %v820
      %v1155 = vpop.f32.mrf.mxu0
      %v1156 = vadd.f32 0.0, %v1155
      %v1157 = vpop.f32.mrf.mxu0
      %v1158 = vadd.f32 0.0, %v1157
      %1159 = vmatmul.bf16.gmra.mxu0 %v823
      %v1160 = vpop.f32.mrf.mxu0
      %v1161 = vadd.f32 0.0, %v1160
      %v1162 = vpop.f32.mrf.mxu0
      %v1163 = vadd.f32 0.0, %v1162
      %1164 = vmatmul.bf16.gmra.mxu0 %v826
      %v1165 = vpop.f32.mrf.mxu0
      %v1166 = vadd.f32 0.0, %v1165
      %v1167 = vpop.f32.mrf.mxu0
      %v1168 = vadd.f32 0.0, %v1167
      %1169 = vmatmul.bf16.gmra.mxu0 %v829
      %v1170 = vpop.f32.mrf.mxu0
      %v1171 = vadd.f32 0.0, %v1170
      %v1172 = vpop.f32.mrf.mxu0
      %v1173 = vadd.f32 0.0, %v1172
      %1174 = vmatmul.bf16.gmra.mxu0 %v832
      %v1175 = vpop.f32.mrf.mxu0
      %v1176 = vadd.f32 0.0, %v1175
      %v1177 = vpop.f32.mrf.mxu0
      %v1178 = vadd.f32 0.0, %v1177
      %1179 = vmatmul.bf16.gmra.mxu0 %v835
      %v1180 = vpop.f32.mrf.mxu0
      %v1181 = vadd.f32 0.0, %v1180
      %v1182 = vpop.f32.mrf.mxu0
      %v1183 = vadd.f32 0.0, %v1182
      %1184 = vdwg.mxu0
      %v1185 = vperm.slane %v533, 0
      %v1186 = vadd.f32 %v857, %v1185
      %v1187 = vadd.f32 %v859, %v1185
      %v1188 = vadd.f32 %v862, %v1185
      %v1189 = vadd.f32 %v864, %v1185
      %v1190 = vadd.f32 %v867, %v1185
      %v1191 = vadd.f32 %v869, %v1185
      %v1192 = vadd.f32 %v872, %v1185
      %v1193 = vadd.f32 %v874, %v1185
      %v1194 = vadd.f32 %v877, %v1185
      %v1195 = vadd.f32 %v879, %v1185
      %v1196 = vadd.f32 %v882, %v1185
      %v1197 = vadd.f32 %v884, %v1185
      %v1198 = vadd.f32 %v887, %v1185
      %v1199 = vadd.f32 %v889, %v1185
      %v1200 = vadd.f32 %v892, %v1185
      %v1201 = vadd.f32 %v894, %v1185
      %v1202 = vadd.f32 %v897, %v1185
      %v1203 = vadd.f32 %v899, %v1185
      %v1204 = vadd.f32 %v902, %v1185
      %v1205 = vadd.f32 %v904, %v1185
      %v1206 = vadd.f32 %v907, %v1185
      %v1207 = vadd.f32 %v909, %v1185
      %v1208 = vadd.f32 %v912, %v1185
      %v1209 = vadd.f32 %v914, %v1185
      %v1210 = vadd.f32 %v917, %v1185
      %v1211 = vadd.f32 %v919, %v1185
      %v1212 = vadd.f32 %v922, %v1185
      %v1213 = vadd.f32 %v924, %v1185
      %v1214 = vadd.f32 %v927, %v1185
      %v1215 = vadd.f32 %v929, %v1185
      %v1216 = vadd.f32 %v932, %v1185
      %v1217 = vadd.f32 %v934, %v1185
      %v1218 = vadd.f32 %v937, %v1185
      %v1219 = vadd.f32 %v939, %v1185
      %v1220 = vadd.f32 %v942, %v1185
      %v1221 = vadd.f32 %v944, %v1185
      %v1222 = vadd.f32 %v947, %v1185
      %v1223 = vadd.f32 %v949, %v1185
      %v1224 = vadd.f32 %v952, %v1185
      %v1225 = vadd.f32 %v954, %v1185
      %v1226 = vadd.f32 %v957, %v1185
      %v1227 = vadd.f32 %v959, %v1185
      %v1228 = vadd.f32 %v962, %v1185
      %v1229 = vadd.f32 %v964, %v1185
      %v1230 = vadd.f32 %v967, %v1185
      %v1231 = vadd.f32 %v969, %v1185
      %v1232 = vadd.f32 %v972, %v1185
      %v1233 = vadd.f32 %v974, %v1185
      %v1234 = vadd.f32 %v977, %v1185
      %v1235 = vadd.f32 %v979, %v1185
      %v1236 = vadd.f32 %v982, %v1185
      %v1237 = vadd.f32 %v984, %v1185
      %v1238 = vadd.f32 %v987, %v1185
      %v1239 = vadd.f32 %v989, %v1185
      %v1240 = vadd.f32 %v992, %v1185
      %v1241 = vadd.f32 %v994, %v1185
      %v1242 = vadd.f32 %v997, %v1185
      %v1243 = vadd.f32 %v999, %v1185
      %v1244 = vadd.f32 %v1002, %v1185
      %v1245 = vadd.f32 %v1004, %v1185
      %v1246 = vadd.f32 %v1007, %v1185
      %v1247 = vadd.f32 %v1009, %v1185
      %v1248 = vadd.f32 %v1012, %v1185
      %v1249 = vadd.f32 %v1014, %v1185
      %v1250 = vmax.f32 %v1186, 0.0
      %v1251 = vmax.f32 %v1187, 0.0
      %v1252 = vmax.f32 %v1188, 0.0
      %v1253 = vmax.f32 %v1189, 0.0
      %v1254 = vmax.f32 %v1190, 0.0
      %v1255 = vmax.f32 %v1191, 0.0
      %v1256 = vmax.f32 %v1192, 0.0
      %v1257 = vmax.f32 %v1193, 0.0
      %v1258 = vmax.f32 %v1194, 0.0
      %v1259 = vmax.f32 %v1195, 0.0
      %v1260 = vmax.f32 %v1196, 0.0
      %v1261 = vmax.f32 %v1197, 0.0
      %v1262 = vmax.f32 %v1198, 0.0
      %v1263 = vmax.f32 %v1199, 0.0
      %v1264 = vmax.f32 %v1200, 0.0
      %v1265 = vmax.f32 %v1201, 0.0
      %v1266 = vmax.f32 %v1202, 0.0
      %v1267 = vmax.f32 %v1203, 0.0
      %v1268 = vmax.f32 %v1204, 0.0
      %v1269 = vmax.f32 %v1205, 0.0
      %v1270 = vmax.f32 %v1206, 0.0
      %v1271 = vmax.f32 %v1207, 0.0
      %v1272 = vmax.f32 %v1208, 0.0
      %v1273 = vmax.f32 %v1209, 0.0
      %v1274 = vmax.f32 %v1210, 0.0
      %v1275 = vmax.f32 %v1211, 0.0
      %v1276 = vmax.f32 %v1212, 0.0
      %v1277 = vmax.f32 %v1213, 0.0
      %v1278 = vmax.f32 %v1214, 0.0
      %v1279 = vmax.f32 %v1215, 0.0
      %v1280 = vmax.f32 %v1216, 0.0
      %v1281 = vmax.f32 %v1217, 0.0
      %v1282 = vmax.f32 %v1218, 0.0
      %v1283 = vmax.f32 %v1219, 0.0
      %v1284 = vmax.f32 %v1220, 0.0
      %v1285 = vmax.f32 %v1221, 0.0
      %v1286 = vmax.f32 %v1222, 0.0
      %v1287 = vmax.f32 %v1223, 0.0
      %v1288 = vmax.f32 %v1224, 0.0
      %v1289 = vmax.f32 %v1225, 0.0
      %v1290 = vmax.f32 %v1226, 0.0
      %v1291 = vmax.f32 %v1227, 0.0
      %v1292 = vmax.f32 %v1228, 0.0
      %v1293 = vmax.f32 %v1229, 0.0
      %v1294 = vmax.f32 %v1230, 0.0
      %v1295 = vmax.f32 %v1231, 0.0
      %v1296 = vmax.f32 %v1232, 0.0
      %v1297 = vmax.f32 %v1233, 0.0
      %v1298 = vmax.f32 %v1234, 0.0
      %v1299 = vmax.f32 %v1235, 0.0
      %v1300 = vmax.f32 %v1236, 0.0
      %v1301 = vmax.f32 %v1237, 0.0
      %v1302 = vmax.f32 %v1238, 0.0
      %v1303 = vmax.f32 %v1239, 0.0
      %v1304 = vmax.f32 %v1240, 0.0
      %v1305 = vmax.f32 %v1241, 0.0
      %v1306 = vmax.f32 %v1242, 0.0
      %v1307 = vmax.f32 %v1243, 0.0
      %v1308 = vmax.f32 %v1244, 0.0
      %v1309 = vmax.f32 %v1245, 0.0
      %v1310 = vmax.f32 %v1246, 0.0
      %v1311 = vmax.f32 %v1247, 0.0
      %v1312 = vmax.f32 %v1248, 0.0
      %v1313 = vmax.f32 %v1249, 0.0
      %v1314 = vpack.c.bf16 %v1251, %v1250
      %v1315 = vpack.c.bf16 %v1253, %v1252
      %v1316 = vpack.c.bf16 %v1255, %v1254
      %v1317 = vpack.c.bf16 %v1257, %v1256
      %v1318 = vpack.c.bf16 %v1259, %v1258
      %v1319 = vpack.c.bf16 %v1261, %v1260
      %v1320 = vpack.c.bf16 %v1263, %v1262
      %v1321 = vpack.c.bf16 %v1265, %v1264
      %v1322 = vpack.c.bf16 %v1267, %v1266
      %v1323 = vpack.c.bf16 %v1269, %v1268
      %v1324 = vpack.c.bf16 %v1271, %v1270
      %v1325 = vpack.c.bf16 %v1273, %v1272
      %v1326 = vpack.c.bf16 %v1275, %v1274
      %v1327 = vpack.c.bf16 %v1277, %v1276
      %v1328 = vpack.c.bf16 %v1279, %v1278
      %v1329 = vpack.c.bf16 %v1281, %v1280
      %v1330 = vpack.c.bf16 %v1283, %v1282
      %v1331 = vpack.c.bf16 %v1285, %v1284
      %v1332 = vpack.c.bf16 %v1287, %v1286
      %v1333 = vpack.c.bf16 %v1289, %v1288
      %v1334 = vpack.c.bf16 %v1291, %v1290
      %v1335 = vpack.c.bf16 %v1293, %v1292
      %v1336 = vpack.c.bf16 %v1295, %v1294
      %v1337 = vpack.c.bf16 %v1297, %v1296
      %v1338 = vpack.c.bf16 %v1299, %v1298
      %v1339 = vpack.c.bf16 %v1301, %v1300
      %v1340 = vpack.c.bf16 %v1303, %v1302
      %v1341 = vpack.c.bf16 %v1305, %v1304
      %v1342 = vpack.c.bf16 %v1307, %v1306
      %v1343 = vpack.c.bf16 %v1309, %v1308
      %v1344 = vpack.c.bf16 %v1311, %v1310
      %v1345 = vpack.c.bf16 %v1313, %v1312
      %v1346 = vld [vmem:[%s3] sm:$0xf]
      %v1347 = vld [vmem:[%s3 + $0x4] sm:$0xf]
      %v1348 = vld [vmem:[%s3 + $0x8] sm:$0xf]
      %v1349 = vld [vmem:[%s3 + $0xc] sm:$0xf]
      %v1350 = vld [vmem:[%s3 + $0x10] sm:$0xf]
      %v1351 = vld [vmem:[%s3 + $0x14] sm:$0xf]
      %v1352 = vld [vmem:[%s3 + $0x18] sm:$0xf]
      %v1353 = vld [vmem:[%s3 + $0x1c] sm:$0xf]
      %v1354 = vld [vmem:[%s3 + $0x20] sm:$0xf]
      %v1355 = vld [vmem:[%s3 + $0x24] sm:$0xf]
      %v1356 = vld [vmem:[%s3 + $0x28] sm:$0xf]
      %v1357 = vld [vmem:[%s3 + $0x2c] sm:$0xf]
      %v1358 = vld [vmem:[%s3 + $0x30] sm:$0xf]
      %v1359 = vld [vmem:[%s3 + $0x34] sm:$0xf]
      %v1360 = vld [vmem:[%s3 + $0x38] sm:$0xf]
      %v1361 = vld [vmem:[%s3 + $0x3c] sm:$0xf]
      %v1362 = vperm.slane %v533, 1
      %v1379 = vunpack.c.l.b16 %v1346
      %v1380 = vunpack.c.l.b16 %v1347
      %v1381 = vunpack.c.l.b16 %v1348
      %v1382 = vunpack.c.l.b16 %v1349
      %v1383 = vunpack.c.l.b16 %v1350
      %v1384 = vunpack.c.l.b16 %v1351
      %v1385 = vunpack.c.l.b16 %v1352
      %v1386 = vunpack.c.l.b16 %v1353
      %v1387 = vunpack.c.l.b16 %v1354
      %v1388 = vunpack.c.l.b16 %v1355
      %v1389 = vunpack.c.l.b16 %v1356
      %v1390 = vunpack.c.l.b16 %v1357
      %v1391 = vunpack.c.l.b16 %v1358
      %v1392 = vunpack.c.l.b16 %v1359
      %v1393 = vunpack.c.l.b16 %v1360
      %v1394 = vunpack.c.l.b16 %v1361
      %v1395 = vpack.c.b16 %v1380, %v1379
      %v1396 = vpack.c.b16 %v1382, %v1381
      %v1397 = vpack.c.b16 %v1384, %v1383
      %v1398 = vpack.c.b16 %v1386, %v1385
      %v1399 = vpack.c.b16 %v1388, %v1387
      %v1400 = vpack.c.b16 %v1390, %v1389
      %v1401 = vpack.c.b16 %v1392, %v1391
      %v1402 = vpack.c.b16 %v1394, %v1393
      %1411 = vmatpush.bf16.msra.mxu0 %v1402
      %1412 = vmatpush.bf16.msra.mxu0 %v1401
      %1413 = vmatpush.bf16.msra.mxu0 %v1400
      %1414 = vmatpush.bf16.msra.mxu0 %v1399
      %1415 = vmatpush.bf16.msra.mxu0 %v1398
      %1416 = vmatpush.bf16.msra.mxu0 %v1397
      %1417 = vmatpush.bf16.msra.mxu0 %v1396
      %1418 = vmatpush.bf16.msra.mxu0 %v1395
      %1419 = vmatmul.bf16.gmra.mxu0 %v1314
      %v1420 = vpop.f32.mrf.mxu0
      %v1421 = vadd.f32 %v1362, %v1420
      %v1422 = vpop.f32.mrf.mxu0
      %v1423 = vadd.f32 %v1362, %v1422
      %1424 = vmatmul.bf16.gmra.mxu0 %v1315
      %v1425 = vpop.f32.mrf.mxu0
      %v1426 = vadd.f32 %v1362, %v1425
      %v1427 = vpop.f32.mrf.mxu0
      %v1428 = vadd.f32 %v1362, %v1427
      %1429 = vmatmul.bf16.gmra.mxu0 %v1316
      %v1430 = vpop.f32.mrf.mxu0
      %v1431 = vadd.f32 %v1362, %v1430
      %v1432 = vpop.f32.mrf.mxu0
      %v1433 = vadd.f32 %v1362, %v1432
      %1434 = vmatmul.bf16.gmra.mxu0 %v1317
      %v1435 = vpop.f32.mrf.mxu0
      %v1436 = vadd.f32 %v1362, %v1435
      %v1437 = vpop.f32.mrf.mxu0
      %v1438 = vadd.f32 %v1362, %v1437
      %1439 = vmatmul.bf16.gmra.mxu0 %v1318
      %v1440 = vpop.f32.mrf.mxu0
      %v1441 = vadd.f32 %v1362, %v1440
      %v1442 = vpop.f32.mrf.mxu0
      %v1443 = vadd.f32 %v1362, %v1442
      %1444 = vmatmul.bf16.gmra.mxu0 %v1319
      %v1445 = vpop.f32.mrf.mxu0
      %v1446 = vadd.f32 %v1362, %v1445
      %v1447 = vpop.f32.mrf.mxu0
      %v1448 = vadd.f32 %v1362, %v1447
      %1449 = vmatmul.bf16.gmra.mxu0 %v1320
      %v1450 = vpop.f32.mrf.mxu0
      %v1451 = vadd.f32 %v1362, %v1450
      %v1452 = vpop.f32.mrf.mxu0
      %v1453 = vadd.f32 %v1362, %v1452
      %1454 = vmatmul.bf16.gmra.mxu0 %v1321
      %v1455 = vpop.f32.mrf.mxu0
      %v1456 = vadd.f32 %v1362, %v1455
      %v1457 = vpop.f32.mrf.mxu0
      %v1458 = vadd.f32 %v1362, %v1457
      %1459 = vmatmul.bf16.gmra.mxu0 %v1322
      %v1460 = vpop.f32.mrf.mxu0
      %v1461 = vadd.f32 %v1362, %v1460
      %v1462 = vpop.f32.mrf.mxu0
      %v1463 = vadd.f32 %v1362, %v1462
      %1464 = vmatmul.bf16.gmra.mxu0 %v1323
      %v1465 = vpop.f32.mrf.mxu0
      %v1466 = vadd.f32 %v1362, %v1465
      %v1467 = vpop.f32.mrf.mxu0
      %v1468 = vadd.f32 %v1362, %v1467
      %1469 = vmatmul.bf16.gmra.mxu0 %v1324
      %v1470 = vpop.f32.mrf.mxu0
      %v1471 = vadd.f32 %v1362, %v1470
      %v1472 = vpop.f32.mrf.mxu0
      %v1473 = vadd.f32 %v1362, %v1472
      %1474 = vmatmul.bf16.gmra.mxu0 %v1325
      %v1475 = vpop.f32.mrf.mxu0
      %v1476 = vadd.f32 %v1362, %v1475
      %v1477 = vpop.f32.mrf.mxu0
      %v1478 = vadd.f32 %v1362, %v1477
      %1479 = vmatmul.bf16.gmra.mxu0 %v1326
      %v1480 = vpop.f32.mrf.mxu0
      %v1481 = vadd.f32 %v1362, %v1480
      %v1482 = vpop.f32.mrf.mxu0
      %v1483 = vadd.f32 %v1362, %v1482
      %1484 = vmatmul.bf16.gmra.mxu0 %v1327
      %v1485 = vpop.f32.mrf.mxu0
      %v1486 = vadd.f32 %v1362, %v1485
      %v1487 = vpop.f32.mrf.mxu0
      %v1488 = vadd.f32 %v1362, %v1487
      %1489 = vmatmul.bf16.gmra.mxu0 %v1328
      %v1490 = vpop.f32.mrf.mxu0
      %v1491 = vadd.f32 %v1362, %v1490
      %v1492 = vpop.f32.mrf.mxu0
      %v1493 = vadd.f32 %v1362, %v1492
      %1494 = vmatmul.bf16.gmra.mxu0 %v1329
      %v1495 = vpop.f32.mrf.mxu0
      %v1496 = vadd.f32 %v1362, %v1495
      %v1497 = vpop.f32.mrf.mxu0
      %v1498 = vadd.f32 %v1362, %v1497
      %1499 = vmatmul.bf16.gmra.mxu0 %v1330
      %v1500 = vpop.f32.mrf.mxu0
      %v1501 = vadd.f32 %v1362, %v1500
      %v1502 = vpop.f32.mrf.mxu0
      %v1503 = vadd.f32 %v1362, %v1502
      %1504 = vmatmul.bf16.gmra.mxu0 %v1331
      %v1505 = vpop.f32.mrf.mxu0
      %v1506 = vadd.f32 %v1362, %v1505
      %v1507 = vpop.f32.mrf.mxu0
      %v1508 = vadd.f32 %v1362, %v1507
      %1509 = vmatmul.bf16.gmra.mxu0 %v1332
      %v1510 = vpop.f32.mrf.mxu0
      %v1511 = vadd.f32 %v1362, %v1510
      %v1512 = vpop.f32.mrf.mxu0
      %v1513 = vadd.f32 %v1362, %v1512
      %1514 = vmatmul.bf16.gmra.mxu0 %v1333
      %v1515 = vpop.f32.mrf.mxu0
      %v1516 = vadd.f32 %v1362, %v1515
      %v1517 = vpop.f32.mrf.mxu0
      %v1518 = vadd.f32 %v1362, %v1517
      %1519 = vmatmul.bf16.gmra.mxu0 %v1334
      %v1520 = vpop.f32.mrf.mxu0
      %v1521 = vadd.f32 %v1362, %v1520
      %v1522 = vpop.f32.mrf.mxu0
      %v1523 = vadd.f32 %v1362, %v1522
      %1524 = vmatmul.bf16.gmra.mxu0 %v1335
      %v1525 = vpop.f32.mrf.mxu0
      %v1526 = vadd.f32 %v1362, %v1525
      %v1527 = vpop.f32.mrf.mxu0
      %v1528 = vadd.f32 %v1362, %v1527
      %1529 = vmatmul.bf16.gmra.mxu0 %v1336
      %v1530 = vpop.f32.mrf.mxu0
      %v1531 = vadd.f32 %v1362, %v1530
      %v1532 = vpop.f32.mrf.mxu0
      %v1533 = vadd.f32 %v1362, %v1532
      %1534 = vmatmul.bf16.gmra.mxu0 %v1337
      %v1535 = vpop.f32.mrf.mxu0
      %v1536 = vadd.f32 %v1362, %v1535
      %v1537 = vpop.f32.mrf.mxu0
      %v1538 = vadd.f32 %v1362, %v1537
      %1539 = vmatmul.bf16.gmra.mxu0 %v1338
      %v1540 = vpop.f32.mrf.mxu0
      %v1541 = vadd.f32 %v1362, %v1540
      %v1542 = vpop.f32.mrf.mxu0
      %v1543 = vadd.f32 %v1362, %v1542
      %1544 = vmatmul.bf16.gmra.mxu0 %v1339
      %v1545 = vpop.f32.mrf.mxu0
      %v1546 = vadd.f32 %v1362, %v1545
      %v1547 = vpop.f32.mrf.mxu0
      %v1548 = vadd.f32 %v1362, %v1547
      %1549 = vmatmul.bf16.gmra.mxu0 %v1340
      %v1550 = vpop.f32.mrf.mxu0
      %v1551 = vadd.f32 %v1362, %v1550
      %v1552 = vpop.f32.mrf.mxu0
      %v1553 = vadd.f32 %v1362, %v1552
      %1554 = vmatmul.bf16.gmra.mxu0 %v1341
      %v1555 = vpop.f32.mrf.mxu0
      %v1556 = vadd.f32 %v1362, %v1555
      %v1557 = vpop.f32.mrf.mxu0
      %v1558 = vadd.f32 %v1362, %v1557
      %1559 = vmatmul.bf16.gmra.mxu0 %v1342
      %v1560 = vpop.f32.mrf.mxu0
      %v1561 = vadd.f32 %v1362, %v1560
      %v1562 = vpop.f32.mrf.mxu0
      %v1563 = vadd.f32 %v1362, %v1562
      %1564 = vmatmul.bf16.gmra.mxu0 %v1343
      %v1565 = vpop.f32.mrf.mxu0
      %v1566 = vadd.f32 %v1362, %v1565
      %v1567 = vpop.f32.mrf.mxu0
      %v1568 = vadd.f32 %v1362, %v1567
      %1569 = vmatmul.bf16.gmra.mxu0 %v1344
      %v1570 = vpop.f32.mrf.mxu0
      %v1571 = vadd.f32 %v1362, %v1570
      %v1572 = vpop.f32.mrf.mxu0
      %v1573 = vadd.f32 %v1362, %v1572
      %1574 = vmatmul.bf16.gmra.mxu0 %v1345
      %v1575 = vpop.f32.mrf.mxu0
      %v1576 = vadd.f32 %v1362, %v1575
      %v1577 = vpop.f32.mrf.mxu0
      %v1578 = vadd.f32 %v1362, %v1577
      %1579 = vdwg.mxu0
      %v1580 = vmax.f32 %v1421, 0.0
      %v1581 = vmax.f32 %v1423, 0.0
      %v1582 = vmax.f32 %v1426, 0.0
      %v1583 = vmax.f32 %v1428, 0.0
      %v1584 = vmax.f32 %v1431, 0.0
      %v1585 = vmax.f32 %v1433, 0.0
      %v1586 = vmax.f32 %v1436, 0.0
      %v1587 = vmax.f32 %v1438, 0.0
      %v1588 = vmax.f32 %v1441, 0.0
      %v1589 = vmax.f32 %v1443, 0.0
      %v1590 = vmax.f32 %v1446, 0.0
      %v1591 = vmax.f32 %v1448, 0.0
      %v1592 = vmax.f32 %v1451, 0.0
      %v1593 = vmax.f32 %v1453, 0.0
      %v1594 = vmax.f32 %v1456, 0.0
      %v1595 = vmax.f32 %v1458, 0.0
      %v1596 = vmax.f32 %v1461, 0.0
      %v1597 = vmax.f32 %v1463, 0.0
      %v1598 = vmax.f32 %v1466, 0.0
      %v1599 = vmax.f32 %v1468, 0.0
      %v1600 = vmax.f32 %v1471, 0.0
      %v1601 = vmax.f32 %v1473, 0.0
      %v1602 = vmax.f32 %v1476, 0.0
      %v1603 = vmax.f32 %v1478, 0.0
      %v1604 = vmax.f32 %v1481, 0.0
      %v1605 = vmax.f32 %v1483, 0.0
      %v1606 = vmax.f32 %v1486, 0.0
      %v1607 = vmax.f32 %v1488, 0.0
      %v1608 = vmax.f32 %v1491, 0.0
      %v1609 = vmax.f32 %v1493, 0.0
      %v1610 = vmax.f32 %v1496, 0.0
      %v1611 = vmax.f32 %v1498, 0.0
      %v1612 = vmax.f32 %v1501, 0.0
      %v1613 = vmax.f32 %v1503, 0.0
      %v1614 = vmax.f32 %v1506, 0.0
      %v1615 = vmax.f32 %v1508, 0.0
      %v1616 = vmax.f32 %v1511, 0.0
      %v1617 = vmax.f32 %v1513, 0.0
      %v1618 = vmax.f32 %v1516, 0.0
      %v1619 = vmax.f32 %v1518, 0.0
      %v1620 = vmax.f32 %v1521, 0.0
      %v1621 = vmax.f32 %v1523, 0.0
      %v1622 = vmax.f32 %v1526, 0.0
      %v1623 = vmax.f32 %v1528, 0.0
      %v1624 = vmax.f32 %v1531, 0.0
      %v1625 = vmax.f32 %v1533, 0.0
      %v1626 = vmax.f32 %v1536, 0.0
      %v1627 = vmax.f32 %v1538, 0.0
      %v1628 = vmax.f32 %v1541, 0.0
      %v1629 = vmax.f32 %v1543, 0.0
      %v1630 = vmax.f32 %v1546, 0.0
      %v1631 = vmax.f32 %v1548, 0.0
      %v1632 = vmax.f32 %v1551, 0.0
      %v1633 = vmax.f32 %v1553, 0.0
      %v1634 = vmax.f32 %v1556, 0.0
      %v1635 = vmax.f32 %v1558, 0.0
      %v1636 = vmax.f32 %v1561, 0.0
      %v1637 = vmax.f32 %v1563, 0.0
      %v1638 = vmax.f32 %v1566, 0.0
      %v1639 = vmax.f32 %v1568, 0.0
      %v1640 = vmax.f32 %v1571, 0.0
      %v1641 = vmax.f32 %v1573, 0.0
      %v1642 = vmax.f32 %v1576, 0.0
      %v1643 = vmax.f32 %v1578, 0.0
      %v1644 = vpack.c.bf16 %v1581, %v1580
      %v1645 = vpack.c.bf16 %v1583, %v1582
      %v1646 = vpack.c.bf16 %v1585, %v1584
      %v1647 = vpack.c.bf16 %v1587, %v1586
      %v1648 = vpack.c.bf16 %v1589, %v1588
      %v1649 = vpack.c.bf16 %v1591, %v1590
      %v1650 = vpack.c.bf16 %v1593, %v1592
      %v1651 = vpack.c.bf16 %v1595, %v1594
      %v1652 = vpack.c.bf16 %v1597, %v1596
      %v1653 = vpack.c.bf16 %v1599, %v1598
      %v1654 = vpack.c.bf16 %v1601, %v1600
      %v1655 = vpack.c.bf16 %v1603, %v1602
      %v1656 = vpack.c.bf16 %v1605, %v1604
      %v1657 = vpack.c.bf16 %v1607, %v1606
      %v1658 = vpack.c.bf16 %v1609, %v1608
      %v1659 = vpack.c.bf16 %v1611, %v1610
      %v1660 = vpack.c.bf16 %v1613, %v1612
      %v1661 = vpack.c.bf16 %v1615, %v1614
      %v1662 = vpack.c.bf16 %v1617, %v1616
      %v1663 = vpack.c.bf16 %v1619, %v1618
      %v1664 = vpack.c.bf16 %v1621, %v1620
      %v1665 = vpack.c.bf16 %v1623, %v1622
      %v1666 = vpack.c.bf16 %v1625, %v1624
      %v1667 = vpack.c.bf16 %v1627, %v1626
      %v1668 = vpack.c.bf16 %v1629, %v1628
      %v1669 = vpack.c.bf16 %v1631, %v1630
      %v1670 = vpack.c.bf16 %v1633, %v1632
      %v1671 = vpack.c.bf16 %v1635, %v1634
      %v1672 = vpack.c.bf16 %v1637, %v1636
      %v1673 = vpack.c.bf16 %v1639, %v1638
      %v1674 = vpack.c.bf16 %v1641, %v1640
      %v1675 = vpack.c.bf16 %v1643, %v1642
      %s1676 = scalar_lea.vmem %s3, 64
      %v1677 = vld [vmem:[%s1676] sm:$0xf]
      %v1678 = vld [vmem:[%s1676 + $0x4] sm:$0xf]
      %v1679 = vld [vmem:[%s1676 + $0x8] sm:$0xf]
      %v1680 = vld [vmem:[%s1676 + $0xc] sm:$0xf]
      %v1681 = vld [vmem:[%s1676 + $0x10] sm:$0xf]
      %v1682 = vld [vmem:[%s1676 + $0x14] sm:$0xf]
      %v1683 = vld [vmem:[%s1676 + $0x18] sm:$0xf]
      %v1684 = vld [vmem:[%s1676 + $0x1c] sm:$0xf]
      %v1685 = vld [vmem:[%s1676 + $0x20] sm:$0xf]
      %v1686 = vld [vmem:[%s1676 + $0x24] sm:$0xf]
      %v1687 = vld [vmem:[%s1676 + $0x28] sm:$0xf]
      %v1688 = vld [vmem:[%s1676 + $0x2c] sm:$0xf]
      %v1689 = vld [vmem:[%s1676 + $0x30] sm:$0xf]
      %v1690 = vld [vmem:[%s1676 + $0x34] sm:$0xf]
      %v1691 = vld [vmem:[%s1676 + $0x38] sm:$0xf]
      %v1692 = vld [vmem:[%s1676 + $0x3c] sm:$0xf]
      %v1693 = vperm.slane %v533, 2
      %v1710 = vunpack.c.l.b16 %v1677
      %v1711 = vunpack.c.l.b16 %v1678
      %v1712 = vunpack.c.l.b16 %v1679
      %v1713 = vunpack.c.l.b16 %v1680
      %v1714 = vunpack.c.l.b16 %v1681
      %v1715 = vunpack.c.l.b16 %v1682
      %v1716 = vunpack.c.l.b16 %v1683
      %v1717 = vunpack.c.l.b16 %v1684
      %v1718 = vunpack.c.l.b16 %v1685
      %v1719 = vunpack.c.l.b16 %v1686
      %v1720 = vunpack.c.l.b16 %v1687
      %v1721 = vunpack.c.l.b16 %v1688
      %v1722 = vunpack.c.l.b16 %v1689
      %v1723 = vunpack.c.l.b16 %v1690
      %v1724 = vunpack.c.l.b16 %v1691
      %v1725 = vunpack.c.l.b16 %v1692
      %v1726 = vpack.c.b16 %v1711, %v1710
      %v1727 = vpack.c.b16 %v1713, %v1712
      %v1728 = vpack.c.b16 %v1715, %v1714
      %v1729 = vpack.c.b16 %v1717, %v1716
      %v1730 = vpack.c.b16 %v1719, %v1718
      %v1731 = vpack.c.b16 %v1721, %v1720
      %v1732 = vpack.c.b16 %v1723, %v1722
      %v1733 = vpack.c.b16 %v1725, %v1724
      %1742 = vmatpush.bf16.msra.mxu0 %v1733
      %1743 = vmatpush.bf16.msra.mxu0 %v1732
      %1744 = vmatpush.bf16.msra.mxu0 %v1731
      %1745 = vmatpush.bf16.msra.mxu0 %v1730
      %1746 = vmatpush.bf16.msra.mxu0 %v1729
      %1747 = vmatpush.bf16.msra.mxu0 %v1728
      %1748 = vmatpush.bf16.msra.mxu0 %v1727
      %1749 = vmatpush.bf16.msra.mxu0 %v1726
      %1750 = vmatmul.bf16.gmra.mxu0 %v1644
      %v1751 = vpop.f32.mrf.mxu0
      %v1752 = vadd.f32 %v1693, %v1751
      %v1753 = vpop.f32.mrf.mxu0
      %v1754 = vadd.f32 %v1693, %v1753
      %1755 = vmatmul.bf16.gmra.mxu0 %v1645
      %v1756 = vpop.f32.mrf.mxu0
      %v1757 = vadd.f32 %v1693, %v1756
      %v1758 = vpop.f32.mrf.mxu0
      %v1759 = vadd.f32 %v1693, %v1758
      %1760 = vmatmul.bf16.gmra.mxu0 %v1646
      %v1761 = vpop.f32.mrf.mxu0
      %v1762 = vadd.f32 %v1693, %v1761
      %v1763 = vpop.f32.mrf.mxu0
      %v1764 = vadd.f32 %v1693, %v1763
      %1765 = vmatmul.bf16.gmra.mxu0 %v1647
      %v1766 = vpop.f32.mrf.mxu0
      %v1767 = vadd.f32 %v1693, %v1766
      %v1768 = vpop.f32.mrf.mxu0
      %v1769 = vadd.f32 %v1693, %v1768
      %1770 = vmatmul.bf16.gmra.mxu0 %v1648
      %v1771 = vpop.f32.mrf.mxu0
      %v1772 = vadd.f32 %v1693, %v1771
      %v1773 = vpop.f32.mrf.mxu0
      %v1774 = vadd.f32 %v1693, %v1773
      %1775 = vmatmul.bf16.gmra.mxu0 %v1649
      %v1776 = vpop.f32.mrf.mxu0
      %v1777 = vadd.f32 %v1693, %v1776
      %v1778 = vpop.f32.mrf.mxu0
      %v1779 = vadd.f32 %v1693, %v1778
      %1780 = vmatmul.bf16.gmra.mxu0 %v1650
      %v1781 = vpop.f32.mrf.mxu0
      %v1782 = vadd.f32 %v1693, %v1781
      %v1783 = vpop.f32.mrf.mxu0
      %v1784 = vadd.f32 %v1693, %v1783
      %1785 = vmatmul.bf16.gmra.mxu0 %v1651
      %v1786 = vpop.f32.mrf.mxu0
      %v1787 = vadd.f32 %v1693, %v1786
      %v1788 = vpop.f32.mrf.mxu0
      %v1789 = vadd.f32 %v1693, %v1788
      %1790 = vmatmul.bf16.gmra.mxu0 %v1652
      %v1791 = vpop.f32.mrf.mxu0
      %v1792 = vadd.f32 %v1693, %v1791
      %v1793 = vpop.f32.mrf.mxu0
      %v1794 = vadd.f32 %v1693, %v1793
      %1795 = vmatmul.bf16.gmra.mxu0 %v1653
      %v1796 = vpop.f32.mrf.mxu0
      %v1797 = vadd.f32 %v1693, %v1796
      %v1798 = vpop.f32.mrf.mxu0
      %v1799 = vadd.f32 %v1693, %v1798
      %1800 = vmatmul.bf16.gmra.mxu0 %v1654
      %v1801 = vpop.f32.mrf.mxu0
      %v1802 = vadd.f32 %v1693, %v1801
      %v1803 = vpop.f32.mrf.mxu0
      %v1804 = vadd.f32 %v1693, %v1803
      %1805 = vmatmul.bf16.gmra.mxu0 %v1655
      %v1806 = vpop.f32.mrf.mxu0
      %v1807 = vadd.f32 %v1693, %v1806
      %v1808 = vpop.f32.mrf.mxu0
      %v1809 = vadd.f32 %v1693, %v1808
      %1810 = vmatmul.bf16.gmra.mxu0 %v1656
      %v1811 = vpop.f32.mrf.mxu0
      %v1812 = vadd.f32 %v1693, %v1811
      %v1813 = vpop.f32.mrf.mxu0
      %v1814 = vadd.f32 %v1693, %v1813
      %1815 = vmatmul.bf16.gmra.mxu0 %v1657
      %v1816 = vpop.f32.mrf.mxu0
      %v1817 = vadd.f32 %v1693, %v1816
      %v1818 = vpop.f32.mrf.mxu0
      %v1819 = vadd.f32 %v1693, %v1818
      %1820 = vmatmul.bf16.gmra.mxu0 %v1658
      %v1821 = vpop.f32.mrf.mxu0
      %v1822 = vadd.f32 %v1693, %v1821
      %v1823 = vpop.f32.mrf.mxu0
      %v1824 = vadd.f32 %v1693, %v1823
      %1825 = vmatmul.bf16.gmra.mxu0 %v1659
      %v1826 = vpop.f32.mrf.mxu0
      %v1827 = vadd.f32 %v1693, %v1826
      %v1828 = vpop.f32.mrf.mxu0
      %v1829 = vadd.f32 %v1693, %v1828
      %1830 = vmatmul.bf16.gmra.mxu0 %v1660
      %v1831 = vpop.f32.mrf.mxu0
      %v1832 = vadd.f32 %v1693, %v1831
      %v1833 = vpop.f32.mrf.mxu0
      %v1834 = vadd.f32 %v1693, %v1833
      %1835 = vmatmul.bf16.gmra.mxu0 %v1661
      %v1836 = vpop.f32.mrf.mxu0
      %v1837 = vadd.f32 %v1693, %v1836
      %v1838 = vpop.f32.mrf.mxu0
      %v1839 = vadd.f32 %v1693, %v1838
      %1840 = vmatmul.bf16.gmra.mxu0 %v1662
      %v1841 = vpop.f32.mrf.mxu0
      %v1842 = vadd.f32 %v1693, %v1841
      %v1843 = vpop.f32.mrf.mxu0
      %v1844 = vadd.f32 %v1693, %v1843
      %1845 = vmatmul.bf16.gmra.mxu0 %v1663
      %v1846 = vpop.f32.mrf.mxu0
      %v1847 = vadd.f32 %v1693, %v1846
      %v1848 = vpop.f32.mrf.mxu0
      %v1849 = vadd.f32 %v1693, %v1848
      %1850 = vmatmul.bf16.gmra.mxu0 %v1664
      %v1851 = vpop.f32.mrf.mxu0
      %v1852 = vadd.f32 %v1693, %v1851
      %v1853 = vpop.f32.mrf.mxu0
      %v1854 = vadd.f32 %v1693, %v1853
      %1855 = vmatmul.bf16.gmra.mxu0 %v1665
      %v1856 = vpop.f32.mrf.mxu0
      %v1857 = vadd.f32 %v1693, %v1856
      %v1858 = vpop.f32.mrf.mxu0
      %v1859 = vadd.f32 %v1693, %v1858
      %1860 = vmatmul.bf16.gmra.mxu0 %v1666
      %v1861 = vpop.f32.mrf.mxu0
      %v1862 = vadd.f32 %v1693, %v1861
      %v1863 = vpop.f32.mrf.mxu0
      %v1864 = vadd.f32 %v1693, %v1863
      %1865 = vmatmul.bf16.gmra.mxu0 %v1667
      %v1866 = vpop.f32.mrf.mxu0
      %v1867 = vadd.f32 %v1693, %v1866
      %v1868 = vpop.f32.mrf.mxu0
      %v1869 = vadd.f32 %v1693, %v1868
      %1870 = vmatmul.bf16.gmra.mxu0 %v1668
      %v1871 = vpop.f32.mrf.mxu0
      %v1872 = vadd.f32 %v1693, %v1871
      %v1873 = vpop.f32.mrf.mxu0
      %v1874 = vadd.f32 %v1693, %v1873
      %1875 = vmatmul.bf16.gmra.mxu0 %v1669
      %v1876 = vpop.f32.mrf.mxu0
      %v1877 = vadd.f32 %v1693, %v1876
      %v1878 = vpop.f32.mrf.mxu0
      %v1879 = vadd.f32 %v1693, %v1878
      %1880 = vmatmul.bf16.gmra.mxu0 %v1670
      %v1881 = vpop.f32.mrf.mxu0
      %v1882 = vadd.f32 %v1693, %v1881
      %v1883 = vpop.f32.mrf.mxu0
      %v1884 = vadd.f32 %v1693, %v1883
      %1885 = vmatmul.bf16.gmra.mxu0 %v1671
      %v1886 = vpop.f32.mrf.mxu0
      %v1887 = vadd.f32 %v1693, %v1886
      %v1888 = vpop.f32.mrf.mxu0
      %v1889 = vadd.f32 %v1693, %v1888
      %1890 = vmatmul.bf16.gmra.mxu0 %v1672
      %v1891 = vpop.f32.mrf.mxu0
      %v1892 = vadd.f32 %v1693, %v1891
      %v1893 = vpop.f32.mrf.mxu0
      %v1894 = vadd.f32 %v1693, %v1893
      %1895 = vmatmul.bf16.gmra.mxu0 %v1673
      %v1896 = vpop.f32.mrf.mxu0
      %v1897 = vadd.f32 %v1693, %v1896
      %v1898 = vpop.f32.mrf.mxu0
      %v1899 = vadd.f32 %v1693, %v1898
      %1900 = vmatmul.bf16.gmra.mxu0 %v1674
      %v1901 = vpop.f32.mrf.mxu0
      %v1902 = vadd.f32 %v1693, %v1901
      %v1903 = vpop.f32.mrf.mxu0
      %v1904 = vadd.f32 %v1693, %v1903
      %1905 = vmatmul.bf16.gmra.mxu0 %v1675
      %v1906 = vpop.f32.mrf.mxu0
      %v1907 = vadd.f32 %v1693, %v1906
      %v1908 = vpop.f32.mrf.mxu0
      %v1909 = vadd.f32 %v1693, %v1908
      %1910 = vdwg.mxu0
      %v1911 = vmax.f32 %v1752, 0.0
      %v1912 = vmax.f32 %v1754, 0.0
      %v1913 = vmax.f32 %v1757, 0.0
      %v1914 = vmax.f32 %v1759, 0.0
      %v1915 = vmax.f32 %v1762, 0.0
      %v1916 = vmax.f32 %v1764, 0.0
      %v1917 = vmax.f32 %v1767, 0.0
      %v1918 = vmax.f32 %v1769, 0.0
      %v1919 = vmax.f32 %v1772, 0.0
      %v1920 = vmax.f32 %v1774, 0.0
      %v1921 = vmax.f32 %v1777, 0.0
      %v1922 = vmax.f32 %v1779, 0.0
      %v1923 = vmax.f32 %v1782, 0.0
      %v1924 = vmax.f32 %v1784, 0.0
      %v1925 = vmax.f32 %v1787, 0.0
      %v1926 = vmax.f32 %v1789, 0.0
      %v1927 = vmax.f32 %v1792, 0.0
      %v1928 = vmax.f32 %v1794, 0.0
      %v1929 = vmax.f32 %v1797, 0.0
      %v1930 = vmax.f32 %v1799, 0.0
      %v1931 = vmax.f32 %v1802, 0.0
      %v1932 = vmax.f32 %v1804, 0.0
      %v1933 = vmax.f32 %v1807, 0.0
      %v1934 = vmax.f32 %v1809, 0.0
      %v1935 = vmax.f32 %v1812, 0.0
      %v1936 = vmax.f32 %v1814, 0.0
      %v1937 = vmax.f32 %v1817, 0.0
      %v1938 = vmax.f32 %v1819, 0.0
      %v1939 = vmax.f32 %v1822, 0.0
      %v1940 = vmax.f32 %v1824, 0.0
      %v1941 = vmax.f32 %v1827, 0.0
      %v1942 = vmax.f32 %v1829, 0.0
      %v1943 = vmax.f32 %v1832, 0.0
      %v1944 = vmax.f32 %v1834, 0.0
      %v1945 = vmax.f32 %v1837, 0.0
      %v1946 = vmax.f32 %v1839, 0.0
      %v1947 = vmax.f32 %v1842, 0.0
      %v1948 = vmax.f32 %v1844, 0.0
      %v1949 = vmax.f32 %v1847, 0.0
      %v1950 = vmax.f32 %v1849, 0.0
      %v1951 = vmax.f32 %v1852, 0.0
      %v1952 = vmax.f32 %v1854, 0.0
      %v1953 = vmax.f32 %v1857, 0.0
      %v1954 = vmax.f32 %v1859, 0.0
      %v1955 = vmax.f32 %v1862, 0.0
      %v1956 = vmax.f32 %v1864, 0.0
      %v1957 = vmax.f32 %v1867, 0.0
      %v1958 = vmax.f32 %v1869, 0.0
      %v1959 = vmax.f32 %v1872, 0.0
      %v1960 = vmax.f32 %v1874, 0.0
      %v1961 = vmax.f32 %v1877, 0.0
      %v1962 = vmax.f32 %v1879, 0.0
      %v1963 = vmax.f32 %v1882, 0.0
      %v1964 = vmax.f32 %v1884, 0.0
      %v1965 = vmax.f32 %v1887, 0.0
      %v1966 = vmax.f32 %v1889, 0.0
      %v1967 = vmax.f32 %v1892, 0.0
      %v1968 = vmax.f32 %v1894, 0.0
      %v1969 = vmax.f32 %v1897, 0.0
      %v1970 = vmax.f32 %v1899, 0.0
      %v1971 = vmax.f32 %v1902, 0.0
      %v1972 = vmax.f32 %v1904, 0.0
      %v1973 = vmax.f32 %v1907, 0.0
      %v1974 = vmax.f32 %v1909, 0.0
      %v1975 = vpack.c.bf16 %v1912, %v1911
      %v1976 = vpack.c.bf16 %v1914, %v1913
      %v1977 = vpack.c.bf16 %v1916, %v1915
      %v1978 = vpack.c.bf16 %v1918, %v1917
      %v1979 = vpack.c.bf16 %v1920, %v1919
      %v1980 = vpack.c.bf16 %v1922, %v1921
      %v1981 = vpack.c.bf16 %v1924, %v1923
      %v1982 = vpack.c.bf16 %v1926, %v1925
      %v1983 = vpack.c.bf16 %v1928, %v1927
      %v1984 = vpack.c.bf16 %v1930, %v1929
      %v1985 = vpack.c.bf16 %v1932, %v1931
      %v1986 = vpack.c.bf16 %v1934, %v1933
      %v1987 = vpack.c.bf16 %v1936, %v1935
      %v1988 = vpack.c.bf16 %v1938, %v1937
      %v1989 = vpack.c.bf16 %v1940, %v1939
      %v1990 = vpack.c.bf16 %v1942, %v1941
      %v1991 = vpack.c.bf16 %v1944, %v1943
      %v1992 = vpack.c.bf16 %v1946, %v1945
      %v1993 = vpack.c.bf16 %v1948, %v1947
      %v1994 = vpack.c.bf16 %v1950, %v1949
      %v1995 = vpack.c.bf16 %v1952, %v1951
      %v1996 = vpack.c.bf16 %v1954, %v1953
      %v1997 = vpack.c.bf16 %v1956, %v1955
      %v1998 = vpack.c.bf16 %v1958, %v1957
      %v1999 = vpack.c.bf16 %v1960, %v1959
      %v2000 = vpack.c.bf16 %v1962, %v1961
      %v2001 = vpack.c.bf16 %v1964, %v1963
      %v2002 = vpack.c.bf16 %v1966, %v1965
      %v2003 = vpack.c.bf16 %v1968, %v1967
      %v2004 = vpack.c.bf16 %v1970, %v1969
      %v2005 = vpack.c.bf16 %v1972, %v1971
      %v2006 = vpack.c.bf16 %v1974, %v1973
      %s2007 = scalar_lea.vmem %s3, 128
      %v2008 = vld [vmem:[%s2007] sm:$0xf]
      %v2009 = vld [vmem:[%s2007 + $0x4] sm:$0xf]
      %v2010 = vld [vmem:[%s2007 + $0x8] sm:$0xf]
      %v2011 = vld [vmem:[%s2007 + $0xc] sm:$0xf]
      %v2012 = vld [vmem:[%s2007 + $0x10] sm:$0xf]
      %v2013 = vld [vmem:[%s2007 + $0x14] sm:$0xf]
      %v2014 = vld [vmem:[%s2007 + $0x18] sm:$0xf]
      %v2015 = vld [vmem:[%s2007 + $0x1c] sm:$0xf]
      %v2016 = vld [vmem:[%s2007 + $0x20] sm:$0xf]
      %v2017 = vld [vmem:[%s2007 + $0x24] sm:$0xf]
      %v2018 = vld [vmem:[%s2007 + $0x28] sm:$0xf]
      %v2019 = vld [vmem:[%s2007 + $0x2c] sm:$0xf]
      %v2020 = vld [vmem:[%s2007 + $0x30] sm:$0xf]
      %v2021 = vld [vmem:[%s2007 + $0x34] sm:$0xf]
      %v2022 = vld [vmem:[%s2007 + $0x38] sm:$0xf]
      %v2023 = vld [vmem:[%s2007 + $0x3c] sm:$0xf]
      %v2024 = vperm.slane %v533, 3
      %v2041 = vunpack.c.l.b16 %v2008
      %v2042 = vunpack.c.l.b16 %v2009
      %v2043 = vunpack.c.l.b16 %v2010
      %v2044 = vunpack.c.l.b16 %v2011
      %v2045 = vunpack.c.l.b16 %v2012
      %v2046 = vunpack.c.l.b16 %v2013
      %v2047 = vunpack.c.l.b16 %v2014
      %v2048 = vunpack.c.l.b16 %v2015
      %v2049 = vunpack.c.l.b16 %v2016
      %v2050 = vunpack.c.l.b16 %v2017
      %v2051 = vunpack.c.l.b16 %v2018
      %v2052 = vunpack.c.l.b16 %v2019
      %v2053 = vunpack.c.l.b16 %v2020
      %v2054 = vunpack.c.l.b16 %v2021
      %v2055 = vunpack.c.l.b16 %v2022
      %v2056 = vunpack.c.l.b16 %v2023
      %v2057 = vpack.c.b16 %v2042, %v2041
      %v2058 = vpack.c.b16 %v2044, %v2043
      %v2059 = vpack.c.b16 %v2046, %v2045
      %v2060 = vpack.c.b16 %v2048, %v2047
      %v2061 = vpack.c.b16 %v2050, %v2049
      %v2062 = vpack.c.b16 %v2052, %v2051
      %v2063 = vpack.c.b16 %v2054, %v2053
      %v2064 = vpack.c.b16 %v2056, %v2055
      %2073 = vmatpush.bf16.msra.mxu0 %v2064
      %2074 = vmatpush.bf16.msra.mxu0 %v2063
      %2075 = vmatpush.bf16.msra.mxu0 %v2062
      %2076 = vmatpush.bf16.msra.mxu0 %v2061
      %2077 = vmatpush.bf16.msra.mxu0 %v2060
      %2078 = vmatpush.bf16.msra.mxu0 %v2059
      %2079 = vmatpush.bf16.msra.mxu0 %v2058
      %2080 = vmatpush.bf16.msra.mxu0 %v2057
      %2081 = vmatmul.bf16.gmra.mxu0 %v1975
      %v2082 = vpop.f32.mrf.mxu0
      %v2083 = vadd.f32 %v2024, %v2082
      %v2084 = vpop.f32.mrf.mxu0
      %v2085 = vadd.f32 %v2024, %v2084
      %2086 = vmatmul.bf16.gmra.mxu0 %v1976
      %v2087 = vpop.f32.mrf.mxu0
      %v2088 = vadd.f32 %v2024, %v2087
      %v2089 = vpop.f32.mrf.mxu0
      %v2090 = vadd.f32 %v2024, %v2089
      %2091 = vmatmul.bf16.gmra.mxu0 %v1977
      %v2092 = vpop.f32.mrf.mxu0
      %v2093 = vadd.f32 %v2024, %v2092
      %v2094 = vpop.f32.mrf.mxu0
      %v2095 = vadd.f32 %v2024, %v2094
      %2096 = vmatmul.bf16.gmra.mxu0 %v1978
      %v2097 = vpop.f32.mrf.mxu0
      %v2098 = vadd.f32 %v2024, %v2097
      %v2099 = vpop.f32.mrf.mxu0
      %v2100 = vadd.f32 %v2024, %v2099
      %2101 = vmatmul.bf16.gmra.mxu0 %v1979
      %v2102 = vpop.f32.mrf.mxu0
      %v2103 = vadd.f32 %v2024, %v2102
      %v2104 = vpop.f32.mrf.mxu0
      %v2105 = vadd.f32 %v2024, %v2104
      %2106 = vmatmul.bf16.gmra.mxu0 %v1980
      %v2107 = vpop.f32.mrf.mxu0
      %v2108 = vadd.f32 %v2024, %v2107
      %v2109 = vpop.f32.mrf.mxu0
      %v2110 = vadd.f32 %v2024, %v2109
      %2111 = vmatmul.bf16.gmra.mxu0 %v1981
      %v2112 = vpop.f32.mrf.mxu0
      %v2113 = vadd.f32 %v2024, %v2112
      %v2114 = vpop.f32.mrf.mxu0
      %v2115 = vadd.f32 %v2024, %v2114
      %2116 = vmatmul.bf16.gmra.mxu0 %v1982
      %v2117 = vpop.f32.mrf.mxu0
      %v2118 = vadd.f32 %v2024, %v2117
      %v2119 = vpop.f32.mrf.mxu0
      %v2120 = vadd.f32 %v2024, %v2119
      %2121 = vmatmul.bf16.gmra.mxu0 %v1983
      %v2122 = vpop.f32.mrf.mxu0
      %v2123 = vadd.f32 %v2024, %v2122
      %v2124 = vpop.f32.mrf.mxu0
      %v2125 = vadd.f32 %v2024, %v2124
      %2126 = vmatmul.bf16.gmra.mxu0 %v1984
      %v2127 = vpop.f32.mrf.mxu0
      %v2128 = vadd.f32 %v2024, %v2127
      %v2129 = vpop.f32.mrf.mxu0
      %v2130 = vadd.f32 %v2024, %v2129
      %2131 = vmatmul.bf16.gmra.mxu0 %v1985
      %v2132 = vpop.f32.mrf.mxu0
      %v2133 = vadd.f32 %v2024, %v2132
      %v2134 = vpop.f32.mrf.mxu0
      %v2135 = vadd.f32 %v2024, %v2134
      %2136 = vmatmul.bf16.gmra.mxu0 %v1986
      %v2137 = vpop.f32.mrf.mxu0
      %v2138 = vadd.f32 %v2024, %v2137
      %v2139 = vpop.f32.mrf.mxu0
      %v2140 = vadd.f32 %v2024, %v2139
      %2141 = vmatmul.bf16.gmra.mxu0 %v1987
      %v2142 = vpop.f32.mrf.mxu0
      %v2143 = vadd.f32 %v2024, %v2142
      %v2144 = vpop.f32.mrf.mxu0
      %v2145 = vadd.f32 %v2024, %v2144
      %2146 = vmatmul.bf16.gmra.mxu0 %v1988
      %v2147 = vpop.f32.mrf.mxu0
      %v2148 = vadd.f32 %v2024, %v2147
      %v2149 = vpop.f32.mrf.mxu0
      %v2150 = vadd.f32 %v2024, %v2149
      %2151 = vmatmul.bf16.gmra.mxu0 %v1989
      %v2152 = vpop.f32.mrf.mxu0
      %v2153 = vadd.f32 %v2024, %v2152
      %v2154 = vpop.f32.mrf.mxu0
      %v2155 = vadd.f32 %v2024, %v2154
      %2156 = vmatmul.bf16.gmra.mxu0 %v1990
      %v2157 = vpop.f32.mrf.mxu0
      %v2158 = vadd.f32 %v2024, %v2157
      %v2159 = vpop.f32.mrf.mxu0
      %v2160 = vadd.f32 %v2024, %v2159
      %2161 = vmatmul.bf16.gmra.mxu0 %v1991
      %v2162 = vpop.f32.mrf.mxu0
      %v2163 = vadd.f32 %v2024, %v2162
      %v2164 = vpop.f32.mrf.mxu0
      %v2165 = vadd.f32 %v2024, %v2164
      %2166 = vmatmul.bf16.gmra.mxu0 %v1992
      %v2167 = vpop.f32.mrf.mxu0
      %v2168 = vadd.f32 %v2024, %v2167
      %v2169 = vpop.f32.mrf.mxu0
      %v2170 = vadd.f32 %v2024, %v2169
      %2171 = vmatmul.bf16.gmra.mxu0 %v1993
      %v2172 = vpop.f32.mrf.mxu0
      %v2173 = vadd.f32 %v2024, %v2172
      %v2174 = vpop.f32.mrf.mxu0
      %v2175 = vadd.f32 %v2024, %v2174
      %2176 = vmatmul.bf16.gmra.mxu0 %v1994
      %v2177 = vpop.f32.mrf.mxu0
      %v2178 = vadd.f32 %v2024, %v2177
      %v2179 = vpop.f32.mrf.mxu0
      %v2180 = vadd.f32 %v2024, %v2179
      %2181 = vmatmul.bf16.gmra.mxu0 %v1995
      %v2182 = vpop.f32.mrf.mxu0
      %v2183 = vadd.f32 %v2024, %v2182
      %v2184 = vpop.f32.mrf.mxu0
      %v2185 = vadd.f32 %v2024, %v2184
      %2186 = vmatmul.bf16.gmra.mxu0 %v1996
      %v2187 = vpop.f32.mrf.mxu0
      %v2188 = vadd.f32 %v2024, %v2187
      %v2189 = vpop.f32.mrf.mxu0
      %v2190 = vadd.f32 %v2024, %v2189
      %2191 = vmatmul.bf16.gmra.mxu0 %v1997
      %v2192 = vpop.f32.mrf.mxu0
      %v2193 = vadd.f32 %v2024, %v2192
      %v2194 = vpop.f32.mrf.mxu0
      %v2195 = vadd.f32 %v2024, %v2194
      %2196 = vmatmul.bf16.gmra.mxu0 %v1998
      %v2197 = vpop.f32.mrf.mxu0
      %v2198 = vadd.f32 %v2024, %v2197
      %v2199 = vpop.f32.mrf.mxu0
      %v2200 = vadd.f32 %v2024, %v2199
      %2201 = vmatmul.bf16.gmra.mxu0 %v1999
      %v2202 = vpop.f32.mrf.mxu0
      %v2203 = vadd.f32 %v2024, %v2202
      %v2204 = vpop.f32.mrf.mxu0
      %v2205 = vadd.f32 %v2024, %v2204
      %2206 = vmatmul.bf16.gmra.mxu0 %v2000
      %v2207 = vpop.f32.mrf.mxu0
      %v2208 = vadd.f32 %v2024, %v2207
      %v2209 = vpop.f32.mrf.mxu0
      %v2210 = vadd.f32 %v2024, %v2209
      %2211 = vmatmul.bf16.gmra.mxu0 %v2001
      %v2212 = vpop.f32.mrf.mxu0
      %v2213 = vadd.f32 %v2024, %v2212
      %v2214 = vpop.f32.mrf.mxu0
      %v2215 = vadd.f32 %v2024, %v2214
      %2216 = vmatmul.bf16.gmra.mxu0 %v2002
      %v2217 = vpop.f32.mrf.mxu0
      %v2218 = vadd.f32 %v2024, %v2217
      %v2219 = vpop.f32.mrf.mxu0
      %v2220 = vadd.f32 %v2024, %v2219
      %2221 = vmatmul.bf16.gmra.mxu0 %v2003
      %v2222 = vpop.f32.mrf.mxu0
      %v2223 = vadd.f32 %v2024, %v2222
      %v2224 = vpop.f32.mrf.mxu0
      %v2225 = vadd.f32 %v2024, %v2224
      %2226 = vmatmul.bf16.gmra.mxu0 %v2004
      %v2227 = vpop.f32.mrf.mxu0
      %v2228 = vadd.f32 %v2024, %v2227
      %v2229 = vpop.f32.mrf.mxu0
      %v2230 = vadd.f32 %v2024, %v2229
      %2231 = vmatmul.bf16.gmra.mxu0 %v2005
      %v2232 = vpop.f32.mrf.mxu0
      %v2233 = vadd.f32 %v2024, %v2232
      %v2234 = vpop.f32.mrf.mxu0
      %v2235 = vadd.f32 %v2024, %v2234
      %2236 = vmatmul.bf16.gmra.mxu0 %v2006
      %v2237 = vpop.f32.mrf.mxu0
      %v2238 = vadd.f32 %v2024, %v2237
      %v2239 = vpop.f32.mrf.mxu0
      %v2240 = vadd.f32 %v2024, %v2239
      %2241 = vdwg.mxu0
      %v2242 = vmax.f32 %v2083, 0.0
      %v2243 = vmax.f32 %v2085, 0.0
      %v2244 = vmax.f32 %v2088, 0.0
      %v2245 = vmax.f32 %v2090, 0.0
      %v2246 = vmax.f32 %v2093, 0.0
      %v2247 = vmax.f32 %v2095, 0.0
      %v2248 = vmax.f32 %v2098, 0.0
      %v2249 = vmax.f32 %v2100, 0.0
      %v2250 = vmax.f32 %v2103, 0.0
      %v2251 = vmax.f32 %v2105, 0.0
      %v2252 = vmax.f32 %v2108, 0.0
      %v2253 = vmax.f32 %v2110, 0.0
      %v2254 = vmax.f32 %v2113, 0.0
      %v2255 = vmax.f32 %v2115, 0.0
      %v2256 = vmax.f32 %v2118, 0.0
      %v2257 = vmax.f32 %v2120, 0.0
      %v2258 = vmax.f32 %v2123, 0.0
      %v2259 = vmax.f32 %v2125, 0.0
      %v2260 = vmax.f32 %v2128, 0.0
      %v2261 = vmax.f32 %v2130, 0.0
      %v2262 = vmax.f32 %v2133, 0.0
      %v2263 = vmax.f32 %v2135, 0.0
      %v2264 = vmax.f32 %v2138, 0.0
      %v2265 = vmax.f32 %v2140, 0.0
      %v2266 = vmax.f32 %v2143, 0.0
      %v2267 = vmax.f32 %v2145, 0.0
      %v2268 = vmax.f32 %v2148, 0.0
      %v2269 = vmax.f32 %v2150, 0.0
      %v2270 = vmax.f32 %v2153, 0.0
      %v2271 = vmax.f32 %v2155, 0.0
      %v2272 = vmax.f32 %v2158, 0.0
      %v2273 = vmax.f32 %v2160, 0.0
      %v2274 = vmax.f32 %v2163, 0.0
      %v2275 = vmax.f32 %v2165, 0.0
      %v2276 = vmax.f32 %v2168, 0.0
      %v2277 = vmax.f32 %v2170, 0.0
      %v2278 = vmax.f32 %v2173, 0.0
      %v2279 = vmax.f32 %v2175, 0.0
      %v2280 = vmax.f32 %v2178, 0.0
      %v2281 = vmax.f32 %v2180, 0.0
      %v2282 = vmax.f32 %v2183, 0.0
      %v2283 = vmax.f32 %v2185, 0.0
      %v2284 = vmax.f32 %v2188, 0.0
      %v2285 = vmax.f32 %v2190, 0.0
      %v2286 = vmax.f32 %v2193, 0.0
      %v2287 = vmax.f32 %v2195, 0.0
      %v2288 = vmax.f32 %v2198, 0.0
      %v2289 = vmax.f32 %v2200, 0.0
      %v2290 = vmax.f32 %v2203, 0.0
      %v2291 = vmax.f32 %v2205, 0.0
      %v2292 = vmax.f32 %v2208, 0.0
      %v2293 = vmax.f32 %v2210, 0.0
      %v2294 = vmax.f32 %v2213, 0.0
      %v2295 = vmax.f32 %v2215, 0.0
      %v2296 = vmax.f32 %v2218, 0.0
      %v2297 = vmax.f32 %v2220, 0.0
      %v2298 = vmax.f32 %v2223, 0.0
      %v2299 = vmax.f32 %v2225, 0.0
      %v2300 = vmax.f32 %v2228, 0.0
      %v2301 = vmax.f32 %v2230, 0.0
      %v2302 = vmax.f32 %v2233, 0.0
      %v2303 = vmax.f32 %v2235, 0.0
      %v2304 = vmax.f32 %v2238, 0.0
      %v2305 = vmax.f32 %v2240, 0.0
      %v2306 = vpack.c.bf16 %v2243, %v2242
      %v2307 = vpack.c.bf16 %v2245, %v2244
      %v2308 = vpack.c.bf16 %v2247, %v2246
      %v2309 = vpack.c.bf16 %v2249, %v2248
      %v2310 = vpack.c.bf16 %v2251, %v2250
      %v2311 = vpack.c.bf16 %v2253, %v2252
      %v2312 = vpack.c.bf16 %v2255, %v2254
      %v2313 = vpack.c.bf16 %v2257, %v2256
      %v2314 = vpack.c.bf16 %v2259, %v2258
      %v2315 = vpack.c.bf16 %v2261, %v2260
      %v2316 = vpack.c.bf16 %v2263, %v2262
      %v2317 = vpack.c.bf16 %v2265, %v2264
      %v2318 = vpack.c.bf16 %v2267, %v2266
      %v2319 = vpack.c.bf16 %v2269, %v2268
      %v2320 = vpack.c.bf16 %v2271, %v2270
      %v2321 = vpack.c.bf16 %v2273, %v2272
      %v2322 = vpack.c.bf16 %v2275, %v2274
      %v2323 = vpack.c.bf16 %v2277, %v2276
      %v2324 = vpack.c.bf16 %v2279, %v2278
      %v2325 = vpack.c.bf16 %v2281, %v2280
      %v2326 = vpack.c.bf16 %v2283, %v2282
      %v2327 = vpack.c.bf16 %v2285, %v2284
      %v2328 = vpack.c.bf16 %v2287, %v2286
      %v2329 = vpack.c.bf16 %v2289, %v2288
      %v2330 = vpack.c.bf16 %v2291, %v2290
      %v2331 = vpack.c.bf16 %v2293, %v2292
      %v2332 = vpack.c.bf16 %v2295, %v2294
      %v2333 = vpack.c.bf16 %v2297, %v2296
      %v2334 = vpack.c.bf16 %v2299, %v2298
      %v2335 = vpack.c.bf16 %v2301, %v2300
      %v2336 = vpack.c.bf16 %v2303, %v2302
      %v2337 = vpack.c.bf16 %v2305, %v2304
      %s2338 = scalar_lea.vmem %s3, 192
      %v2339 = vld [vmem:[%s2338] sm:$0xf]
      %v2340 = vld [vmem:[%s2338 + $0x4] sm:$0xf]
      %v2341 = vld [vmem:[%s2338 + $0x8] sm:$0xf]
      %v2342 = vld [vmem:[%s2338 + $0xc] sm:$0xf]
      %v2343 = vld [vmem:[%s2338 + $0x10] sm:$0xf]
      %v2344 = vld [vmem:[%s2338 + $0x14] sm:$0xf]
      %v2345 = vld [vmem:[%s2338 + $0x18] sm:$0xf]
      %v2346 = vld [vmem:[%s2338 + $0x1c] sm:$0xf]
      %v2347 = vld [vmem:[%s2338 + $0x20] sm:$0xf]
      %v2348 = vld [vmem:[%s2338 + $0x24] sm:$0xf]
      %v2349 = vld [vmem:[%s2338 + $0x28] sm:$0xf]
      %v2350 = vld [vmem:[%s2338 + $0x2c] sm:$0xf]
      %v2351 = vld [vmem:[%s2338 + $0x30] sm:$0xf]
      %v2352 = vld [vmem:[%s2338 + $0x34] sm:$0xf]
      %v2353 = vld [vmem:[%s2338 + $0x38] sm:$0xf]
      %v2354 = vld [vmem:[%s2338 + $0x3c] sm:$0xf]
      %v2371 = vunpack.c.l.b16 %v2339
      %v2372 = vunpack.c.l.b16 %v2340
      %v2373 = vunpack.c.l.b16 %v2341
      %v2374 = vunpack.c.l.b16 %v2342
      %v2375 = vunpack.c.l.b16 %v2343
      %v2376 = vunpack.c.l.b16 %v2344
      %v2377 = vunpack.c.l.b16 %v2345
      %v2378 = vunpack.c.l.b16 %v2346
      %v2379 = vunpack.c.l.b16 %v2347
      %v2380 = vunpack.c.l.b16 %v2348
      %v2381 = vunpack.c.l.b16 %v2349
      %v2382 = vunpack.c.l.b16 %v2350
      %v2383 = vunpack.c.l.b16 %v2351
      %v2384 = vunpack.c.l.b16 %v2352
      %v2385 = vunpack.c.l.b16 %v2353
      %v2386 = vunpack.c.l.b16 %v2354
      %v2387 = vpack.c.b16 %v2372, %v2371
      %v2388 = vpack.c.b16 %v2374, %v2373
      %v2389 = vpack.c.b16 %v2376, %v2375
      %v2390 = vpack.c.b16 %v2378, %v2377
      %v2391 = vpack.c.b16 %v2380, %v2379
      %v2392 = vpack.c.b16 %v2382, %v2381
      %v2393 = vpack.c.b16 %v2384, %v2383
      %v2394 = vpack.c.b16 %v2386, %v2385
      %2403 = vmatpush.bf16.msra.mxu0 %v2394
      %2404 = vmatpush.bf16.msra.mxu0 %v2393
      %2405 = vmatpush.bf16.msra.mxu0 %v2392
      %2406 = vmatpush.bf16.msra.mxu0 %v2391
      %2407 = vmatpush.bf16.msra.mxu0 %v2390
      %2408 = vmatpush.bf16.msra.mxu0 %v2389
      %2409 = vmatpush.bf16.msra.mxu0 %v2388
      %2410 = vmatpush.bf16.msra.mxu0 %v2387
      %2411 = vmatmul.bf16.gmra.mxu0 %v2306
      %v2412 = vpop.f32.mrf.mxu0
      %v2413 = vadd.f32 %v1026, %v2412
      %v2414 = vpop.f32.mrf.mxu0
      %v2415 = vadd.f32 %v1028, %v2414
      %2416 = vmatmul.bf16.gmra.mxu0 %v2307
      %v2417 = vpop.f32.mrf.mxu0
      %v2418 = vadd.f32 %v1031, %v2417
      %v2419 = vpop.f32.mrf.mxu0
      %v2420 = vadd.f32 %v1033, %v2419
      %2421 = vmatmul.bf16.gmra.mxu0 %v2308
      %v2422 = vpop.f32.mrf.mxu0
      %v2423 = vadd.f32 %v1036, %v2422
      %v2424 = vpop.f32.mrf.mxu0
      %v2425 = vadd.f32 %v1038, %v2424
      %2426 = vmatmul.bf16.gmra.mxu0 %v2309
      %v2427 = vpop.f32.mrf.mxu0
      %v2428 = vadd.f32 %v1041, %v2427
      %v2429 = vpop.f32.mrf.mxu0
      %v2430 = vadd.f32 %v1043, %v2429
      %2431 = vmatmul.bf16.gmra.mxu0 %v2310
      %v2432 = vpop.f32.mrf.mxu0
      %v2433 = vadd.f32 %v1046, %v2432
      %v2434 = vpop.f32.mrf.mxu0
      %v2435 = vadd.f32 %v1048, %v2434
      %2436 = vmatmul.bf16.gmra.mxu0 %v2311
      %v2437 = vpop.f32.mrf.mxu0
      %v2438 = vadd.f32 %v1051, %v2437
      %v2439 = vpop.f32.mrf.mxu0
      %v2440 = vadd.f32 %v1053, %v2439
      %2441 = vmatmul.bf16.gmra.mxu0 %v2312
      %v2442 = vpop.f32.mrf.mxu0
      %v2443 = vadd.f32 %v1056, %v2442
      %v2444 = vpop.f32.mrf.mxu0
      %v2445 = vadd.f32 %v1058, %v2444
      %2446 = vmatmul.bf16.gmra.mxu0 %v2313
      %v2447 = vpop.f32.mrf.mxu0
      %v2448 = vadd.f32 %v1061, %v2447
      %v2449 = vpop.f32.mrf.mxu0
      %v2450 = vadd.f32 %v1063, %v2449
      %2451 = vmatmul.bf16.gmra.mxu0 %v2314
      %v2452 = vpop.f32.mrf.mxu0
      %v2453 = vadd.f32 %v1066, %v2452
      %v2454 = vpop.f32.mrf.mxu0
      %v2455 = vadd.f32 %v1068, %v2454
      %2456 = vmatmul.bf16.gmra.mxu0 %v2315
      %v2457 = vpop.f32.mrf.mxu0
      %v2458 = vadd.f32 %v1071, %v2457
      %v2459 = vpop.f32.mrf.mxu0
      %v2460 = vadd.f32 %v1073, %v2459
      %2461 = vmatmul.bf16.gmra.mxu0 %v2316
      %v2462 = vpop.f32.mrf.mxu0
      %v2463 = vadd.f32 %v1076, %v2462
      %v2464 = vpop.f32.mrf.mxu0
      %v2465 = vadd.f32 %v1078, %v2464
      %2466 = vmatmul.bf16.gmra.mxu0 %v2317
      %v2467 = vpop.f32.mrf.mxu0
      %v2468 = vadd.f32 %v1081, %v2467
      %v2469 = vpop.f32.mrf.mxu0
      %v2470 = vadd.f32 %v1083, %v2469
      %2471 = vmatmul.bf16.gmra.mxu0 %v2318
      %v2472 = vpop.f32.mrf.mxu0
      %v2473 = vadd.f32 %v1086, %v2472
      %v2474 = vpop.f32.mrf.mxu0
      %v2475 = vadd.f32 %v1088, %v2474
      %2476 = vmatmul.bf16.gmra.mxu0 %v2319
      %v2477 = vpop.f32.mrf.mxu0
      %v2478 = vadd.f32 %v1091, %v2477
      %v2479 = vpop.f32.mrf.mxu0
      %v2480 = vadd.f32 %v1093, %v2479
      %2481 = vmatmul.bf16.gmra.mxu0 %v2320
      %v2482 = vpop.f32.mrf.mxu0
      %v2483 = vadd.f32 %v1096, %v2482
      %v2484 = vpop.f32.mrf.mxu0
      %v2485 = vadd.f32 %v1098, %v2484
      %2486 = vmatmul.bf16.gmra.mxu0 %v2321
      %v2487 = vpop.f32.mrf.mxu0
      %v2488 = vadd.f32 %v1101, %v2487
      %v2489 = vpop.f32.mrf.mxu0
      %v2490 = vadd.f32 %v1103, %v2489
      %2491 = vmatmul.bf16.gmra.mxu0 %v2322
      %v2492 = vpop.f32.mrf.mxu0
      %v2493 = vadd.f32 %v1106, %v2492
      %v2494 = vpop.f32.mrf.mxu0
      %v2495 = vadd.f32 %v1108, %v2494
      %2496 = vmatmul.bf16.gmra.mxu0 %v2323
      %v2497 = vpop.f32.mrf.mxu0
      %v2498 = vadd.f32 %v1111, %v2497
      %v2499 = vpop.f32.mrf.mxu0
      %v2500 = vadd.f32 %v1113, %v2499
      %2501 = vmatmul.bf16.gmra.mxu0 %v2324
      %v2502 = vpop.f32.mrf.mxu0
      %v2503 = vadd.f32 %v1116, %v2502
      %v2504 = vpop.f32.mrf.mxu0
      %v2505 = vadd.f32 %v1118, %v2504
      %2506 = vmatmul.bf16.gmra.mxu0 %v2325
      %v2507 = vpop.f32.mrf.mxu0
      %v2508 = vadd.f32 %v1121, %v2507
      %v2509 = vpop.f32.mrf.mxu0
      %v2510 = vadd.f32 %v1123, %v2509
      %2511 = vmatmul.bf16.gmra.mxu0 %v2326
      %v2512 = vpop.f32.mrf.mxu0
      %v2513 = vadd.f32 %v1126, %v2512
      %v2514 = vpop.f32.mrf.mxu0
      %v2515 = vadd.f32 %v1128, %v2514
      %2516 = vmatmul.bf16.gmra.mxu0 %v2327
      %v2517 = vpop.f32.mrf.mxu0
      %v2518 = vadd.f32 %v1131, %v2517
      %v2519 = vpop.f32.mrf.mxu0
      %v2520 = vadd.f32 %v1133, %v2519
      %2521 = vmatmul.bf16.gmra.mxu0 %v2328
      %v2522 = vpop.f32.mrf.mxu0
      %v2523 = vadd.f32 %v1136, %v2522
      %v2524 = vpop.f32.mrf.mxu0
      %v2525 = vadd.f32 %v1138, %v2524
      %2526 = vmatmul.bf16.gmra.mxu0 %v2329
      %v2527 = vpop.f32.mrf.mxu0
      %v2528 = vadd.f32 %v1141, %v2527
      %v2529 = vpop.f32.mrf.mxu0
      %v2530 = vadd.f32 %v1143, %v2529
      %2531 = vmatmul.bf16.gmra.mxu0 %v2330
      %v2532 = vpop.f32.mrf.mxu0
      %v2533 = vadd.f32 %v1146, %v2532
      %v2534 = vpop.f32.mrf.mxu0
      %v2535 = vadd.f32 %v1148, %v2534
      %2536 = vmatmul.bf16.gmra.mxu0 %v2331
      %v2537 = vpop.f32.mrf.mxu0
      %v2538 = vadd.f32 %v1151, %v2537
      %v2539 = vpop.f32.mrf.mxu0
      %v2540 = vadd.f32 %v1153, %v2539
      %2541 = vmatmul.bf16.gmra.mxu0 %v2332
      %v2542 = vpop.f32.mrf.mxu0
      %v2543 = vadd.f32 %v1156, %v2542
      %v2544 = vpop.f32.mrf.mxu0
      %v2545 = vadd.f32 %v1158, %v2544
      %2546 = vmatmul.bf16.gmra.mxu0 %v2333
      %v2547 = vpop.f32.mrf.mxu0
      %v2548 = vadd.f32 %v1161, %v2547
      %v2549 = vpop.f32.mrf.mxu0
      %v2550 = vadd.f32 %v1163, %v2549
      %2551 = vmatmul.bf16.gmra.mxu0 %v2334
      %v2552 = vpop.f32.mrf.mxu0
      %v2553 = vadd.f32 %v1166, %v2552
      %v2554 = vpop.f32.mrf.mxu0
      %v2555 = vadd.f32 %v1168, %v2554
      %2556 = vmatmul.bf16.gmra.mxu0 %v2335
      %v2557 = vpop.f32.mrf.mxu0
      %v2558 = vadd.f32 %v1171, %v2557
      %v2559 = vpop.f32.mrf.mxu0
      %v2560 = vadd.f32 %v1173, %v2559
      %2561 = vmatmul.bf16.gmra.mxu0 %v2336
      %v2562 = vpop.f32.mrf.mxu0
      %v2563 = vadd.f32 %v1176, %v2562
      %v2564 = vpop.f32.mrf.mxu0
      %v2565 = vadd.f32 %v1178, %v2564
      %2566 = vmatmul.bf16.gmra.mxu0 %v2337
      %v2567 = vpop.f32.mrf.mxu0
      %v2568 = vadd.f32 %v1181, %v2567
      %v2569 = vpop.f32.mrf.mxu0
      %v2570 = vadd.f32 %v1183, %v2569
      %2571 = vdwg.mxu0
      %v2572 = vperm.slane %v533, 4
      %v2573 = vadd.f32 %v2413, %v2572
      %v2574 = vadd.f32 %v2415, %v2572
      %v2575 = vadd.f32 %v2418, %v2572
      %v2576 = vadd.f32 %v2420, %v2572
      %v2577 = vadd.f32 %v2423, %v2572
      %v2578 = vadd.f32 %v2425, %v2572
      %v2579 = vadd.f32 %v2428, %v2572
      %v2580 = vadd.f32 %v2430, %v2572
      %v2581 = vadd.f32 %v2433, %v2572
      %v2582 = vadd.f32 %v2435, %v2572
      %v2583 = vadd.f32 %v2438, %v2572
      %v2584 = vadd.f32 %v2440, %v2572
      %v2585 = vadd.f32 %v2443, %v2572
      %v2586 = vadd.f32 %v2445, %v2572
      %v2587 = vadd.f32 %v2448, %v2572
      %v2588 = vadd.f32 %v2450, %v2572
      %v2589 = vadd.f32 %v2453, %v2572
      %v2590 = vadd.f32 %v2455, %v2572
      %v2591 = vadd.f32 %v2458, %v2572
      %v2592 = vadd.f32 %v2460, %v2572
      %v2593 = vadd.f32 %v2463, %v2572
      %v2594 = vadd.f32 %v2465, %v2572
      %v2595 = vadd.f32 %v2468, %v2572
      %v2596 = vadd.f32 %v2470, %v2572
      %v2597 = vadd.f32 %v2473, %v2572
      %v2598 = vadd.f32 %v2475, %v2572
      %v2599 = vadd.f32 %v2478, %v2572
      %v2600 = vadd.f32 %v2480, %v2572
      %v2601 = vadd.f32 %v2483, %v2572
      %v2602 = vadd.f32 %v2485, %v2572
      %v2603 = vadd.f32 %v2488, %v2572
      %v2604 = vadd.f32 %v2490, %v2572
      %v2605 = vadd.f32 %v2493, %v2572
      %v2606 = vadd.f32 %v2495, %v2572
      %v2607 = vadd.f32 %v2498, %v2572
      %v2608 = vadd.f32 %v2500, %v2572
      %v2609 = vadd.f32 %v2503, %v2572
      %v2610 = vadd.f32 %v2505, %v2572
      %v2611 = vadd.f32 %v2508, %v2572
      %v2612 = vadd.f32 %v2510, %v2572
      %v2613 = vadd.f32 %v2513, %v2572
      %v2614 = vadd.f32 %v2515, %v2572
      %v2615 = vadd.f32 %v2518, %v2572
      %v2616 = vadd.f32 %v2520, %v2572
      %v2617 = vadd.f32 %v2523, %v2572
      %v2618 = vadd.f32 %v2525, %v2572
      %v2619 = vadd.f32 %v2528, %v2572
      %v2620 = vadd.f32 %v2530, %v2572
      %v2621 = vadd.f32 %v2533, %v2572
      %v2622 = vadd.f32 %v2535, %v2572
      %v2623 = vadd.f32 %v2538, %v2572
      %v2624 = vadd.f32 %v2540, %v2572
      %v2625 = vadd.f32 %v2543, %v2572
      %v2626 = vadd.f32 %v2545, %v2572
      %v2627 = vadd.f32 %v2548, %v2572
      %v2628 = vadd.f32 %v2550, %v2572
      %v2629 = vadd.f32 %v2553, %v2572
      %v2630 = vadd.f32 %v2555, %v2572
      %v2631 = vadd.f32 %v2558, %v2572
      %v2632 = vadd.f32 %v2560, %v2572
      %v2633 = vadd.f32 %v2563, %v2572
      %v2634 = vadd.f32 %v2565, %v2572
      %v2635 = vadd.f32 %v2568, %v2572
      %v2636 = vadd.f32 %v2570, %v2572
      %v2637 = vmax.f32 %v2573, 0.0
      %v2638 = vmax.f32 %v2574, 0.0
      %v2639 = vmax.f32 %v2575, 0.0
      %v2640 = vmax.f32 %v2576, 0.0
      %v2641 = vmax.f32 %v2577, 0.0
      %v2642 = vmax.f32 %v2578, 0.0
      %v2643 = vmax.f32 %v2579, 0.0
      %v2644 = vmax.f32 %v2580, 0.0
      %v2645 = vmax.f32 %v2581, 0.0
      %v2646 = vmax.f32 %v2582, 0.0
      %v2647 = vmax.f32 %v2583, 0.0
      %v2648 = vmax.f32 %v2584, 0.0
      %v2649 = vmax.f32 %v2585, 0.0
      %v2650 = vmax.f32 %v2586, 0.0
      %v2651 = vmax.f32 %v2587, 0.0
      %v2652 = vmax.f32 %v2588, 0.0
      %v2653 = vmax.f32 %v2589, 0.0
      %v2654 = vmax.f32 %v2590, 0.0
      %v2655 = vmax.f32 %v2591, 0.0
      %v2656 = vmax.f32 %v2592, 0.0
      %v2657 = vmax.f32 %v2593, 0.0
      %v2658 = vmax.f32 %v2594, 0.0
      %v2659 = vmax.f32 %v2595, 0.0
      %v2660 = vmax.f32 %v2596, 0.0
      %v2661 = vmax.f32 %v2597, 0.0
      %v2662 = vmax.f32 %v2598, 0.0
      %v2663 = vmax.f32 %v2599, 0.0
      %v2664 = vmax.f32 %v2600, 0.0
      %v2665 = vmax.f32 %v2601, 0.0
      %v2666 = vmax.f32 %v2602, 0.0
      %v2667 = vmax.f32 %v2603, 0.0
      %v2668 = vmax.f32 %v2604, 0.0
      %v2669 = vmax.f32 %v2605, 0.0
      %v2670 = vmax.f32 %v2606, 0.0
      %v2671 = vmax.f32 %v2607, 0.0
      %v2672 = vmax.f32 %v2608, 0.0
      %v2673 = vmax.f32 %v2609, 0.0
      %v2674 = vmax.f32 %v2610, 0.0
      %v2675 = vmax.f32 %v2611, 0.0
      %v2676 = vmax.f32 %v2612, 0.0
      %v2677 = vmax.f32 %v2613, 0.0
      %v2678 = vmax.f32 %v2614, 0.0
      %v2679 = vmax.f32 %v2615, 0.0
      %v2680 = vmax.f32 %v2616, 0.0
      %v2681 = vmax.f32 %v2617, 0.0
      %v2682 = vmax.f32 %v2618, 0.0
      %v2683 = vmax.f32 %v2619, 0.0
      %v2684 = vmax.f32 %v2620, 0.0
      %v2685 = vmax.f32 %v2621, 0.0
      %v2686 = vmax.f32 %v2622, 0.0
      %v2687 = vmax.f32 %v2623, 0.0
      %v2688 = vmax.f32 %v2624, 0.0
      %v2689 = vmax.f32 %v2625, 0.0
      %v2690 = vmax.f32 %v2626, 0.0
      %v2691 = vmax.f32 %v2627, 0.0
      %v2692 = vmax.f32 %v2628, 0.0
      %v2693 = vmax.f32 %v2629, 0.0
      %v2694 = vmax.f32 %v2630, 0.0
      %v2695 = vmax.f32 %v2631, 0.0
      %v2696 = vmax.f32 %v2632, 0.0
      %v2697 = vmax.f32 %v2633, 0.0
      %v2698 = vmax.f32 %v2634, 0.0
      %v2699 = vmax.f32 %v2635, 0.0
      %v2700 = vmax.f32 %v2636, 0.0
      %v2701 = vpack.c.bf16 %v2638, %v2637
      %v2702 = vpack.c.bf16 %v2640, %v2639
      %v2703 = vpack.c.bf16 %v2642, %v2641
      %v2704 = vpack.c.bf16 %v2644, %v2643
      %v2705 = vpack.c.bf16 %v2646, %v2645
      %v2706 = vpack.c.bf16 %v2648, %v2647
      %v2707 = vpack.c.bf16 %v2650, %v2649
      %v2708 = vpack.c.bf16 %v2652, %v2651
      %v2709 = vpack.c.bf16 %v2654, %v2653
      %v2710 = vpack.c.bf16 %v2656, %v2655
      %v2711 = vpack.c.bf16 %v2658, %v2657
      %v2712 = vpack.c.bf16 %v2660, %v2659
      %v2713 = vpack.c.bf16 %v2662, %v2661
      %v2714 = vpack.c.bf16 %v2664, %v2663
      %v2715 = vpack.c.bf16 %v2666, %v2665
      %v2716 = vpack.c.bf16 %v2668, %v2667
      %v2717 = vpack.c.bf16 %v2670, %v2669
      %v2718 = vpack.c.bf16 %v2672, %v2671
      %v2719 = vpack.c.bf16 %v2674, %v2673
      %v2720 = vpack.c.bf16 %v2676, %v2675
      %v2721 = vpack.c.bf16 %v2678, %v2677
      %v2722 = vpack.c.bf16 %v2680, %v2679
      %v2723 = vpack.c.bf16 %v2682, %v2681
      %v2724 = vpack.c.bf16 %v2684, %v2683
      %v2725 = vpack.c.bf16 %v2686, %v2685
      %v2726 = vpack.c.bf16 %v2688, %v2687
      %v2727 = vpack.c.bf16 %v2690, %v2689
      %v2728 = vpack.c.bf16 %v2692, %v2691
      %v2729 = vpack.c.bf16 %v2694, %v2693
      %v2730 = vpack.c.bf16 %v2696, %v2695
      %v2731 = vpack.c.bf16 %v2698, %v2697
      %v2732 = vpack.c.bf16 %v2700, %v2699
      %s2733 = scalar_lea.vmem %s3, 256
      %v2734 = vld [vmem:[%s2733] sm:$0xf]
      %v2735 = vld [vmem:[%s2733 + $0x4] sm:$0xf]
      %v2736 = vld [vmem:[%s2733 + $0x8] sm:$0xf]
      %v2737 = vld [vmem:[%s2733 + $0xc] sm:$0xf]
      %v2738 = vld [vmem:[%s2733 + $0x10] sm:$0xf]
      %v2739 = vld [vmem:[%s2733 + $0x14] sm:$0xf]
      %v2740 = vld [vmem:[%s2733 + $0x18] sm:$0xf]
      %v2741 = vld [vmem:[%s2733 + $0x1c] sm:$0xf]
      %v2742 = vld [vmem:[%s2733 + $0x20] sm:$0xf]
      %v2743 = vld [vmem:[%s2733 + $0x24] sm:$0xf]
      %v2744 = vld [vmem:[%s2733 + $0x28] sm:$0xf]
      %v2745 = vld [vmem:[%s2733 + $0x2c] sm:$0xf]
      %v2746 = vld [vmem:[%s2733 + $0x30] sm:$0xf]
      %v2747 = vld [vmem:[%s2733 + $0x34] sm:$0xf]
      %v2748 = vld [vmem:[%s2733 + $0x38] sm:$0xf]
      %v2749 = vld [vmem:[%s2733 + $0x3c] sm:$0xf]
      %v2750 = vperm.slane %v533, 5
      %v2767 = vunpack.c.l.b16 %v2734
      %v2768 = vunpack.c.l.b16 %v2735
      %v2769 = vunpack.c.l.b16 %v2736
      %v2770 = vunpack.c.l.b16 %v2737
      %v2771 = vunpack.c.l.b16 %v2738
      %v2772 = vunpack.c.l.b16 %v2739
      %v2773 = vunpack.c.l.b16 %v2740
      %v2774 = vunpack.c.l.b16 %v2741
      %v2775 = vunpack.c.l.b16 %v2742
      %v2776 = vunpack.c.l.b16 %v2743
      %v2777 = vunpack.c.l.b16 %v2744
      %v2778 = vunpack.c.l.b16 %v2745
      %v2779 = vunpack.c.l.b16 %v2746
      %v2780 = vunpack.c.l.b16 %v2747
      %v2781 = vunpack.c.l.b16 %v2748
      %v2782 = vunpack.c.l.b16 %v2749
      %v2783 = vpack.c.b16 %v2768, %v2767
      %v2784 = vpack.c.b16 %v2770, %v2769
      %v2785 = vpack.c.b16 %v2772, %v2771
      %v2786 = vpack.c.b16 %v2774, %v2773
      %v2787 = vpack.c.b16 %v2776, %v2775
      %v2788 = vpack.c.b16 %v2778, %v2777
      %v2789 = vpack.c.b16 %v2780, %v2779
      %v2790 = vpack.c.b16 %v2782, %v2781
      %2799 = vmatpush.bf16.msra.mxu0 %v2790
      %2800 = vmatpush.bf16.msra.mxu0 %v2789
      %2801 = vmatpush.bf16.msra.mxu0 %v2788
      %2802 = vmatpush.bf16.msra.mxu0 %v2787
      %2803 = vmatpush.bf16.msra.mxu0 %v2786
      %2804 = vmatpush.bf16.msra.mxu0 %v2785
      %2805 = vmatpush.bf16.msra.mxu0 %v2784
      %2806 = vmatpush.bf16.msra.mxu0 %v2783
      %2807 = vmatmul.bf16.gmra.mxu0 %v2701
      %v2808 = vpop.f32.mrf.mxu0
      %v2809 = vadd.f32 %v2750, %v2808
      %v2810 = vpop.f32.mrf.mxu0
      %v2811 = vadd.f32 %v2750, %v2810
      %2812 = vmatmul.bf16.gmra.mxu0 %v2702
      %v2813 = vpop.f32.mrf.mxu0
      %v2814 = vadd.f32 %v2750, %v2813
      %v2815 = vpop.f32.mrf.mxu0
      %v2816 = vadd.f32 %v2750, %v2815
      %2817 = vmatmul.bf16.gmra.mxu0 %v2703
      %v2818 = vpop.f32.mrf.mxu0
      %v2819 = vadd.f32 %v2750, %v2818
      %v2820 = vpop.f32.mrf.mxu0
      %v2821 = vadd.f32 %v2750, %v2820
      %2822 = vmatmul.bf16.gmra.mxu0 %v2704
      %v2823 = vpop.f32.mrf.mxu0
      %v2824 = vadd.f32 %v2750, %v2823
      %v2825 = vpop.f32.mrf.mxu0
      %v2826 = vadd.f32 %v2750, %v2825
      %2827 = vmatmul.bf16.gmra.mxu0 %v2705
      %v2828 = vpop.f32.mrf.mxu0
      %v2829 = vadd.f32 %v2750, %v2828
      %v2830 = vpop.f32.mrf.mxu0
      %v2831 = vadd.f32 %v2750, %v2830
      %2832 = vmatmul.bf16.gmra.mxu0 %v2706
      %v2833 = vpop.f32.mrf.mxu0
      %v2834 = vadd.f32 %v2750, %v2833
      %v2835 = vpop.f32.mrf.mxu0
      %v2836 = vadd.f32 %v2750, %v2835
      %2837 = vmatmul.bf16.gmra.mxu0 %v2707
      %v2838 = vpop.f32.mrf.mxu0
      %v2839 = vadd.f32 %v2750, %v2838
      %v2840 = vpop.f32.mrf.mxu0
      %v2841 = vadd.f32 %v2750, %v2840
      %2842 = vmatmul.bf16.gmra.mxu0 %v2708
      %v2843 = vpop.f32.mrf.mxu0
      %v2844 = vadd.f32 %v2750, %v2843
      %v2845 = vpop.f32.mrf.mxu0
      %v2846 = vadd.f32 %v2750, %v2845
      %2847 = vmatmul.bf16.gmra.mxu0 %v2709
      %v2848 = vpop.f32.mrf.mxu0
      %v2849 = vadd.f32 %v2750, %v2848
      %v2850 = vpop.f32.mrf.mxu0
      %v2851 = vadd.f32 %v2750, %v2850
      %2852 = vmatmul.bf16.gmra.mxu0 %v2710
      %v2853 = vpop.f32.mrf.mxu0
      %v2854 = vadd.f32 %v2750, %v2853
      %v2855 = vpop.f32.mrf.mxu0
      %v2856 = vadd.f32 %v2750, %v2855
      %2857 = vmatmul.bf16.gmra.mxu0 %v2711
      %v2858 = vpop.f32.mrf.mxu0
      %v2859 = vadd.f32 %v2750, %v2858
      %v2860 = vpop.f32.mrf.mxu0
      %v2861 = vadd.f32 %v2750, %v2860
      %2862 = vmatmul.bf16.gmra.mxu0 %v2712
      %v2863 = vpop.f32.mrf.mxu0
      %v2864 = vadd.f32 %v2750, %v2863
      %v2865 = vpop.f32.mrf.mxu0
      %v2866 = vadd.f32 %v2750, %v2865
      %2867 = vmatmul.bf16.gmra.mxu0 %v2713
      %v2868 = vpop.f32.mrf.mxu0
      %v2869 = vadd.f32 %v2750, %v2868
      %v2870 = vpop.f32.mrf.mxu0
      %v2871 = vadd.f32 %v2750, %v2870
      %2872 = vmatmul.bf16.gmra.mxu0 %v2714
      %v2873 = vpop.f32.mrf.mxu0
      %v2874 = vadd.f32 %v2750, %v2873
      %v2875 = vpop.f32.mrf.mxu0
      %v2876 = vadd.f32 %v2750, %v2875
      %2877 = vmatmul.bf16.gmra.mxu0 %v2715
      %v2878 = vpop.f32.mrf.mxu0
      %v2879 = vadd.f32 %v2750, %v2878
      %v2880 = vpop.f32.mrf.mxu0
      %v2881 = vadd.f32 %v2750, %v2880
      %2882 = vmatmul.bf16.gmra.mxu0 %v2716
      %v2883 = vpop.f32.mrf.mxu0
      %v2884 = vadd.f32 %v2750, %v2883
      %v2885 = vpop.f32.mrf.mxu0
      %v2886 = vadd.f32 %v2750, %v2885
      %2887 = vmatmul.bf16.gmra.mxu0 %v2717
      %v2888 = vpop.f32.mrf.mxu0
      %v2889 = vadd.f32 %v2750, %v2888
      %v2890 = vpop.f32.mrf.mxu0
      %v2891 = vadd.f32 %v2750, %v2890
      %2892 = vmatmul.bf16.gmra.mxu0 %v2718
      %v2893 = vpop.f32.mrf.mxu0
      %v2894 = vadd.f32 %v2750, %v2893
      %v2895 = vpop.f32.mrf.mxu0
      %v2896 = vadd.f32 %v2750, %v2895
      %2897 = vmatmul.bf16.gmra.mxu0 %v2719
      %v2898 = vpop.f32.mrf.mxu0
      %v2899 = vadd.f32 %v2750, %v2898
      %v2900 = vpop.f32.mrf.mxu0
      %v2901 = vadd.f32 %v2750, %v2900
      %2902 = vmatmul.bf16.gmra.mxu0 %v2720
      %v2903 = vpop.f32.mrf.mxu0
      %v2904 = vadd.f32 %v2750, %v2903
      %v2905 = vpop.f32.mrf.mxu0
      %v2906 = vadd.f32 %v2750, %v2905
      %2907 = vmatmul.bf16.gmra.mxu0 %v2721
      %v2908 = vpop.f32.mrf.mxu0
      %v2909 = vadd.f32 %v2750, %v2908
      %v2910 = vpop.f32.mrf.mxu0
      %v2911 = vadd.f32 %v2750, %v2910
      %2912 = vmatmul.bf16.gmra.mxu0 %v2722
      %v2913 = vpop.f32.mrf.mxu0
      %v2914 = vadd.f32 %v2750, %v2913
      %v2915 = vpop.f32.mrf.mxu0
      %v2916 = vadd.f32 %v2750, %v2915
      %2917 = vmatmul.bf16.gmra.mxu0 %v2723
      %v2918 = vpop.f32.mrf.mxu0
      %v2919 = vadd.f32 %v2750, %v2918
      %v2920 = vpop.f32.mrf.mxu0
      %v2921 = vadd.f32 %v2750, %v2920
      %2922 = vmatmul.bf16.gmra.mxu0 %v2724
      %v2923 = vpop.f32.mrf.mxu0
      %v2924 = vadd.f32 %v2750, %v2923
      %v2925 = vpop.f32.mrf.mxu0
      %v2926 = vadd.f32 %v2750, %v2925
      %2927 = vmatmul.bf16.gmra.mxu0 %v2725
      %v2928 = vpop.f32.mrf.mxu0
      %v2929 = vadd.f32 %v2750, %v2928
      %v2930 = vpop.f32.mrf.mxu0
      %v2931 = vadd.f32 %v2750, %v2930
      %2932 = vmatmul.bf16.gmra.mxu0 %v2726
      %v2933 = vpop.f32.mrf.mxu0
      %v2934 = vadd.f32 %v2750, %v2933
      %v2935 = vpop.f32.mrf.mxu0
      %v2936 = vadd.f32 %v2750, %v2935
      %2937 = vmatmul.bf16.gmra.mxu0 %v2727
      %v2938 = vpop.f32.mrf.mxu0
      %v2939 = vadd.f32 %v2750, %v2938
      %v2940 = vpop.f32.mrf.mxu0
      %v2941 = vadd.f32 %v2750, %v2940
      %2942 = vmatmul.bf16.gmra.mxu0 %v2728
      %v2943 = vpop.f32.mrf.mxu0
      %v2944 = vadd.f32 %v2750, %v2943
      %v2945 = vpop.f32.mrf.mxu0
      %v2946 = vadd.f32 %v2750, %v2945
      %2947 = vmatmul.bf16.gmra.mxu0 %v2729
      %v2948 = vpop.f32.mrf.mxu0
      %v2949 = vadd.f32 %v2750, %v2948
      %v2950 = vpop.f32.mrf.mxu0
      %v2951 = vadd.f32 %v2750, %v2950
      %2952 = vmatmul.bf16.gmra.mxu0 %v2730
      %v2953 = vpop.f32.mrf.mxu0
      %v2954 = vadd.f32 %v2750, %v2953
      %v2955 = vpop.f32.mrf.mxu0
      %v2956 = vadd.f32 %v2750, %v2955
      %2957 = vmatmul.bf16.gmra.mxu0 %v2731
      %v2958 = vpop.f32.mrf.mxu0
      %v2959 = vadd.f32 %v2750, %v2958
      %v2960 = vpop.f32.mrf.mxu0
      %v2961 = vadd.f32 %v2750, %v2960
      %2962 = vmatmul.bf16.gmra.mxu0 %v2732
      %v2963 = vpop.f32.mrf.mxu0
      %v2964 = vadd.f32 %v2750, %v2963
      %v2965 = vpop.f32.mrf.mxu0
      %v2966 = vadd.f32 %v2750, %v2965
      %2967 = vdwg.mxu0
      %v2968 = vmax.f32 %v2809, 0.0
      %v2969 = vmax.f32 %v2811, 0.0
      %v2970 = vmax.f32 %v2814, 0.0
      %v2971 = vmax.f32 %v2816, 0.0
      %v2972 = vmax.f32 %v2819, 0.0
      %v2973 = vmax.f32 %v2821, 0.0
      %v2974 = vmax.f32 %v2824, 0.0
      %v2975 = vmax.f32 %v2826, 0.0
      %v2976 = vmax.f32 %v2829, 0.0
      %v2977 = vmax.f32 %v2831, 0.0
      %v2978 = vmax.f32 %v2834, 0.0
      %v2979 = vmax.f32 %v2836, 0.0
      %v2980 = vmax.f32 %v2839, 0.0
      %v2981 = vmax.f32 %v2841, 0.0
      %v2982 = vmax.f32 %v2844, 0.0
      %v2983 = vmax.f32 %v2846, 0.0
      %v2984 = vmax.f32 %v2849, 0.0
      %v2985 = vmax.f32 %v2851, 0.0
      %v2986 = vmax.f32 %v2854, 0.0
      %v2987 = vmax.f32 %v2856, 0.0
      %v2988 = vmax.f32 %v2859, 0.0
      %v2989 = vmax.f32 %v2861, 0.0
      %v2990 = vmax.f32 %v2864, 0.0
      %v2991 = vmax.f32 %v2866, 0.0
      %v2992 = vmax.f32 %v2869, 0.0
      %v2993 = vmax.f32 %v2871, 0.0
      %v2994 = vmax.f32 %v2874, 0.0
      %v2995 = vmax.f32 %v2876, 0.0
      %v2996 = vmax.f32 %v2879, 0.0
      %v2997 = vmax.f32 %v2881, 0.0
      %v2998 = vmax.f32 %v2884, 0.0
      %v2999 = vmax.f32 %v2886, 0.0
      %v3000 = vmax.f32 %v2889, 0.0
      %v3001 = vmax.f32 %v2891, 0.0
      %v3002 = vmax.f32 %v2894, 0.0
      %v3003 = vmax.f32 %v2896, 0.0
      %v3004 = vmax.f32 %v2899, 0.0
      %v3005 = vmax.f32 %v2901, 0.0
      %v3006 = vmax.f32 %v2904, 0.0
      %v3007 = vmax.f32 %v2906, 0.0
      %v3008 = vmax.f32 %v2909, 0.0
      %v3009 = vmax.f32 %v2911, 0.0
      %v3010 = vmax.f32 %v2914, 0.0
      %v3011 = vmax.f32 %v2916, 0.0
      %v3012 = vmax.f32 %v2919, 0.0
      %v3013 = vmax.f32 %v2921, 0.0
      %v3014 = vmax.f32 %v2924, 0.0
      %v3015 = vmax.f32 %v2926, 0.0
      %v3016 = vmax.f32 %v2929, 0.0
      %v3017 = vmax.f32 %v2931, 0.0
      %v3018 = vmax.f32 %v2934, 0.0
      %v3019 = vmax.f32 %v2936, 0.0
      %v3020 = vmax.f32 %v2939, 0.0
      %v3021 = vmax.f32 %v2941, 0.0
      %v3022 = vmax.f32 %v2944, 0.0
      %v3023 = vmax.f32 %v2946, 0.0
      %v3024 = vmax.f32 %v2949, 0.0
      %v3025 = vmax.f32 %v2951, 0.0
      %v3026 = vmax.f32 %v2954, 0.0
      %v3027 = vmax.f32 %v2956, 0.0
      %v3028 = vmax.f32 %v2959, 0.0
      %v3029 = vmax.f32 %v2961, 0.0
      %v3030 = vmax.f32 %v2964, 0.0
      %v3031 = vmax.f32 %v2966, 0.0
      %v3032 = vpack.c.bf16 %v2969, %v2968
      %v3033 = vpack.c.bf16 %v2971, %v2970
      %v3034 = vpack.c.bf16 %v2973, %v2972
      %v3035 = vpack.c.bf16 %v2975, %v2974
      %v3036 = vpack.c.bf16 %v2977, %v2976
      %v3037 = vpack.c.bf16 %v2979, %v2978
      %v3038 = vpack.c.bf16 %v2981, %v2980
      %v3039 = vpack.c.bf16 %v2983, %v2982
      %v3040 = vpack.c.bf16 %v2985, %v2984
      %v3041 = vpack.c.bf16 %v2987, %v2986
      %v3042 = vpack.c.bf16 %v2989, %v2988
      %v3043 = vpack.c.bf16 %v2991, %v2990
      %v3044 = vpack.c.bf16 %v2993, %v2992
      %v3045 = vpack.c.bf16 %v2995, %v2994
      %v3046 = vpack.c.bf16 %v2997, %v2996
      %v3047 = vpack.c.bf16 %v2999, %v2998
      %v3048 = vpack.c.bf16 %v3001, %v3000
      %v3049 = vpack.c.bf16 %v3003, %v3002
      %v3050 = vpack.c.bf16 %v3005, %v3004
      %v3051 = vpack.c.bf16 %v3007, %v3006
      %v3052 = vpack.c.bf16 %v3009, %v3008
      %v3053 = vpack.c.bf16 %v3011, %v3010
      %v3054 = vpack.c.bf16 %v3013, %v3012
      %v3055 = vpack.c.bf16 %v3015, %v3014
      %v3056 = vpack.c.bf16 %v3017, %v3016
      %v3057 = vpack.c.bf16 %v3019, %v3018
      %v3058 = vpack.c.bf16 %v3021, %v3020
      %v3059 = vpack.c.bf16 %v3023, %v3022
      %v3060 = vpack.c.bf16 %v3025, %v3024
      %v3061 = vpack.c.bf16 %v3027, %v3026
      %v3062 = vpack.c.bf16 %v3029, %v3028
      %v3063 = vpack.c.bf16 %v3031, %v3030
      %s3064 = scalar_lea.vmem %s3, 320
      %v3065 = vld [vmem:[%s3064] sm:$0xf]
      %v3066 = vld [vmem:[%s3064 + $0x4] sm:$0xf]
      %v3067 = vld [vmem:[%s3064 + $0x8] sm:$0xf]
      %v3068 = vld [vmem:[%s3064 + $0xc] sm:$0xf]
      %v3069 = vld [vmem:[%s3064 + $0x10] sm:$0xf]
      %v3070 = vld [vmem:[%s3064 + $0x14] sm:$0xf]
      %v3071 = vld [vmem:[%s3064 + $0x18] sm:$0xf]
      %v3072 = vld [vmem:[%s3064 + $0x1c] sm:$0xf]
      %v3073 = vld [vmem:[%s3064 + $0x20] sm:$0xf]
      %v3074 = vld [vmem:[%s3064 + $0x24] sm:$0xf]
      %v3075 = vld [vmem:[%s3064 + $0x28] sm:$0xf]
      %v3076 = vld [vmem:[%s3064 + $0x2c] sm:$0xf]
      %v3077 = vld [vmem:[%s3064 + $0x30] sm:$0xf]
      %v3078 = vld [vmem:[%s3064 + $0x34] sm:$0xf]
      %v3079 = vld [vmem:[%s3064 + $0x38] sm:$0xf]
      %v3080 = vld [vmem:[%s3064 + $0x3c] sm:$0xf]
      %v3081 = vperm.slane %v533, 6
      %v3098 = vunpack.c.l.b16 %v3065
      %v3099 = vunpack.c.l.b16 %v3066
      %v3100 = vunpack.c.l.b16 %v3067
      %v3101 = vunpack.c.l.b16 %v3068
      %v3102 = vunpack.c.l.b16 %v3069
      %v3103 = vunpack.c.l.b16 %v3070
      %v3104 = vunpack.c.l.b16 %v3071
      %v3105 = vunpack.c.l.b16 %v3072
      %v3106 = vunpack.c.l.b16 %v3073
      %v3107 = vunpack.c.l.b16 %v3074
      %v3108 = vunpack.c.l.b16 %v3075
      %v3109 = vunpack.c.l.b16 %v3076
      %v3110 = vunpack.c.l.b16 %v3077
      %v3111 = vunpack.c.l.b16 %v3078
      %v3112 = vunpack.c.l.b16 %v3079
      %v3113 = vunpack.c.l.b16 %v3080
      %v3114 = vpack.c.b16 %v3099, %v3098
      %v3115 = vpack.c.b16 %v3101, %v3100
      %v3116 = vpack.c.b16 %v3103, %v3102
      %v3117 = vpack.c.b16 %v3105, %v3104
      %v3118 = vpack.c.b16 %v3107, %v3106
      %v3119 = vpack.c.b16 %v3109, %v3108
      %v3120 = vpack.c.b16 %v3111, %v3110
      %v3121 = vpack.c.b16 %v3113, %v3112
      %3130 = vmatpush.bf16.msra.mxu0 %v3121
      %3131 = vmatpush.bf16.msra.mxu0 %v3120
      %3132 = vmatpush.bf16.msra.mxu0 %v3119
      %3133 = vmatpush.bf16.msra.mxu0 %v3118
      %3134 = vmatpush.bf16.msra.mxu0 %v3117
      %3135 = vmatpush.bf16.msra.mxu0 %v3116
      %3136 = vmatpush.bf16.msra.mxu0 %v3115
      %3137 = vmatpush.bf16.msra.mxu0 %v3114
      %3138 = vmatmul.bf16.gmra.mxu0 %v3032
      %v3139 = vpop.f32.mrf.mxu0
      %v3140 = vadd.f32 %v3081, %v3139
      %v3141 = vpop.f32.mrf.mxu0
      %v3142 = vadd.f32 %v3081, %v3141
      %3143 = vmatmul.bf16.gmra.mxu0 %v3033
      %v3144 = vpop.f32.mrf.mxu0
      %v3145 = vadd.f32 %v3081, %v3144
      %v3146 = vpop.f32.mrf.mxu0
      %v3147 = vadd.f32 %v3081, %v3146
      %3148 = vmatmul.bf16.gmra.mxu0 %v3034
      %v3149 = vpop.f32.mrf.mxu0
      %v3150 = vadd.f32 %v3081, %v3149
      %v3151 = vpop.f32.mrf.mxu0
      %v3152 = vadd.f32 %v3081, %v3151
      %3153 = vmatmul.bf16.gmra.mxu0 %v3035
      %v3154 = vpop.f32.mrf.mxu0
      %v3155 = vadd.f32 %v3081, %v3154
      %v3156 = vpop.f32.mrf.mxu0
      %v3157 = vadd.f32 %v3081, %v3156
      %3158 = vmatmul.bf16.gmra.mxu0 %v3036
      %v3159 = vpop.f32.mrf.mxu0
      %v3160 = vadd.f32 %v3081, %v3159
      %v3161 = vpop.f32.mrf.mxu0
      %v3162 = vadd.f32 %v3081, %v3161
      %3163 = vmatmul.bf16.gmra.mxu0 %v3037
      %v3164 = vpop.f32.mrf.mxu0
      %v3165 = vadd.f32 %v3081, %v3164
      %v3166 = vpop.f32.mrf.mxu0
      %v3167 = vadd.f32 %v3081, %v3166
      %3168 = vmatmul.bf16.gmra.mxu0 %v3038
      %v3169 = vpop.f32.mrf.mxu0
      %v3170 = vadd.f32 %v3081, %v3169
      %v3171 = vpop.f32.mrf.mxu0
      %v3172 = vadd.f32 %v3081, %v3171
      %3173 = vmatmul.bf16.gmra.mxu0 %v3039
      %v3174 = vpop.f32.mrf.mxu0
      %v3175 = vadd.f32 %v3081, %v3174
      %v3176 = vpop.f32.mrf.mxu0
      %v3177 = vadd.f32 %v3081, %v3176
      %3178 = vmatmul.bf16.gmra.mxu0 %v3040
      %v3179 = vpop.f32.mrf.mxu0
      %v3180 = vadd.f32 %v3081, %v3179
      %v3181 = vpop.f32.mrf.mxu0
      %v3182 = vadd.f32 %v3081, %v3181
      %3183 = vmatmul.bf16.gmra.mxu0 %v3041
      %v3184 = vpop.f32.mrf.mxu0
      %v3185 = vadd.f32 %v3081, %v3184
      %v3186 = vpop.f32.mrf.mxu0
      %v3187 = vadd.f32 %v3081, %v3186
      %3188 = vmatmul.bf16.gmra.mxu0 %v3042
      %v3189 = vpop.f32.mrf.mxu0
      %v3190 = vadd.f32 %v3081, %v3189
      %v3191 = vpop.f32.mrf.mxu0
      %v3192 = vadd.f32 %v3081, %v3191
      %3193 = vmatmul.bf16.gmra.mxu0 %v3043
      %v3194 = vpop.f32.mrf.mxu0
      %v3195 = vadd.f32 %v3081, %v3194
      %v3196 = vpop.f32.mrf.mxu0
      %v3197 = vadd.f32 %v3081, %v3196
      %3198 = vmatmul.bf16.gmra.mxu0 %v3044
      %v3199 = vpop.f32.mrf.mxu0
      %v3200 = vadd.f32 %v3081, %v3199
      %v3201 = vpop.f32.mrf.mxu0
      %v3202 = vadd.f32 %v3081, %v3201
      %3203 = vmatmul.bf16.gmra.mxu0 %v3045
      %v3204 = vpop.f32.mrf.mxu0
      %v3205 = vadd.f32 %v3081, %v3204
      %v3206 = vpop.f32.mrf.mxu0
      %v3207 = vadd.f32 %v3081, %v3206
      %3208 = vmatmul.bf16.gmra.mxu0 %v3046
      %v3209 = vpop.f32.mrf.mxu0
      %v3210 = vadd.f32 %v3081, %v3209
      %v3211 = vpop.f32.mrf.mxu0
      %v3212 = vadd.f32 %v3081, %v3211
      %3213 = vmatmul.bf16.gmra.mxu0 %v3047
      %v3214 = vpop.f32.mrf.mxu0
      %v3215 = vadd.f32 %v3081, %v3214
      %v3216 = vpop.f32.mrf.mxu0
      %v3217 = vadd.f32 %v3081, %v3216
      %3218 = vmatmul.bf16.gmra.mxu0 %v3048
      %v3219 = vpop.f32.mrf.mxu0
      %v3220 = vadd.f32 %v3081, %v3219
      %v3221 = vpop.f32.mrf.mxu0
      %v3222 = vadd.f32 %v3081, %v3221
      %3223 = vmatmul.bf16.gmra.mxu0 %v3049
      %v3224 = vpop.f32.mrf.mxu0
      %v3225 = vadd.f32 %v3081, %v3224
      %v3226 = vpop.f32.mrf.mxu0
      %v3227 = vadd.f32 %v3081, %v3226
      %3228 = vmatmul.bf16.gmra.mxu0 %v3050
      %v3229 = vpop.f32.mrf.mxu0
      %v3230 = vadd.f32 %v3081, %v3229
      %v3231 = vpop.f32.mrf.mxu0
      %v3232 = vadd.f32 %v3081, %v3231
      %3233 = vmatmul.bf16.gmra.mxu0 %v3051
      %v3234 = vpop.f32.mrf.mxu0
      %v3235 = vadd.f32 %v3081, %v3234
      %v3236 = vpop.f32.mrf.mxu0
      %v3237 = vadd.f32 %v3081, %v3236
      %3238 = vmatmul.bf16.gmra.mxu0 %v3052
      %v3239 = vpop.f32.mrf.mxu0
      %v3240 = vadd.f32 %v3081, %v3239
      %v3241 = vpop.f32.mrf.mxu0
      %v3242 = vadd.f32 %v3081, %v3241
      %3243 = vmatmul.bf16.gmra.mxu0 %v3053
      %v3244 = vpop.f32.mrf.mxu0
      %v3245 = vadd.f32 %v3081, %v3244
      %v3246 = vpop.f32.mrf.mxu0
      %v3247 = vadd.f32 %v3081, %v3246
      %3248 = vmatmul.bf16.gmra.mxu0 %v3054
      %v3249 = vpop.f32.mrf.mxu0
      %v3250 = vadd.f32 %v3081, %v3249
      %v3251 = vpop.f32.mrf.mxu0
      %v3252 = vadd.f32 %v3081, %v3251
      %3253 = vmatmul.bf16.gmra.mxu0 %v3055
      %v3254 = vpop.f32.mrf.mxu0
      %v3255 = vadd.f32 %v3081, %v3254
      %v3256 = vpop.f32.mrf.mxu0
      %v3257 = vadd.f32 %v3081, %v3256
      %3258 = vmatmul.bf16.gmra.mxu0 %v3056
      %v3259 = vpop.f32.mrf.mxu0
      %v3260 = vadd.f32 %v3081, %v3259
      %v3261 = vpop.f32.mrf.mxu0
      %v3262 = vadd.f32 %v3081, %v3261
      %3263 = vmatmul.bf16.gmra.mxu0 %v3057
      %v3264 = vpop.f32.mrf.mxu0
      %v3265 = vadd.f32 %v3081, %v3264
      %v3266 = vpop.f32.mrf.mxu0
      %v3267 = vadd.f32 %v3081, %v3266
      %3268 = vmatmul.bf16.gmra.mxu0 %v3058
      %v3269 = vpop.f32.mrf.mxu0
      %v3270 = vadd.f32 %v3081, %v3269
      %v3271 = vpop.f32.mrf.mxu0
      %v3272 = vadd.f32 %v3081, %v3271
      %3273 = vmatmul.bf16.gmra.mxu0 %v3059
      %v3274 = vpop.f32.mrf.mxu0
      %v3275 = vadd.f32 %v3081, %v3274
      %v3276 = vpop.f32.mrf.mxu0
      %v3277 = vadd.f32 %v3081, %v3276
      %3278 = vmatmul.bf16.gmra.mxu0 %v3060
      %v3279 = vpop.f32.mrf.mxu0
      %v3280 = vadd.f32 %v3081, %v3279
      %v3281 = vpop.f32.mrf.mxu0
      %v3282 = vadd.f32 %v3081, %v3281
      %3283 = vmatmul.bf16.gmra.mxu0 %v3061
      %v3284 = vpop.f32.mrf.mxu0
      %v3285 = vadd.f32 %v3081, %v3284
      %v3286 = vpop.f32.mrf.mxu0
      %v3287 = vadd.f32 %v3081, %v3286
      %3288 = vmatmul.bf16.gmra.mxu0 %v3062
      %v3289 = vpop.f32.mrf.mxu0
      %v3290 = vadd.f32 %v3081, %v3289
      %v3291 = vpop.f32.mrf.mxu0
      %v3292 = vadd.f32 %v3081, %v3291
      %3293 = vmatmul.bf16.gmra.mxu0 %v3063
      %v3294 = vpop.f32.mrf.mxu0
      %v3295 = vadd.f32 %v3081, %v3294
      %v3296 = vpop.f32.mrf.mxu0
      %v3297 = vadd.f32 %v3081, %v3296
      %3298 = vdwg.mxu0
      %v3299 = vmax.f32 %v3140, 0.0
      %v3300 = vmax.f32 %v3142, 0.0
      %v3301 = vmax.f32 %v3145, 0.0
      %v3302 = vmax.f32 %v3147, 0.0
      %v3303 = vmax.f32 %v3150, 0.0
      %v3304 = vmax.f32 %v3152, 0.0
      %v3305 = vmax.f32 %v3155, 0.0
      %v3306 = vmax.f32 %v3157, 0.0
      %v3307 = vmax.f32 %v3160, 0.0
      %v3308 = vmax.f32 %v3162, 0.0
      %v3309 = vmax.f32 %v3165, 0.0
      %v3310 = vmax.f32 %v3167, 0.0
      %v3311 = vmax.f32 %v3170, 0.0
      %v3312 = vmax.f32 %v3172, 0.0
      %v3313 = vmax.f32 %v3175, 0.0
      %v3314 = vmax.f32 %v3177, 0.0
      %v3315 = vmax.f32 %v3180, 0.0
      %v3316 = vmax.f32 %v3182, 0.0
      %v3317 = vmax.f32 %v3185, 0.0
      %v3318 = vmax.f32 %v3187, 0.0
      %v3319 = vmax.f32 %v3190, 0.0
      %v3320 = vmax.f32 %v3192, 0.0
      %v3321 = vmax.f32 %v3195, 0.0
      %v3322 = vmax.f32 %v3197, 0.0
      %v3323 = vmax.f32 %v3200, 0.0
      %v3324 = vmax.f32 %v3202, 0.0
      %v3325 = vmax.f32 %v3205, 0.0
      %v3326 = vmax.f32 %v3207, 0.0
      %v3327 = vmax.f32 %v3210, 0.0
      %v3328 = vmax.f32 %v3212, 0.0
      %v3329 = vmax.f32 %v3215, 0.0
      %v3330 = vmax.f32 %v3217, 0.0
      %v3331 = vmax.f32 %v3220, 0.0
      %v3332 = vmax.f32 %v3222, 0.0
      %v3333 = vmax.f32 %v3225, 0.0
      %v3334 = vmax.f32 %v3227, 0.0
      %v3335 = vmax.f32 %v3230, 0.0
      %v3336 = vmax.f32 %v3232, 0.0
      %v3337 = vmax.f32 %v3235, 0.0
      %v3338 = vmax.f32 %v3237, 0.0
      %v3339 = vmax.f32 %v3240, 0.0
      %v3340 = vmax.f32 %v3242, 0.0
      %v3341 = vmax.f32 %v3245, 0.0
      %v3342 = vmax.f32 %v3247, 0.0
      %v3343 = vmax.f32 %v3250, 0.0
      %v3344 = vmax.f32 %v3252, 0.0
      %v3345 = vmax.f32 %v3255, 0.0
      %v3346 = vmax.f32 %v3257, 0.0
      %v3347 = vmax.f32 %v3260, 0.0
      %v3348 = vmax.f32 %v3262, 0.0
      %v3349 = vmax.f32 %v3265, 0.0
      %v3350 = vmax.f32 %v3267, 0.0
      %v3351 = vmax.f32 %v3270, 0.0
      %v3352 = vmax.f32 %v3272, 0.0
      %v3353 = vmax.f32 %v3275, 0.0
      %v3354 = vmax.f32 %v3277, 0.0
      %v3355 = vmax.f32 %v3280, 0.0
      %v3356 = vmax.f32 %v3282, 0.0
      %v3357 = vmax.f32 %v3285, 0.0
      %v3358 = vmax.f32 %v3287, 0.0
      %v3359 = vmax.f32 %v3290, 0.0
      %v3360 = vmax.f32 %v3292, 0.0
      %v3361 = vmax.f32 %v3295, 0.0
      %v3362 = vmax.f32 %v3297, 0.0
      %v3363 = vpack.c.bf16 %v3299, %v3299
      %v3364 = vpack.c.bf16 %v3300, %v3300
      %v3365 = vpack.c.bf16 %v3301, %v3301
      %v3366 = vpack.c.bf16 %v3302, %v3302
      %v3367 = vpack.c.bf16 %v3303, %v3303
      %v3368 = vpack.c.bf16 %v3304, %v3304
      %v3369 = vpack.c.bf16 %v3305, %v3305
      %v3370 = vpack.c.bf16 %v3306, %v3306
      %v3371 = vpack.c.bf16 %v3307, %v3307
      %v3372 = vpack.c.bf16 %v3308, %v3308
      %v3373 = vpack.c.bf16 %v3309, %v3309
      %v3374 = vpack.c.bf16 %v3310, %v3310
      %v3375 = vpack.c.bf16 %v3311, %v3311
      %v3376 = vpack.c.bf16 %v3312, %v3312
      %v3377 = vpack.c.bf16 %v3313, %v3313
      %v3378 = vpack.c.bf16 %v3314, %v3314
      %v3379 = vpack.c.bf16 %v3315, %v3315
      %v3380 = vpack.c.bf16 %v3316, %v3316
      %v3381 = vpack.c.bf16 %v3317, %v3317
      %v3382 = vpack.c.bf16 %v3318, %v3318
      %v3383 = vpack.c.bf16 %v3319, %v3319
      %v3384 = vpack.c.bf16 %v3320, %v3320
      %v3385 = vpack.c.bf16 %v3321, %v3321
      %v3386 = vpack.c.bf16 %v3322, %v3322
      %v3387 = vpack.c.bf16 %v3323, %v3323
      %v3388 = vpack.c.bf16 %v3324, %v3324
      %v3389 = vpack.c.bf16 %v3325, %v3325
      %v3390 = vpack.c.bf16 %v3326, %v3326
      %v3391 = vpack.c.bf16 %v3327, %v3327
      %v3392 = vpack.c.bf16 %v3328, %v3328
      %v3393 = vpack.c.bf16 %v3329, %v3329
      %v3394 = vpack.c.bf16 %v3330, %v3330
      %v3395 = vpack.c.bf16 %v3331, %v3331
      %v3396 = vpack.c.bf16 %v3332, %v3332
      %v3397 = vpack.c.bf16 %v3333, %v3333
      %v3398 = vpack.c.bf16 %v3334, %v3334
      %v3399 = vpack.c.bf16 %v3335, %v3335
      %v3400 = vpack.c.bf16 %v3336, %v3336
      %v3401 = vpack.c.bf16 %v3337, %v3337
      %v3402 = vpack.c.bf16 %v3338, %v3338
      %v3403 = vpack.c.bf16 %v3339, %v3339
      %v3404 = vpack.c.bf16 %v3340, %v3340
      %v3405 = vpack.c.bf16 %v3341, %v3341
      %v3406 = vpack.c.bf16 %v3342, %v3342
      %v3407 = vpack.c.bf16 %v3343, %v3343
      %v3408 = vpack.c.bf16 %v3344, %v3344
      %v3409 = vpack.c.bf16 %v3345, %v3345
      %v3410 = vpack.c.bf16 %v3346, %v3346
      %v3411 = vpack.c.bf16 %v3347, %v3347
      %v3412 = vpack.c.bf16 %v3348, %v3348
      %v3413 = vpack.c.bf16 %v3349, %v3349
      %v3414 = vpack.c.bf16 %v3350, %v3350
      %v3415 = vpack.c.bf16 %v3351, %v3351
      %v3416 = vpack.c.bf16 %v3352, %v3352
      %v3417 = vpack.c.bf16 %v3353, %v3353
      %v3418 = vpack.c.bf16 %v3354, %v3354
      %v3419 = vpack.c.bf16 %v3355, %v3355
      %v3420 = vpack.c.bf16 %v3356, %v3356
      %v3421 = vpack.c.bf16 %v3357, %v3357
      %v3422 = vpack.c.bf16 %v3358, %v3358
      %v3423 = vpack.c.bf16 %v3359, %v3359
      %v3424 = vpack.c.bf16 %v3360, %v3360
      %v3425 = vpack.c.bf16 %v3361, %v3361
      %v3426 = vpack.c.bf16 %v3362, %v3362
      %v3427 = vld [vmem:[%s5] sm:$0xf]
      %v3428 = vld [vmem:[%s5 + $0x4] sm:$0xf]
      %v3429 = vld [vmem:[%s5 + $0x8] sm:$0xf]
      %v3430 = vld [vmem:[%s5 + $0xc] sm:$0xf]
      %v3431 = vld [vmem:[%s5 + $0x10] sm:$0xf]
      %v3432 = vld [vmem:[%s5 + $0x14] sm:$0xf]
      %v3433 = vld [vmem:[%s5 + $0x18] sm:$0xf]
      %v3434 = vld [vmem:[%s5 + $0x1c] sm:$0xf]
      %v3435 = vld [vmem:[%s5 + $0x20] sm:$0xf]
      %v3436 = vld [vmem:[%s5 + $0x24] sm:$0xf]
      %v3437 = vld [vmem:[%s5 + $0x28] sm:$0xf]
      %v3438 = vld [vmem:[%s5 + $0x2c] sm:$0xf]
      %v3439 = vld [vmem:[%s5 + $0x30] sm:$0xf]
      %v3440 = vld [vmem:[%s5 + $0x34] sm:$0xf]
      %v3441 = vld [vmem:[%s5 + $0x38] sm:$0xf]
      %v3442 = vld [vmem:[%s5 + $0x3c] sm:$0xf]
      %v3443 = vperm.slane %v533, 7
      %v3508 = vunpack.c.l.b16 %v3363
      %v3509 = vunpack.c.l.b16 %v3364
      %v3510 = vunpack.c.l.b16 %v3365
      %v3511 = vunpack.c.l.b16 %v3366
      %v3512 = vunpack.c.l.b16 %v3367
      %v3513 = vunpack.c.l.b16 %v3368
      %v3514 = vunpack.c.l.b16 %v3369
      %v3515 = vunpack.c.l.b16 %v3370
      %v3516 = vunpack.c.l.b16 %v3371
      %v3517 = vunpack.c.l.b16 %v3372
      %v3518 = vunpack.c.l.b16 %v3373
      %v3519 = vunpack.c.l.b16 %v3374
      %v3520 = vunpack.c.l.b16 %v3375
      %v3521 = vunpack.c.l.b16 %v3376
      %v3522 = vunpack.c.l.b16 %v3377
      %v3523 = vunpack.c.l.b16 %v3378
      %v3524 = vunpack.c.l.b16 %v3379
      %v3525 = vunpack.c.l.b16 %v3380
      %v3526 = vunpack.c.l.b16 %v3381
      %v3527 = vunpack.c.l.b16 %v3382
      %v3528 = vunpack.c.l.b16 %v3383
      %v3529 = vunpack.c.l.b16 %v3384
      %v3530 = vunpack.c.l.b16 %v3385
      %v3531 = vunpack.c.l.b16 %v3386
      %v3532 = vunpack.c.l.b16 %v3387
      %v3533 = vunpack.c.l.b16 %v3388
      %v3534 = vunpack.c.l.b16 %v3389
      %v3535 = vunpack.c.l.b16 %v3390
      %v3536 = vunpack.c.l.b16 %v3391
      %v3537 = vunpack.c.l.b16 %v3392
      %v3538 = vunpack.c.l.b16 %v3393
      %v3539 = vunpack.c.l.b16 %v3394
      %v3540 = vunpack.c.l.b16 %v3395
      %v3541 = vunpack.c.l.b16 %v3396
      %v3542 = vunpack.c.l.b16 %v3397
      %v3543 = vunpack.c.l.b16 %v3398
      %v3544 = vunpack.c.l.b16 %v3399
      %v3545 = vunpack.c.l.b16 %v3400
      %v3546 = vunpack.c.l.b16 %v3401
      %v3547 = vunpack.c.l.b16 %v3402
      %v3548 = vunpack.c.l.b16 %v3403
      %v3549 = vunpack.c.l.b16 %v3404
      %v3550 = vunpack.c.l.b16 %v3405
      %v3551 = vunpack.c.l.b16 %v3406
      %v3552 = vunpack.c.l.b16 %v3407
      %v3553 = vunpack.c.l.b16 %v3408
      %v3554 = vunpack.c.l.b16 %v3409
      %v3555 = vunpack.c.l.b16 %v3410
      %v3556 = vunpack.c.l.b16 %v3411
      %v3557 = vunpack.c.l.b16 %v3412
      %v3558 = vunpack.c.l.b16 %v3413
      %v3559 = vunpack.c.l.b16 %v3414
      %v3560 = vunpack.c.l.b16 %v3415
      %v3561 = vunpack.c.l.b16 %v3416
      %v3562 = vunpack.c.l.b16 %v3417
      %v3563 = vunpack.c.l.b16 %v3418
      %v3564 = vunpack.c.l.b16 %v3419
      %v3565 = vunpack.c.l.b16 %v3420
      %v3566 = vunpack.c.l.b16 %v3421
      %v3567 = vunpack.c.l.b16 %v3422
      %v3568 = vunpack.c.l.b16 %v3423
      %v3569 = vunpack.c.l.b16 %v3424
      %v3570 = vunpack.c.l.b16 %v3425
      %v3571 = vunpack.c.l.b16 %v3426
      %v3572 = vpack.c.b16 %v3509, %v3508
      %v3573 = vpack.c.b16 %v3511, %v3510
      %v3574 = vpack.c.b16 %v3513, %v3512
      %v3575 = vpack.c.b16 %v3515, %v3514
      %v3576 = vpack.c.b16 %v3517, %v3516
      %v3577 = vpack.c.b16 %v3519, %v3518
      %v3578 = vpack.c.b16 %v3521, %v3520
      %v3579 = vpack.c.b16 %v3523, %v3522
      %v3580 = vpack.c.b16 %v3525, %v3524
      %v3581 = vpack.c.b16 %v3527, %v3526
      %v3582 = vpack.c.b16 %v3529, %v3528
      %v3583 = vpack.c.b16 %v3531, %v3530
      %v3584 = vpack.c.b16 %v3533, %v3532
      %v3585 = vpack.c.b16 %v3535, %v3534
      %v3586 = vpack.c.b16 %v3537, %v3536
      %v3587 = vpack.c.b16 %v3539, %v3538
      %v3588 = vpack.c.b16 %v3541, %v3540
      %v3589 = vpack.c.b16 %v3543, %v3542
      %v3590 = vpack.c.b16 %v3545, %v3544
      %v3591 = vpack.c.b16 %v3547, %v3546
      %v3592 = vpack.c.b16 %v3549, %v3548
      %v3593 = vpack.c.b16 %v3551, %v3550
      %v3594 = vpack.c.b16 %v3553, %v3552
      %v3595 = vpack.c.b16 %v3555, %v3554
      %v3596 = vpack.c.b16 %v3557, %v3556
      %v3597 = vpack.c.b16 %v3559, %v3558
      %v3598 = vpack.c.b16 %v3561, %v3560
      %v3599 = vpack.c.b16 %v3563, %v3562
      %v3600 = vpack.c.b16 %v3565, %v3564
      %v3601 = vpack.c.b16 %v3567, %v3566
      %v3602 = vpack.c.b16 %v3569, %v3568
      %v3603 = vpack.c.b16 %v3571, %v3570
      %v3652 = vunpack.c.l.b16 %v3427
      %v3653 = vunpack.c.l.b16 %v3428
      %v3654 = vunpack.c.l.b16 %v3429
      %v3655 = vunpack.c.l.b16 %v3430
      %v3656 = vunpack.c.l.b16 %v3431
      %v3657 = vunpack.c.l.b16 %v3432
      %v3658 = vunpack.c.l.b16 %v3433
      %v3659 = vunpack.c.l.b16 %v3434
      %v3660 = vunpack.c.l.b16 %v3435
      %v3661 = vunpack.c.l.b16 %v3436
      %v3662 = vunpack.c.l.b16 %v3437
      %v3663 = vunpack.c.l.b16 %v3438
      %v3664 = vunpack.c.l.b16 %v3439
      %v3665 = vunpack.c.l.b16 %v3440
      %v3666 = vunpack.c.l.b16 %v3441
      %v3667 = vunpack.c.l.b16 %v3442
      %v3668 = vpack.c.b16 %v3653, %v3652
      %v3669 = vpack.c.b16 %v3655, %v3654
      %v3670 = vpack.c.b16 %v3657, %v3656
      %v3671 = vpack.c.b16 %v3659, %v3658
      %v3672 = vpack.c.b16 %v3661, %v3660
      %v3673 = vpack.c.b16 %v3663, %v3662
      %v3674 = vpack.c.b16 %v3665, %v3664
      %v3675 = vpack.c.b16 %v3667, %v3666
      %3684 = vmatpush.bf16.msra.mxu0 %v3675
      %3685 = vmatpush.bf16.msra.mxu0 %v3674
      %3686 = vmatpush.bf16.msra.mxu0 %v3673
      %3687 = vmatpush.bf16.msra.mxu0 %v3672
      %3688 = vmatpush.bf16.msra.mxu0 %v3671
      %3689 = vmatpush.bf16.msra.mxu0 %v3670
      %3690 = vmatpush.bf16.msra.mxu0 %v3669
      %3691 = vmatpush.bf16.msra.mxu0 %v3668
      %3692 = vmatmul.bf16.gmra.mxu0 %v3572
      %v3693 = vpop.f32.mrf.mxu0
      %v3694 = vadd.f32 %v3443, %v3693
      %v3695 = vpop.f32.mrf.mxu0
      %v3696 = vadd.f32 %v3443, %v3695
      %3697 = vmatmul.bf16.gmra.mxu0 %v3573
      %v3698 = vpop.f32.mrf.mxu0
      %v3699 = vadd.f32 %v3443, %v3698
      %v3700 = vpop.f32.mrf.mxu0
      %v3701 = vadd.f32 %v3443, %v3700
      %3702 = vmatmul.bf16.gmra.mxu0 %v3574
      %v3703 = vpop.f32.mrf.mxu0
      %v3704 = vadd.f32 %v3443, %v3703
      %v3705 = vpop.f32.mrf.mxu0
      %v3706 = vadd.f32 %v3443, %v3705
      %3707 = vmatmul.bf16.gmra.mxu0 %v3575
      %v3708 = vpop.f32.mrf.mxu0
      %v3709 = vadd.f32 %v3443, %v3708
      %v3710 = vpop.f32.mrf.mxu0
      %v3711 = vadd.f32 %v3443, %v3710
      %3712 = vmatmul.bf16.gmra.mxu0 %v3576
      %v3713 = vpop.f32.mrf.mxu0
      %v3714 = vadd.f32 %v3443, %v3713
      %v3715 = vpop.f32.mrf.mxu0
      %v3716 = vadd.f32 %v3443, %v3715
      %3717 = vmatmul.bf16.gmra.mxu0 %v3577
      %v3718 = vpop.f32.mrf.mxu0
      %v3719 = vadd.f32 %v3443, %v3718
      %v3720 = vpop.f32.mrf.mxu0
      %v3721 = vadd.f32 %v3443, %v3720
      %3722 = vmatmul.bf16.gmra.mxu0 %v3578
      %v3723 = vpop.f32.mrf.mxu0
      %v3724 = vadd.f32 %v3443, %v3723
      %v3725 = vpop.f32.mrf.mxu0
      %v3726 = vadd.f32 %v3443, %v3725
      %3727 = vmatmul.bf16.gmra.mxu0 %v3579
      %v3728 = vpop.f32.mrf.mxu0
      %v3729 = vadd.f32 %v3443, %v3728
      %v3730 = vpop.f32.mrf.mxu0
      %v3731 = vadd.f32 %v3443, %v3730
      %3732 = vmatmul.bf16.gmra.mxu0 %v3580
      %v3733 = vpop.f32.mrf.mxu0
      %v3734 = vadd.f32 %v3443, %v3733
      %v3735 = vpop.f32.mrf.mxu0
      %v3736 = vadd.f32 %v3443, %v3735
      %3737 = vmatmul.bf16.gmra.mxu0 %v3581
      %v3738 = vpop.f32.mrf.mxu0
      %v3739 = vadd.f32 %v3443, %v3738
      %v3740 = vpop.f32.mrf.mxu0
      %v3741 = vadd.f32 %v3443, %v3740
      %3742 = vmatmul.bf16.gmra.mxu0 %v3582
      %v3743 = vpop.f32.mrf.mxu0
      %v3744 = vadd.f32 %v3443, %v3743
      %v3745 = vpop.f32.mrf.mxu0
      %v3746 = vadd.f32 %v3443, %v3745
      %3747 = vmatmul.bf16.gmra.mxu0 %v3583
      %v3748 = vpop.f32.mrf.mxu0
      %v3749 = vadd.f32 %v3443, %v3748
      %v3750 = vpop.f32.mrf.mxu0
      %v3751 = vadd.f32 %v3443, %v3750
      %3752 = vmatmul.bf16.gmra.mxu0 %v3584
      %v3753 = vpop.f32.mrf.mxu0
      %v3754 = vadd.f32 %v3443, %v3753
      %v3755 = vpop.f32.mrf.mxu0
      %v3756 = vadd.f32 %v3443, %v3755
      %3757 = vmatmul.bf16.gmra.mxu0 %v3585
      %v3758 = vpop.f32.mrf.mxu0
      %v3759 = vadd.f32 %v3443, %v3758
      %v3760 = vpop.f32.mrf.mxu0
      %v3761 = vadd.f32 %v3443, %v3760
      %3762 = vmatmul.bf16.gmra.mxu0 %v3586
      %v3763 = vpop.f32.mrf.mxu0
      %v3764 = vadd.f32 %v3443, %v3763
      %v3765 = vpop.f32.mrf.mxu0
      %v3766 = vadd.f32 %v3443, %v3765
      %3767 = vmatmul.bf16.gmra.mxu0 %v3587
      %v3768 = vpop.f32.mrf.mxu0
      %v3769 = vadd.f32 %v3443, %v3768
      %v3770 = vpop.f32.mrf.mxu0
      %v3771 = vadd.f32 %v3443, %v3770
      %3772 = vmatmul.bf16.gmra.mxu0 %v3588
      %v3773 = vpop.f32.mrf.mxu0
      %v3774 = vadd.f32 %v3443, %v3773
      %v3775 = vpop.f32.mrf.mxu0
      %v3776 = vadd.f32 %v3443, %v3775
      %3777 = vmatmul.bf16.gmra.mxu0 %v3589
      %v3778 = vpop.f32.mrf.mxu0
      %v3779 = vadd.f32 %v3443, %v3778
      %v3780 = vpop.f32.mrf.mxu0
      %v3781 = vadd.f32 %v3443, %v3780
      %3782 = vmatmul.bf16.gmra.mxu0 %v3590
      %v3783 = vpop.f32.mrf.mxu0
      %v3784 = vadd.f32 %v3443, %v3783
      %v3785 = vpop.f32.mrf.mxu0
      %v3786 = vadd.f32 %v3443, %v3785
      %3787 = vmatmul.bf16.gmra.mxu0 %v3591
      %v3788 = vpop.f32.mrf.mxu0
      %v3789 = vadd.f32 %v3443, %v3788
      %v3790 = vpop.f32.mrf.mxu0
      %v3791 = vadd.f32 %v3443, %v3790
      %3792 = vmatmul.bf16.gmra.mxu0 %v3592
      %v3793 = vpop.f32.mrf.mxu0
      %v3794 = vadd.f32 %v3443, %v3793
      %v3795 = vpop.f32.mrf.mxu0
      %v3796 = vadd.f32 %v3443, %v3795
      %3797 = vmatmul.bf16.gmra.mxu0 %v3593
      %v3798 = vpop.f32.mrf.mxu0
      %v3799 = vadd.f32 %v3443, %v3798
      %v3800 = vpop.f32.mrf.mxu0
      %v3801 = vadd.f32 %v3443, %v3800
      %3802 = vmatmul.bf16.gmra.mxu0 %v3594
      %v3803 = vpop.f32.mrf.mxu0
      %v3804 = vadd.f32 %v3443, %v3803
      %v3805 = vpop.f32.mrf.mxu0
      %v3806 = vadd.f32 %v3443, %v3805
      %3807 = vmatmul.bf16.gmra.mxu0 %v3595
      %v3808 = vpop.f32.mrf.mxu0
      %v3809 = vadd.f32 %v3443, %v3808
      %v3810 = vpop.f32.mrf.mxu0
      %v3811 = vadd.f32 %v3443, %v3810
      %3812 = vmatmul.bf16.gmra.mxu0 %v3596
      %v3813 = vpop.f32.mrf.mxu0
      %v3814 = vadd.f32 %v3443, %v3813
      %v3815 = vpop.f32.mrf.mxu0
      %v3816 = vadd.f32 %v3443, %v3815
      %3817 = vmatmul.bf16.gmra.mxu0 %v3597
      %v3818 = vpop.f32.mrf.mxu0
      %v3819 = vadd.f32 %v3443, %v3818
      %v3820 = vpop.f32.mrf.mxu0
      %v3821 = vadd.f32 %v3443, %v3820
      %3822 = vmatmul.bf16.gmra.mxu0 %v3598
      %v3823 = vpop.f32.mrf.mxu0
      %v3824 = vadd.f32 %v3443, %v3823
      %v3825 = vpop.f32.mrf.mxu0
      %v3826 = vadd.f32 %v3443, %v3825
      %3827 = vmatmul.bf16.gmra.mxu0 %v3599
      %v3828 = vpop.f32.mrf.mxu0
      %v3829 = vadd.f32 %v3443, %v3828
      %v3830 = vpop.f32.mrf.mxu0
      %v3831 = vadd.f32 %v3443, %v3830
      %3832 = vmatmul.bf16.gmra.mxu0 %v3600
      %v3833 = vpop.f32.mrf.mxu0
      %v3834 = vadd.f32 %v3443, %v3833
      %v3835 = vpop.f32.mrf.mxu0
      %v3836 = vadd.f32 %v3443, %v3835
      %3837 = vmatmul.bf16.gmra.mxu0 %v3601
      %v3838 = vpop.f32.mrf.mxu0
      %v3839 = vadd.f32 %v3443, %v3838
      %v3840 = vpop.f32.mrf.mxu0
      %v3841 = vadd.f32 %v3443, %v3840
      %3842 = vmatmul.bf16.gmra.mxu0 %v3602
      %v3843 = vpop.f32.mrf.mxu0
      %v3844 = vadd.f32 %v3443, %v3843
      %v3845 = vpop.f32.mrf.mxu0
      %v3846 = vadd.f32 %v3443, %v3845
      %3847 = vmatmul.bf16.gmra.mxu0 %v3603
      %v3848 = vpop.f32.mrf.mxu0
      %v3849 = vadd.f32 %v3443, %v3848
      %v3850 = vpop.f32.mrf.mxu0
      %v3851 = vadd.f32 %v3443, %v3850
      %3852 = vdwg.mxu0
      %v3853 = vpack.c.bf16 %v3696, %v3694
      %v3854 = vpack.c.bf16 %v3701, %v3699
      %v3855 = vpack.c.bf16 %v3706, %v3704
      %v3856 = vpack.c.bf16 %v3711, %v3709
      %v3857 = vpack.c.bf16 %v3716, %v3714
      %v3858 = vpack.c.bf16 %v3721, %v3719
      %v3859 = vpack.c.bf16 %v3726, %v3724
      %v3860 = vpack.c.bf16 %v3731, %v3729
      %v3861 = vpack.c.bf16 %v3736, %v3734
      %v3862 = vpack.c.bf16 %v3741, %v3739
      %v3863 = vpack.c.bf16 %v3746, %v3744
      %v3864 = vpack.c.bf16 %v3751, %v3749
      %v3865 = vpack.c.bf16 %v3756, %v3754
      %v3866 = vpack.c.bf16 %v3761, %v3759
      %v3867 = vpack.c.bf16 %v3766, %v3764
      %v3868 = vpack.c.bf16 %v3771, %v3769
      %v3869 = vpack.c.bf16 %v3776, %v3774
      %v3870 = vpack.c.bf16 %v3781, %v3779
      %v3871 = vpack.c.bf16 %v3786, %v3784
      %v3872 = vpack.c.bf16 %v3791, %v3789
      %v3873 = vpack.c.bf16 %v3796, %v3794
      %v3874 = vpack.c.bf16 %v3801, %v3799
      %v3875 = vpack.c.bf16 %v3806, %v3804
      %v3876 = vpack.c.bf16 %v3811, %v3809
      %v3877 = vpack.c.bf16 %v3816, %v3814
      %v3878 = vpack.c.bf16 %v3821, %v3819
      %v3879 = vpack.c.bf16 %v3826, %v3824
      %v3880 = vpack.c.bf16 %v3831, %v3829
      %v3881 = vpack.c.bf16 %v3836, %v3834
      %v3882 = vpack.c.bf16 %v3841, %v3839
      %v3883 = vpack.c.bf16 %v3846, %v3844
      %v3884 = vpack.c.bf16 %v3851, %v3849
      %v3885 = vunpack.c.l.bf16 %v3363
      %v3886 = vunpack.c.l.bf16 %v3364
      %v3887 = vunpack.c.l.bf16 %v3365
      %v3888 = vunpack.c.l.bf16 %v3366
      %v3889 = vunpack.c.l.bf16 %v3367
      %v3890 = vunpack.c.l.bf16 %v3368
      %v3891 = vunpack.c.l.bf16 %v3369
      %v3892 = vunpack.c.l.bf16 %v3370
      %v3893 = vunpack.c.l.bf16 %v3371
      %v3894 = vunpack.c.l.bf16 %v3372
      %v3895 = vunpack.c.l.bf16 %v3373
      %v3896 = vunpack.c.l.bf16 %v3374
      %v3897 = vunpack.c.l.bf16 %v3375
      %v3898 = vunpack.c.l.bf16 %v3376
      %v3899 = vunpack.c.l.bf16 %v3377
      %v3900 = vunpack.c.l.bf16 %v3378
      %v3901 = vunpack.c.l.bf16 %v3379
      %v3902 = vunpack.c.l.bf16 %v3380
      %v3903 = vunpack.c.l.bf16 %v3381
      %v3904 = vunpack.c.l.bf16 %v3382
      %v3905 = vunpack.c.l.bf16 %v3383
      %v3906 = vunpack.c.l.bf16 %v3384
      %v3907 = vunpack.c.l.bf16 %v3385
      %v3908 = vunpack.c.l.bf16 %v3386
      %v3909 = vunpack.c.l.bf16 %v3387
      %v3910 = vunpack.c.l.bf16 %v3388
      %v3911 = vunpack.c.l.bf16 %v3389
      %v3912 = vunpack.c.l.bf16 %v3390
      %v3913 = vunpack.c.l.bf16 %v3391
      %v3914 = vunpack.c.l.bf16 %v3392
      %v3915 = vunpack.c.l.bf16 %v3393
      %v3916 = vunpack.c.l.bf16 %v3394
      %v3917 = vunpack.c.l.bf16 %v3395
      %v3918 = vunpack.c.l.bf16 %v3396
      %v3919 = vunpack.c.l.bf16 %v3397
      %v3920 = vunpack.c.l.bf16 %v3398
      %v3921 = vunpack.c.l.bf16 %v3399
      %v3922 = vunpack.c.l.bf16 %v3400
      %v3923 = vunpack.c.l.bf16 %v3401
      %v3924 = vunpack.c.l.bf16 %v3402
      %v3925 = vunpack.c.l.bf16 %v3403
      %v3926 = vunpack.c.l.bf16 %v3404
      %v3927 = vunpack.c.l.bf16 %v3405
      %v3928 = vunpack.c.l.bf16 %v3406
      %v3929 = vunpack.c.l.bf16 %v3407
      %v3930 = vunpack.c.l.bf16 %v3408
      %v3931 = vunpack.c.l.bf16 %v3409
      %v3932 = vunpack.c.l.bf16 %v3410
      %v3933 = vunpack.c.l.bf16 %v3411
      %v3934 = vunpack.c.l.bf16 %v3412
      %v3935 = vunpack.c.l.bf16 %v3413
      %v3936 = vunpack.c.l.bf16 %v3414
      %v3937 = vunpack.c.l.bf16 %v3415
      %v3938 = vunpack.c.l.bf16 %v3416
      %v3939 = vunpack.c.l.bf16 %v3417
      %v3940 = vunpack.c.l.bf16 %v3418
      %v3941 = vunpack.c.l.bf16 %v3419
      %v3942 = vunpack.c.l.bf16 %v3420
      %v3943 = vunpack.c.l.bf16 %v3421
      %v3944 = vunpack.c.l.bf16 %v3422
      %v3945 = vunpack.c.l.bf16 %v3423
      %v3946 = vunpack.c.l.bf16 %v3424
      %v3947 = vunpack.c.l.bf16 %v3425
      %v3948 = vunpack.c.l.bf16 %v3426
      %v3949 = vld [vmem:[%s6] sm:$0x1]
      %v3951 = vperm.slane %v3949, 0
      %v3953 = vmul.f32 %v3885, %v3951
      %v3954 = vmul.f32 %v3886, %v3951
      %v3955 = vmul.f32 %v3887, %v3951
      %v3956 = vmul.f32 %v3888, %v3951
      %v3957 = vmul.f32 %v3889, %v3951
      %v3958 = vmul.f32 %v3890, %v3951
      %v3959 = vmul.f32 %v3891, %v3951
      %v3960 = vmul.f32 %v3892, %v3951
      %v3961 = vmul.f32 %v3893, %v3951
      %v3962 = vmul.f32 %v3894, %v3951
      %v3963 = vmul.f32 %v3895, %v3951
      %v3964 = vmul.f32 %v3896, %v3951
      %v3965 = vmul.f32 %v3897, %v3951
      %v3966 = vmul.f32 %v3898, %v3951
      %v3967 = vmul.f32 %v3899, %v3951
      %v3968 = vmul.f32 %v3900, %v3951
      %v3969 = vmul.f32 %v3901, %v3951
      %v3970 = vmul.f32 %v3902, %v3951
      %v3971 = vmul.f32 %v3903, %v3951
      %v3972 = vmul.f32 %v3904, %v3951
      %v3973 = vmul.f32 %v3905, %v3951
      %v3974 = vmul.f32 %v3906, %v3951
      %v3975 = vmul.f32 %v3907, %v3951
      %v3976 = vmul.f32 %v3908, %v3951
      %v3977 = vmul.f32 %v3909, %v3951
      %v3978 = vmul.f32 %v3910, %v3951
      %v3979 = vmul.f32 %v3911, %v3951
      %v3980 = vmul.f32 %v3912, %v3951
      %v3981 = vmul.f32 %v3913, %v3951
      %v3982 = vmul.f32 %v3914, %v3951
      %v3983 = vmul.f32 %v3915, %v3951
      %v3984 = vmul.f32 %v3916, %v3951
      %v3985 = vmul.f32 %v3917, %v3951
      %v3986 = vmul.f32 %v3918, %v3951
      %v3987 = vmul.f32 %v3919, %v3951
      %v3988 = vmul.f32 %v3920, %v3951
      %v3989 = vmul.f32 %v3921, %v3951
      %v3990 = vmul.f32 %v3922, %v3951
      %v3991 = vmul.f32 %v3923, %v3951
      %v3992 = vmul.f32 %v3924, %v3951
      %v3993 = vmul.f32 %v3925, %v3951
      %v3994 = vmul.f32 %v3926, %v3951
      %v3995 = vmul.f32 %v3927, %v3951
      %v3996 = vmul.f32 %v3928, %v3951
      %v3997 = vmul.f32 %v3929, %v3951
      %v3998 = vmul.f32 %v3930, %v3951
      %v3999 = vmul.f32 %v3931, %v3951
      %v4000 = vmul.f32 %v3932, %v3951
      %v4001 = vmul.f32 %v3933, %v3951
      %v4002 = vmul.f32 %v3934, %v3951
      %v4003 = vmul.f32 %v3935, %v3951
      %v4004 = vmul.f32 %v3936, %v3951
      %v4005 = vmul.f32 %v3937, %v3951
      %v4006 = vmul.f32 %v3938, %v3951
      %v4007 = vmul.f32 %v3939, %v3951
      %v4008 = vmul.f32 %v3940, %v3951
      %v4009 = vmul.f32 %v3941, %v3951
      %v4010 = vmul.f32 %v3942, %v3951
      %v4011 = vmul.f32 %v3943, %v3951
      %v4012 = vmul.f32 %v3944, %v3951
      %v4013 = vmul.f32 %v3945, %v3951
      %v4014 = vmul.f32 %v3946, %v3951
      %v4015 = vmul.f32 %v3947, %v3951
      %v4016 = vmul.f32 %v3948, %v3951
      %4017 = vadd.xlane.f32.xlu0 %v3953
      %v4018 = vpop.xlane.xlu0 %4017
      %4019 = vadd.xlane.f32.xlu0 %v3954
      %v4020 = vpop.xlane.xlu0 %4019
      %4021 = vadd.xlane.f32.xlu0 %v3955
      %v4022 = vpop.xlane.xlu0 %4021
      %4023 = vadd.xlane.f32.xlu0 %v3956
      %v4024 = vpop.xlane.xlu0 %4023
      %4025 = vadd.xlane.f32.xlu0 %v3957
      %v4026 = vpop.xlane.xlu0 %4025
      %4027 = vadd.xlane.f32.xlu0 %v3958
      %v4028 = vpop.xlane.xlu0 %4027
      %4029 = vadd.xlane.f32.xlu0 %v3959
      %v4030 = vpop.xlane.xlu0 %4029
      %4031 = vadd.xlane.f32.xlu0 %v3960
      %v4032 = vpop.xlane.xlu0 %4031
      %4033 = vadd.xlane.f32.xlu0 %v3961
      %v4034 = vpop.xlane.xlu0 %4033
      %4035 = vadd.xlane.f32.xlu0 %v3962
      %v4036 = vpop.xlane.xlu0 %4035
      %4037 = vadd.xlane.f32.xlu0 %v3963
      %v4038 = vpop.xlane.xlu0 %4037
      %4039 = vadd.xlane.f32.xlu0 %v3964
      %v4040 = vpop.xlane.xlu0 %4039
      %4041 = vadd.xlane.f32.xlu0 %v3965
      %v4042 = vpop.xlane.xlu0 %4041
      %4043 = vadd.xlane.f32.xlu0 %v3966
      %v4044 = vpop.xlane.xlu0 %4043
      %4045 = vadd.xlane.f32.xlu0 %v3967
      %v4046 = vpop.xlane.xlu0 %4045
      %4047 = vadd.xlane.f32.xlu0 %v3968
      %v4048 = vpop.xlane.xlu0 %4047
      %4049 = vadd.xlane.f32.xlu0 %v3969
      %v4050 = vpop.xlane.xlu0 %4049
      %4051 = vadd.xlane.f32.xlu0 %v3970
      %v4052 = vpop.xlane.xlu0 %4051
      %4053 = vadd.xlane.f32.xlu0 %v3971
      %v4054 = vpop.xlane.xlu0 %4053
      %4055 = vadd.xlane.f32.xlu0 %v3972
      %v4056 = vpop.xlane.xlu0 %4055
      %4057 = vadd.xlane.f32.xlu0 %v3973
      %v4058 = vpop.xlane.xlu0 %4057
      %4059 = vadd.xlane.f32.xlu0 %v3974
      %v4060 = vpop.xlane.xlu0 %4059
      %4061 = vadd.xlane.f32.xlu0 %v3975
      %v4062 = vpop.xlane.xlu0 %4061
      %4063 = vadd.xlane.f32.xlu0 %v3976
      %v4064 = vpop.xlane.xlu0 %4063
      %4065 = vadd.xlane.f32.xlu0 %v3977
      %v4066 = vpop.xlane.xlu0 %4065
      %4067 = vadd.xlane.f32.xlu0 %v3978
      %v4068 = vpop.xlane.xlu0 %4067
      %4069 = vadd.xlane.f32.xlu0 %v3979
      %v4070 = vpop.xlane.xlu0 %4069
      %4071 = vadd.xlane.f32.xlu0 %v3980
      %v4072 = vpop.xlane.xlu0 %4071
      %4073 = vadd.xlane.f32.xlu0 %v3981
      %v4074 = vpop.xlane.xlu0 %4073
      %4075 = vadd.xlane.f32.xlu0 %v3982
      %v4076 = vpop.xlane.xlu0 %4075
      %4077 = vadd.xlane.f32.xlu0 %v3983
      %v4078 = vpop.xlane.xlu0 %4077
      %4079 = vadd.xlane.f32.xlu0 %v3984
      %v4080 = vpop.xlane.xlu0 %4079
      %4081 = vadd.xlane.f32.xlu0 %v3985
      %v4082 = vpop.xlane.xlu0 %4081
      %4083 = vadd.xlane.f32.xlu0 %v3986
      %v4084 = vpop.xlane.xlu0 %4083
      %4085 = vadd.xlane.f32.xlu0 %v3987
      %v4086 = vpop.xlane.xlu0 %4085
      %4087 = vadd.xlane.f32.xlu0 %v3988
      %v4088 = vpop.xlane.xlu0 %4087
      %4089 = vadd.xlane.f32.xlu0 %v3989
      %v4090 = vpop.xlane.xlu0 %4089
      %4091 = vadd.xlane.f32.xlu0 %v3990
      %v4092 = vpop.xlane.xlu0 %4091
      %4093 = vadd.xlane.f32.xlu0 %v3991
      %v4094 = vpop.xlane.xlu0 %4093
      %4095 = vadd.xlane.f32.xlu0 %v3992
      %v4096 = vpop.xlane.xlu0 %4095
      %4097 = vadd.xlane.f32.xlu0 %v3993
      %v4098 = vpop.xlane.xlu0 %4097
      %4099 = vadd.xlane.f32.xlu0 %v3994
      %v4100 = vpop.xlane.xlu0 %4099
      %4101 = vadd.xlane.f32.xlu0 %v3995
      %v4102 = vpop.xlane.xlu0 %4101
      %4103 = vadd.xlane.f32.xlu0 %v3996
      %v4104 = vpop.xlane.xlu0 %4103
      %4105 = vadd.xlane.f32.xlu0 %v3997
      %v4106 = vpop.xlane.xlu0 %4105
      %4107 = vadd.xlane.f32.xlu0 %v3998
      %v4108 = vpop.xlane.xlu0 %4107
      %4109 = vadd.xlane.f32.xlu0 %v3999
      %v4110 = vpop.xlane.xlu0 %4109
      %4111 = vadd.xlane.f32.xlu0 %v4000
      %v4112 = vpop.xlane.xlu0 %4111
      %4113 = vadd.xlane.f32.xlu0 %v4001
      %v4114 = vpop.xlane.xlu0 %4113
      %4115 = vadd.xlane.f32.xlu0 %v4002
      %v4116 = vpop.xlane.xlu0 %4115
      %4117 = vadd.xlane.f32.xlu0 %v4003
      %v4118 = vpop.xlane.xlu0 %4117
      %4119 = vadd.xlane.f32.xlu0 %v4004
      %v4120 = vpop.xlane.xlu0 %4119
      %4121 = vadd.xlane.f32.xlu0 %v4005
      %v4122 = vpop.xlane.xlu0 %4121
      %4123 = vadd.xlane.f32.xlu0 %v4006
      %v4124 = vpop.xlane.xlu0 %4123
      %4125 = vadd.xlane.f32.xlu0 %v4007
      %v4126 = vpop.xlane.xlu0 %4125
      %4127 = vadd.xlane.f32.xlu0 %v4008
      %v4128 = vpop.xlane.xlu0 %4127
      %4129 = vadd.xlane.f32.xlu0 %v4009
      %v4130 = vpop.xlane.xlu0 %4129
      %4131 = vadd.xlane.f32.xlu0 %v4010
      %v4132 = vpop.xlane.xlu0 %4131
      %4133 = vadd.xlane.f32.xlu0 %v4011
      %v4134 = vpop.xlane.xlu0 %4133
      %4135 = vadd.xlane.f32.xlu0 %v4012
      %v4136 = vpop.xlane.xlu0 %4135
      %4137 = vadd.xlane.f32.xlu0 %v4013
      %v4138 = vpop.xlane.xlu0 %4137
      %4139 = vadd.xlane.f32.xlu0 %v4014
      %v4140 = vpop.xlane.xlu0 %4139
      %4141 = vadd.xlane.f32.xlu0 %v4015
      %v4142 = vpop.xlane.xlu0 %4141
      %4143 = vadd.xlane.f32.xlu0 %v4016
      %v4144 = vpop.xlane.xlu0 %4143
      %v4145 = vld [vmem:[#allocation2] sm:$0x1]
      %v4147 = vperm.slane %v4145, 0
      %v4149 = vadd.f32 %v4018, %v4147
      %v4150 = vadd.f32 %v4020, %v4147
      %v4151 = vadd.f32 %v4022, %v4147
      %v4152 = vadd.f32 %v4024, %v4147
      %v4153 = vadd.f32 %v4026, %v4147
      %v4154 = vadd.f32 %v4028, %v4147
      %v4155 = vadd.f32 %v4030, %v4147
      %v4156 = vadd.f32 %v4032, %v4147
      %v4157 = vadd.f32 %v4034, %v4147
      %v4158 = vadd.f32 %v4036, %v4147
      %v4159 = vadd.f32 %v4038, %v4147
      %v4160 = vadd.f32 %v4040, %v4147
      %v4161 = vadd.f32 %v4042, %v4147
      %v4162 = vadd.f32 %v4044, %v4147
      %v4163 = vadd.f32 %v4046, %v4147
      %v4164 = vadd.f32 %v4048, %v4147
      %v4165 = vadd.f32 %v4050, %v4147
      %v4166 = vadd.f32 %v4052, %v4147
      %v4167 = vadd.f32 %v4054, %v4147
      %v4168 = vadd.f32 %v4056, %v4147
      %v4169 = vadd.f32 %v4058, %v4147
      %v4170 = vadd.f32 %v4060, %v4147
      %v4171 = vadd.f32 %v4062, %v4147
      %v4172 = vadd.f32 %v4064, %v4147
      %v4173 = vadd.f32 %v4066, %v4147
      %v4174 = vadd.f32 %v4068, %v4147
      %v4175 = vadd.f32 %v4070, %v4147
      %v4176 = vadd.f32 %v4072, %v4147
      %v4177 = vadd.f32 %v4074, %v4147
      %v4178 = vadd.f32 %v4076, %v4147
      %v4179 = vadd.f32 %v4078, %v4147
      %v4180 = vadd.f32 %v4080, %v4147
      %v4181 = vadd.f32 %v4082, %v4147
      %v4182 = vadd.f32 %v4084, %v4147
      %v4183 = vadd.f32 %v4086, %v4147
      %v4184 = vadd.f32 %v4088, %v4147
      %v4185 = vadd.f32 %v4090, %v4147
      %v4186 = vadd.f32 %v4092, %v4147
      %v4187 = vadd.f32 %v4094, %v4147
      %v4188 = vadd.f32 %v4096, %v4147
      %v4189 = vadd.f32 %v4098, %v4147
      %v4190 = vadd.f32 %v4100, %v4147
      %v4191 = vadd.f32 %v4102, %v4147
      %v4192 = vadd.f32 %v4104, %v4147
      %v4193 = vadd.f32 %v4106, %v4147
      %v4194 = vadd.f32 %v4108, %v4147
      %v4195 = vadd.f32 %v4110, %v4147
      %v4196 = vadd.f32 %v4112, %v4147
      %v4197 = vadd.f32 %v4114, %v4147
      %v4198 = vadd.f32 %v4116, %v4147
      %v4199 = vadd.f32 %v4118, %v4147
      %v4200 = vadd.f32 %v4120, %v4147
      %v4201 = vadd.f32 %v4122, %v4147
      %v4202 = vadd.f32 %v4124, %v4147
      %v4203 = vadd.f32 %v4126, %v4147
      %v4204 = vadd.f32 %v4128, %v4147
      %v4205 = vadd.f32 %v4130, %v4147
      %v4206 = vadd.f32 %v4132, %v4147
      %v4207 = vadd.f32 %v4134, %v4147
      %v4208 = vadd.f32 %v4136, %v4147
      %v4209 = vadd.f32 %v4138, %v4147
      %v4210 = vadd.f32 %v4140, %v4147
      %v4211 = vadd.f32 %v4142, %v4147
      %v4212 = vadd.f32 %v4144, %v4147
      %v4213 = vmax.f32 %v4149, 0.0
      %v4214 = vmax.f32 %v4150, 0.0
      %v4215 = vmax.f32 %v4151, 0.0
      %v4216 = vmax.f32 %v4152, 0.0
      %v4217 = vmax.f32 %v4153, 0.0
      %v4218 = vmax.f32 %v4154, 0.0
      %v4219 = vmax.f32 %v4155, 0.0
      %v4220 = vmax.f32 %v4156, 0.0
      %v4221 = vmax.f32 %v4157, 0.0
      %v4222 = vmax.f32 %v4158, 0.0
      %v4223 = vmax.f32 %v4159, 0.0
      %v4224 = vmax.f32 %v4160, 0.0
      %v4225 = vmax.f32 %v4161, 0.0
      %v4226 = vmax.f32 %v4162, 0.0
      %v4227 = vmax.f32 %v4163, 0.0
      %v4228 = vmax.f32 %v4164, 0.0
      %v4229 = vmax.f32 %v4165, 0.0
      %v4230 = vmax.f32 %v4166, 0.0
      %v4231 = vmax.f32 %v4167, 0.0
      %v4232 = vmax.f32 %v4168, 0.0
      %v4233 = vmax.f32 %v4169, 0.0
      %v4234 = vmax.f32 %v4170, 0.0
      %v4235 = vmax.f32 %v4171, 0.0
      %v4236 = vmax.f32 %v4172, 0.0
      %v4237 = vmax.f32 %v4173, 0.0
      %v4238 = vmax.f32 %v4174, 0.0
      %v4239 = vmax.f32 %v4175, 0.0
      %v4240 = vmax.f32 %v4176, 0.0
      %v4241 = vmax.f32 %v4177, 0.0
      %v4242 = vmax.f32 %v4178, 0.0
      %v4243 = vmax.f32 %v4179, 0.0
      %v4244 = vmax.f32 %v4180, 0.0
      %v4245 = vmax.f32 %v4181, 0.0
      %v4246 = vmax.f32 %v4182, 0.0
      %v4247 = vmax.f32 %v4183, 0.0
      %v4248 = vmax.f32 %v4184, 0.0
      %v4249 = vmax.f32 %v4185, 0.0
      %v4250 = vmax.f32 %v4186, 0.0
      %v4251 = vmax.f32 %v4187, 0.0
      %v4252 = vmax.f32 %v4188, 0.0
      %v4253 = vmax.f32 %v4189, 0.0
      %v4254 = vmax.f32 %v4190, 0.0
      %v4255 = vmax.f32 %v4191, 0.0
      %v4256 = vmax.f32 %v4192, 0.0
      %v4257 = vmax.f32 %v4193, 0.0
      %v4258 = vmax.f32 %v4194, 0.0
      %v4259 = vmax.f32 %v4195, 0.0
      %v4260 = vmax.f32 %v4196, 0.0
      %v4261 = vmax.f32 %v4197, 0.0
      %v4262 = vmax.f32 %v4198, 0.0
      %v4263 = vmax.f32 %v4199, 0.0
      %v4264 = vmax.f32 %v4200, 0.0
      %v4265 = vmax.f32 %v4201, 0.0
      %v4266 = vmax.f32 %v4202, 0.0
      %v4267 = vmax.f32 %v4203, 0.0
      %v4268 = vmax.f32 %v4204, 0.0
      %v4269 = vmax.f32 %v4205, 0.0
      %v4270 = vmax.f32 %v4206, 0.0
      %v4271 = vmax.f32 %v4207, 0.0
      %v4272 = vmax.f32 %v4208, 0.0
      %v4273 = vmax.f32 %v4209, 0.0
      %v4274 = vmax.f32 %v4210, 0.0
      %v4275 = vmax.f32 %v4211, 0.0
      %v4276 = vmax.f32 %v4212, 0.0
      %v4277 = vld [vmem:[%s460] sm:$0xf]
      %v4278 = vld [vmem:[%s460 + $0x4] sm:$0xf]
      %v4279 = vld [vmem:[%s460 + $0x8] sm:$0xf]
      %v4280 = vld [vmem:[%s460 + $0xc] sm:$0xf]
      %v4281 = vld [vmem:[%s460 + $0x10] sm:$0xf]
      %v4282 = vld [vmem:[%s460 + $0x14] sm:$0xf]
      %v4283 = vld [vmem:[%s460 + $0x18] sm:$0xf]
      %v4284 = vld [vmem:[%s460 + $0x1c] sm:$0xf]
      %v4285 = vld [vmem:[%s460 + $0x20] sm:$0xf]
      %v4286 = vld [vmem:[%s460 + $0x24] sm:$0xf]
      %v4287 = vld [vmem:[%s460 + $0x28] sm:$0xf]
      %v4288 = vld [vmem:[%s460 + $0x2c] sm:$0xf]
      %v4289 = vld [vmem:[%s460 + $0x30] sm:$0xf]
      %v4290 = vld [vmem:[%s460 + $0x34] sm:$0xf]
      %v4291 = vld [vmem:[%s460 + $0x38] sm:$0xf]
      %v4292 = vld [vmem:[%s460 + $0x3c] sm:$0xf]
      %v4293 = vld [vmem:[%s460 + $0x40] sm:$0xf]
      %v4294 = vld [vmem:[%s460 + $0x44] sm:$0xf]
      %v4295 = vld [vmem:[%s460 + $0x48] sm:$0xf]
      %v4296 = vld [vmem:[%s460 + $0x4c] sm:$0xf]
      %v4297 = vld [vmem:[%s460 + $0x50] sm:$0xf]
      %v4298 = vld [vmem:[%s460 + $0x54] sm:$0xf]
      %v4299 = vld [vmem:[%s460 + $0x58] sm:$0xf]
      %v4300 = vld [vmem:[%s460 + $0x5c] sm:$0xf]
      %v4301 = vld [vmem:[%s460 + $0x60] sm:$0xf]
      %v4302 = vld [vmem:[%s460 + $0x64] sm:$0xf]
      %v4303 = vld [vmem:[%s460 + $0x68] sm:$0xf]
      %v4304 = vld [vmem:[%s460 + $0x6c] sm:$0xf]
      %v4305 = vld [vmem:[%s460 + $0x70] sm:$0xf]
      %v4306 = vld [vmem:[%s460 + $0x74] sm:$0xf]
      %v4307 = vld [vmem:[%s460 + $0x78] sm:$0xf]
      %v4308 = vld [vmem:[%s460 + $0x7c] sm:$0xf]
      %v4309 = vld [vmem:[%s460 + $0x80] sm:$0xf]
      %v4310 = vld [vmem:[%s460 + $0x84] sm:$0xf]
      %v4311 = vld [vmem:[%s460 + $0x88] sm:$0xf]
      %v4312 = vld [vmem:[%s460 + $0x8c] sm:$0xf]
      %v4313 = vld [vmem:[%s460 + $0x90] sm:$0xf]
      %v4314 = vld [vmem:[%s460 + $0x94] sm:$0xf]
      %v4315 = vld [vmem:[%s460 + $0x98] sm:$0xf]
      %v4316 = vld [vmem:[%s460 + $0x9c] sm:$0xf]
      %v4317 = vld [vmem:[%s460 + $0xa0] sm:$0xf]
      %v4318 = vld [vmem:[%s460 + $0xa4] sm:$0xf]
      %v4319 = vld [vmem:[%s460 + $0xa8] sm:$0xf]
      %v4320 = vld [vmem:[%s460 + $0xac] sm:$0xf]
      %v4321 = vld [vmem:[%s460 + $0xb0] sm:$0xf]
      %v4322 = vld [vmem:[%s460 + $0xb4] sm:$0xf]
      %v4323 = vld [vmem:[%s460 + $0xb8] sm:$0xf]
      %v4324 = vld [vmem:[%s460 + $0xbc] sm:$0xf]
      %v4325 = vld [vmem:[%s460 + $0xc0] sm:$0xf]
      %v4326 = vld [vmem:[%s460 + $0xc4] sm:$0xf]
      %v4327 = vld [vmem:[%s460 + $0xc8] sm:$0xf]
      %v4328 = vld [vmem:[%s460 + $0xcc] sm:$0xf]
      %v4329 = vld [vmem:[%s460 + $0xd0] sm:$0xf]
      %v4330 = vld [vmem:[%s460 + $0xd4] sm:$0xf]
      %v4331 = vld [vmem:[%s460 + $0xd8] sm:$0xf]
      %v4332 = vld [vmem:[%s460 + $0xdc] sm:$0xf]
      %v4333 = vld [vmem:[%s460 + $0xe0] sm:$0xf]
      %v4334 = vld [vmem:[%s460 + $0xe4] sm:$0xf]
      %v4335 = vld [vmem:[%s460 + $0xe8] sm:$0xf]
      %v4336 = vld [vmem:[%s460 + $0xec] sm:$0xf]
      %v4337 = vld [vmem:[%s460 + $0xf0] sm:$0xf]
      %v4338 = vld [vmem:[%s460 + $0xf4] sm:$0xf]
      %v4339 = vld [vmem:[%s460 + $0xf8] sm:$0xf]
      %v4340 = vld [vmem:[%s460 + $0xfc] sm:$0xf]
      %v4341 = vld [vmem:[%s8] sm:$0xf]
      %v4342 = vld [vmem:[%s8 + $0x4] sm:$0xf]
      %v4343 = vld [vmem:[%s8 + $0x8] sm:$0xf]
      %v4344 = vld [vmem:[%s8 + $0xc] sm:$0xf]
      %v4345 = vld [vmem:[%s8 + $0x10] sm:$0xf]
      %v4346 = vld [vmem:[%s8 + $0x14] sm:$0xf]
      %v4347 = vld [vmem:[%s8 + $0x18] sm:$0xf]
      %v4348 = vld [vmem:[%s8 + $0x1c] sm:$0xf]
      %v4349 = vld [vmem:[%s8 + $0x20] sm:$0xf]
      %v4350 = vld [vmem:[%s8 + $0x24] sm:$0xf]
      %v4351 = vld [vmem:[%s8 + $0x28] sm:$0xf]
      %v4352 = vld [vmem:[%s8 + $0x2c] sm:$0xf]
      %v4353 = vld [vmem:[%s8 + $0x30] sm:$0xf]
      %v4354 = vld [vmem:[%s8 + $0x34] sm:$0xf]
      %v4355 = vld [vmem:[%s8 + $0x38] sm:$0xf]
      %v4356 = vld [vmem:[%s8 + $0x3c] sm:$0xf]
      %v4357 = vld [vmem:[%s9] sm:$0xf]
      %v4358 = vld [vmem:[%s9 + $0x4] sm:$0xf]
      %v4359 = vld [vmem:[%s9 + $0x8] sm:$0xf]
      %v4360 = vld [vmem:[%s9 + $0xc] sm:$0x3]
      %v4425 = vunpack.c.l.b16 %v4277
      %v4426 = vunpack.c.l.b16 %v4278
      %v4427 = vunpack.c.l.b16 %v4279
      %v4428 = vunpack.c.l.b16 %v4280
      %v4429 = vunpack.c.l.b16 %v4281
      %v4430 = vunpack.c.l.b16 %v4282
      %v4431 = vunpack.c.l.b16 %v4283
      %v4432 = vunpack.c.l.b16 %v4284
      %v4433 = vunpack.c.l.b16 %v4285
      %v4434 = vunpack.c.l.b16 %v4286
      %v4435 = vunpack.c.l.b16 %v4287
      %v4436 = vunpack.c.l.b16 %v4288
      %v4437 = vunpack.c.l.b16 %v4289
      %v4438 = vunpack.c.l.b16 %v4290
      %v4439 = vunpack.c.l.b16 %v4291
      %v4440 = vunpack.c.l.b16 %v4292
      %v4441 = vunpack.c.l.b16 %v4293
      %v4442 = vunpack.c.l.b16 %v4294
      %v4443 = vunpack.c.l.b16 %v4295
      %v4444 = vunpack.c.l.b16 %v4296
      %v4445 = vunpack.c.l.b16 %v4297
      %v4446 = vunpack.c.l.b16 %v4298
      %v4447 = vunpack.c.l.b16 %v4299
      %v4448 = vunpack.c.l.b16 %v4300
      %v4449 = vunpack.c.l.b16 %v4301
      %v4450 = vunpack.c.l.b16 %v4302
      %v4451 = vunpack.c.l.b16 %v4303
      %v4452 = vunpack.c.l.b16 %v4304
      %v4453 = vunpack.c.l.b16 %v4305
      %v4454 = vunpack.c.l.b16 %v4306
      %v4455 = vunpack.c.l.b16 %v4307
      %v4456 = vunpack.c.l.b16 %v4308
      %v4457 = vunpack.c.l.b16 %v4309
      %v4458 = vunpack.c.l.b16 %v4310
      %v4459 = vunpack.c.l.b16 %v4311
      %v4460 = vunpack.c.l.b16 %v4312
      %v4461 = vunpack.c.l.b16 %v4313
      %v4462 = vunpack.c.l.b16 %v4314
      %v4463 = vunpack.c.l.b16 %v4315
      %v4464 = vunpack.c.l.b16 %v4316
      %v4465 = vunpack.c.l.b16 %v4317
      %v4466 = vunpack.c.l.b16 %v4318
      %v4467 = vunpack.c.l.b16 %v4319
      %v4468 = vunpack.c.l.b16 %v4320
      %v4469 = vunpack.c.l.b16 %v4321
      %v4470 = vunpack.c.l.b16 %v4322
      %v4471 = vunpack.c.l.b16 %v4323
      %v4472 = vunpack.c.l.b16 %v4324
      %v4473 = vunpack.c.l.b16 %v4325
      %v4474 = vunpack.c.l.b16 %v4326
      %v4475 = vunpack.c.l.b16 %v4327
      %v4476 = vunpack.c.l.b16 %v4328
      %v4477 = vunpack.c.l.b16 %v4329
      %v4478 = vunpack.c.l.b16 %v4330
      %v4479 = vunpack.c.l.b16 %v4331
      %v4480 = vunpack.c.l.b16 %v4332
      %v4481 = vunpack.c.l.b16 %v4333
      %v4482 = vunpack.c.l.b16 %v4334
      %v4483 = vunpack.c.l.b16 %v4335
      %v4484 = vunpack.c.l.b16 %v4336
      %v4485 = vunpack.c.l.b16 %v4337
      %v4486 = vunpack.c.l.b16 %v4338
      %v4487 = vunpack.c.l.b16 %v4339
      %v4488 = vunpack.c.l.b16 %v4340
      %v4489 = vpack.c.b16 %v4426, %v4425
      %v4490 = vpack.c.b16 %v4428, %v4427
      %v4491 = vpack.c.b16 %v4430, %v4429
      %v4492 = vpack.c.b16 %v4432, %v4431
      %v4493 = vpack.c.b16 %v4434, %v4433
      %v4494 = vpack.c.b16 %v4436, %v4435
      %v4495 = vpack.c.b16 %v4438, %v4437
      %v4496 = vpack.c.b16 %v4440, %v4439
      %v4497 = vpack.c.b16 %v4442, %v4441
      %v4498 = vpack.c.b16 %v4444, %v4443
      %v4499 = vpack.c.b16 %v4446, %v4445
      %v4500 = vpack.c.b16 %v4448, %v4447
      %v4501 = vpack.c.b16 %v4450, %v4449
      %v4502 = vpack.c.b16 %v4452, %v4451
      %v4503 = vpack.c.b16 %v4454, %v4453
      %v4504 = vpack.c.b16 %v4456, %v4455
      %v4505 = vpack.c.b16 %v4458, %v4457
      %v4506 = vpack.c.b16 %v4460, %v4459
      %v4507 = vpack.c.b16 %v4462, %v4461
      %v4508 = vpack.c.b16 %v4464, %v4463
      %v4509 = vpack.c.b16 %v4466, %v4465
      %v4510 = vpack.c.b16 %v4468, %v4467
      %v4511 = vpack.c.b16 %v4470, %v4469
      %v4512 = vpack.c.b16 %v4472, %v4471
      %v4513 = vpack.c.b16 %v4474, %v4473
      %v4514 = vpack.c.b16 %v4476, %v4475
      %v4515 = vpack.c.b16 %v4478, %v4477
      %v4516 = vpack.c.b16 %v4480, %v4479
      %v4517 = vpack.c.b16 %v4482, %v4481
      %v4518 = vpack.c.b16 %v4484, %v4483
      %v4519 = vpack.c.b16 %v4486, %v4485
      %v4520 = vpack.c.b16 %v4488, %v4487
      %v4525 = vunpack.c.l.b16 %v4357
      %v4526 = vunpack.c.l.b16 %v4358
      %v4527 = vunpack.c.l.b16 %v4359
      %v4528 = vunpack.c.l.b16 %v4360
      %v4529 = vpack.c.b16 %v4526, %v4525
      %v4530 = vpack.c.b16 %v4528, %v4527
      %vm4532 = vcmask 220160
      %v4534 = vsel %vm4532, %v4489, 0
      %v4537 = vsel %vm4532, %v4490, 0
      %v4540 = vsel %vm4532, %v4491, 0
      %v4543 = vsel %vm4532, %v4492, 0
      %v4546 = vsel %vm4532, %v4493, 0
      %v4549 = vsel %vm4532, %v4494, 0
      %v4552 = vsel %vm4532, %v4495, 0
      %v4555 = vsel %vm4532, %v4496, 0
      %v4558 = vsel %vm4532, %v4497, 0
      %v4561 = vsel %vm4532, %v4498, 0
      %v4564 = vsel %vm4532, %v4499, 0
      %v4567 = vsel %vm4532, %v4500, 0
      %v4570 = vsel %vm4532, %v4501, 0
      %v4573 = vsel %vm4532, %v4502, 0
      %v4576 = vsel %vm4532, %v4503, 0
      %v4579 = vsel %vm4532, %v4504, 0
      %v4582 = vsel %vm4532, %v4505, 0
      %v4585 = vsel %vm4532, %v4506, 0
      %v4588 = vsel %vm4532, %v4507, 0
      %v4591 = vsel %vm4532, %v4508, 0
      %v4594 = vsel %vm4532, %v4509, 0
      %v4597 = vsel %vm4532, %v4510, 0
      %v4600 = vsel %vm4532, %v4511, 0
      %v4603 = vsel %vm4532, %v4512, 0
      %v4606 = vsel %vm4532, %v4513, 0
      %v4609 = vsel %vm4532, %v4514, 0
      %v4612 = vsel %vm4532, %v4515, 0
      %v4615 = vsel %vm4532, %v4516, 0
      %v4618 = vsel %vm4532, %v4517, 0
      %v4621 = vsel %vm4532, %v4518, 0
      %v4624 = vsel %vm4532, %v4519, 0
      %v4627 = vsel %vm4532, %v4520, 0
      %vm4629 = vcmask 1044480
      %vm4630 = vcmask 1045504
      %v4631 = vsel %vm4629, 4294967295, 65535
      %v4632 = vsel %vm4630, %v4631, 0
      %v4634 = vand.u32 %v4530, %v4632
      %4636 = vmatpush.bf16.msra.mxu0 0
      %4637 = vmatpush.bf16.msra.mxu0 0
      %4638 = vmatpush.bf16.msra.mxu0 0
      %4639 = vmatpush.bf16.msra.mxu0 0
      %4640 = vmatpush.bf16.msra.mxu0 0
      %4641 = vmatpush.bf16.msra.mxu0 0
      %4642 = vmatpush.bf16.msra.mxu0 %v4634
      %4643 = vmatpush.bf16.msra.mxu0 %v4529
      %4644 = vmatmul.bf16.gmra.mxu0 %v4534
      %v4645 = vpop.f32.mrf.mxu0
      %v4646 = vadd.f32 0.0, %v4645
      %v4647 = vpop.f32.mrf.mxu0
      %v4648 = vadd.f32 0.0, %v4647
      %4649 = vmatmul.bf16.gmra.mxu0 %v4537
      %v4650 = vpop.f32.mrf.mxu0
      %v4651 = vadd.f32 0.0, %v4650
      %v4652 = vpop.f32.mrf.mxu0
      %v4653 = vadd.f32 0.0, %v4652
      %4654 = vmatmul.bf16.gmra.mxu0 %v4540
      %v4655 = vpop.f32.mrf.mxu0
      %v4656 = vadd.f32 0.0, %v4655
      %v4657 = vpop.f32.mrf.mxu0
      %v4658 = vadd.f32 0.0, %v4657
      %4659 = vmatmul.bf16.gmra.mxu0 %v4543
      %v4660 = vpop.f32.mrf.mxu0
      %v4661 = vadd.f32 0.0, %v4660
      %v4662 = vpop.f32.mrf.mxu0
      %v4663 = vadd.f32 0.0, %v4662
      %4664 = vmatmul.bf16.gmra.mxu0 %v4546
      %v4665 = vpop.f32.mrf.mxu0
      %v4666 = vadd.f32 0.0, %v4665
      %v4667 = vpop.f32.mrf.mxu0
      %v4668 = vadd.f32 0.0, %v4667
      %4669 = vmatmul.bf16.gmra.mxu0 %v4549
      %v4670 = vpop.f32.mrf.mxu0
      %v4671 = vadd.f32 0.0, %v4670
      %v4672 = vpop.f32.mrf.mxu0
      %v4673 = vadd.f32 0.0, %v4672
      %4674 = vmatmul.bf16.gmra.mxu0 %v4552
      %v4675 = vpop.f32.mrf.mxu0
      %v4676 = vadd.f32 0.0, %v4675
      %v4677 = vpop.f32.mrf.mxu0
      %v4678 = vadd.f32 0.0, %v4677
      %4679 = vmatmul.bf16.gmra.mxu0 %v4555
      %v4680 = vpop.f32.mrf.mxu0
      %v4681 = vadd.f32 0.0, %v4680
      %v4682 = vpop.f32.mrf.mxu0
      %v4683 = vadd.f32 0.0, %v4682
      %4684 = vmatmul.bf16.gmra.mxu0 %v4558
      %v4685 = vpop.f32.mrf.mxu0
      %v4686 = vadd.f32 0.0, %v4685
      %v4687 = vpop.f32.mrf.mxu0
      %v4688 = vadd.f32 0.0, %v4687
      %4689 = vmatmul.bf16.gmra.mxu0 %v4561
      %v4690 = vpop.f32.mrf.mxu0
      %v4691 = vadd.f32 0.0, %v4690
      %v4692 = vpop.f32.mrf.mxu0
      %v4693 = vadd.f32 0.0, %v4692
      %4694 = vmatmul.bf16.gmra.mxu0 %v4564
      %v4695 = vpop.f32.mrf.mxu0
      %v4696 = vadd.f32 0.0, %v4695
      %v4697 = vpop.f32.mrf.mxu0
      %v4698 = vadd.f32 0.0, %v4697
      %4699 = vmatmul.bf16.gmra.mxu0 %v4567
      %v4700 = vpop.f32.mrf.mxu0
      %v4701 = vadd.f32 0.0, %v4700
      %v4702 = vpop.f32.mrf.mxu0
      %v4703 = vadd.f32 0.0, %v4702
      %4704 = vmatmul.bf16.gmra.mxu0 %v4570
      %v4705 = vpop.f32.mrf.mxu0
      %v4706 = vadd.f32 0.0, %v4705
      %v4707 = vpop.f32.mrf.mxu0
      %v4708 = vadd.f32 0.0, %v4707
      %4709 = vmatmul.bf16.gmra.mxu0 %v4573
      %v4710 = vpop.f32.mrf.mxu0
      %v4711 = vadd.f32 0.0, %v4710
      %v4712 = vpop.f32.mrf.mxu0
      %v4713 = vadd.f32 0.0, %v4712
      %4714 = vmatmul.bf16.gmra.mxu0 %v4576
      %v4715 = vpop.f32.mrf.mxu0
      %v4716 = vadd.f32 0.0, %v4715
      %v4717 = vpop.f32.mrf.mxu0
      %v4718 = vadd.f32 0.0, %v4717
      %4719 = vmatmul.bf16.gmra.mxu0 %v4579
      %v4720 = vpop.f32.mrf.mxu0
      %v4721 = vadd.f32 0.0, %v4720
      %v4722 = vpop.f32.mrf.mxu0
      %v4723 = vadd.f32 0.0, %v4722
      %4724 = vmatmul.bf16.gmra.mxu0 %v4582
      %v4725 = vpop.f32.mrf.mxu0
      %v4726 = vadd.f32 0.0, %v4725
      %v4727 = vpop.f32.mrf.mxu0
      %v4728 = vadd.f32 0.0, %v4727
      %4729 = vmatmul.bf16.gmra.mxu0 %v4585
      %v4730 = vpop.f32.mrf.mxu0
      %v4731 = vadd.f32 0.0, %v4730
      %v4732 = vpop.f32.mrf.mxu0
      %v4733 = vadd.f32 0.0, %v4732
      %4734 = vmatmul.bf16.gmra.mxu0 %v4588
      %v4735 = vpop.f32.mrf.mxu0
      %v4736 = vadd.f32 0.0, %v4735
      %v4737 = vpop.f32.mrf.mxu0
      %v4738 = vadd.f32 0.0, %v4737
      %4739 = vmatmul.bf16.gmra.mxu0 %v4591
      %v4740 = vpop.f32.mrf.mxu0
      %v4741 = vadd.f32 0.0, %v4740
      %v4742 = vpop.f32.mrf.mxu0
      %v4743 = vadd.f32 0.0, %v4742
      %4744 = vmatmul.bf16.gmra.mxu0 %v4594
      %v4745 = vpop.f32.mrf.mxu0
      %v4746 = vadd.f32 0.0, %v4745
      %v4747 = vpop.f32.mrf.mxu0
      %v4748 = vadd.f32 0.0, %v4747
      %4749 = vmatmul.bf16.gmra.mxu0 %v4597
      %v4750 = vpop.f32.mrf.mxu0
      %v4751 = vadd.f32 0.0, %v4750
      %v4752 = vpop.f32.mrf.mxu0
      %v4753 = vadd.f32 0.0, %v4752
      %4754 = vmatmul.bf16.gmra.mxu0 %v4600
      %v4755 = vpop.f32.mrf.mxu0
      %v4756 = vadd.f32 0.0, %v4755
      %v4757 = vpop.f32.mrf.mxu0
      %v4758 = vadd.f32 0.0, %v4757
      %4759 = vmatmul.bf16.gmra.mxu0 %v4603
      %v4760 = vpop.f32.mrf.mxu0
      %v4761 = vadd.f32 0.0, %v4760
      %v4762 = vpop.f32.mrf.mxu0
      %v4763 = vadd.f32 0.0, %v4762
      %4764 = vmatmul.bf16.gmra.mxu0 %v4606
      %v4765 = vpop.f32.mrf.mxu0
      %v4766 = vadd.f32 0.0, %v4765
      %v4767 = vpop.f32.mrf.mxu0
      %v4768 = vadd.f32 0.0, %v4767
      %4769 = vmatmul.bf16.gmra.mxu0 %v4609
      %v4770 = vpop.f32.mrf.mxu0
      %v4771 = vadd.f32 0.0, %v4770
      %v4772 = vpop.f32.mrf.mxu0
      %v4773 = vadd.f32 0.0, %v4772
      %4774 = vmatmul.bf16.gmra.mxu0 %v4612
      %v4775 = vpop.f32.mrf.mxu0
      %v4776 = vadd.f32 0.0, %v4775
      %v4777 = vpop.f32.mrf.mxu0
      %v4778 = vadd.f32 0.0, %v4777
      %4779 = vmatmul.bf16.gmra.mxu0 %v4615
      %v4780 = vpop.f32.mrf.mxu0
      %v4781 = vadd.f32 0.0, %v4780
      %v4782 = vpop.f32.mrf.mxu0
      %v4783 = vadd.f32 0.0, %v4782
      %4784 = vmatmul.bf16.gmra.mxu0 %v4618
      %v4785 = vpop.f32.mrf.mxu0
      %v4786 = vadd.f32 0.0, %v4785
      %v4787 = vpop.f32.mrf.mxu0
      %v4788 = vadd.f32 0.0, %v4787
      %4789 = vmatmul.bf16.gmra.mxu0 %v4621
      %v4790 = vpop.f32.mrf.mxu0
      %v4791 = vadd.f32 0.0, %v4790
      %v4792 = vpop.f32.mrf.mxu0
      %v4793 = vadd.f32 0.0, %v4792
      %4794 = vmatmul.bf16.gmra.mxu0 %v4624
      %v4795 = vpop.f32.mrf.mxu0
      %v4796 = vadd.f32 0.0, %v4795
      %v4797 = vpop.f32.mrf.mxu0
      %v4798 = vadd.f32 0.0, %v4797
      %4799 = vmatmul.bf16.gmra.mxu0 %v4627
      %v4800 = vpop.f32.mrf.mxu0
      %v4801 = vadd.f32 0.0, %v4800
      %v4802 = vpop.f32.mrf.mxu0
      %v4803 = vadd.f32 0.0, %v4802
      %4804 = vdwg.mxu0
      %v4821 = vunpack.c.l.b16 %v4341
      %v4822 = vunpack.c.l.b16 %v4342
      %v4823 = vunpack.c.l.b16 %v4343
      %v4824 = vunpack.c.l.b16 %v4344
      %v4825 = vunpack.c.l.b16 %v4345
      %v4826 = vunpack.c.l.b16 %v4346
      %v4827 = vunpack.c.l.b16 %v4347
      %v4828 = vunpack.c.l.b16 %v4348
      %v4829 = vunpack.c.l.b16 %v4349
      %v4830 = vunpack.c.l.b16 %v4350
      %v4831 = vunpack.c.l.b16 %v4351
      %v4832 = vunpack.c.l.b16 %v4352
      %v4833 = vunpack.c.l.b16 %v4353
      %v4834 = vunpack.c.l.b16 %v4354
      %v4835 = vunpack.c.l.b16 %v4355
      %v4836 = vunpack.c.l.b16 %v4356
      %v4837 = vpack.c.b16 %v4822, %v4821
      %v4838 = vpack.c.b16 %v4824, %v4823
      %v4839 = vpack.c.b16 %v4826, %v4825
      %v4840 = vpack.c.b16 %v4828, %v4827
      %v4841 = vpack.c.b16 %v4830, %v4829
      %v4842 = vpack.c.b16 %v4832, %v4831
      %v4843 = vpack.c.b16 %v4834, %v4833
      %v4844 = vpack.c.b16 %v4836, %v4835
      %4853 = vmatpush.bf16.msra.mxu0 %v4844
      %4854 = vmatpush.bf16.msra.mxu0 %v4843
      %4855 = vmatpush.bf16.msra.mxu0 %v4842
      %4856 = vmatpush.bf16.msra.mxu0 %v4841
      %4857 = vmatpush.bf16.msra.mxu0 %v4840
      %4858 = vmatpush.bf16.msra.mxu0 %v4839
      %4859 = vmatpush.bf16.msra.mxu0 %v4838
      %4860 = vmatpush.bf16.msra.mxu0 %v4837
      %4861 = vmatmul.bf16.gmra.mxu0 %v3853
      %v4862 = vpop.f32.mrf.mxu0
      %v4863 = vadd.f32 %v4646, %v4862
      %v4864 = vpop.f32.mrf.mxu0
      %v4865 = vadd.f32 %v4648, %v4864
      %4866 = vmatmul.bf16.gmra.mxu0 %v3854
      %v4867 = vpop.f32.mrf.mxu0
      %v4868 = vadd.f32 %v4651, %v4867
      %v4869 = vpop.f32.mrf.mxu0
      %v4870 = vadd.f32 %v4653, %v4869
      %4871 = vmatmul.bf16.gmra.mxu0 %v3855
      %v4872 = vpop.f32.mrf.mxu0
      %v4873 = vadd.f32 %v4656, %v4872
      %v4874 = vpop.f32.mrf.mxu0
      %v4875 = vadd.f32 %v4658, %v4874
      %4876 = vmatmul.bf16.gmra.mxu0 %v3856
      %v4877 = vpop.f32.mrf.mxu0
      %v4878 = vadd.f32 %v4661, %v4877
      %v4879 = vpop.f32.mrf.mxu0
      %v4880 = vadd.f32 %v4663, %v4879
      %4881 = vmatmul.bf16.gmra.mxu0 %v3857
      %v4882 = vpop.f32.mrf.mxu0
      %v4883 = vadd.f32 %v4666, %v4882
      %v4884 = vpop.f32.mrf.mxu0
      %v4885 = vadd.f32 %v4668, %v4884
      %4886 = vmatmul.bf16.gmra.mxu0 %v3858
      %v4887 = vpop.f32.mrf.mxu0
      %v4888 = vadd.f32 %v4671, %v4887
      %v4889 = vpop.f32.mrf.mxu0
      %v4890 = vadd.f32 %v4673, %v4889
      %4891 = vmatmul.bf16.gmra.mxu0 %v3859
      %v4892 = vpop.f32.mrf.mxu0
      %v4893 = vadd.f32 %v4676, %v4892
      %v4894 = vpop.f32.mrf.mxu0
      %v4895 = vadd.f32 %v4678, %v4894
      %4896 = vmatmul.bf16.gmra.mxu0 %v3860
      %v4897 = vpop.f32.mrf.mxu0
      %v4898 = vadd.f32 %v4681, %v4897
      %v4899 = vpop.f32.mrf.mxu0
      %v4900 = vadd.f32 %v4683, %v4899
      %4901 = vmatmul.bf16.gmra.mxu0 %v3861
      %v4902 = vpop.f32.mrf.mxu0
      %v4903 = vadd.f32 %v4686, %v4902
      %v4904 = vpop.f32.mrf.mxu0
      %v4905 = vadd.f32 %v4688, %v4904
      %4906 = vmatmul.bf16.gmra.mxu0 %v3862
      %v4907 = vpop.f32.mrf.mxu0
      %v4908 = vadd.f32 %v4691, %v4907
      %v4909 = vpop.f32.mrf.mxu0
      %v4910 = vadd.f32 %v4693, %v4909
      %4911 = vmatmul.bf16.gmra.mxu0 %v3863
      %v4912 = vpop.f32.mrf.mxu0
      %v4913 = vadd.f32 %v4696, %v4912
      %v4914 = vpop.f32.mrf.mxu0
      %v4915 = vadd.f32 %v4698, %v4914
      %4916 = vmatmul.bf16.gmra.mxu0 %v3864
      %v4917 = vpop.f32.mrf.mxu0
      %v4918 = vadd.f32 %v4701, %v4917
      %v4919 = vpop.f32.mrf.mxu0
      %v4920 = vadd.f32 %v4703, %v4919
      %4921 = vmatmul.bf16.gmra.mxu0 %v3865
      %v4922 = vpop.f32.mrf.mxu0
      %v4923 = vadd.f32 %v4706, %v4922
      %v4924 = vpop.f32.mrf.mxu0
      %v4925 = vadd.f32 %v4708, %v4924
      %4926 = vmatmul.bf16.gmra.mxu0 %v3866
      %v4927 = vpop.f32.mrf.mxu0
      %v4928 = vadd.f32 %v4711, %v4927
      %v4929 = vpop.f32.mrf.mxu0
      %v4930 = vadd.f32 %v4713, %v4929
      %4931 = vmatmul.bf16.gmra.mxu0 %v3867
      %v4932 = vpop.f32.mrf.mxu0
      %v4933 = vadd.f32 %v4716, %v4932
      %v4934 = vpop.f32.mrf.mxu0
      %v4935 = vadd.f32 %v4718, %v4934
      %4936 = vmatmul.bf16.gmra.mxu0 %v3868
      %v4937 = vpop.f32.mrf.mxu0
      %v4938 = vadd.f32 %v4721, %v4937
      %v4939 = vpop.f32.mrf.mxu0
      %v4940 = vadd.f32 %v4723, %v4939
      %4941 = vmatmul.bf16.gmra.mxu0 %v3869
      %v4942 = vpop.f32.mrf.mxu0
      %v4943 = vadd.f32 %v4726, %v4942
      %v4944 = vpop.f32.mrf.mxu0
      %v4945 = vadd.f32 %v4728, %v4944
      %4946 = vmatmul.bf16.gmra.mxu0 %v3870
      %v4947 = vpop.f32.mrf.mxu0
      %v4948 = vadd.f32 %v4731, %v4947
      %v4949 = vpop.f32.mrf.mxu0
      %v4950 = vadd.f32 %v4733, %v4949
      %4951 = vmatmul.bf16.gmra.mxu0 %v3871
      %v4952 = vpop.f32.mrf.mxu0
      %v4953 = vadd.f32 %v4736, %v4952
      %v4954 = vpop.f32.mrf.mxu0
      %v4955 = vadd.f32 %v4738, %v4954
      %4956 = vmatmul.bf16.gmra.mxu0 %v3872
      %v4957 = vpop.f32.mrf.mxu0
      %v4958 = vadd.f32 %v4741, %v4957
      %v4959 = vpop.f32.mrf.mxu0
      %v4960 = vadd.f32 %v4743, %v4959
      %4961 = vmatmul.bf16.gmra.mxu0 %v3873
      %v4962 = vpop.f32.mrf.mxu0
      %v4963 = vadd.f32 %v4746, %v4962
      %v4964 = vpop.f32.mrf.mxu0
      %v4965 = vadd.f32 %v4748, %v4964
      %4966 = vmatmul.bf16.gmra.mxu0 %v3874
      %v4967 = vpop.f32.mrf.mxu0
      %v4968 = vadd.f32 %v4751, %v4967
      %v4969 = vpop.f32.mrf.mxu0
      %v4970 = vadd.f32 %v4753, %v4969
      %4971 = vmatmul.bf16.gmra.mxu0 %v3875
      %v4972 = vpop.f32.mrf.mxu0
      %v4973 = vadd.f32 %v4756, %v4972
      %v4974 = vpop.f32.mrf.mxu0
      %v4975 = vadd.f32 %v4758, %v4974
      %4976 = vmatmul.bf16.gmra.mxu0 %v3876
      %v4977 = vpop.f32.mrf.mxu0
      %v4978 = vadd.f32 %v4761, %v4977
      %v4979 = vpop.f32.mrf.mxu0
      %v4980 = vadd.f32 %v4763, %v4979
      %4981 = vmatmul.bf16.gmra.mxu0 %v3877
      %v4982 = vpop.f32.mrf.mxu0
      %v4983 = vadd.f32 %v4766, %v4982
      %v4984 = vpop.f32.mrf.mxu0
      %v4985 = vadd.f32 %v4768, %v4984
      %4986 = vmatmul.bf16.gmra.mxu0 %v3878
      %v4987 = vpop.f32.mrf.mxu0
      %v4988 = vadd.f32 %v4771, %v4987
      %v4989 = vpop.f32.mrf.mxu0
      %v4990 = vadd.f32 %v4773, %v4989
      %4991 = vmatmul.bf16.gmra.mxu0 %v3879
      %v4992 = vpop.f32.mrf.mxu0
      %v4993 = vadd.f32 %v4776, %v4992
      %v4994 = vpop.f32.mrf.mxu0
      %v4995 = vadd.f32 %v4778, %v4994
      %4996 = vmatmul.bf16.gmra.mxu0 %v3880
      %v4997 = vpop.f32.mrf.mxu0
      %v4998 = vadd.f32 %v4781, %v4997
      %v4999 = vpop.f32.mrf.mxu0
      %v5000 = vadd.f32 %v4783, %v4999
      %5001 = vmatmul.bf16.gmra.mxu0 %v3881
      %v5002 = vpop.f32.mrf.mxu0
      %v5003 = vadd.f32 %v4786, %v5002
      %v5004 = vpop.f32.mrf.mxu0
      %v5005 = vadd.f32 %v4788, %v5004
      %5006 = vmatmul.bf16.gmra.mxu0 %v3882
      %v5007 = vpop.f32.mrf.mxu0
      %v5008 = vadd.f32 %v4791, %v5007
      %v5009 = vpop.f32.mrf.mxu0
      %v5010 = vadd.f32 %v4793, %v5009
      %5011 = vmatmul.bf16.gmra.mxu0 %v3883
      %v5012 = vpop.f32.mrf.mxu0
      %v5013 = vadd.f32 %v4796, %v5012
      %v5014 = vpop.f32.mrf.mxu0
      %v5015 = vadd.f32 %v4798, %v5014
      %5016 = vmatmul.bf16.gmra.mxu0 %v3884
      %v5017 = vpop.f32.mrf.mxu0
      %v5018 = vadd.f32 %v4801, %v5017
      %v5019 = vpop.f32.mrf.mxu0
      %v5020 = vadd.f32 %v4803, %v5019
      %5021 = vdwg.mxu0
      %v5022 = vld [vmem:[%s10] sm:$0x1]
      %v5024 = vperm.slane %v5022, 0
      %v5026 = vadd.f32 %v4863, %v5024
      %v5027 = vadd.f32 %v4865, %v5024
      %v5028 = vadd.f32 %v4868, %v5024
      %v5029 = vadd.f32 %v4870, %v5024
      %v5030 = vadd.f32 %v4873, %v5024
      %v5031 = vadd.f32 %v4875, %v5024
      %v5032 = vadd.f32 %v4878, %v5024
      %v5033 = vadd.f32 %v4880, %v5024
      %v5034 = vadd.f32 %v4883, %v5024
      %v5035 = vadd.f32 %v4885, %v5024
      %v5036 = vadd.f32 %v4888, %v5024
      %v5037 = vadd.f32 %v4890, %v5024
      %v5038 = vadd.f32 %v4893, %v5024
      %v5039 = vadd.f32 %v4895, %v5024
      %v5040 = vadd.f32 %v4898, %v5024
      %v5041 = vadd.f32 %v4900, %v5024
      %v5042 = vadd.f32 %v4903, %v5024
      %v5043 = vadd.f32 %v4905, %v5024
      %v5044 = vadd.f32 %v4908, %v5024
      %v5045 = vadd.f32 %v4910, %v5024
      %v5046 = vadd.f32 %v4913, %v5024
      %v5047 = vadd.f32 %v4915, %v5024
      %v5048 = vadd.f32 %v4918, %v5024
      %v5049 = vadd.f32 %v4920, %v5024
      %v5050 = vadd.f32 %v4923, %v5024
      %v5051 = vadd.f32 %v4925, %v5024
      %v5052 = vadd.f32 %v4928, %v5024
      %v5053 = vadd.f32 %v4930, %v5024
      %v5054 = vadd.f32 %v4933, %v5024
      %v5055 = vadd.f32 %v4935, %v5024
      %v5056 = vadd.f32 %v4938, %v5024
      %v5057 = vadd.f32 %v4940, %v5024
      %v5058 = vadd.f32 %v4943, %v5024
      %v5059 = vadd.f32 %v4945, %v5024
      %v5060 = vadd.f32 %v4948, %v5024
      %v5061 = vadd.f32 %v4950, %v5024
      %v5062 = vadd.f32 %v4953, %v5024
      %v5063 = vadd.f32 %v4955, %v5024
      %v5064 = vadd.f32 %v4958, %v5024
      %v5065 = vadd.f32 %v4960, %v5024
      %v5066 = vadd.f32 %v4963, %v5024
      %v5067 = vadd.f32 %v4965, %v5024
      %v5068 = vadd.f32 %v4968, %v5024
      %v5069 = vadd.f32 %v4970, %v5024
      %v5070 = vadd.f32 %v4973, %v5024
      %v5071 = vadd.f32 %v4975, %v5024
      %v5072 = vadd.f32 %v4978, %v5024
      %v5073 = vadd.f32 %v4980, %v5024
      %v5074 = vadd.f32 %v4983, %v5024
      %v5075 = vadd.f32 %v4985, %v5024
      %v5076 = vadd.f32 %v4988, %v5024
      %v5077 = vadd.f32 %v4990, %v5024
      %v5078 = vadd.f32 %v4993, %v5024
      %v5079 = vadd.f32 %v4995, %v5024
      %v5080 = vadd.f32 %v4998, %v5024
      %v5081 = vadd.f32 %v5000, %v5024
      %v5082 = vadd.f32 %v5003, %v5024
      %v5083 = vadd.f32 %v5005, %v5024
      %v5084 = vadd.f32 %v5008, %v5024
      %v5085 = vadd.f32 %v5010, %v5024
      %v5086 = vadd.f32 %v5013, %v5024
      %v5087 = vadd.f32 %v5015, %v5024
      %v5088 = vadd.f32 %v5018, %v5024
      %v5089 = vadd.f32 %v5020, %v5024
      %v5090 = vmax.f32 %v5026, 0.0
      %v5091 = vmax.f32 %v5027, 0.0
      %v5092 = vmax.f32 %v5028, 0.0
      %v5093 = vmax.f32 %v5029, 0.0
      %v5094 = vmax.f32 %v5030, 0.0
      %v5095 = vmax.f32 %v5031, 0.0
      %v5096 = vmax.f32 %v5032, 0.0
      %v5097 = vmax.f32 %v5033, 0.0
      %v5098 = vmax.f32 %v5034, 0.0
      %v5099 = vmax.f32 %v5035, 0.0
      %v5100 = vmax.f32 %v5036, 0.0
      %v5101 = vmax.f32 %v5037, 0.0
      %v5102 = vmax.f32 %v5038, 0.0
      %v5103 = vmax.f32 %v5039, 0.0
      %v5104 = vmax.f32 %v5040, 0.0
      %v5105 = vmax.f32 %v5041, 0.0
      %v5106 = vmax.f32 %v5042, 0.0
      %v5107 = vmax.f32 %v5043, 0.0
      %v5108 = vmax.f32 %v5044, 0.0
      %v5109 = vmax.f32 %v5045, 0.0
      %v5110 = vmax.f32 %v5046, 0.0
      %v5111 = vmax.f32 %v5047, 0.0
      %v5112 = vmax.f32 %v5048, 0.0
      %v5113 = vmax.f32 %v5049, 0.0
      %v5114 = vmax.f32 %v5050, 0.0
      %v5115 = vmax.f32 %v5051, 0.0
      %v5116 = vmax.f32 %v5052, 0.0
      %v5117 = vmax.f32 %v5053, 0.0
      %v5118 = vmax.f32 %v5054, 0.0
      %v5119 = vmax.f32 %v5055, 0.0
      %v5120 = vmax.f32 %v5056, 0.0
      %v5121 = vmax.f32 %v5057, 0.0
      %v5122 = vmax.f32 %v5058, 0.0
      %v5123 = vmax.f32 %v5059, 0.0
      %v5124 = vmax.f32 %v5060, 0.0
      %v5125 = vmax.f32 %v5061, 0.0
      %v5126 = vmax.f32 %v5062, 0.0
      %v5127 = vmax.f32 %v5063, 0.0
      %v5128 = vmax.f32 %v5064, 0.0
      %v5129 = vmax.f32 %v5065, 0.0
      %v5130 = vmax.f32 %v5066, 0.0
      %v5131 = vmax.f32 %v5067, 0.0
      %v5132 = vmax.f32 %v5068, 0.0
      %v5133 = vmax.f32 %v5069, 0.0
      %v5134 = vmax.f32 %v5070, 0.0
      %v5135 = vmax.f32 %v5071, 0.0
      %v5136 = vmax.f32 %v5072, 0.0
      %v5137 = vmax.f32 %v5073, 0.0
      %v5138 = vmax.f32 %v5074, 0.0
      %v5139 = vmax.f32 %v5075, 0.0
      %v5140 = vmax.f32 %v5076, 0.0
      %v5141 = vmax.f32 %v5077, 0.0
      %v5142 = vmax.f32 %v5078, 0.0
      %v5143 = vmax.f32 %v5079, 0.0
      %v5144 = vmax.f32 %v5080, 0.0
      %v5145 = vmax.f32 %v5081, 0.0
      %v5146 = vmax.f32 %v5082, 0.0
      %v5147 = vmax.f32 %v5083, 0.0
      %v5148 = vmax.f32 %v5084, 0.0
      %v5149 = vmax.f32 %v5085, 0.0
      %v5150 = vmax.f32 %v5086, 0.0
      %v5151 = vmax.f32 %v5087, 0.0
      %v5152 = vmax.f32 %v5088, 0.0
      %v5153 = vmax.f32 %v5089, 0.0
      %v5154 = vpack.c.bf16 %v5091, %v5090
      %v5155 = vpack.c.bf16 %v5093, %v5092
      %v5156 = vpack.c.bf16 %v5095, %v5094
      %v5157 = vpack.c.bf16 %v5097, %v5096
      %v5158 = vpack.c.bf16 %v5099, %v5098
      %v5159 = vpack.c.bf16 %v5101, %v5100
      %v5160 = vpack.c.bf16 %v5103, %v5102
      %v5161 = vpack.c.bf16 %v5105, %v5104
      %v5162 = vpack.c.bf16 %v5107, %v5106
      %v5163 = vpack.c.bf16 %v5109, %v5108
      %v5164 = vpack.c.bf16 %v5111, %v5110
      %v5165 = vpack.c.bf16 %v5113, %v5112
      %v5166 = vpack.c.bf16 %v5115, %v5114
      %v5167 = vpack.c.bf16 %v5117, %v5116
      %v5168 = vpack.c.bf16 %v5119, %v5118
      %v5169 = vpack.c.bf16 %v5121, %v5120
      %v5170 = vpack.c.bf16 %v5123, %v5122
      %v5171 = vpack.c.bf16 %v5125, %v5124
      %v5172 = vpack.c.bf16 %v5127, %v5126
      %v5173 = vpack.c.bf16 %v5129, %v5128
      %v5174 = vpack.c.bf16 %v5131, %v5130
      %v5175 = vpack.c.bf16 %v5133, %v5132
      %v5176 = vpack.c.bf16 %v5135, %v5134
      %v5177 = vpack.c.bf16 %v5137, %v5136
      %v5178 = vpack.c.bf16 %v5139, %v5138
      %v5179 = vpack.c.bf16 %v5141, %v5140
      %v5180 = vpack.c.bf16 %v5143, %v5142
      %v5181 = vpack.c.bf16 %v5145, %v5144
      %v5182 = vpack.c.bf16 %v5147, %v5146
      %v5183 = vpack.c.bf16 %v5149, %v5148
      %v5184 = vpack.c.bf16 %v5151, %v5150
      %v5185 = vpack.c.bf16 %v5153, %v5152
      %v5186 = vld [vmem:[%s11] sm:$0xf]
      %v5187 = vld [vmem:[%s11 + $0x4] sm:$0xf]
      %v5188 = vld [vmem:[%s11 + $0x8] sm:$0xf]
      %v5189 = vld [vmem:[%s11 + $0xc] sm:$0xf]
      %v5190 = vld [vmem:[%s11 + $0x10] sm:$0xf]
      %v5191 = vld [vmem:[%s11 + $0x14] sm:$0xf]
      %v5192 = vld [vmem:[%s11 + $0x18] sm:$0xf]
      %v5193 = vld [vmem:[%s11 + $0x1c] sm:$0xf]
      %v5194 = vld [vmem:[%s12] sm:$0x1]
      %v5196 = vperm.slane %v5194, 0
      %v5206 = vunpack.c.l.b16 %v5186
      %v5207 = vunpack.c.l.b16 %v5187
      %v5208 = vunpack.c.l.b16 %v5188
      %v5209 = vunpack.c.l.b16 %v5189
      %v5210 = vunpack.c.l.b16 %v5190
      %v5211 = vunpack.c.l.b16 %v5191
      %v5212 = vunpack.c.l.b16 %v5192
      %v5213 = vunpack.c.l.b16 %v5193
      %v5214 = vpack.c.b16 %v5207, %v5206
      %v5215 = vpack.c.b16 %v5209, %v5208
      %v5216 = vpack.c.b16 %v5211, %v5210
      %v5217 = vpack.c.b16 %v5213, %v5212
      %vm5222 = vcmask 523264
      %v5224 = vsel %vm5222, %v5154, 0
      %v5227 = vsel %vm5222, %v5155, 0
      %v5230 = vsel %vm5222, %v5156, 0
      %v5233 = vsel %vm5222, %v5157, 0
      %v5236 = vsel %vm5222, %v5158, 0
      %v5239 = vsel %vm5222, %v5159, 0
      %v5242 = vsel %vm5222, %v5160, 0
      %v5245 = vsel %vm5222, %v5161, 0
      %v5248 = vsel %vm5222, %v5162, 0
      %v5251 = vsel %vm5222, %v5163, 0
      %v5254 = vsel %vm5222, %v5164, 0
      %v5257 = vsel %vm5222, %v5165, 0
      %v5260 = vsel %vm5222, %v5166, 0
      %v5263 = vsel %vm5222, %v5167, 0
      %v5266 = vsel %vm5222, %v5168, 0
      %v5269 = vsel %vm5222, %v5169, 0
      %v5272 = vsel %vm5222, %v5170, 0
      %v5275 = vsel %vm5222, %v5171, 0
      %v5278 = vsel %vm5222, %v5172, 0
      %v5281 = vsel %vm5222, %v5173, 0
      %v5284 = vsel %vm5222, %v5174, 0
      %v5287 = vsel %vm5222, %v5175, 0
      %v5290 = vsel %vm5222, %v5176, 0
      %v5293 = vsel %vm5222, %v5177, 0
      %v5296 = vsel %vm5222, %v5178, 0
      %v5299 = vsel %vm5222, %v5179, 0
      %v5302 = vsel %vm5222, %v5180, 0
      %v5305 = vsel %vm5222, %v5181, 0
      %v5308 = vsel %vm5222, %v5182, 0
      %v5311 = vsel %vm5222, %v5183, 0
      %v5314 = vsel %vm5222, %v5184, 0
      %v5317 = vsel %vm5222, %v5185, 0
      %5319 = vmatpush.bf16.msra.mxu0 0
      %5320 = vmatpush.bf16.msra.mxu0 0
      %5321 = vmatpush.bf16.msra.mxu0 0
      %5322 = vmatpush.bf16.msra.mxu0 0
      %5323 = vmatpush.bf16.msra.mxu0 %v5217
      %5324 = vmatpush.bf16.msra.mxu0 %v5216
      %5325 = vmatpush.bf16.msra.mxu0 %v5215
      %5326 = vmatpush.bf16.msra.mxu0 %v5214
      %5327 = vmatmul.bf16.gmra.mxu0 %v5224
      %v5328 = vpop.f32.mrf.mxu0
      %v5329 = vadd.f32 %v5196, %v5328
      %v5330 = vpop.f32.mrf.mxu0
      %v5331 = vadd.f32 %v5196, %v5330
      %5332 = vmatmul.bf16.gmra.mxu0 %v5227
      %v5333 = vpop.f32.mrf.mxu0
      %v5334 = vadd.f32 %v5196, %v5333
      %v5335 = vpop.f32.mrf.mxu0
      %v5336 = vadd.f32 %v5196, %v5335
      %5337 = vmatmul.bf16.gmra.mxu0 %v5230
      %v5338 = vpop.f32.mrf.mxu0
      %v5339 = vadd.f32 %v5196, %v5338
      %v5340 = vpop.f32.mrf.mxu0
      %v5341 = vadd.f32 %v5196, %v5340
      %5342 = vmatmul.bf16.gmra.mxu0 %v5233
      %v5343 = vpop.f32.mrf.mxu0
      %v5344 = vadd.f32 %v5196, %v5343
      %v5345 = vpop.f32.mrf.mxu0
      %v5346 = vadd.f32 %v5196, %v5345
      %5347 = vmatmul.bf16.gmra.mxu0 %v5236
      %v5348 = vpop.f32.mrf.mxu0
      %v5349 = vadd.f32 %v5196, %v5348
      %v5350 = vpop.f32.mrf.mxu0
      %v5351 = vadd.f32 %v5196, %v5350
      %5352 = vmatmul.bf16.gmra.mxu0 %v5239
      %v5353 = vpop.f32.mrf.mxu0
      %v5354 = vadd.f32 %v5196, %v5353
      %v5355 = vpop.f32.mrf.mxu0
      %v5356 = vadd.f32 %v5196, %v5355
      %5357 = vmatmul.bf16.gmra.mxu0 %v5242
      %v5358 = vpop.f32.mrf.mxu0
      %v5359 = vadd.f32 %v5196, %v5358
      %v5360 = vpop.f32.mrf.mxu0
      %v5361 = vadd.f32 %v5196, %v5360
      %5362 = vmatmul.bf16.gmra.mxu0 %v5245
      %v5363 = vpop.f32.mrf.mxu0
      %v5364 = vadd.f32 %v5196, %v5363
      %v5365 = vpop.f32.mrf.mxu0
      %v5366 = vadd.f32 %v5196, %v5365
      %5367 = vmatmul.bf16.gmra.mxu0 %v5248
      %v5368 = vpop.f32.mrf.mxu0
      %v5369 = vadd.f32 %v5196, %v5368
      %v5370 = vpop.f32.mrf.mxu0
      %v5371 = vadd.f32 %v5196, %v5370
      %5372 = vmatmul.bf16.gmra.mxu0 %v5251
      %v5373 = vpop.f32.mrf.mxu0
      %v5374 = vadd.f32 %v5196, %v5373
      %v5375 = vpop.f32.mrf.mxu0
      %v5376 = vadd.f32 %v5196, %v5375
      %5377 = vmatmul.bf16.gmra.mxu0 %v5254
      %v5378 = vpop.f32.mrf.mxu0
      %v5379 = vadd.f32 %v5196, %v5378
      %v5380 = vpop.f32.mrf.mxu0
      %v5381 = vadd.f32 %v5196, %v5380
      %5382 = vmatmul.bf16.gmra.mxu0 %v5257
      %v5383 = vpop.f32.mrf.mxu0
      %v5384 = vadd.f32 %v5196, %v5383
      %v5385 = vpop.f32.mrf.mxu0
      %v5386 = vadd.f32 %v5196, %v5385
      %5387 = vmatmul.bf16.gmra.mxu0 %v5260
      %v5388 = vpop.f32.mrf.mxu0
      %v5389 = vadd.f32 %v5196, %v5388
      %v5390 = vpop.f32.mrf.mxu0
      %v5391 = vadd.f32 %v5196, %v5390
      %5392 = vmatmul.bf16.gmra.mxu0 %v5263
      %v5393 = vpop.f32.mrf.mxu0
      %v5394 = vadd.f32 %v5196, %v5393
      %v5395 = vpop.f32.mrf.mxu0
      %v5396 = vadd.f32 %v5196, %v5395
      %5397 = vmatmul.bf16.gmra.mxu0 %v5266
      %v5398 = vpop.f32.mrf.mxu0
      %v5399 = vadd.f32 %v5196, %v5398
      %v5400 = vpop.f32.mrf.mxu0
      %v5401 = vadd.f32 %v5196, %v5400
      %5402 = vmatmul.bf16.gmra.mxu0 %v5269
      %v5403 = vpop.f32.mrf.mxu0
      %v5404 = vadd.f32 %v5196, %v5403
      %v5405 = vpop.f32.mrf.mxu0
      %v5406 = vadd.f32 %v5196, %v5405
      %5407 = vmatmul.bf16.gmra.mxu0 %v5272
      %v5408 = vpop.f32.mrf.mxu0
      %v5409 = vadd.f32 %v5196, %v5408
      %v5410 = vpop.f32.mrf.mxu0
      %v5411 = vadd.f32 %v5196, %v5410
      %5412 = vmatmul.bf16.gmra.mxu0 %v5275
      %v5413 = vpop.f32.mrf.mxu0
      %v5414 = vadd.f32 %v5196, %v5413
      %v5415 = vpop.f32.mrf.mxu0
      %v5416 = vadd.f32 %v5196, %v5415
      %5417 = vmatmul.bf16.gmra.mxu0 %v5278
      %v5418 = vpop.f32.mrf.mxu0
      %v5419 = vadd.f32 %v5196, %v5418
      %v5420 = vpop.f32.mrf.mxu0
      %v5421 = vadd.f32 %v5196, %v5420
      %5422 = vmatmul.bf16.gmra.mxu0 %v5281
      %v5423 = vpop.f32.mrf.mxu0
      %v5424 = vadd.f32 %v5196, %v5423
      %v5425 = vpop.f32.mrf.mxu0
      %v5426 = vadd.f32 %v5196, %v5425
      %5427 = vmatmul.bf16.gmra.mxu0 %v5284
      %v5428 = vpop.f32.mrf.mxu0
      %v5429 = vadd.f32 %v5196, %v5428
      %v5430 = vpop.f32.mrf.mxu0
      %v5431 = vadd.f32 %v5196, %v5430
      %5432 = vmatmul.bf16.gmra.mxu0 %v5287
      %v5433 = vpop.f32.mrf.mxu0
      %v5434 = vadd.f32 %v5196, %v5433
      %v5435 = vpop.f32.mrf.mxu0
      %v5436 = vadd.f32 %v5196, %v5435
      %5437 = vmatmul.bf16.gmra.mxu0 %v5290
      %v5438 = vpop.f32.mrf.mxu0
      %v5439 = vadd.f32 %v5196, %v5438
      %v5440 = vpop.f32.mrf.mxu0
      %v5441 = vadd.f32 %v5196, %v5440
      %5442 = vmatmul.bf16.gmra.mxu0 %v5293
      %v5443 = vpop.f32.mrf.mxu0
      %v5444 = vadd.f32 %v5196, %v5443
      %v5445 = vpop.f32.mrf.mxu0
      %v5446 = vadd.f32 %v5196, %v5445
      %5447 = vmatmul.bf16.gmra.mxu0 %v5296
      %v5448 = vpop.f32.mrf.mxu0
      %v5449 = vadd.f32 %v5196, %v5448
      %v5450 = vpop.f32.mrf.mxu0
      %v5451 = vadd.f32 %v5196, %v5450
      %5452 = vmatmul.bf16.gmra.mxu0 %v5299
      %v5453 = vpop.f32.mrf.mxu0
      %v5454 = vadd.f32 %v5196, %v5453
      %v5455 = vpop.f32.mrf.mxu0
      %v5456 = vadd.f32 %v5196, %v5455
      %5457 = vmatmul.bf16.gmra.mxu0 %v5302
      %v5458 = vpop.f32.mrf.mxu0
      %v5459 = vadd.f32 %v5196, %v5458
      %v5460 = vpop.f32.mrf.mxu0
      %v5461 = vadd.f32 %v5196, %v5460
      %5462 = vmatmul.bf16.gmra.mxu0 %v5305
      %v5463 = vpop.f32.mrf.mxu0
      %v5464 = vadd.f32 %v5196, %v5463
      %v5465 = vpop.f32.mrf.mxu0
      %v5466 = vadd.f32 %v5196, %v5465
      %5467 = vmatmul.bf16.gmra.mxu0 %v5308
      %v5468 = vpop.f32.mrf.mxu0
      %v5469 = vadd.f32 %v5196, %v5468
      %v5470 = vpop.f32.mrf.mxu0
      %v5471 = vadd.f32 %v5196, %v5470
      %5472 = vmatmul.bf16.gmra.mxu0 %v5311
      %v5473 = vpop.f32.mrf.mxu0
      %v5474 = vadd.f32 %v5196, %v5473
      %v5475 = vpop.f32.mrf.mxu0
      %v5476 = vadd.f32 %v5196, %v5475
      %5477 = vmatmul.bf16.gmra.mxu0 %v5314
      %v5478 = vpop.f32.mrf.mxu0
      %v5479 = vadd.f32 %v5196, %v5478
      %v5480 = vpop.f32.mrf.mxu0
      %v5481 = vadd.f32 %v5196, %v5480
      %5482 = vmatmul.bf16.gmra.mxu0 %v5317
      %v5483 = vpop.f32.mrf.mxu0
      %v5484 = vadd.f32 %v5196, %v5483
      %v5485 = vpop.f32.mrf.mxu0
      %v5486 = vadd.f32 %v5196, %v5485
      %5487 = vdwg.mxu0
      %v5488 = vxor.u32 %v5329, 2147483648
      %v5489 = vxor.u32 %v5331, 2147483648
      %v5490 = vxor.u32 %v5334, 2147483648
      %v5491 = vxor.u32 %v5336, 2147483648
      %v5492 = vxor.u32 %v5339, 2147483648
      %v5493 = vxor.u32 %v5341, 2147483648
      %v5494 = vxor.u32 %v5344, 2147483648
      %v5495 = vxor.u32 %v5346, 2147483648
      %v5496 = vxor.u32 %v5349, 2147483648
      %v5497 = vxor.u32 %v5351, 2147483648
      %v5498 = vxor.u32 %v5354, 2147483648
      %v5499 = vxor.u32 %v5356, 2147483648
      %v5500 = vxor.u32 %v5359, 2147483648
      %v5501 = vxor.u32 %v5361, 2147483648
      %v5502 = vxor.u32 %v5364, 2147483648
      %v5503 = vxor.u32 %v5366, 2147483648
      %v5504 = vxor.u32 %v5369, 2147483648
      %v5505 = vxor.u32 %v5371, 2147483648
      %v5506 = vxor.u32 %v5374, 2147483648
      %v5507 = vxor.u32 %v5376, 2147483648
      %v5508 = vxor.u32 %v5379, 2147483648
      %v5509 = vxor.u32 %v5381, 2147483648
      %v5510 = vxor.u32 %v5384, 2147483648
      %v5511 = vxor.u32 %v5386, 2147483648
      %v5512 = vxor.u32 %v5389, 2147483648
      %v5513 = vxor.u32 %v5391, 2147483648
      %v5514 = vxor.u32 %v5394, 2147483648
      %v5515 = vxor.u32 %v5396, 2147483648
      %v5516 = vxor.u32 %v5399, 2147483648
      %v5517 = vxor.u32 %v5401, 2147483648
      %v5518 = vxor.u32 %v5404, 2147483648
      %v5519 = vxor.u32 %v5406, 2147483648
      %v5520 = vxor.u32 %v5409, 2147483648
      %v5521 = vxor.u32 %v5411, 2147483648
      %v5522 = vxor.u32 %v5414, 2147483648
      %v5523 = vxor.u32 %v5416, 2147483648
      %v5524 = vxor.u32 %v5419, 2147483648
      %v5525 = vxor.u32 %v5421, 2147483648
      %v5526 = vxor.u32 %v5424, 2147483648
      %v5527 = vxor.u32 %v5426, 2147483648
      %v5528 = vxor.u32 %v5429, 2147483648
      %v5529 = vxor.u32 %v5431, 2147483648
      %v5530 = vxor.u32 %v5434, 2147483648
      %v5531 = vxor.u32 %v5436, 2147483648
      %v5532 = vxor.u32 %v5439, 2147483648
      %v5533 = vxor.u32 %v5441, 2147483648
      %v5534 = vxor.u32 %v5444, 2147483648
      %v5535 = vxor.u32 %v5446, 2147483648
      %v5536 = vxor.u32 %v5449, 2147483648
      %v5537 = vxor.u32 %v5451, 2147483648
      %v5538 = vxor.u32 %v5454, 2147483648
      %v5539 = vxor.u32 %v5456, 2147483648
      %v5540 = vxor.u32 %v5459, 2147483648
      %v5541 = vxor.u32 %v5461, 2147483648
      %v5542 = vxor.u32 %v5464, 2147483648
      %v5543 = vxor.u32 %v5466, 2147483648
      %v5544 = vxor.u32 %v5469, 2147483648
      %v5545 = vxor.u32 %v5471, 2147483648
      %v5546 = vxor.u32 %v5474, 2147483648
      %v5547 = vxor.u32 %v5476, 2147483648
      %v5548 = vxor.u32 %v5479, 2147483648
      %v5549 = vxor.u32 %v5481, 2147483648
      %v5550 = vxor.u32 %v5484, 2147483648
      %v5551 = vxor.u32 %v5486, 2147483648
      %v5552 = vmul.f32 %v5488, 1.442695
      %v5553 = vpow.pop %v5552
      %v5554 = vmul.f32 %v5489, 1.442695
      %v5555 = vpow.pop %v5554
      %v5556 = vmul.f32 %v5490, 1.442695
      %v5557 = vpow.pop %v5556
      %v5558 = vmul.f32 %v5491, 1.442695
      %v5559 = vpow.pop %v5558
      %v5560 = vmul.f32 %v5492, 1.442695
      %v5561 = vpow.pop %v5560
      %v5562 = vmul.f32 %v5493, 1.442695
      %v5563 = vpow.pop %v5562
      %v5564 = vmul.f32 %v5494, 1.442695
      %v5565 = vpow.pop %v5564
      %v5566 = vmul.f32 %v5495, 1.442695
      %v5567 = vpow.pop %v5566
      %v5568 = vmul.f32 %v5496, 1.442695
      %v5569 = vpow.pop %v5568
      %v5570 = vmul.f32 %v5497, 1.442695
      %v5571 = vpow.pop %v5570
      %v5572 = vmul.f32 %v5498, 1.442695
      %v5573 = vpow.pop %v5572
      %v5574 = vmul.f32 %v5499, 1.442695
      %v5575 = vpow.pop %v5574
      %v5576 = vmul.f32 %v5500, 1.442695
      %v5577 = vpow.pop %v5576
      %v5578 = vmul.f32 %v5501, 1.442695
      %v5579 = vpow.pop %v5578
      %v5580 = vmul.f32 %v5502, 1.442695
      %v5581 = vpow.pop %v5580
      %v5582 = vmul.f32 %v5503, 1.442695
      %v5583 = vpow.pop %v5582
      %v5584 = vmul.f32 %v5504, 1.442695
      %v5585 = vpow.pop %v5584
      %v5586 = vmul.f32 %v5505, 1.442695
      %v5587 = vpow.pop %v5586
      %v5588 = vmul.f32 %v5506, 1.442695
      %v5589 = vpow.pop %v5588
      %v5590 = vmul.f32 %v5507, 1.442695
      %v5591 = vpow.pop %v5590
      %v5592 = vmul.f32 %v5508, 1.442695
      %v5593 = vpow.pop %v5592
      %v5594 = vmul.f32 %v5509, 1.442695
      %v5595 = vpow.pop %v5594
      %v5596 = vmul.f32 %v5510, 1.442695
      %v5597 = vpow.pop %v5596
      %v5598 = vmul.f32 %v5511, 1.442695
      %v5599 = vpow.pop %v5598
      %v5600 = vmul.f32 %v5512, 1.442695
      %v5601 = vpow.pop %v5600
      %v5602 = vmul.f32 %v5513, 1.442695
      %v5603 = vpow.pop %v5602
      %v5604 = vmul.f32 %v5514, 1.442695
      %v5605 = vpow.pop %v5604
      %v5606 = vmul.f32 %v5515, 1.442695
      %v5607 = vpow.pop %v5606
      %v5608 = vmul.f32 %v5516, 1.442695
      %v5609 = vpow.pop %v5608
      %v5610 = vmul.f32 %v5517, 1.442695
      %v5611 = vpow.pop %v5610
      %v5612 = vmul.f32 %v5518, 1.442695
      %v5613 = vpow.pop %v5612
      %v5614 = vmul.f32 %v5519, 1.442695
      %v5615 = vpow.pop %v5614
      %v5616 = vmul.f32 %v5520, 1.442695
      %v5617 = vpow.pop %v5616
      %v5618 = vmul.f32 %v5521, 1.442695
      %v5619 = vpow.pop %v5618
      %v5620 = vmul.f32 %v5522, 1.442695
      %v5621 = vpow.pop %v5620
      %v5622 = vmul.f32 %v5523, 1.442695
      %v5623 = vpow.pop %v5622
      %v5624 = vmul.f32 %v5524, 1.442695
      %v5625 = vpow.pop %v5624
      %v5626 = vmul.f32 %v5525, 1.442695
      %v5627 = vpow.pop %v5626
      %v5628 = vmul.f32 %v5526, 1.442695
      %v5629 = vpow.pop %v5628
      %v5630 = vmul.f32 %v5527, 1.442695
      %v5631 = vpow.pop %v5630
      %v5632 = vmul.f32 %v5528, 1.442695
      %v5633 = vpow.pop %v5632
      %v5634 = vmul.f32 %v5529, 1.442695
      %v5635 = vpow.pop %v5634
      %v5636 = vmul.f32 %v5530, 1.442695
      %v5637 = vpow.pop %v5636
      %v5638 = vmul.f32 %v5531, 1.442695
      %v5639 = vpow.pop %v5638
      %v5640 = vmul.f32 %v5532, 1.442695
      %v5641 = vpow.pop %v5640
      %v5642 = vmul.f32 %v5533, 1.442695
      %v5643 = vpow.pop %v5642
      %v5644 = vmul.f32 %v5534, 1.442695
      %v5645 = vpow.pop %v5644
      %v5646 = vmul.f32 %v5535, 1.442695
      %v5647 = vpow.pop %v5646
      %v5648 = vmul.f32 %v5536, 1.442695
      %v5649 = vpow.pop %v5648
      %v5650 = vmul.f32 %v5537, 1.442695
      %v5651 = vpow.pop %v5650
      %v5652 = vmul.f32 %v5538, 1.442695
      %v5653 = vpow.pop %v5652
      %v5654 = vmul.f32 %v5539, 1.442695
      %v5655 = vpow.pop %v5654
      %v5656 = vmul.f32 %v5540, 1.442695
      %v5657 = vpow.pop %v5656
      %v5658 = vmul.f32 %v5541, 1.442695
      %v5659 = vpow.pop %v5658
      %v5660 = vmul.f32 %v5542, 1.442695
      %v5661 = vpow.pop %v5660
      %v5662 = vmul.f32 %v5543, 1.442695
      %v5663 = vpow.pop %v5662
      %v5664 = vmul.f32 %v5544, 1.442695
      %v5665 = vpow.pop %v5664
      %v5666 = vmul.f32 %v5545, 1.442695
      %v5667 = vpow.pop %v5666
      %v5668 = vmul.f32 %v5546, 1.442695
      %v5669 = vpow.pop %v5668
      %v5670 = vmul.f32 %v5547, 1.442695
      %v5671 = vpow.pop %v5670
      %v5672 = vmul.f32 %v5548, 1.442695
      %v5673 = vpow.pop %v5672
      %v5674 = vmul.f32 %v5549, 1.442695
      %v5675 = vpow.pop %v5674
      %v5676 = vmul.f32 %v5550, 1.442695
      %v5677 = vpow.pop %v5676
      %v5678 = vmul.f32 %v5551, 1.442695
      %v5679 = vpow.pop %v5678
      %v5680 = vadd.f32 %v5553, 1.0
      %v5681 = vadd.f32 %v5555, 1.0
      %v5682 = vadd.f32 %v5557, 1.0
      %v5683 = vadd.f32 %v5559, 1.0
      %v5684 = vadd.f32 %v5561, 1.0
      %v5685 = vadd.f32 %v5563, 1.0
      %v5686 = vadd.f32 %v5565, 1.0
      %v5687 = vadd.f32 %v5567, 1.0
      %v5688 = vadd.f32 %v5569, 1.0
      %v5689 = vadd.f32 %v5571, 1.0
      %v5690 = vadd.f32 %v5573, 1.0
      %v5691 = vadd.f32 %v5575, 1.0
      %v5692 = vadd.f32 %v5577, 1.0
      %v5693 = vadd.f32 %v5579, 1.0
      %v5694 = vadd.f32 %v5581, 1.0
      %v5695 = vadd.f32 %v5583, 1.0
      %v5696 = vadd.f32 %v5585, 1.0
      %v5697 = vadd.f32 %v5587, 1.0
      %v5698 = vadd.f32 %v5589, 1.0
      %v5699 = vadd.f32 %v5591, 1.0
      %v5700 = vadd.f32 %v5593, 1.0
      %v5701 = vadd.f32 %v5595, 1.0
      %v5702 = vadd.f32 %v5597, 1.0
      %v5703 = vadd.f32 %v5599, 1.0
      %v5704 = vadd.f32 %v5601, 1.0
      %v5705 = vadd.f32 %v5603, 1.0
      %v5706 = vadd.f32 %v5605, 1.0
      %v5707 = vadd.f32 %v5607, 1.0
      %v5708 = vadd.f32 %v5609, 1.0
      %v5709 = vadd.f32 %v5611, 1.0
      %v5710 = vadd.f32 %v5613, 1.0
      %v5711 = vadd.f32 %v5615, 1.0
      %v5712 = vadd.f32 %v5617, 1.0
      %v5713 = vadd.f32 %v5619, 1.0
      %v5714 = vadd.f32 %v5621, 1.0
      %v5715 = vadd.f32 %v5623, 1.0
      %v5716 = vadd.f32 %v5625, 1.0
      %v5717 = vadd.f32 %v5627, 1.0
      %v5718 = vadd.f32 %v5629, 1.0
      %v5719 = vadd.f32 %v5631, 1.0
      %v5720 = vadd.f32 %v5633, 1.0
      %v5721 = vadd.f32 %v5635, 1.0
      %v5722 = vadd.f32 %v5637, 1.0
      %v5723 = vadd.f32 %v5639, 1.0
      %v5724 = vadd.f32 %v5641, 1.0
      %v5725 = vadd.f32 %v5643, 1.0
      %v5726 = vadd.f32 %v5645, 1.0
      %v5727 = vadd.f32 %v5647, 1.0
      %v5728 = vadd.f32 %v5649, 1.0
      %v5729 = vadd.f32 %v5651, 1.0
      %v5730 = vadd.f32 %v5653, 1.0
      %v5731 = vadd.f32 %v5655, 1.0
      %v5732 = vadd.f32 %v5657, 1.0
      %v5733 = vadd.f32 %v5659, 1.0
      %v5734 = vadd.f32 %v5661, 1.0
      %v5735 = vadd.f32 %v5663, 1.0
      %v5736 = vadd.f32 %v5665, 1.0
      %v5737 = vadd.f32 %v5667, 1.0
      %v5738 = vadd.f32 %v5669, 1.0
      %v5739 = vadd.f32 %v5671, 1.0
      %v5740 = vadd.f32 %v5673, 1.0
      %v5741 = vadd.f32 %v5675, 1.0
      %v5742 = vadd.f32 %v5677, 1.0
      %v5743 = vadd.f32 %v5679, 1.0
      %v5744 = vrcp.pop %v5680
      %v5745 = vmul.f32 %v5680, %v5744
      %v5746 = vsub.f32 1.0, %v5745
      %v5747 = vmul.f32 %v5744, %v5746
      %v5748 = vadd.f32 %v5744, %v5747
      %vm5749 = vweird.f32 %v5680
      %vm5750 = vweird.f32 %v5744
      %vm5751 = vmor %vm5749, %vm5750
      %v5752 = vsel %vm5751, %v5744, %v5748
      %v5753 = vand.u32 2147483647, %v5680
      %vm5754 = vcmp.eq.f32.partialorder %v5753, 8.507059e+37
      %v5755 = vand.u32 %v5680, 2147483648
      %v5756 = vor.u32 1.1754944e-38, %v5755
      %v5757 = vsel %vm5754, %v5756, %v5752
      %v5758 = vmul.f32 1.0, %v5757
      %v5759 = vrcp.pop %v5681
      %v5760 = vmul.f32 %v5681, %v5759
      %v5761 = vsub.f32 1.0, %v5760
      %v5762 = vmul.f32 %v5759, %v5761
      %v5763 = vadd.f32 %v5759, %v5762
      %vm5764 = vweird.f32 %v5681
      %vm5765 = vweird.f32 %v5759
      %vm5766 = vmor %vm5764, %vm5765
      %v5767 = vsel %vm5766, %v5759, %v5763
      %v5768 = vand.u32 2147483647, %v5681
      %vm5769 = vcmp.eq.f32.partialorder %v5768, 8.507059e+37
      %v5770 = vand.u32 %v5681, 2147483648
      %v5771 = vor.u32 1.1754944e-38, %v5770
      %v5772 = vsel %vm5769, %v5771, %v5767
      %v5773 = vmul.f32 1.0, %v5772
      %v5774 = vrcp.pop %v5682
      %v5775 = vmul.f32 %v5682, %v5774
      %v5776 = vsub.f32 1.0, %v5775
      %v5777 = vmul.f32 %v5774, %v5776
      %v5778 = vadd.f32 %v5774, %v5777
      %vm5779 = vweird.f32 %v5682
      %vm5780 = vweird.f32 %v5774
      %vm5781 = vmor %vm5779, %vm5780
      %v5782 = vsel %vm5781, %v5774, %v5778
      %v5783 = vand.u32 2147483647, %v5682
      %vm5784 = vcmp.eq.f32.partialorder %v5783, 8.507059e+37
      %v5785 = vand.u32 %v5682, 2147483648
      %v5786 = vor.u32 1.1754944e-38, %v5785
      %v5787 = vsel %vm5784, %v5786, %v5782
      %v5788 = vmul.f32 1.0, %v5787
      %v5789 = vrcp.pop %v5683
      %v5790 = vmul.f32 %v5683, %v5789
      %v5791 = vsub.f32 1.0, %v5790
      %v5792 = vmul.f32 %v5789, %v5791
      %v5793 = vadd.f32 %v5789, %v5792
      %vm5794 = vweird.f32 %v5683
      %vm5795 = vweird.f32 %v5789
      %vm5796 = vmor %vm5794, %vm5795
      %v5797 = vsel %vm5796, %v5789, %v5793
      %v5798 = vand.u32 2147483647, %v5683
      %vm5799 = vcmp.eq.f32.partialorder %v5798, 8.507059e+37
      %v5800 = vand.u32 %v5683, 2147483648
      %v5801 = vor.u32 1.1754944e-38, %v5800
      %v5802 = vsel %vm5799, %v5801, %v5797
      %v5803 = vmul.f32 1.0, %v5802
      %v5804 = vrcp.pop %v5684
      %v5805 = vmul.f32 %v5684, %v5804
      %v5806 = vsub.f32 1.0, %v5805
      %v5807 = vmul.f32 %v5804, %v5806
      %v5808 = vadd.f32 %v5804, %v5807
      %vm5809 = vweird.f32 %v5684
      %vm5810 = vweird.f32 %v5804
      %vm5811 = vmor %vm5809, %vm5810
      %v5812 = vsel %vm5811, %v5804, %v5808
      %v5813 = vand.u32 2147483647, %v5684
      %vm5814 = vcmp.eq.f32.partialorder %v5813, 8.507059e+37
      %v5815 = vand.u32 %v5684, 2147483648
      %v5816 = vor.u32 1.1754944e-38, %v5815
      %v5817 = vsel %vm5814, %v5816, %v5812
      %v5818 = vmul.f32 1.0, %v5817
      %v5819 = vrcp.pop %v5685
      %v5820 = vmul.f32 %v5685, %v5819
      %v5821 = vsub.f32 1.0, %v5820
      %v5822 = vmul.f32 %v5819, %v5821
      %v5823 = vadd.f32 %v5819, %v5822
      %vm5824 = vweird.f32 %v5685
      %vm5825 = vweird.f32 %v5819
      %vm5826 = vmor %vm5824, %vm5825
      %v5827 = vsel %vm5826, %v5819, %v5823
      %v5828 = vand.u32 2147483647, %v5685
      %vm5829 = vcmp.eq.f32.partialorder %v5828, 8.507059e+37
      %v5830 = vand.u32 %v5685, 2147483648
      %v5831 = vor.u32 1.1754944e-38, %v5830
      %v5832 = vsel %vm5829, %v5831, %v5827
      %v5833 = vmul.f32 1.0, %v5832
      %v5834 = vrcp.pop %v5686
      %v5835 = vmul.f32 %v5686, %v5834
      %v5836 = vsub.f32 1.0, %v5835
      %v5837 = vmul.f32 %v5834, %v5836
      %v5838 = vadd.f32 %v5834, %v5837
      %vm5839 = vweird.f32 %v5686
      %vm5840 = vweird.f32 %v5834
      %vm5841 = vmor %vm5839, %vm5840
      %v5842 = vsel %vm5841, %v5834, %v5838
      %v5843 = vand.u32 2147483647, %v5686
      %vm5844 = vcmp.eq.f32.partialorder %v5843, 8.507059e+37
      %v5845 = vand.u32 %v5686, 2147483648
      %v5846 = vor.u32 1.1754944e-38, %v5845
      %v5847 = vsel %vm5844, %v5846, %v5842
      %v5848 = vmul.f32 1.0, %v5847
      %v5849 = vrcp.pop %v5687
      %v5850 = vmul.f32 %v5687, %v5849
      %v5851 = vsub.f32 1.0, %v5850
      %v5852 = vmul.f32 %v5849, %v5851
      %v5853 = vadd.f32 %v5849, %v5852
      %vm5854 = vweird.f32 %v5687
      %vm5855 = vweird.f32 %v5849
      %vm5856 = vmor %vm5854, %vm5855
      %v5857 = vsel %vm5856, %v5849, %v5853
      %v5858 = vand.u32 2147483647, %v5687
      %vm5859 = vcmp.eq.f32.partialorder %v5858, 8.507059e+37
      %v5860 = vand.u32 %v5687, 2147483648
      %v5861 = vor.u32 1.1754944e-38, %v5860
      %v5862 = vsel %vm5859, %v5861, %v5857
      %v5863 = vmul.f32 1.0, %v5862
      %v5864 = vrcp.pop %v5688
      %v5865 = vmul.f32 %v5688, %v5864
      %v5866 = vsub.f32 1.0, %v5865
      %v5867 = vmul.f32 %v5864, %v5866
      %v5868 = vadd.f32 %v5864, %v5867
      %vm5869 = vweird.f32 %v5688
      %vm5870 = vweird.f32 %v5864
      %vm5871 = vmor %vm5869, %vm5870
      %v5872 = vsel %vm5871, %v5864, %v5868
      %v5873 = vand.u32 2147483647, %v5688
      %vm5874 = vcmp.eq.f32.partialorder %v5873, 8.507059e+37
      %v5875 = vand.u32 %v5688, 2147483648
      %v5876 = vor.u32 1.1754944e-38, %v5875
      %v5877 = vsel %vm5874, %v5876, %v5872
      %v5878 = vmul.f32 1.0, %v5877
      %v5879 = vrcp.pop %v5689
      %v5880 = vmul.f32 %v5689, %v5879
      %v5881 = vsub.f32 1.0, %v5880
      %v5882 = vmul.f32 %v5879, %v5881
      %v5883 = vadd.f32 %v5879, %v5882
      %vm5884 = vweird.f32 %v5689
      %vm5885 = vweird.f32 %v5879
      %vm5886 = vmor %vm5884, %vm5885
      %v5887 = vsel %vm5886, %v5879, %v5883
      %v5888 = vand.u32 2147483647, %v5689
      %vm5889 = vcmp.eq.f32.partialorder %v5888, 8.507059e+37
      %v5890 = vand.u32 %v5689, 2147483648
      %v5891 = vor.u32 1.1754944e-38, %v5890
      %v5892 = vsel %vm5889, %v5891, %v5887
      %v5893 = vmul.f32 1.0, %v5892
      %v5894 = vrcp.pop %v5690
      %v5895 = vmul.f32 %v5690, %v5894
      %v5896 = vsub.f32 1.0, %v5895
      %v5897 = vmul.f32 %v5894, %v5896
      %v5898 = vadd.f32 %v5894, %v5897
      %vm5899 = vweird.f32 %v5690
      %vm5900 = vweird.f32 %v5894
      %vm5901 = vmor %vm5899, %vm5900
      %v5902 = vsel %vm5901, %v5894, %v5898
      %v5903 = vand.u32 2147483647, %v5690
      %vm5904 = vcmp.eq.f32.partialorder %v5903, 8.507059e+37
      %v5905 = vand.u32 %v5690, 2147483648
      %v5906 = vor.u32 1.1754944e-38, %v5905
      %v5907 = vsel %vm5904, %v5906, %v5902
      %v5908 = vmul.f32 1.0, %v5907
      %v5909 = vrcp.pop %v5691
      %v5910 = vmul.f32 %v5691, %v5909
      %v5911 = vsub.f32 1.0, %v5910
      %v5912 = vmul.f32 %v5909, %v5911
      %v5913 = vadd.f32 %v5909, %v5912
      %vm5914 = vweird.f32 %v5691
      %vm5915 = vweird.f32 %v5909
      %vm5916 = vmor %vm5914, %vm5915
      %v5917 = vsel %vm5916, %v5909, %v5913
      %v5918 = vand.u32 2147483647, %v5691
      %vm5919 = vcmp.eq.f32.partialorder %v5918, 8.507059e+37
      %v5920 = vand.u32 %v5691, 2147483648
      %v5921 = vor.u32 1.1754944e-38, %v5920
      %v5922 = vsel %vm5919, %v5921, %v5917
      %v5923 = vmul.f32 1.0, %v5922
      %v5924 = vrcp.pop %v5692
      %v5925 = vmul.f32 %v5692, %v5924
      %v5926 = vsub.f32 1.0, %v5925
      %v5927 = vmul.f32 %v5924, %v5926
      %v5928 = vadd.f32 %v5924, %v5927
      %vm5929 = vweird.f32 %v5692
      %vm5930 = vweird.f32 %v5924
      %vm5931 = vmor %vm5929, %vm5930
      %v5932 = vsel %vm5931, %v5924, %v5928
      %v5933 = vand.u32 2147483647, %v5692
      %vm5934 = vcmp.eq.f32.partialorder %v5933, 8.507059e+37
      %v5935 = vand.u32 %v5692, 2147483648
      %v5936 = vor.u32 1.1754944e-38, %v5935
      %v5937 = vsel %vm5934, %v5936, %v5932
      %v5938 = vmul.f32 1.0, %v5937
      %v5939 = vrcp.pop %v5693
      %v5940 = vmul.f32 %v5693, %v5939
      %v5941 = vsub.f32 1.0, %v5940
      %v5942 = vmul.f32 %v5939, %v5941
      %v5943 = vadd.f32 %v5939, %v5942
      %vm5944 = vweird.f32 %v5693
      %vm5945 = vweird.f32 %v5939
      %vm5946 = vmor %vm5944, %vm5945
      %v5947 = vsel %vm5946, %v5939, %v5943
      %v5948 = vand.u32 2147483647, %v5693
      %vm5949 = vcmp.eq.f32.partialorder %v5948, 8.507059e+37
      %v5950 = vand.u32 %v5693, 2147483648
      %v5951 = vor.u32 1.1754944e-38, %v5950
      %v5952 = vsel %vm5949, %v5951, %v5947
      %v5953 = vmul.f32 1.0, %v5952
      %v5954 = vrcp.pop %v5694
      %v5955 = vmul.f32 %v5694, %v5954
      %v5956 = vsub.f32 1.0, %v5955
      %v5957 = vmul.f32 %v5954, %v5956
      %v5958 = vadd.f32 %v5954, %v5957
      %vm5959 = vweird.f32 %v5694
      %vm5960 = vweird.f32 %v5954
      %vm5961 = vmor %vm5959, %vm5960
      %v5962 = vsel %vm5961, %v5954, %v5958
      %v5963 = vand.u32 2147483647, %v5694
      %vm5964 = vcmp.eq.f32.partialorder %v5963, 8.507059e+37
      %v5965 = vand.u32 %v5694, 2147483648
      %v5966 = vor.u32 1.1754944e-38, %v5965
      %v5967 = vsel %vm5964, %v5966, %v5962
      %v5968 = vmul.f32 1.0, %v5967
      %v5969 = vrcp.pop %v5695
      %v5970 = vmul.f32 %v5695, %v5969
      %v5971 = vsub.f32 1.0, %v5970
      %v5972 = vmul.f32 %v5969, %v5971
      %v5973 = vadd.f32 %v5969, %v5972
      %vm5974 = vweird.f32 %v5695
      %vm5975 = vweird.f32 %v5969
      %vm5976 = vmor %vm5974, %vm5975
      %v5977 = vsel %vm5976, %v5969, %v5973
      %v5978 = vand.u32 2147483647, %v5695
      %vm5979 = vcmp.eq.f32.partialorder %v5978, 8.507059e+37
      %v5980 = vand.u32 %v5695, 2147483648
      %v5981 = vor.u32 1.1754944e-38, %v5980
      %v5982 = vsel %vm5979, %v5981, %v5977
      %v5983 = vmul.f32 1.0, %v5982
      %v5984 = vrcp.pop %v5696
      %v5985 = vmul.f32 %v5696, %v5984
      %v5986 = vsub.f32 1.0, %v5985
      %v5987 = vmul.f32 %v5984, %v5986
      %v5988 = vadd.f32 %v5984, %v5987
      %vm5989 = vweird.f32 %v5696
      %vm5990 = vweird.f32 %v5984
      %vm5991 = vmor %vm5989, %vm5990
      %v5992 = vsel %vm5991, %v5984, %v5988
      %v5993 = vand.u32 2147483647, %v5696
      %vm5994 = vcmp.eq.f32.partialorder %v5993, 8.507059e+37
      %v5995 = vand.u32 %v5696, 2147483648
      %v5996 = vor.u32 1.1754944e-38, %v5995
      %v5997 = vsel %vm5994, %v5996, %v5992
      %v5998 = vmul.f32 1.0, %v5997
      %v5999 = vrcp.pop %v5697
      %v6000 = vmul.f32 %v5697, %v5999
      %v6001 = vsub.f32 1.0, %v6000
      %v6002 = vmul.f32 %v5999, %v6001
      %v6003 = vadd.f32 %v5999, %v6002
      %vm6004 = vweird.f32 %v5697
      %vm6005 = vweird.f32 %v5999
      %vm6006 = vmor %vm6004, %vm6005
      %v6007 = vsel %vm6006, %v5999, %v6003
      %v6008 = vand.u32 2147483647, %v5697
      %vm6009 = vcmp.eq.f32.partialorder %v6008, 8.507059e+37
      %v6010 = vand.u32 %v5697, 2147483648
      %v6011 = vor.u32 1.1754944e-38, %v6010
      %v6012 = vsel %vm6009, %v6011, %v6007
      %v6013 = vmul.f32 1.0, %v6012
      %v6014 = vrcp.pop %v5698
      %v6015 = vmul.f32 %v5698, %v6014
      %v6016 = vsub.f32 1.0, %v6015
      %v6017 = vmul.f32 %v6014, %v6016
      %v6018 = vadd.f32 %v6014, %v6017
      %vm6019 = vweird.f32 %v5698
      %vm6020 = vweird.f32 %v6014
      %vm6021 = vmor %vm6019, %vm6020
      %v6022 = vsel %vm6021, %v6014, %v6018
      %v6023 = vand.u32 2147483647, %v5698
      %vm6024 = vcmp.eq.f32.partialorder %v6023, 8.507059e+37
      %v6025 = vand.u32 %v5698, 2147483648
      %v6026 = vor.u32 1.1754944e-38, %v6025
      %v6027 = vsel %vm6024, %v6026, %v6022
      %v6028 = vmul.f32 1.0, %v6027
      %v6029 = vrcp.pop %v5699
      %v6030 = vmul.f32 %v5699, %v6029
      %v6031 = vsub.f32 1.0, %v6030
      %v6032 = vmul.f32 %v6029, %v6031
      %v6033 = vadd.f32 %v6029, %v6032
      %vm6034 = vweird.f32 %v5699
      %vm6035 = vweird.f32 %v6029
      %vm6036 = vmor %vm6034, %vm6035
      %v6037 = vsel %vm6036, %v6029, %v6033
      %v6038 = vand.u32 2147483647, %v5699
      %vm6039 = vcmp.eq.f32.partialorder %v6038, 8.507059e+37
      %v6040 = vand.u32 %v5699, 2147483648
      %v6041 = vor.u32 1.1754944e-38, %v6040
      %v6042 = vsel %vm6039, %v6041, %v6037
      %v6043 = vmul.f32 1.0, %v6042
      %v6044 = vrcp.pop %v5700
      %v6045 = vmul.f32 %v5700, %v6044
      %v6046 = vsub.f32 1.0, %v6045
      %v6047 = vmul.f32 %v6044, %v6046
      %v6048 = vadd.f32 %v6044, %v6047
      %vm6049 = vweird.f32 %v5700
      %vm6050 = vweird.f32 %v6044
      %vm6051 = vmor %vm6049, %vm6050
      %v6052 = vsel %vm6051, %v6044, %v6048
      %v6053 = vand.u32 2147483647, %v5700
      %vm6054 = vcmp.eq.f32.partialorder %v6053, 8.507059e+37
      %v6055 = vand.u32 %v5700, 2147483648
      %v6056 = vor.u32 1.1754944e-38, %v6055
      %v6057 = vsel %vm6054, %v6056, %v6052
      %v6058 = vmul.f32 1.0, %v6057
      %v6059 = vrcp.pop %v5701
      %v6060 = vmul.f32 %v5701, %v6059
      %v6061 = vsub.f32 1.0, %v6060
      %v6062 = vmul.f32 %v6059, %v6061
      %v6063 = vadd.f32 %v6059, %v6062
      %vm6064 = vweird.f32 %v5701
      %vm6065 = vweird.f32 %v6059
      %vm6066 = vmor %vm6064, %vm6065
      %v6067 = vsel %vm6066, %v6059, %v6063
      %v6068 = vand.u32 2147483647, %v5701
      %vm6069 = vcmp.eq.f32.partialorder %v6068, 8.507059e+37
      %v6070 = vand.u32 %v5701, 2147483648
      %v6071 = vor.u32 1.1754944e-38, %v6070
      %v6072 = vsel %vm6069, %v6071, %v6067
      %v6073 = vmul.f32 1.0, %v6072
      %v6074 = vrcp.pop %v5702
      %v6075 = vmul.f32 %v5702, %v6074
      %v6076 = vsub.f32 1.0, %v6075
      %v6077 = vmul.f32 %v6074, %v6076
      %v6078 = vadd.f32 %v6074, %v6077
      %vm6079 = vweird.f32 %v5702
      %vm6080 = vweird.f32 %v6074
      %vm6081 = vmor %vm6079, %vm6080
      %v6082 = vsel %vm6081, %v6074, %v6078
      %v6083 = vand.u32 2147483647, %v5702
      %vm6084 = vcmp.eq.f32.partialorder %v6083, 8.507059e+37
      %v6085 = vand.u32 %v5702, 2147483648
      %v6086 = vor.u32 1.1754944e-38, %v6085
      %v6087 = vsel %vm6084, %v6086, %v6082
      %v6088 = vmul.f32 1.0, %v6087
      %v6089 = vrcp.pop %v5703
      %v6090 = vmul.f32 %v5703, %v6089
      %v6091 = vsub.f32 1.0, %v6090
      %v6092 = vmul.f32 %v6089, %v6091
      %v6093 = vadd.f32 %v6089, %v6092
      %vm6094 = vweird.f32 %v5703
      %vm6095 = vweird.f32 %v6089
      %vm6096 = vmor %vm6094, %vm6095
      %v6097 = vsel %vm6096, %v6089, %v6093
      %v6098 = vand.u32 2147483647, %v5703
      %vm6099 = vcmp.eq.f32.partialorder %v6098, 8.507059e+37
      %v6100 = vand.u32 %v5703, 2147483648
      %v6101 = vor.u32 1.1754944e-38, %v6100
      %v6102 = vsel %vm6099, %v6101, %v6097
      %v6103 = vmul.f32 1.0, %v6102
      %v6104 = vrcp.pop %v5704
      %v6105 = vmul.f32 %v5704, %v6104
      %v6106 = vsub.f32 1.0, %v6105
      %v6107 = vmul.f32 %v6104, %v6106
      %v6108 = vadd.f32 %v6104, %v6107
      %vm6109 = vweird.f32 %v5704
      %vm6110 = vweird.f32 %v6104
      %vm6111 = vmor %vm6109, %vm6110
      %v6112 = vsel %vm6111, %v6104, %v6108
      %v6113 = vand.u32 2147483647, %v5704
      %vm6114 = vcmp.eq.f32.partialorder %v6113, 8.507059e+37
      %v6115 = vand.u32 %v5704, 2147483648
      %v6116 = vor.u32 1.1754944e-38, %v6115
      %v6117 = vsel %vm6114, %v6116, %v6112
      %v6118 = vmul.f32 1.0, %v6117
      %v6119 = vrcp.pop %v5705
      %v6120 = vmul.f32 %v5705, %v6119
      %v6121 = vsub.f32 1.0, %v6120
      %v6122 = vmul.f32 %v6119, %v6121
      %v6123 = vadd.f32 %v6119, %v6122
      %vm6124 = vweird.f32 %v5705
      %vm6125 = vweird.f32 %v6119
      %vm6126 = vmor %vm6124, %vm6125
      %v6127 = vsel %vm6126, %v6119, %v6123
      %v6128 = vand.u32 2147483647, %v5705
      %vm6129 = vcmp.eq.f32.partialorder %v6128, 8.507059e+37
      %v6130 = vand.u32 %v5705, 2147483648
      %v6131 = vor.u32 1.1754944e-38, %v6130
      %v6132 = vsel %vm6129, %v6131, %v6127
      %v6133 = vmul.f32 1.0, %v6132
      %v6134 = vrcp.pop %v5706
      %v6135 = vmul.f32 %v5706, %v6134
      %v6136 = vsub.f32 1.0, %v6135
      %v6137 = vmul.f32 %v6134, %v6136
      %v6138 = vadd.f32 %v6134, %v6137
      %vm6139 = vweird.f32 %v5706
      %vm6140 = vweird.f32 %v6134
      %vm6141 = vmor %vm6139, %vm6140
      %v6142 = vsel %vm6141, %v6134, %v6138
      %v6143 = vand.u32 2147483647, %v5706
      %vm6144 = vcmp.eq.f32.partialorder %v6143, 8.507059e+37
      %v6145 = vand.u32 %v5706, 2147483648
      %v6146 = vor.u32 1.1754944e-38, %v6145
      %v6147 = vsel %vm6144, %v6146, %v6142
      %v6148 = vmul.f32 1.0, %v6147
      %v6149 = vrcp.pop %v5707
      %v6150 = vmul.f32 %v5707, %v6149
      %v6151 = vsub.f32 1.0, %v6150
      %v6152 = vmul.f32 %v6149, %v6151
      %v6153 = vadd.f32 %v6149, %v6152
      %vm6154 = vweird.f32 %v5707
      %vm6155 = vweird.f32 %v6149
      %vm6156 = vmor %vm6154, %vm6155
      %v6157 = vsel %vm6156, %v6149, %v6153
      %v6158 = vand.u32 2147483647, %v5707
      %vm6159 = vcmp.eq.f32.partialorder %v6158, 8.507059e+37
      %v6160 = vand.u32 %v5707, 2147483648
      %v6161 = vor.u32 1.1754944e-38, %v6160
      %v6162 = vsel %vm6159, %v6161, %v6157
      %v6163 = vmul.f32 1.0, %v6162
      %v6164 = vrcp.pop %v5708
      %v6165 = vmul.f32 %v5708, %v6164
      %v6166 = vsub.f32 1.0, %v6165
      %v6167 = vmul.f32 %v6164, %v6166
      %v6168 = vadd.f32 %v6164, %v6167
      %vm6169 = vweird.f32 %v5708
      %vm6170 = vweird.f32 %v6164
      %vm6171 = vmor %vm6169, %vm6170
      %v6172 = vsel %vm6171, %v6164, %v6168
      %v6173 = vand.u32 2147483647, %v5708
      %vm6174 = vcmp.eq.f32.partialorder %v6173, 8.507059e+37
      %v6175 = vand.u32 %v5708, 2147483648
      %v6176 = vor.u32 1.1754944e-38, %v6175
      %v6177 = vsel %vm6174, %v6176, %v6172
      %v6178 = vmul.f32 1.0, %v6177
      %v6179 = vrcp.pop %v5709
      %v6180 = vmul.f32 %v5709, %v6179
      %v6181 = vsub.f32 1.0, %v6180
      %v6182 = vmul.f32 %v6179, %v6181
      %v6183 = vadd.f32 %v6179, %v6182
      %vm6184 = vweird.f32 %v5709
      %vm6185 = vweird.f32 %v6179
      %vm6186 = vmor %vm6184, %vm6185
      %v6187 = vsel %vm6186, %v6179, %v6183
      %v6188 = vand.u32 2147483647, %v5709
      %vm6189 = vcmp.eq.f32.partialorder %v6188, 8.507059e+37
      %v6190 = vand.u32 %v5709, 2147483648
      %v6191 = vor.u32 1.1754944e-38, %v6190
      %v6192 = vsel %vm6189, %v6191, %v6187
      %v6193 = vmul.f32 1.0, %v6192
      %v6194 = vrcp.pop %v5710
      %v6195 = vmul.f32 %v5710, %v6194
      %v6196 = vsub.f32 1.0, %v6195
      %v6197 = vmul.f32 %v6194, %v6196
      %v6198 = vadd.f32 %v6194, %v6197
      %vm6199 = vweird.f32 %v5710
      %vm6200 = vweird.f32 %v6194
      %vm6201 = vmor %vm6199, %vm6200
      %v6202 = vsel %vm6201, %v6194, %v6198
      %v6203 = vand.u32 2147483647, %v5710
      %vm6204 = vcmp.eq.f32.partialorder %v6203, 8.507059e+37
      %v6205 = vand.u32 %v5710, 2147483648
      %v6206 = vor.u32 1.1754944e-38, %v6205
      %v6207 = vsel %vm6204, %v6206, %v6202
      %v6208 = vmul.f32 1.0, %v6207
      %v6209 = vrcp.pop %v5711
      %v6210 = vmul.f32 %v5711, %v6209
      %v6211 = vsub.f32 1.0, %v6210
      %v6212 = vmul.f32 %v6209, %v6211
      %v6213 = vadd.f32 %v6209, %v6212
      %vm6214 = vweird.f32 %v5711
      %vm6215 = vweird.f32 %v6209
      %vm6216 = vmor %vm6214, %vm6215
      %v6217 = vsel %vm6216, %v6209, %v6213
      %v6218 = vand.u32 2147483647, %v5711
      %vm6219 = vcmp.eq.f32.partialorder %v6218, 8.507059e+37
      %v6220 = vand.u32 %v5711, 2147483648
      %v6221 = vor.u32 1.1754944e-38, %v6220
      %v6222 = vsel %vm6219, %v6221, %v6217
      %v6223 = vmul.f32 1.0, %v6222
      %v6224 = vrcp.pop %v5712
      %v6225 = vmul.f32 %v5712, %v6224
      %v6226 = vsub.f32 1.0, %v6225
      %v6227 = vmul.f32 %v6224, %v6226
      %v6228 = vadd.f32 %v6224, %v6227
      %vm6229 = vweird.f32 %v5712
      %vm6230 = vweird.f32 %v6224
      %vm6231 = vmor %vm6229, %vm6230
      %v6232 = vsel %vm6231, %v6224, %v6228
      %v6233 = vand.u32 2147483647, %v5712
      %vm6234 = vcmp.eq.f32.partialorder %v6233, 8.507059e+37
      %v6235 = vand.u32 %v5712, 2147483648
      %v6236 = vor.u32 1.1754944e-38, %v6235
      %v6237 = vsel %vm6234, %v6236, %v6232
      %v6238 = vmul.f32 1.0, %v6237
      %v6239 = vrcp.pop %v5713
      %v6240 = vmul.f32 %v5713, %v6239
      %v6241 = vsub.f32 1.0, %v6240
      %v6242 = vmul.f32 %v6239, %v6241
      %v6243 = vadd.f32 %v6239, %v6242
      %vm6244 = vweird.f32 %v5713
      %vm6245 = vweird.f32 %v6239
      %vm6246 = vmor %vm6244, %vm6245
      %v6247 = vsel %vm6246, %v6239, %v6243
      %v6248 = vand.u32 2147483647, %v5713
      %vm6249 = vcmp.eq.f32.partialorder %v6248, 8.507059e+37
      %v6250 = vand.u32 %v5713, 2147483648
      %v6251 = vor.u32 1.1754944e-38, %v6250
      %v6252 = vsel %vm6249, %v6251, %v6247
      %v6253 = vmul.f32 1.0, %v6252
      %v6254 = vrcp.pop %v5714
      %v6255 = vmul.f32 %v5714, %v6254
      %v6256 = vsub.f32 1.0, %v6255
      %v6257 = vmul.f32 %v6254, %v6256
      %v6258 = vadd.f32 %v6254, %v6257
      %vm6259 = vweird.f32 %v5714
      %vm6260 = vweird.f32 %v6254
      %vm6261 = vmor %vm6259, %vm6260
      %v6262 = vsel %vm6261, %v6254, %v6258
      %v6263 = vand.u32 2147483647, %v5714
      %vm6264 = vcmp.eq.f32.partialorder %v6263, 8.507059e+37
      %v6265 = vand.u32 %v5714, 2147483648
      %v6266 = vor.u32 1.1754944e-38, %v6265
      %v6267 = vsel %vm6264, %v6266, %v6262
      %v6268 = vmul.f32 1.0, %v6267
      %v6269 = vrcp.pop %v5715
      %v6270 = vmul.f32 %v5715, %v6269
      %v6271 = vsub.f32 1.0, %v6270
      %v6272 = vmul.f32 %v6269, %v6271
      %v6273 = vadd.f32 %v6269, %v6272
      %vm6274 = vweird.f32 %v5715
      %vm6275 = vweird.f32 %v6269
      %vm6276 = vmor %vm6274, %vm6275
      %v6277 = vsel %vm6276, %v6269, %v6273
      %v6278 = vand.u32 2147483647, %v5715
      %vm6279 = vcmp.eq.f32.partialorder %v6278, 8.507059e+37
      %v6280 = vand.u32 %v5715, 2147483648
      %v6281 = vor.u32 1.1754944e-38, %v6280
      %v6282 = vsel %vm6279, %v6281, %v6277
      %v6283 = vmul.f32 1.0, %v6282
      %v6284 = vrcp.pop %v5716
      %v6285 = vmul.f32 %v5716, %v6284
      %v6286 = vsub.f32 1.0, %v6285
      %v6287 = vmul.f32 %v6284, %v6286
      %v6288 = vadd.f32 %v6284, %v6287
      %vm6289 = vweird.f32 %v5716
      %vm6290 = vweird.f32 %v6284
      %vm6291 = vmor %vm6289, %vm6290
      %v6292 = vsel %vm6291, %v6284, %v6288
      %v6293 = vand.u32 2147483647, %v5716
      %vm6294 = vcmp.eq.f32.partialorder %v6293, 8.507059e+37
      %v6295 = vand.u32 %v5716, 2147483648
      %v6296 = vor.u32 1.1754944e-38, %v6295
      %v6297 = vsel %vm6294, %v6296, %v6292
      %v6298 = vmul.f32 1.0, %v6297
      %v6299 = vrcp.pop %v5717
      %v6300 = vmul.f32 %v5717, %v6299
      %v6301 = vsub.f32 1.0, %v6300
      %v6302 = vmul.f32 %v6299, %v6301
      %v6303 = vadd.f32 %v6299, %v6302
      %vm6304 = vweird.f32 %v5717
      %vm6305 = vweird.f32 %v6299
      %vm6306 = vmor %vm6304, %vm6305
      %v6307 = vsel %vm6306, %v6299, %v6303
      %v6308 = vand.u32 2147483647, %v5717
      %vm6309 = vcmp.eq.f32.partialorder %v6308, 8.507059e+37
      %v6310 = vand.u32 %v5717, 2147483648
      %v6311 = vor.u32 1.1754944e-38, %v6310
      %v6312 = vsel %vm6309, %v6311, %v6307
      %v6313 = vmul.f32 1.0, %v6312
      %v6314 = vrcp.pop %v5718
      %v6315 = vmul.f32 %v5718, %v6314
      %v6316 = vsub.f32 1.0, %v6315
      %v6317 = vmul.f32 %v6314, %v6316
      %v6318 = vadd.f32 %v6314, %v6317
      %vm6319 = vweird.f32 %v5718
      %vm6320 = vweird.f32 %v6314
      %vm6321 = vmor %vm6319, %vm6320
      %v6322 = vsel %vm6321, %v6314, %v6318
      %v6323 = vand.u32 2147483647, %v5718
      %vm6324 = vcmp.eq.f32.partialorder %v6323, 8.507059e+37
      %v6325 = vand.u32 %v5718, 2147483648
      %v6326 = vor.u32 1.1754944e-38, %v6325
      %v6327 = vsel %vm6324, %v6326, %v6322
      %v6328 = vmul.f32 1.0, %v6327
      %v6329 = vrcp.pop %v5719
      %v6330 = vmul.f32 %v5719, %v6329
      %v6331 = vsub.f32 1.0, %v6330
      %v6332 = vmul.f32 %v6329, %v6331
      %v6333 = vadd.f32 %v6329, %v6332
      %vm6334 = vweird.f32 %v5719
      %vm6335 = vweird.f32 %v6329
      %vm6336 = vmor %vm6334, %vm6335
      %v6337 = vsel %vm6336, %v6329, %v6333
      %v6338 = vand.u32 2147483647, %v5719
      %vm6339 = vcmp.eq.f32.partialorder %v6338, 8.507059e+37
      %v6340 = vand.u32 %v5719, 2147483648
      %v6341 = vor.u32 1.1754944e-38, %v6340
      %v6342 = vsel %vm6339, %v6341, %v6337
      %v6343 = vmul.f32 1.0, %v6342
      %v6344 = vrcp.pop %v5720
      %v6345 = vmul.f32 %v5720, %v6344
      %v6346 = vsub.f32 1.0, %v6345
      %v6347 = vmul.f32 %v6344, %v6346
      %v6348 = vadd.f32 %v6344, %v6347
      %vm6349 = vweird.f32 %v5720
      %vm6350 = vweird.f32 %v6344
      %vm6351 = vmor %vm6349, %vm6350
      %v6352 = vsel %vm6351, %v6344, %v6348
      %v6353 = vand.u32 2147483647, %v5720
      %vm6354 = vcmp.eq.f32.partialorder %v6353, 8.507059e+37
      %v6355 = vand.u32 %v5720, 2147483648
      %v6356 = vor.u32 1.1754944e-38, %v6355
      %v6357 = vsel %vm6354, %v6356, %v6352
      %v6358 = vmul.f32 1.0, %v6357
      %v6359 = vrcp.pop %v5721
      %v6360 = vmul.f32 %v5721, %v6359
      %v6361 = vsub.f32 1.0, %v6360
      %v6362 = vmul.f32 %v6359, %v6361
      %v6363 = vadd.f32 %v6359, %v6362
      %vm6364 = vweird.f32 %v5721
      %vm6365 = vweird.f32 %v6359
      %vm6366 = vmor %vm6364, %vm6365
      %v6367 = vsel %vm6366, %v6359, %v6363
      %v6368 = vand.u32 2147483647, %v5721
      %vm6369 = vcmp.eq.f32.partialorder %v6368, 8.507059e+37
      %v6370 = vand.u32 %v5721, 2147483648
      %v6371 = vor.u32 1.1754944e-38, %v6370
      %v6372 = vsel %vm6369, %v6371, %v6367
      %v6373 = vmul.f32 1.0, %v6372
      %v6374 = vrcp.pop %v5722
      %v6375 = vmul.f32 %v5722, %v6374
      %v6376 = vsub.f32 1.0, %v6375
      %v6377 = vmul.f32 %v6374, %v6376
      %v6378 = vadd.f32 %v6374, %v6377
      %vm6379 = vweird.f32 %v5722
      %vm6380 = vweird.f32 %v6374
      %vm6381 = vmor %vm6379, %vm6380
      %v6382 = vsel %vm6381, %v6374, %v6378
      %v6383 = vand.u32 2147483647, %v5722
      %vm6384 = vcmp.eq.f32.partialorder %v6383, 8.507059e+37
      %v6385 = vand.u32 %v5722, 2147483648
      %v6386 = vor.u32 1.1754944e-38, %v6385
      %v6387 = vsel %vm6384, %v6386, %v6382
      %v6388 = vmul.f32 1.0, %v6387
      %v6389 = vrcp.pop %v5723
      %v6390 = vmul.f32 %v5723, %v6389
      %v6391 = vsub.f32 1.0, %v6390
      %v6392 = vmul.f32 %v6389, %v6391
      %v6393 = vadd.f32 %v6389, %v6392
      %vm6394 = vweird.f32 %v5723
      %vm6395 = vweird.f32 %v6389
      %vm6396 = vmor %vm6394, %vm6395
      %v6397 = vsel %vm6396, %v6389, %v6393
      %v6398 = vand.u32 2147483647, %v5723
      %vm6399 = vcmp.eq.f32.partialorder %v6398, 8.507059e+37
      %v6400 = vand.u32 %v5723, 2147483648
      %v6401 = vor.u32 1.1754944e-38, %v6400
      %v6402 = vsel %vm6399, %v6401, %v6397
      %v6403 = vmul.f32 1.0, %v6402
      %v6404 = vrcp.pop %v5724
      %v6405 = vmul.f32 %v5724, %v6404
      %v6406 = vsub.f32 1.0, %v6405
      %v6407 = vmul.f32 %v6404, %v6406
      %v6408 = vadd.f32 %v6404, %v6407
      %vm6409 = vweird.f32 %v5724
      %vm6410 = vweird.f32 %v6404
      %vm6411 = vmor %vm6409, %vm6410
      %v6412 = vsel %vm6411, %v6404, %v6408
      %v6413 = vand.u32 2147483647, %v5724
      %vm6414 = vcmp.eq.f32.partialorder %v6413, 8.507059e+37
      %v6415 = vand.u32 %v5724, 2147483648
      %v6416 = vor.u32 1.1754944e-38, %v6415
      %v6417 = vsel %vm6414, %v6416, %v6412
      %v6418 = vmul.f32 1.0, %v6417
      %v6419 = vrcp.pop %v5725
      %v6420 = vmul.f32 %v5725, %v6419
      %v6421 = vsub.f32 1.0, %v6420
      %v6422 = vmul.f32 %v6419, %v6421
      %v6423 = vadd.f32 %v6419, %v6422
      %vm6424 = vweird.f32 %v5725
      %vm6425 = vweird.f32 %v6419
      %vm6426 = vmor %vm6424, %vm6425
      %v6427 = vsel %vm6426, %v6419, %v6423
      %v6428 = vand.u32 2147483647, %v5725
      %vm6429 = vcmp.eq.f32.partialorder %v6428, 8.507059e+37
      %v6430 = vand.u32 %v5725, 2147483648
      %v6431 = vor.u32 1.1754944e-38, %v6430
      %v6432 = vsel %vm6429, %v6431, %v6427
      %v6433 = vmul.f32 1.0, %v6432
      %v6434 = vrcp.pop %v5726
      %v6435 = vmul.f32 %v5726, %v6434
      %v6436 = vsub.f32 1.0, %v6435
      %v6437 = vmul.f32 %v6434, %v6436
      %v6438 = vadd.f32 %v6434, %v6437
      %vm6439 = vweird.f32 %v5726
      %vm6440 = vweird.f32 %v6434
      %vm6441 = vmor %vm6439, %vm6440
      %v6442 = vsel %vm6441, %v6434, %v6438
      %v6443 = vand.u32 2147483647, %v5726
      %vm6444 = vcmp.eq.f32.partialorder %v6443, 8.507059e+37
      %v6445 = vand.u32 %v5726, 2147483648
      %v6446 = vor.u32 1.1754944e-38, %v6445
      %v6447 = vsel %vm6444, %v6446, %v6442
      %v6448 = vmul.f32 1.0, %v6447
      %v6449 = vrcp.pop %v5727
      %v6450 = vmul.f32 %v5727, %v6449
      %v6451 = vsub.f32 1.0, %v6450
      %v6452 = vmul.f32 %v6449, %v6451
      %v6453 = vadd.f32 %v6449, %v6452
      %vm6454 = vweird.f32 %v5727
      %vm6455 = vweird.f32 %v6449
      %vm6456 = vmor %vm6454, %vm6455
      %v6457 = vsel %vm6456, %v6449, %v6453
      %v6458 = vand.u32 2147483647, %v5727
      %vm6459 = vcmp.eq.f32.partialorder %v6458, 8.507059e+37
      %v6460 = vand.u32 %v5727, 2147483648
      %v6461 = vor.u32 1.1754944e-38, %v6460
      %v6462 = vsel %vm6459, %v6461, %v6457
      %v6463 = vmul.f32 1.0, %v6462
      %v6464 = vrcp.pop %v5728
      %v6465 = vmul.f32 %v5728, %v6464
      %v6466 = vsub.f32 1.0, %v6465
      %v6467 = vmul.f32 %v6464, %v6466
      %v6468 = vadd.f32 %v6464, %v6467
      %vm6469 = vweird.f32 %v5728
      %vm6470 = vweird.f32 %v6464
      %vm6471 = vmor %vm6469, %vm6470
      %v6472 = vsel %vm6471, %v6464, %v6468
      %v6473 = vand.u32 2147483647, %v5728
      %vm6474 = vcmp.eq.f32.partialorder %v6473, 8.507059e+37
      %v6475 = vand.u32 %v5728, 2147483648
      %v6476 = vor.u32 1.1754944e-38, %v6475
      %v6477 = vsel %vm6474, %v6476, %v6472
      %v6478 = vmul.f32 1.0, %v6477
      %v6479 = vrcp.pop %v5729
      %v6480 = vmul.f32 %v5729, %v6479
      %v6481 = vsub.f32 1.0, %v6480
      %v6482 = vmul.f32 %v6479, %v6481
      %v6483 = vadd.f32 %v6479, %v6482
      %vm6484 = vweird.f32 %v5729
      %vm6485 = vweird.f32 %v6479
      %vm6486 = vmor %vm6484, %vm6485
      %v6487 = vsel %vm6486, %v6479, %v6483
      %v6488 = vand.u32 2147483647, %v5729
      %vm6489 = vcmp.eq.f32.partialorder %v6488, 8.507059e+37
      %v6490 = vand.u32 %v5729, 2147483648
      %v6491 = vor.u32 1.1754944e-38, %v6490
      %v6492 = vsel %vm6489, %v6491, %v6487
      %v6493 = vmul.f32 1.0, %v6492
      %v6494 = vrcp.pop %v5730
      %v6495 = vmul.f32 %v5730, %v6494
      %v6496 = vsub.f32 1.0, %v6495
      %v6497 = vmul.f32 %v6494, %v6496
      %v6498 = vadd.f32 %v6494, %v6497
      %vm6499 = vweird.f32 %v5730
      %vm6500 = vweird.f32 %v6494
      %vm6501 = vmor %vm6499, %vm6500
      %v6502 = vsel %vm6501, %v6494, %v6498
      %v6503 = vand.u32 2147483647, %v5730
      %vm6504 = vcmp.eq.f32.partialorder %v6503, 8.507059e+37
      %v6505 = vand.u32 %v5730, 2147483648
      %v6506 = vor.u32 1.1754944e-38, %v6505
      %v6507 = vsel %vm6504, %v6506, %v6502
      %v6508 = vmul.f32 1.0, %v6507
      %v6509 = vrcp.pop %v5731
      %v6510 = vmul.f32 %v5731, %v6509
      %v6511 = vsub.f32 1.0, %v6510
      %v6512 = vmul.f32 %v6509, %v6511
      %v6513 = vadd.f32 %v6509, %v6512
      %vm6514 = vweird.f32 %v5731
      %vm6515 = vweird.f32 %v6509
      %vm6516 = vmor %vm6514, %vm6515
      %v6517 = vsel %vm6516, %v6509, %v6513
      %v6518 = vand.u32 2147483647, %v5731
      %vm6519 = vcmp.eq.f32.partialorder %v6518, 8.507059e+37
      %v6520 = vand.u32 %v5731, 2147483648
      %v6521 = vor.u32 1.1754944e-38, %v6520
      %v6522 = vsel %vm6519, %v6521, %v6517
      %v6523 = vmul.f32 1.0, %v6522
      %v6524 = vrcp.pop %v5732
      %v6525 = vmul.f32 %v5732, %v6524
      %v6526 = vsub.f32 1.0, %v6525
      %v6527 = vmul.f32 %v6524, %v6526
      %v6528 = vadd.f32 %v6524, %v6527
      %vm6529 = vweird.f32 %v5732
      %vm6530 = vweird.f32 %v6524
      %vm6531 = vmor %vm6529, %vm6530
      %v6532 = vsel %vm6531, %v6524, %v6528
      %v6533 = vand.u32 2147483647, %v5732
      %vm6534 = vcmp.eq.f32.partialorder %v6533, 8.507059e+37
      %v6535 = vand.u32 %v5732, 2147483648
      %v6536 = vor.u32 1.1754944e-38, %v6535
      %v6537 = vsel %vm6534, %v6536, %v6532
      %v6538 = vmul.f32 1.0, %v6537
      %v6539 = vrcp.pop %v5733
      %v6540 = vmul.f32 %v5733, %v6539
      %v6541 = vsub.f32 1.0, %v6540
      %v6542 = vmul.f32 %v6539, %v6541
      %v6543 = vadd.f32 %v6539, %v6542
      %vm6544 = vweird.f32 %v5733
      %vm6545 = vweird.f32 %v6539
      %vm6546 = vmor %vm6544, %vm6545
      %v6547 = vsel %vm6546, %v6539, %v6543
      %v6548 = vand.u32 2147483647, %v5733
      %vm6549 = vcmp.eq.f32.partialorder %v6548, 8.507059e+37
      %v6550 = vand.u32 %v5733, 2147483648
      %v6551 = vor.u32 1.1754944e-38, %v6550
      %v6552 = vsel %vm6549, %v6551, %v6547
      %v6553 = vmul.f32 1.0, %v6552
      %v6554 = vrcp.pop %v5734
      %v6555 = vmul.f32 %v5734, %v6554
      %v6556 = vsub.f32 1.0, %v6555
      %v6557 = vmul.f32 %v6554, %v6556
      %v6558 = vadd.f32 %v6554, %v6557
      %vm6559 = vweird.f32 %v5734
      %vm6560 = vweird.f32 %v6554
      %vm6561 = vmor %vm6559, %vm6560
      %v6562 = vsel %vm6561, %v6554, %v6558
      %v6563 = vand.u32 2147483647, %v5734
      %vm6564 = vcmp.eq.f32.partialorder %v6563, 8.507059e+37
      %v6565 = vand.u32 %v5734, 2147483648
      %v6566 = vor.u32 1.1754944e-38, %v6565
      %v6567 = vsel %vm6564, %v6566, %v6562
      %v6568 = vmul.f32 1.0, %v6567
      %v6569 = vrcp.pop %v5735
      %v6570 = vmul.f32 %v5735, %v6569
      %v6571 = vsub.f32 1.0, %v6570
      %v6572 = vmul.f32 %v6569, %v6571
      %v6573 = vadd.f32 %v6569, %v6572
      %vm6574 = vweird.f32 %v5735
      %vm6575 = vweird.f32 %v6569
      %vm6576 = vmor %vm6574, %vm6575
      %v6577 = vsel %vm6576, %v6569, %v6573
      %v6578 = vand.u32 2147483647, %v5735
      %vm6579 = vcmp.eq.f32.partialorder %v6578, 8.507059e+37
      %v6580 = vand.u32 %v5735, 2147483648
      %v6581 = vor.u32 1.1754944e-38, %v6580
      %v6582 = vsel %vm6579, %v6581, %v6577
      %v6583 = vmul.f32 1.0, %v6582
      %v6584 = vrcp.pop %v5736
      %v6585 = vmul.f32 %v5736, %v6584
      %v6586 = vsub.f32 1.0, %v6585
      %v6587 = vmul.f32 %v6584, %v6586
      %v6588 = vadd.f32 %v6584, %v6587
      %vm6589 = vweird.f32 %v5736
      %vm6590 = vweird.f32 %v6584
      %vm6591 = vmor %vm6589, %vm6590
      %v6592 = vsel %vm6591, %v6584, %v6588
      %v6593 = vand.u32 2147483647, %v5736
      %vm6594 = vcmp.eq.f32.partialorder %v6593, 8.507059e+37
      %v6595 = vand.u32 %v5736, 2147483648
      %v6596 = vor.u32 1.1754944e-38, %v6595
      %v6597 = vsel %vm6594, %v6596, %v6592
      %v6598 = vmul.f32 1.0, %v6597
      %v6599 = vrcp.pop %v5737
      %v6600 = vmul.f32 %v5737, %v6599
      %v6601 = vsub.f32 1.0, %v6600
      %v6602 = vmul.f32 %v6599, %v6601
      %v6603 = vadd.f32 %v6599, %v6602
      %vm6604 = vweird.f32 %v5737
      %vm6605 = vweird.f32 %v6599
      %vm6606 = vmor %vm6604, %vm6605
      %v6607 = vsel %vm6606, %v6599, %v6603
      %v6608 = vand.u32 2147483647, %v5737
      %vm6609 = vcmp.eq.f32.partialorder %v6608, 8.507059e+37
      %v6610 = vand.u32 %v5737, 2147483648
      %v6611 = vor.u32 1.1754944e-38, %v6610
      %v6612 = vsel %vm6609, %v6611, %v6607
      %v6613 = vmul.f32 1.0, %v6612
      %v6614 = vrcp.pop %v5738
      %v6615 = vmul.f32 %v5738, %v6614
      %v6616 = vsub.f32 1.0, %v6615
      %v6617 = vmul.f32 %v6614, %v6616
      %v6618 = vadd.f32 %v6614, %v6617
      %vm6619 = vweird.f32 %v5738
      %vm6620 = vweird.f32 %v6614
      %vm6621 = vmor %vm6619, %vm6620
      %v6622 = vsel %vm6621, %v6614, %v6618
      %v6623 = vand.u32 2147483647, %v5738
      %vm6624 = vcmp.eq.f32.partialorder %v6623, 8.507059e+37
      %v6625 = vand.u32 %v5738, 2147483648
      %v6626 = vor.u32 1.1754944e-38, %v6625
      %v6627 = vsel %vm6624, %v6626, %v6622
      %v6628 = vmul.f32 1.0, %v6627
      %v6629 = vrcp.pop %v5739
      %v6630 = vmul.f32 %v5739, %v6629
      %v6631 = vsub.f32 1.0, %v6630
      %v6632 = vmul.f32 %v6629, %v6631
      %v6633 = vadd.f32 %v6629, %v6632
      %vm6634 = vweird.f32 %v5739
      %vm6635 = vweird.f32 %v6629
      %vm6636 = vmor %vm6634, %vm6635
      %v6637 = vsel %vm6636, %v6629, %v6633
      %v6638 = vand.u32 2147483647, %v5739
      %vm6639 = vcmp.eq.f32.partialorder %v6638, 8.507059e+37
      %v6640 = vand.u32 %v5739, 2147483648
      %v6641 = vor.u32 1.1754944e-38, %v6640
      %v6642 = vsel %vm6639, %v6641, %v6637
      %v6643 = vmul.f32 1.0, %v6642
      %v6644 = vrcp.pop %v5740
      %v6645 = vmul.f32 %v5740, %v6644
      %v6646 = vsub.f32 1.0, %v6645
      %v6647 = vmul.f32 %v6644, %v6646
      %v6648 = vadd.f32 %v6644, %v6647
      %vm6649 = vweird.f32 %v5740
      %vm6650 = vweird.f32 %v6644
      %vm6651 = vmor %vm6649, %vm6650
      %v6652 = vsel %vm6651, %v6644, %v6648
      %v6653 = vand.u32 2147483647, %v5740
      %vm6654 = vcmp.eq.f32.partialorder %v6653, 8.507059e+37
      %v6655 = vand.u32 %v5740, 2147483648
      %v6656 = vor.u32 1.1754944e-38, %v6655
      %v6657 = vsel %vm6654, %v6656, %v6652
      %v6658 = vmul.f32 1.0, %v6657
      %v6659 = vrcp.pop %v5741
      %v6660 = vmul.f32 %v5741, %v6659
      %v6661 = vsub.f32 1.0, %v6660
      %v6662 = vmul.f32 %v6659, %v6661
      %v6663 = vadd.f32 %v6659, %v6662
      %vm6664 = vweird.f32 %v5741
      %vm6665 = vweird.f32 %v6659
      %vm6666 = vmor %vm6664, %vm6665
      %v6667 = vsel %vm6666, %v6659, %v6663
      %v6668 = vand.u32 2147483647, %v5741
      %vm6669 = vcmp.eq.f32.partialorder %v6668, 8.507059e+37
      %v6670 = vand.u32 %v5741, 2147483648
      %v6671 = vor.u32 1.1754944e-38, %v6670
      %v6672 = vsel %vm6669, %v6671, %v6667
      %v6673 = vmul.f32 1.0, %v6672
      %v6674 = vrcp.pop %v5742
      %v6675 = vmul.f32 %v5742, %v6674
      %v6676 = vsub.f32 1.0, %v6675
      %v6677 = vmul.f32 %v6674, %v6676
      %v6678 = vadd.f32 %v6674, %v6677
      %vm6679 = vweird.f32 %v5742
      %vm6680 = vweird.f32 %v6674
      %vm6681 = vmor %vm6679, %vm6680
      %v6682 = vsel %vm6681, %v6674, %v6678
      %v6683 = vand.u32 2147483647, %v5742
      %vm6684 = vcmp.eq.f32.partialorder %v6683, 8.507059e+37
      %v6685 = vand.u32 %v5742, 2147483648
      %v6686 = vor.u32 1.1754944e-38, %v6685
      %v6687 = vsel %vm6684, %v6686, %v6682
      %v6688 = vmul.f32 1.0, %v6687
      %v6689 = vrcp.pop %v5743
      %v6690 = vmul.f32 %v5743, %v6689
      %v6691 = vsub.f32 1.0, %v6690
      %v6692 = vmul.f32 %v6689, %v6691
      %v6693 = vadd.f32 %v6689, %v6692
      %vm6694 = vweird.f32 %v5743
      %vm6695 = vweird.f32 %v6689
      %vm6696 = vmor %vm6694, %vm6695
      %v6697 = vsel %vm6696, %v6689, %v6693
      %v6698 = vand.u32 2147483647, %v5743
      %vm6699 = vcmp.eq.f32.partialorder %v6698, 8.507059e+37
      %v6700 = vand.u32 %v5743, 2147483648
      %v6701 = vor.u32 1.1754944e-38, %v6700
      %v6702 = vsel %vm6699, %v6701, %v6697
      %v6703 = vmul.f32 1.0, %v6702
      %vm6704 = vcmask 23552
      %6705 = vst.msk [vmem:[%s466] sm:$0xff] %vm6704, %v5758
      %6706 = vst.msk [vmem:[%s466 + $0x8] sm:$0xff] %vm6704, %v5773
      %6707 = vst.msk [vmem:[%s466 + $0x10] sm:$0xff] %vm6704, %v5788
      %6708 = vst.msk [vmem:[%s466 + $0x18] sm:$0xff] %vm6704, %v5803
      %6709 = vst.msk [vmem:[%s466 + $0x20] sm:$0xff] %vm6704, %v5818
      %6710 = vst.msk [vmem:[%s466 + $0x28] sm:$0xff] %vm6704, %v5833
      %6711 = vst.msk [vmem:[%s466 + $0x30] sm:$0xff] %vm6704, %v5848
      %6712 = vst.msk [vmem:[%s466 + $0x38] sm:$0xff] %vm6704, %v5863
      %6713 = vst.msk [vmem:[%s466 + $0x40] sm:$0xff] %vm6704, %v5878
      %6714 = vst.msk [vmem:[%s466 + $0x48] sm:$0xff] %vm6704, %v5893
      %6715 = vst.msk [vmem:[%s466 + $0x50] sm:$0xff] %vm6704, %v5908
      %6716 = vst.msk [vmem:[%s466 + $0x58] sm:$0xff] %vm6704, %v5923
      %6717 = vst.msk [vmem:[%s466 + $0x60] sm:$0xff] %vm6704, %v5938
      %6718 = vst.msk [vmem:[%s466 + $0x68] sm:$0xff] %vm6704, %v5953
      %6719 = vst.msk [vmem:[%s466 + $0x70] sm:$0xff] %vm6704, %v5968
      %6720 = vst.msk [vmem:[%s466 + $0x78] sm:$0xff] %vm6704, %v5983
      %6721 = vst.msk [vmem:[%s466 + $0x80] sm:$0xff] %vm6704, %v5998
      %6722 = vst.msk [vmem:[%s466 + $0x88] sm:$0xff] %vm6704, %v6013
      %6723 = vst.msk [vmem:[%s466 + $0x90] sm:$0xff] %vm6704, %v6028
      %6724 = vst.msk [vmem:[%s466 + $0x98] sm:$0xff] %vm6704, %v6043
      %6725 = vst.msk [vmem:[%s466 + $0xa0] sm:$0xff] %vm6704, %v6058
      %6726 = vst.msk [vmem:[%s466 + $0xa8] sm:$0xff] %vm6704, %v6073
      %6727 = vst.msk [vmem:[%s466 + $0xb0] sm:$0xff] %vm6704, %v6088
      %6728 = vst.msk [vmem:[%s466 + $0xb8] sm:$0xff] %vm6704, %v6103
      %6729 = vst.msk [vmem:[%s466 + $0xc0] sm:$0xff] %vm6704, %v6118
      %6730 = vst.msk [vmem:[%s466 + $0xc8] sm:$0xff] %vm6704, %v6133
      %6731 = vst.msk [vmem:[%s466 + $0xd0] sm:$0xff] %vm6704, %v6148
      %6732 = vst.msk [vmem:[%s466 + $0xd8] sm:$0xff] %vm6704, %v6163
      %6733 = vst.msk [vmem:[%s466 + $0xe0] sm:$0xff] %vm6704, %v6178
      %6734 = vst.msk [vmem:[%s466 + $0xe8] sm:$0xff] %vm6704, %v6193
      %6735 = vst.msk [vmem:[%s466 + $0xf0] sm:$0xff] %vm6704, %v6208
      %6736 = vst.msk [vmem:[%s466 + $0xf8] sm:$0xff] %vm6704, %v6223
      %6737 = vst.msk [vmem:[%s466 + $0x100] sm:$0xff] %vm6704, %v6238
      %6738 = vst.msk [vmem:[%s466 + $0x108] sm:$0xff] %vm6704, %v6253
      %6739 = vst.msk [vmem:[%s466 + $0x110] sm:$0xff] %vm6704, %v6268
      %6740 = vst.msk [vmem:[%s466 + $0x118] sm:$0xff] %vm6704, %v6283
      %6741 = vst.msk [vmem:[%s466 + $0x120] sm:$0xff] %vm6704, %v6298
      %6742 = vst.msk [vmem:[%s466 + $0x128] sm:$0xff] %vm6704, %v6313
      %6743 = vst.msk [vmem:[%s466 + $0x130] sm:$0xff] %vm6704, %v6328
      %6744 = vst.msk [vmem:[%s466 + $0x138] sm:$0xff] %vm6704, %v6343
      %6745 = vst.msk [vmem:[%s466 + $0x140] sm:$0xff] %vm6704, %v6358
      %6746 = vst.msk [vmem:[%s466 + $0x148] sm:$0xff] %vm6704, %v6373
      %6747 = vst.msk [vmem:[%s466 + $0x150] sm:$0xff] %vm6704, %v6388
      %6748 = vst.msk [vmem:[%s466 + $0x158] sm:$0xff] %vm6704, %v6403
      %6749 = vst.msk [vmem:[%s466 + $0x160] sm:$0xff] %vm6704, %v6418
      %6750 = vst.msk [vmem:[%s466 + $0x168] sm:$0xff] %vm6704, %v6433
      %6751 = vst.msk [vmem:[%s466 + $0x170] sm:$0xff] %vm6704, %v6448
      %6752 = vst.msk [vmem:[%s466 + $0x178] sm:$0xff] %vm6704, %v6463
      %6753 = vst.msk [vmem:[%s466 + $0x180] sm:$0xff] %vm6704, %v6478
      %6754 = vst.msk [vmem:[%s466 + $0x188] sm:$0xff] %vm6704, %v6493
      %6755 = vst.msk [vmem:[%s466 + $0x190] sm:$0xff] %vm6704, %v6508
      %6756 = vst.msk [vmem:[%s466 + $0x198] sm:$0xff] %vm6704, %v6523
      %6757 = vst.msk [vmem:[%s466 + $0x1a0] sm:$0xff] %vm6704, %v6538
      %6758 = vst.msk [vmem:[%s466 + $0x1a8] sm:$0xff] %vm6704, %v6553
      %6759 = vst.msk [vmem:[%s466 + $0x1b0] sm:$0xff] %vm6704, %v6568
      %6760 = vst.msk [vmem:[%s466 + $0x1b8] sm:$0xff] %vm6704, %v6583
      %6761 = vst.msk [vmem:[%s466 + $0x1c0] sm:$0xff] %vm6704, %v6598
      %6762 = vst.msk [vmem:[%s466 + $0x1c8] sm:$0xff] %vm6704, %v6613
      %6763 = vst.msk [vmem:[%s466 + $0x1d0] sm:$0xff] %vm6704, %v6628
      %6764 = vst.msk [vmem:[%s466 + $0x1d8] sm:$0xff] %vm6704, %v6643
      %6765 = vst.msk [vmem:[%s466 + $0x1e0] sm:$0xff] %vm6704, %v6658
      %6766 = vst.msk [vmem:[%s466 + $0x1e8] sm:$0xff] %vm6704, %v6673
      %6767 = vst.msk [vmem:[%s466 + $0x1f0] sm:$0xff] %vm6704, %v6688
      %6768 = vst.msk [vmem:[%s466 + $0x1f8] sm:$0xff] %vm6704, %v6703
      %6833 = vrot.lane.b32.xlu0 %v4213, 3
      %v6834 = vpop.permute.xlu0 %6833
      %6835 = vrot.lane.b32.xlu0 %v4214, 3
      %v6836 = vpop.permute.xlu0 %6835
      %6837 = vrot.lane.b32.xlu0 %v4215, 3
      %v6838 = vpop.permute.xlu0 %6837
      %6839 = vrot.lane.b32.xlu0 %v4216, 3
      %v6840 = vpop.permute.xlu0 %6839
      %6841 = vrot.lane.b32.xlu0 %v4217, 3
      %v6842 = vpop.permute.xlu0 %6841
      %6843 = vrot.lane.b32.xlu0 %v4218, 3
      %v6844 = vpop.permute.xlu0 %6843
      %6845 = vrot.lane.b32.xlu0 %v4219, 3
      %v6846 = vpop.permute.xlu0 %6845
      %6847 = vrot.lane.b32.xlu0 %v4220, 3
      %v6848 = vpop.permute.xlu0 %6847
      %6849 = vrot.lane.b32.xlu0 %v4221, 3
      %v6850 = vpop.permute.xlu0 %6849
      %6851 = vrot.lane.b32.xlu0 %v4222, 3
      %v6852 = vpop.permute.xlu0 %6851
      %6853 = vrot.lane.b32.xlu0 %v4223, 3
      %v6854 = vpop.permute.xlu0 %6853
      %6855 = vrot.lane.b32.xlu0 %v4224, 3
      %v6856 = vpop.permute.xlu0 %6855
      %6857 = vrot.lane.b32.xlu0 %v4225, 3
      %v6858 = vpop.permute.xlu0 %6857
      %6859 = vrot.lane.b32.xlu0 %v4226, 3
      %v6860 = vpop.permute.xlu0 %6859
      %6861 = vrot.lane.b32.xlu0 %v4227, 3
      %v6862 = vpop.permute.xlu0 %6861
      %6863 = vrot.lane.b32.xlu0 %v4228, 3
      %v6864 = vpop.permute.xlu0 %6863
      %6865 = vrot.lane.b32.xlu0 %v4229, 3
      %v6866 = vpop.permute.xlu0 %6865
      %6867 = vrot.lane.b32.xlu0 %v4230, 3
      %v6868 = vpop.permute.xlu0 %6867
      %6869 = vrot.lane.b32.xlu0 %v4231, 3
      %v6870 = vpop.permute.xlu0 %6869
      %6871 = vrot.lane.b32.xlu0 %v4232, 3
      %v6872 = vpop.permute.xlu0 %6871
      %6873 = vrot.lane.b32.xlu0 %v4233, 3
      %v6874 = vpop.permute.xlu0 %6873
      %6875 = vrot.lane.b32.xlu0 %v4234, 3
      %v6876 = vpop.permute.xlu0 %6875
      %6877 = vrot.lane.b32.xlu0 %v4235, 3
      %v6878 = vpop.permute.xlu0 %6877
      %6879 = vrot.lane.b32.xlu0 %v4236, 3
      %v6880 = vpop.permute.xlu0 %6879
      %6881 = vrot.lane.b32.xlu0 %v4237, 3
      %v6882 = vpop.permute.xlu0 %6881
      %6883 = vrot.lane.b32.xlu0 %v4238, 3
      %v6884 = vpop.permute.xlu0 %6883
      %6885 = vrot.lane.b32.xlu0 %v4239, 3
      %v6886 = vpop.permute.xlu0 %6885
      %6887 = vrot.lane.b32.xlu0 %v4240, 3
      %v6888 = vpop.permute.xlu0 %6887
      %6889 = vrot.lane.b32.xlu0 %v4241, 3
      %v6890 = vpop.permute.xlu0 %6889
      %6891 = vrot.lane.b32.xlu0 %v4242, 3
      %v6892 = vpop.permute.xlu0 %6891
      %6893 = vrot.lane.b32.xlu0 %v4243, 3
      %v6894 = vpop.permute.xlu0 %6893
      %6895 = vrot.lane.b32.xlu0 %v4244, 3
      %v6896 = vpop.permute.xlu0 %6895
      %6897 = vrot.lane.b32.xlu0 %v4245, 3
      %v6898 = vpop.permute.xlu0 %6897
      %6899 = vrot.lane.b32.xlu0 %v4246, 3
      %v6900 = vpop.permute.xlu0 %6899
      %6901 = vrot.lane.b32.xlu0 %v4247, 3
      %v6902 = vpop.permute.xlu0 %6901
      %6903 = vrot.lane.b32.xlu0 %v4248, 3
      %v6904 = vpop.permute.xlu0 %6903
      %6905 = vrot.lane.b32.xlu0 %v4249, 3
      %v6906 = vpop.permute.xlu0 %6905
      %6907 = vrot.lane.b32.xlu0 %v4250, 3
      %v6908 = vpop.permute.xlu0 %6907
      %6909 = vrot.lane.b32.xlu0 %v4251, 3
      %v6910 = vpop.permute.xlu0 %6909
      %6911 = vrot.lane.b32.xlu0 %v4252, 3
      %v6912 = vpop.permute.xlu0 %6911
      %6913 = vrot.lane.b32.xlu0 %v4253, 3
      %v6914 = vpop.permute.xlu0 %6913
      %6915 = vrot.lane.b32.xlu0 %v4254, 3
      %v6916 = vpop.permute.xlu0 %6915
      %6917 = vrot.lane.b32.xlu0 %v4255, 3
      %v6918 = vpop.permute.xlu0 %6917
      %6919 = vrot.lane.b32.xlu0 %v4256, 3
      %v6920 = vpop.permute.xlu0 %6919
      %6921 = vrot.lane.b32.xlu0 %v4257, 3
      %v6922 = vpop.permute.xlu0 %6921
      %6923 = vrot.lane.b32.xlu0 %v4258, 3
      %v6924 = vpop.permute.xlu0 %6923
      %6925 = vrot.lane.b32.xlu0 %v4259, 3
      %v6926 = vpop.permute.xlu0 %6925
      %6927 = vrot.lane.b32.xlu0 %v4260, 3
      %v6928 = vpop.permute.xlu0 %6927
      %6929 = vrot.lane.b32.xlu0 %v4261, 3
      %v6930 = vpop.permute.xlu0 %6929
      %6931 = vrot.lane.b32.xlu0 %v4262, 3
      %v6932 = vpop.permute.xlu0 %6931
      %6933 = vrot.lane.b32.xlu0 %v4263, 3
      %v6934 = vpop.permute.xlu0 %6933
      %6935 = vrot.lane.b32.xlu0 %v4264, 3
      %v6936 = vpop.permute.xlu0 %6935
      %6937 = vrot.lane.b32.xlu0 %v4265, 3
      %v6938 = vpop.permute.xlu0 %6937
      %6939 = vrot.lane.b32.xlu0 %v4266, 3
      %v6940 = vpop.permute.xlu0 %6939
      %6941 = vrot.lane.b32.xlu0 %v4267, 3
      %v6942 = vpop.permute.xlu0 %6941
      %6943 = vrot.lane.b32.xlu0 %v4268, 3
      %v6944 = vpop.permute.xlu0 %6943
      %6945 = vrot.lane.b32.xlu0 %v4269, 3
      %v6946 = vpop.permute.xlu0 %6945
      %6947 = vrot.lane.b32.xlu0 %v4270, 3
      %v6948 = vpop.permute.xlu0 %6947
      %6949 = vrot.lane.b32.xlu0 %v4271, 3
      %v6950 = vpop.permute.xlu0 %6949
      %6951 = vrot.lane.b32.xlu0 %v4272, 3
      %v6952 = vpop.permute.xlu0 %6951
      %6953 = vrot.lane.b32.xlu0 %v4273, 3
      %v6954 = vpop.permute.xlu0 %6953
      %6955 = vrot.lane.b32.xlu0 %v4274, 3
      %v6956 = vpop.permute.xlu0 %6955
      %6957 = vrot.lane.b32.xlu0 %v4275, 3
      %v6958 = vpop.permute.xlu0 %6957
      %6959 = vrot.lane.b32.xlu0 %v4276, 3
      %v6960 = vpop.permute.xlu0 %6959
      %vm7025 = vcmask 31768
      %7026 = vst.msk [vmem:[%s466] sm:$0xff] %vm7025, %v6834
      %7027 = vst.msk [vmem:[%s466 + $0x8] sm:$0xff] %vm7025, %v6836
      %7028 = vst.msk [vmem:[%s466 + $0x10] sm:$0xff] %vm7025, %v6838
      %7029 = vst.msk [vmem:[%s466 + $0x18] sm:$0xff] %vm7025, %v6840
      %7030 = vst.msk [vmem:[%s466 + $0x20] sm:$0xff] %vm7025, %v6842
      %7031 = vst.msk [vmem:[%s466 + $0x28] sm:$0xff] %vm7025, %v6844
      %7032 = vst.msk [vmem:[%s466 + $0x30] sm:$0xff] %vm7025, %v6846
      %7033 = vst.msk [vmem:[%s466 + $0x38] sm:$0xff] %vm7025, %v6848
      %7034 = vst.msk [vmem:[%s466 + $0x40] sm:$0xff] %vm7025, %v6850
      %7035 = vst.msk [vmem:[%s466 + $0x48] sm:$0xff] %vm7025, %v6852
      %7036 = vst.msk [vmem:[%s466 + $0x50] sm:$0xff] %vm7025, %v6854
      %7037 = vst.msk [vmem:[%s466 + $0x58] sm:$0xff] %vm7025, %v6856
      %7038 = vst.msk [vmem:[%s466 + $0x60] sm:$0xff] %vm7025, %v6858
      %7039 = vst.msk [vmem:[%s466 + $0x68] sm:$0xff] %vm7025, %v6860
      %7040 = vst.msk [vmem:[%s466 + $0x70] sm:$0xff] %vm7025, %v6862
      %7041 = vst.msk [vmem:[%s466 + $0x78] sm:$0xff] %vm7025, %v6864
      %7042 = vst.msk [vmem:[%s466 + $0x80] sm:$0xff] %vm7025, %v6866
      %7043 = vst.msk [vmem:[%s466 + $0x88] sm:$0xff] %vm7025, %v6868
      %7044 = vst.msk [vmem:[%s466 + $0x90] sm:$0xff] %vm7025, %v6870
      %7045 = vst.msk [vmem:[%s466 + $0x98] sm:$0xff] %vm7025, %v6872
      %7046 = vst.msk [vmem:[%s466 + $0xa0] sm:$0xff] %vm7025, %v6874
      %7047 = vst.msk [vmem:[%s466 + $0xa8] sm:$0xff] %vm7025, %v6876
      %7048 = vst.msk [vmem:[%s466 + $0xb0] sm:$0xff] %vm7025, %v6878
      %7049 = vst.msk [vmem:[%s466 + $0xb8] sm:$0xff] %vm7025, %v6880
      %7050 = vst.msk [vmem:[%s466 + $0xc0] sm:$0xff] %vm7025, %v6882
      %7051 = vst.msk [vmem:[%s466 + $0xc8] sm:$0xff] %vm7025, %v6884
      %7052 = vst.msk [vmem:[%s466 + $0xd0] sm:$0xff] %vm7025, %v6886
      %7053 = vst.msk [vmem:[%s466 + $0xd8] sm:$0xff] %vm7025, %v6888
      %7054 = vst.msk [vmem:[%s466 + $0xe0] sm:$0xff] %vm7025, %v6890
      %7055 = vst.msk [vmem:[%s466 + $0xe8] sm:$0xff] %vm7025, %v6892
      %7056 = vst.msk [vmem:[%s466 + $0xf0] sm:$0xff] %vm7025, %v6894
      %7057 = vst.msk [vmem:[%s466 + $0xf8] sm:$0xff] %vm7025, %v6896
      %7058 = vst.msk [vmem:[%s466 + $0x100] sm:$0xff] %vm7025, %v6898
      %7059 = vst.msk [vmem:[%s466 + $0x108] sm:$0xff] %vm7025, %v6900
      %7060 = vst.msk [vmem:[%s466 + $0x110] sm:$0xff] %vm7025, %v6902
      %7061 = vst.msk [vmem:[%s466 + $0x118] sm:$0xff] %vm7025, %v6904
      %7062 = vst.msk [vmem:[%s466 + $0x120] sm:$0xff] %vm7025, %v6906
      %7063 = vst.msk [vmem:[%s466 + $0x128] sm:$0xff] %vm7025, %v6908
      %7064 = vst.msk [vmem:[%s466 + $0x130] sm:$0xff] %vm7025, %v6910
      %7065 = vst.msk [vmem:[%s466 + $0x138] sm:$0xff] %vm7025, %v6912
      %7066 = vst.msk [vmem:[%s466 + $0x140] sm:$0xff] %vm7025, %v6914
      %7067 = vst.msk [vmem:[%s466 + $0x148] sm:$0xff] %vm7025, %v6916
      %7068 = vst.msk [vmem:[%s466 + $0x150] sm:$0xff] %vm7025, %v6918
      %7069 = vst.msk [vmem:[%s466 + $0x158] sm:$0xff] %vm7025, %v6920
      %7070 = vst.msk [vmem:[%s466 + $0x160] sm:$0xff] %vm7025, %v6922
      %7071 = vst.msk [vmem:[%s466 + $0x168] sm:$0xff] %vm7025, %v6924
      %7072 = vst.msk [vmem:[%s466 + $0x170] sm:$0xff] %vm7025, %v6926
      %7073 = vst.msk [vmem:[%s466 + $0x178] sm:$0xff] %vm7025, %v6928
      %7074 = vst.msk [vmem:[%s466 + $0x180] sm:$0xff] %vm7025, %v6930
      %7075 = vst.msk [vmem:[%s466 + $0x188] sm:$0xff] %vm7025, %v6932
      %7076 = vst.msk [vmem:[%s466 + $0x190] sm:$0xff] %vm7025, %v6934
      %7077 = vst.msk [vmem:[%s466 + $0x198] sm:$0xff] %vm7025, %v6936
      %7078 = vst.msk [vmem:[%s466 + $0x1a0] sm:$0xff] %vm7025, %v6938
      %7079 = vst.msk [vmem:[%s466 + $0x1a8] sm:$0xff] %vm7025, %v6940
      %7080 = vst.msk [vmem:[%s466 + $0x1b0] sm:$0xff] %vm7025, %v6942
      %7081 = vst.msk [vmem:[%s466 + $0x1b8] sm:$0xff] %vm7025, %v6944
      %7082 = vst.msk [vmem:[%s466 + $0x1c0] sm:$0xff] %vm7025, %v6946
      %7083 = vst.msk [vmem:[%s466 + $0x1c8] sm:$0xff] %vm7025, %v6948
      %7084 = vst.msk [vmem:[%s466 + $0x1d0] sm:$0xff] %vm7025, %v6950
      %7085 = vst.msk [vmem:[%s466 + $0x1d8] sm:$0xff] %vm7025, %v6952
      %7086 = vst.msk [vmem:[%s466 + $0x1e0] sm:$0xff] %vm7025, %v6954
      %7087 = vst.msk [vmem:[%s466 + $0x1e8] sm:$0xff] %vm7025, %v6956
      %7088 = vst.msk [vmem:[%s466 + $0x1f0] sm:$0xff] %vm7025, %v6958
      %7089 = vst.msk [vmem:[%s466 + $0x1f8] sm:$0xff] %vm7025, %v6960
      %s7090 = smul.u32 64, %s26
      %p7091 = scmp.lt.s32.totalorder %s7090, 127
      %s7092 = scalar_select %p7091, %s7090, 127
      %s7093 = smul.addr %s7092, 8
      %s7094 = scalar_lea.vmem %s13, %s7093
      // Predicated region
      $region73: #{tpu_custom_call.1} parent=71 // pred_check
        %p7095 = pneg %p327
      $region74: #{tpu_custom_call.1} parent=71 // pred_check_branch
        %7097 = sbr.rel (%p7095) target = $region76
      $region75: #{tpu_custom_call.1} parent=71 // pred_region
        %s7098 = smul.u32 64, %s26
      $region76: #{tpu_custom_call.1} parent=71 // pred_fallthru
        _
    $region72: #{tpu_custom_call.1} parent=5 // pred_fallthru
      _
    %p7099 = scmp.le.s32.totalorder 2, %s21
    // Predicated region
    $region77: #{tpu_custom_call.1} parent=5 // pred_check
      %p7100 = pneg %p7099
    $region78: #{tpu_custom_call.1} parent=5 // pred_check_branch
      %7102 = sbr.rel (%p7100) target = $region80
    $region79: #{tpu_custom_call.1} parent=5 // pred_region
      %s7103 = ssub.s32 %s21, 2
      // Predicated region
      $region81: #{tpu_custom_call.1} parent=79 // pred_check
        %p7104 = pneg %p333
      $region82: #{tpu_custom_call.1} parent=79 // pred_check_branch
        %7106 = sbr.rel (%p7104) target = $region84
      $region83: #{tpu_custom_call.1} parent=79 // pred_region
        %s7107 = smul.u32 64, %s27
        %p7108 = scmp.lt.s32.totalorder %s7107, 127
        %s7109 = scalar_select %p7108, %s7107, 127
        %s7110 = smul.addr %s7109, 8
        %s7111 = scalar_lea.vmem %s13, %s7110
      $region84: #{tpu_custom_call.1} parent=79 // pred_fallthru
        _
    $region80: #{tpu_custom_call.1} parent=5 // pred_fallthru
      _
  $region6: #{tpu_custom_call.1} parent=0 // loop_footer
    %s25 = sadd.s32 1, %s21
  $region7: #{tpu_custom_call.1} parent=0 // loop_footer_branch
    %20 = sbr.rel target = $region3
  $region8: #{tpu_custom_call.1} parent=0 // loop_exit
    _

</llo_original>
